<compile_context>
chip_gen: v6e
topology: v6e:2x2x1
jax: 0.10.0
libtpu: 0.0.40
codegen_flags: <defaults>
</compile_context>

<pallas_src>
import numpy as np
import jax
import jax.numpy as jnp
from jax import lax
from jax.experimental import pallas as pl
from jax.experimental.pallas import tpu as pltpu


# ----------------------------------------------------------------------------
# Kernel
# ----------------------------------------------------------------------------
def residual_block_kernel(x_ref, w1_ref, w2_ref, p_ref, o_ref):
    """One grid step processes `B` batch samples.

    x_ref  : (B, H, L)   input, L = W*C lanes (w-major, c-minor), f32
    w1_ref : (3, L, L)   conv1 banded weights (one per ky tap), f32 or bf16
    w2_ref : (3, L, L)   conv2 banded weights
    p_ref  : (6+G, L)    rows: b1, gamma1, beta1, b2, gamma2, beta2, group masks
    o_ref  : (B, H, L)   output, f32
    """
    B, H, L = x_ref.shape
    BH = B * H
    G = p_ref.shape[0] - 6
    inv_cnt = 1.0 / float(H * (L // G))      # 1 / (elements per sample per group)
    eps = 1e-5

    x2 = x_ref[...].reshape(BH, L)           # rows = (sample, image row)

    p = p_ref[...]
    b1, g1, be1 = p[0:1], p[1:2], p[2:3]     # (1, L) each
    b2, g2, be2 = p[3:4], p[4:5], p[5:6]
    gmask = p[6:6 + G]                       # (G, L) group-membership per lane

    # Per-row image-boundary masks, hoisted (shared by both convs).  Row i of the
    # folded (BH, L) slab is image row (i % H) of sample (i // H).
    row = lax.broadcasted_iota(jnp.int32, (BH, 1), 0)
    not_top = (row % H != 0).astype(jnp.float32)          # a row above exists
    not_bot = (row % H != (H - 1)).astype(jnp.float32)    # a row below exists

    def conv3x3(xin, w_ref, bias):
        # kx taps + horizontal zero padding are folded into the banded (L, L)
        # weights -> 3 MXU matmuls.  ky taps = sublane rolls on the XLU (free slot
        # next to the MXU/VPU) + boundary mask.  Cast each operand once; f32 acc.
        x_mid = xin.astype(w_ref.dtype)
        x_up = (pltpu.roll(xin, shift=1, axis=0) * not_top).astype(w_ref.dtype)
        x_dn = (pltpu.roll(xin, shift=BH - 1, axis=0) * not_bot).astype(w_ref.dtype)
        acc = jnp.dot(x_up, w_ref[0], preferred_element_type=jnp.float32)
        acc = acc + jnp.dot(x_mid, w_ref[1], preferred_element_type=jnp.float32)
        acc = acc + jnp.dot(x_dn, w_ref[2], preferred_element_type=jnp.float32)
        # TODO(synk): if MXU-bound, stack (x_up,x_mid,x_dn) into one (BH,3L)x(3L,L)
        # matmul and/or skip structurally-zero W-bands of the banded weight.
        return acc + bias

    def group_norm_relu(y2d, gamma, beta):
        # Single-pass moments E[x^2]-E[x]^2 in f32 (clamped at 0).
        # TODO(synk): two-pass / Welford variance if production activations are huge.
        y = y2d.reshape(B, H, L)
        s1 = jnp.sum(y, axis=1)                              # (B, L) per-lane sums
        s2 = jnp.sum(y * y, axis=1)
        gsum = jnp.sum(s1[:, None, :] * gmask[None], axis=-1, keepdims=True)  # (B,G,1)
        gsq = jnp.sum(s2[:, None, :] * gmask[None], axis=-1, keepdims=True)
        gmean = gsum * inv_cnt
        gvar = jnp.maximum(gsq * inv_cnt - gmean * gmean, 0.0)
        mean_l = jnp.sum(gmask[None] * gmean, axis=1)        # (B, L)
        rstd_l = lax.rsqrt(jnp.sum(gmask[None] * gvar, axis=1) + eps)
        yn = (y - mean_l[:, None, :]) * rstd_l[:, None, :] * gamma + beta
        return jnp.maximum(yn, 0.0).reshape(BH, L)

    y = group_norm_relu(conv3x3(x2, w1_ref, b1), g1, be1)
    y = group_norm_relu(conv3x3(y, w2_ref, b2), g2, be2)

    o_ref[...] = jnp.maximum(x2 + y, 0.0).reshape(B, H, L)   # lane-dense store


# ----------------------------------------------------------------------------
# Wrapper: layout conversion, banded-weight construction, param packing
# ----------------------------------------------------------------------------
def _banded_conv_weights(w, W, dtype):
    """PyTorch (Cout, Cin, 3, 3) conv weight -> (3, W*C, W*C) banded matrices.

    mats[ky][w'*Cin + cin, w*Cout + cout] = w[cout, cin, ky, kx] with w' = w + kx - 1;
    out-of-range (w', w) pairs get no entry, which implements the horizontal zero
    padding for free."""
    wk = jnp.transpose(w, (2, 3, 1, 0)).astype(jnp.float32)      # (3, 3, Cin, Cout)
    mats = []
    for ky in range(3):
        m = jnp.zeros((W * wk.shape[2], W * wk.shape[3]), jnp.float32)
        for kx in range(3):
            shift = jnp.eye(W, k=1 - kx, dtype=jnp.float32)      # S[w',w]=1 iff w=w'+1-kx
            m = m + jnp.kron(shift, wk[ky, kx])
        mats.append(m)
    return jnp.stack(mats, axis=0).astype(dtype)


def _pick_batch_tile(N, H):
    """Largest divisor of N with batch_tile*H <= 512 rows (fills the MXU M dim and
    amortizes per-step overhead) while keeping >= 2 grid steps when possible so the
    'parallel' batch axis still shards across both v7x TensorCores."""
    divisors = [d for d in range(1, N + 1) if N % d == 0]
    fits = [d for d in divisors if d * H <= 512] or [1]
    multi_step = [d for d in fits if N // d >= 2]
    return max(multi_step if multi_step else fits)


def residual_block_forward_packed(x_packed, params, *, compute_dtype=jnp.bfloat16,
                                  batch_tile=None):
    """Forward on the lane-dense layout: x_packed is (N, H, W*C) with lanes packed
    w-major / c-minor.  Keep consecutive ResidualBlocks in this layout (convert once
    at network entry/exit) to avoid repeated NCHW<->packed HBM passes."""
    N, H, L = x_packed.shape
    C = params["w1"].shape[0]                 # planes
    G = int(params["num_groups"])
    assert params["w1"].shape[1] == C, "stride=1 residual path requires in_planes == planes"
    assert L % C == 0
    W = L // C
    assert C % G == 0
    # Lane-dense / unmasked-store layout guarantees of this kernel:
    assert L % 128 == 0, f"W*C={L} must be a multiple of 128 (lane-dense vregs)"
    assert H % 8 == 0, f"H={H} must be a multiple of 8 (aligned sublane tiles)"

    if batch_tile is None:
        batch_tile = _pick_batch_tile(N, H)
    assert N % batch_tile == 0
    grid = (N // batch_tile,)

    w_itemsize = jnp.dtype(compute_dtype).itemsize
    w_bytes = 2 * 3 * L * L * w_itemsize      # both convs, one copy each
    if w_bytes > (24 << 20):
        # TODO(synk): tile the banded weight over output W-bands (2nd grid axis) or
        # switch to a C-contraction formulation for large C*W (v7x has only 64 MiB VMEM).
        raise NotImplementedError(
            f"banded conv weights need {w_bytes / 2**20:.1f} MiB VMEM; add W-band tiling")

    w1b = _banded_conv_weights(params["w1"], W, compute_dtype)
    w2b = _banded_conv_weights(params["w2"], W, compute_dtype)

    def lanes(v):                              # (C,) -> (L,), lane l holds channel l % C
        return jnp.tile(v.astype(jnp.float32).reshape(C), W)

    grp_of_lane = (np.arange(L) % C) // (C // G)
    gmask = (grp_of_lane[None, :] == np.arange(G)[:, None]).astype(np.float32)
    p_all = jnp.concatenate([
        jnp.stack([lanes(params["b1"]), lanes(params["gamma1"]), lanes(params["beta1"]),
                   lanes(params["b2"]), lanes(params["gamma2"]), lanes(params["beta2"])],
                  axis=0),
        jnp.asarray(gmask)], axis=0)           # (6 + G, L), one small input stream

    x = x_packed.astype(jnp.float32)

    # Tight-but-safe scoped VMEM: double-buffered x/out blocks, both conv weights
    # (budgeted double-buffered in case single-buffering is unavailable), packed
    # params, plus headroom for in-kernel f32 temporaries / spills.
    blk_bytes = batch_tile * H * L * 4
    vmem_limit = int(4 * blk_bytes + 2 * w_bytes + 2 * (6 + G) * L * 4
                     + 16 * blk_bytes + (4 << 20))
    vmem_limit = min(vmem_limit, 64 << 20)

    def call(single_buffer_consts):
        const_kw = {"pipeline_mode": pl.Buffered(1)} if single_buffer_consts else {}
        return pl.pallas_call(
            residual_block_kernel,
            out_shape=jax.ShapeDtypeStruct((N, H, L), jnp.float32),
            grid_spec=pltpu.PrefetchScalarGridSpec(
                num_scalar_prefetch=0,
                grid=grid,
                in_specs=[
                    pl.BlockSpec((batch_tile, H, L), lambda n: (n, 0, 0)),
                    pl.BlockSpec((3, L, L), lambda n: (0, 0, 0), **const_kw),
                    pl.BlockSpec((3, L, L), lambda n: (0, 0, 0), **const_kw),
                    pl.BlockSpec((6 + G, L), lambda n: (0, 0), **const_kw),
                ],
                out_specs=pl.BlockSpec((batch_tile, H, L), lambda n: (n, 0, 0)),
            ),
            compiler_params=pltpu.CompilerParams(
                dimension_semantics=("parallel",),   # batch axis shards across v7x TCs
                vmem_limit_bytes=vmem_limit),
        )(x, w1b, w2b, p_all)

    try:
        # Grid-invariant operands (weights / packed params) single-buffered.
        return call(True)
    except Exception:
        # pl.Buffered(1) rejected by this jax/libtpu combo: fall back to the default
        # double-buffered pipeline (costs ~w_bytes extra VMEM; semantics identical).
        return call(False)


def residual_block_forward(x_nchw, params, *, compute_dtype=jnp.bfloat16,
                           batch_tile=None):
    """NCHW convenience wrapper.  The NCHW <-> (N, H, W*C) conversions are full HBM
    read+write passes; in a real extractor keep activations packed across blocks and
    call residual_block_forward_packed directly."""
    N, Cin, H, W = x_nchw.shape
    C = params["w1"].shape[0]
    assert Cin == C, "stride=1 residual path requires in_planes == planes"
    x = jnp.transpose(x_nchw, (0, 2, 3, 1)).astype(jnp.float32).reshape(N, H, W * C)
    out = residual_block_forward_packed(x, params, compute_dtype=compute_dtype,
                                        batch_tile=batch_tile)
    return jnp.transpose(out.reshape(N, H, W, C), (0, 3, 1, 2))   # back to NCHW


# ----------------------------------------------------------------------------
# Plain-JAX reference (for correctness check)
# ----------------------------------------------------------------------------
def _conv3x3_ref(x, w, b):
    out = lax.conv_general_dilated(
        x, jnp.transpose(w, (2, 3, 1, 0)),
        window_strides=(1, 1), padding=((1, 1), (1, 1)),
        dimension_numbers=("NHWC", "HWIO", "NHWC"))
    return out + b.reshape(1, 1, 1, -1)


def _group_norm_ref(x, gamma, beta, num_groups, eps=1e-5):
    N, H, W, C = x.shape
    xg = x.reshape(N, H, W, num_groups, C // num_groups)
    mean = xg.mean(axis=(1, 2, 4), keepdims=True)
    var = xg.var(axis=(1, 2, 4), keepdims=True)
    xn = ((xg - mean) / jnp.sqrt(var + eps)).reshape(N, H, W, C)
    return xn * gamma.reshape(1, 1, 1, C) + beta.reshape(1, 1, 1, C)


def residual_block_ref(x_nchw, params):
    G = params["num_groups"]
    x = jnp.transpose(x_nchw, (0, 2, 3, 1)).astype(jnp.float32)
    y = jax.nn.relu(_group_norm_ref(
        _conv3x3_ref(x, params["w1"], params["b1"]),
        params["gamma1"], params["beta1"], G))
    y = jax.nn.relu(_group_norm_ref(
        _conv3x3_ref(y, params["w2"], params["b2"]),
        params["gamma2"], params["beta2"], G))
    out = jax.nn.relu(x + y)
    return jnp.transpose(out, (0, 3, 1, 2))


# ----------------------------------------------------------------------------
if __name__ == "__main__":
    key = jax.random.PRNGKey(0)
    N, C, H, W = 8, 16, 16, 16          # in_planes = planes = 16, stride = 1
    G = C // 8                          # GroupNorm num_groups = planes // 8

    keys = jax.random.split(key, 9)
    params = dict(
        w1=0.1 * jax.random.normal(keys[0], (C, C, 3, 3), jnp.float32),
        b1=0.1 * jax.random.normal(keys[1], (C,), jnp.float32),
        w2=0.1 * jax.random.normal(keys[2], (C, C, 3, 3), jnp.float32),
        b2=0.1 * jax.random.normal(keys[3], (C,), jnp.float32),
        gamma1=1.0 + 0.1 * jax.random.normal(keys[4], (C,), jnp.float32),
        beta1=0.1 * jax.random.normal(keys[5], (C,), jnp.float32),
        gamma2=1.0 + 0.1 * jax.random.normal(keys[6], (C,), jnp.float32),
        beta2=0.1 * jax.random.normal(keys[7], (C,), jnp.float32),
        num_groups=G,
    )
    x = jax.random.normal(keys[8], (N, C, H, W), jnp.float32)

    ref = jax.block_until_ready(residual_block_ref(x, params))

    # Exact-semantics f32 path.
    out_f32 = jax.block_until_ready(
        residual_block_forward(x, params, compute_dtype=jnp.float32))
    assert out_f32.shape == (N, C, H, W)
    np.testing.assert_allclose(np.asarray(out_f32), np.asarray(ref),
                               atol=1e-3, rtol=1e-3)

    # Default fast path: bf16 at the MXU on ALL generations (v5e's MXU is natively
    # bf16; GroupNorm / accumulation / residual stay f32).  Expect ~1e-2-level
    # deviation since GroupNorm statistics are computed from bf16-matmul outputs.
    out_bf16 = jax.block_until_ready(residual_block_forward(x, params))
    np.testing.assert_allclose(np.asarray(out_bf16), np.asarray(ref),
                               atol=5e-2, rtol=5e-2)

    print("KERNEL_OK")
</pallas_src>

<mosaic_0001>
module attributes {stable_mosaic.version = 11 : i64} {
  func.func @residual_block_kernel(%arg0: i32, %arg1: memref<4x16x256xf32, #tpu.memory_space<vmem>>, %arg2: memref<3x256x256xf32, #tpu.memory_space<vmem>>, %arg3: memref<3x256x256xf32, #tpu.memory_space<vmem>>, %arg4: memref<8x256xf32, #tpu.memory_space<vmem>>, %arg5: memref<4x16x256xf32, #tpu.memory_space<vmem>>) attributes {dimension_semantics = [#tpu.dimension_semantics<parallel>], iteration_bounds = array<i64: 2>, scalar_prefetch = 0 : i64, scratch_operands = 0 : i64, tpu.core_type = #tpu.core_type<tc>, window_params = [{transform_indices = @transform_0, window_bounds = array<i64: 4, 16, 256>}, {pipeline_mode = #tpu.pipeline_mode<synchronous>, transform_indices = @transform_1, window_bounds = array<i64: 3, 256, 256>}, {pipeline_mode = #tpu.pipeline_mode<synchronous>, transform_indices = @transform_2, window_bounds = array<i64: 3, 256, 256>}, {pipeline_mode = #tpu.pipeline_mode<synchronous>, transform_indices = @transform_3, window_bounds = array<i64: 8, 256>}, {transform_indices = @transform_4, window_bounds = array<i64: 4, 16, 256>}]} {
    %c0 = arith.constant 0 : index
    %c0_0 = arith.constant 0 : index
    %c0_1 = arith.constant 0 : index
    %0 = vector.load %arg1[%c0, %c0_0, %c0_1] : memref<4x16x256xf32, #tpu.memory_space<vmem>>, vector<4x16x256xf32>
    %1 = vector.shape_cast %0 : vector<4x16x256xf32> to vector<64x256xf32>
    %c0_2 = arith.constant 0 : index
    %c0_3 = arith.constant 0 : index
    %2 = vector.load %arg4[%c0_2, %c0_3] : memref<8x256xf32, #tpu.memory_space<vmem>>, vector<8x256xf32>
    %3 = vector.extract_strided_slice %2 {offsets = [0, 0], sizes = [1, 256], strides = [1, 1]} : vector<8x256xf32> to vector<1x256xf32>
    %4 = vector.extract_strided_slice %2 {offsets = [1, 0], sizes = [1, 256], strides = [1, 1]} : vector<8x256xf32> to vector<1x256xf32>
    %5 = vector.extract_strided_slice %2 {offsets = [2, 0], sizes = [1, 256], strides = [1, 1]} : vector<8x256xf32> to vector<1x256xf32>
    %6 = vector.extract_strided_slice %2 {offsets = [3, 0], sizes = [1, 256], strides = [1, 1]} : vector<8x256xf32> to vector<1x256xf32>
    %7 = vector.extract_strided_slice %2 {offsets = [4, 0], sizes = [1, 256], strides = [1, 1]} : vector<8x256xf32> to vector<1x256xf32>
    %8 = vector.extract_strided_slice %2 {offsets = [5, 0], sizes = [1, 256], strides = [1, 1]} : vector<8x256xf32> to vector<1x256xf32>
    %9 = vector.extract_strided_slice %2 {offsets = [6, 0], sizes = [2, 256], strides = [1, 1]} : vector<8x256xf32> to vector<2x256xf32>
    %10 = tpu.iota {dimensions = array<i32: 0>} : vector<64x1xi32>
    %c16_i32 = arith.constant 16 : i32
    %c0_i32 = arith.constant 0 : i32
    %11 = arith.cmpi eq, %c16_i32, %c0_i32 : i32
    %c1_i32 = arith.constant 1 : i32
    %12 = arith.select %11, %c1_i32, %c16_i32 : i32
    %13 = vector.broadcast %12 : i32 to vector<64x1xi32>
    %14 = arith.remsi %10, %13 : vector<64x1xi32>
    %c0_i32_4 = arith.constant 0 : i32
    %15 = vector.broadcast %c0_i32_4 : i32 to vector<64x1xi32>
    %16 = arith.cmpi ne, %14, %15 : vector<64x1xi32>
    %c0_i32_5 = arith.constant 0 : i32
    %17 = vector.broadcast %c0_i32_5 : i32 to vector<64x1xi32>
    %18 = arith.cmpi slt, %14, %17 : vector<64x1xi32>
    %c0_i32_6 = arith.constant 0 : i32
    %19 = arith.cmpi slt, %12, %c0_i32_6 : i32
    %20 = vector.broadcast %19 : i1 to vector<64x1xi1>
    %21 = vector.broadcast %20 : vector<64x1xi1> to vector<64x1xi1>
    %22 = arith.xori %18, %21 : vector<64x1xi1>
    %23 = arith.andi %22, %16 : vector<64x1xi1>
    %24 = vector.broadcast %12 : i32 to vector<64x1xi32>
    %25 = arith.addi %14, %24 : vector<64x1xi32>
    %26 = arith.select %23, %25, %14 : vector<64x1xi1>, vector<64x1xi32>
    %c0_i32_7 = arith.constant 0 : i32
    %27 = vector.broadcast %c0_i32_7 : i32 to vector<64x1xi32>
    %28 = arith.cmpi ne, %26, %27 : vector<64x1xi32>
    %29 = arith.extui %28 : vector<64x1xi1> to vector<64x1xi32>
    %30 = arith.sitofp %29 : vector<64x1xi32> to vector<64x1xf32>
    %c16_i32_8 = arith.constant 16 : i32
    %c0_i32_9 = arith.constant 0 : i32
    %31 = arith.cmpi eq, %c16_i32_8, %c0_i32_9 : i32
    %c1_i32_10 = arith.constant 1 : i32
    %32 = arith.select %31, %c1_i32_10, %c16_i32_8 : i32
    %33 = vector.broadcast %32 : i32 to vector<64x1xi32>
    %34 = arith.remsi %10, %33 : vector<64x1xi32>
    %c0_i32_11 = arith.constant 0 : i32
    %35 = vector.broadcast %c0_i32_11 : i32 to vector<64x1xi32>
    %36 = arith.cmpi ne, %34, %35 : vector<64x1xi32>
    %c0_i32_12 = arith.constant 0 : i32
    %37 = vector.broadcast %c0_i32_12 : i32 to vector<64x1xi32>
    %38 = arith.cmpi slt, %34, %37 : vector<64x1xi32>
    %c0_i32_13 = arith.constant 0 : i32
    %39 = arith.cmpi slt, %32, %c0_i32_13 : i32
    %40 = vector.broadcast %39 : i1 to vector<64x1xi1>
    %41 = vector.broadcast %40 : vector<64x1xi1> to vector<64x1xi1>
    %42 = arith.xori %38, %41 : vector<64x1xi1>
    %43 = arith.andi %42, %36 : vector<64x1xi1>
    %44 = vector.broadcast %32 : i32 to vector<64x1xi32>
    %45 = arith.addi %34, %44 : vector<64x1xi32>
    %46 = arith.select %43, %45, %34 : vector<64x1xi1>, vector<64x1xi32>
    %c15_i32 = arith.constant 15 : i32
    %47 = vector.broadcast %c15_i32 : i32 to vector<64x1xi32>
    %48 = arith.cmpi ne, %46, %47 : vector<64x1xi32>
    %49 = arith.extui %48 : vector<64x1xi1> to vector<64x1xi32>
    %50 = arith.sitofp %49 : vector<64x1xi32> to vector<64x1xf32>
    %c1_i32_14 = arith.constant 1 : i32
    %51 = tpu.dynamic_rotate %1 by %c1_i32_14 dim 0 : vector<64x256xf32>, i32 -> vector<64x256xf32>
    %52 = vector.broadcast %30 : vector<64x1xf32> to vector<64x256xf32>
    %53 = arith.mulf %51, %52 : vector<64x256xf32>
    %c63_i32 = arith.constant 63 : i32
    %54 = tpu.dynamic_rotate %1 by %c63_i32 dim 0 : vector<64x256xf32>, i32 -> vector<64x256xf32>
    %55 = vector.broadcast %50 : vector<64x1xf32> to vector<64x256xf32>
    %56 = arith.mulf %54, %55 : vector<64x256xf32>
    %c0_15 = arith.constant 0 : index
    %c0_16 = arith.constant 0 : index
    %c0_17 = arith.constant 0 : index
    %57 = vector.load %arg2[%c0_15, %c0_16, %c0_17] : memref<3x256x256xf32, #tpu.memory_space<vmem>>, vector<1x256x256xf32>
    %58 = vector.shape_cast %57 : vector<1x256x256xf32> to vector<256x256xf32>
    %cst = arith.constant dense<0.000000e+00> : vector<64x256xf32>
    %59 = tpu.matmul %53, %58, %cst {dimension_numbers = #tpu.dot_dimension_numbers<[1], [0], [0], [1], [0, 0, 1, 1], [], []>} : vector<64x256xf32>, vector<256x256xf32>, vector<64x256xf32> -> vector<64x256xf32>
    %c1 = arith.constant 1 : index
    %c0_18 = arith.constant 0 : index
    %c0_19 = arith.constant 0 : index
    %60 = vector.load %arg2[%c1, %c0_18, %c0_19] : memref<3x256x256xf32, #tpu.memory_space<vmem>>, vector<1x256x256xf32>
    %61 = vector.shape_cast %60 : vector<1x256x256xf32> to vector<256x256xf32>
    %cst_20 = arith.constant dense<0.000000e+00> : vector<64x256xf32>
    %62 = tpu.matmul %1, %61, %cst_20 {dimension_numbers = #tpu.dot_dimension_numbers<[1], [0], [0], [1], [0, 0, 1, 1], [], []>} : vector<64x256xf32>, vector<256x256xf32>, vector<64x256xf32> -> vector<64x256xf32>
    %63 = arith.addf %59, %62 : vector<64x256xf32>
    %c2 = arith.constant 2 : index
    %c0_21 = arith.constant 0 : index
    %c0_22 = arith.constant 0 : index
    %64 = vector.load %arg2[%c2, %c0_21, %c0_22] : memref<3x256x256xf32, #tpu.memory_space<vmem>>, vector<1x256x256xf32>
    %65 = vector.shape_cast %64 : vector<1x256x256xf32> to vector<256x256xf32>
    %cst_23 = arith.constant dense<0.000000e+00> : vector<64x256xf32>
    %66 = tpu.matmul %56, %65, %cst_23 {dimension_numbers = #tpu.dot_dimension_numbers<[1], [0], [0], [1], [0, 0, 1, 1], [], []>} : vector<64x256xf32>, vector<256x256xf32>, vector<64x256xf32> -> vector<64x256xf32>
    %67 = arith.addf %63, %66 : vector<64x256xf32>
    %68 = vector.broadcast %3 : vector<1x256xf32> to vector<64x256xf32>
    %69 = arith.addf %67, %68 : vector<64x256xf32>
    %70 = vector.shape_cast %69 : vector<64x256xf32> to vector<4x16x256xf32>
    %cst_24 = arith.constant dense<0.000000e+00> : vector<4x256xf32>
    %71 = vector.multi_reduction <add>, %70, %cst_24 [1] : vector<4x16x256xf32> to vector<4x256xf32>
    %72 = arith.mulf %70, %70 : vector<4x16x256xf32>
    %cst_25 = arith.constant dense<0.000000e+00> : vector<4x256xf32>
    %73 = vector.multi_reduction <add>, %72, %cst_25 [1] : vector<4x16x256xf32> to vector<4x256xf32>
    %74 = vector.shape_cast %71 : vector<4x256xf32> to vector<4x1x256xf32>
    %75 = vector.shape_cast %9 : vector<2x256xf32> to vector<1x2x256xf32>
    %76 = vector.broadcast %74 : vector<4x1x256xf32> to vector<4x2x256xf32>
    %77 = vector.broadcast %75 : vector<1x2x256xf32> to vector<4x2x256xf32>
    %78 = arith.mulf %76, %77 : vector<4x2x256xf32>
    %cst_26 = arith.constant dense<0.000000e+00> : vector<4x2xf32>
    %79 = vector.multi_reduction <add>, %78, %cst_26 [2] : vector<4x2x256xf32> to vector<4x2xf32>
    %80 = vector.shape_cast %79 : vector<4x2xf32> to vector<4x2x1xf32>
    %81 = vector.shape_cast %73 : vector<4x256xf32> to vector<4x1x256xf32>
    %82 = vector.shape_cast %9 : vector<2x256xf32> to vector<1x2x256xf32>
    %83 = vector.broadcast %81 : vector<4x1x256xf32> to vector<4x2x256xf32>
    %84 = vector.broadcast %82 : vector<1x2x256xf32> to vector<4x2x256xf32>
    %85 = arith.mulf %83, %84 : vector<4x2x256xf32>
    %cst_27 = arith.constant dense<0.000000e+00> : vector<4x2xf32>
    %86 = vector.multi_reduction <add>, %85, %cst_27 [2] : vector<4x2x256xf32> to vector<4x2xf32>
    %87 = vector.shape_cast %86 : vector<4x2xf32> to vector<4x2x1xf32>
    %cst_28 = arith.constant 4.8828125E-4 : f32
    %88 = vector.broadcast %cst_28 : f32 to vector<4x2x1xf32>
    %89 = arith.mulf %80, %88 : vector<4x2x1xf32>
    %cst_29 = arith.constant 4.8828125E-4 : f32
    %90 = vector.broadcast %cst_29 : f32 to vector<4x2x1xf32>
    %91 = arith.mulf %87, %90 : vector<4x2x1xf32>
    %92 = arith.mulf %89, %89 : vector<4x2x1xf32>
    %93 = arith.subf %91, %92 : vector<4x2x1xf32>
    %cst_30 = arith.constant 0.000000e+00 : f32
    %94 = vector.broadcast %cst_30 : f32 to vector<4x2x1xf32>
    %95 = arith.maximumf %93, %94 : vector<4x2x1xf32>
    %96 = vector.shape_cast %9 : vector<2x256xf32> to vector<1x2x256xf32>
    %97 = vector.broadcast %96 : vector<1x2x256xf32> to vector<4x2x256xf32>
    %98 = vector.broadcast %89 : vector<4x2x1xf32> to vector<4x2x256xf32>
    %99 = arith.mulf %97, %98 : vector<4x2x256xf32>
    %cst_31 = arith.constant dense<0.000000e+00> : vector<4x256xf32>
    %100 = vector.multi_reduction <add>, %99, %cst_31 [1] : vector<4x2x256xf32> to vector<4x256xf32>
    %101 = vector.shape_cast %9 : vector<2x256xf32> to vector<1x2x256xf32>
    %102 = vector.broadcast %101 : vector<1x2x256xf32> to vector<4x2x256xf32>
    %103 = vector.broadcast %95 : vector<4x2x1xf32> to vector<4x2x256xf32>
    %104 = arith.mulf %102, %103 : vector<4x2x256xf32>
    %cst_32 = arith.constant dense<0.000000e+00> : vector<4x256xf32>
    %105 = vector.multi_reduction <add>, %104, %cst_32 [1] : vector<4x2x256xf32> to vector<4x256xf32>
    %cst_33 = arith.constant 9.99999974E-6 : f32
    %106 = vector.broadcast %cst_33 : f32 to vector<4x256xf32>
    %107 = arith.addf %105, %106 : vector<4x256xf32>
    %108 = math.rsqrt %107 : vector<4x256xf32>
    %109 = vector.shape_cast %100 : vector<4x256xf32> to vector<4x1x256xf32>
    %110 = vector.broadcast %109 : vector<4x1x256xf32> to vector<4x16x256xf32>
    %111 = arith.subf %70, %110 : vector<4x16x256xf32>
    %112 = vector.shape_cast %108 : vector<4x256xf32> to vector<4x1x256xf32>
    %113 = vector.broadcast %112 : vector<4x1x256xf32> to vector<4x16x256xf32>
    %114 = arith.mulf %111, %113 : vector<4x16x256xf32>
    %115 = vector.shape_cast %4 : vector<1x256xf32> to vector<1x1x256xf32>
    %116 = vector.broadcast %115 : vector<1x1x256xf32> to vector<4x16x256xf32>
    %117 = arith.mulf %114, %116 : vector<4x16x256xf32>
    %118 = vector.shape_cast %5 : vector<1x256xf32> to vector<1x1x256xf32>
    %119 = vector.broadcast %118 : vector<1x1x256xf32> to vector<4x16x256xf32>
    %120 = arith.addf %117, %119 : vector<4x16x256xf32>
    %cst_34 = arith.constant 0.000000e+00 : f32
    %121 = vector.broadcast %cst_34 : f32 to vector<4x16x256xf32>
    %122 = arith.maximumf %120, %121 : vector<4x16x256xf32>
    %123 = vector.shape_cast %122 : vector<4x16x256xf32> to vector<64x256xf32>
    %c1_i32_35 = arith.constant 1 : i32
    %124 = tpu.dynamic_rotate %123 by %c1_i32_35 dim 0 : vector<64x256xf32>, i32 -> vector<64x256xf32>
    %125 = vector.broadcast %30 : vector<64x1xf32> to vector<64x256xf32>
    %126 = arith.mulf %124, %125 : vector<64x256xf32>
    %c63_i32_36 = arith.constant 63 : i32
    %127 = tpu.dynamic_rotate %123 by %c63_i32_36 dim 0 : vector<64x256xf32>, i32 -> vector<64x256xf32>
    %128 = vector.broadcast %50 : vector<64x1xf32> to vector<64x256xf32>
    %129 = arith.mulf %127, %128 : vector<64x256xf32>
    %c0_37 = arith.constant 0 : index
    %c0_38 = arith.constant 0 : index
    %c0_39 = arith.constant 0 : index
    %130 = vector.load %arg3[%c0_37, %c0_38, %c0_39] : memref<3x256x256xf32, #tpu.memory_space<vmem>>, vector<1x256x256xf32>
    %131 = vector.shape_cast %130 : vector<1x256x256xf32> to vector<256x256xf32>
    %cst_40 = arith.constant dense<0.000000e+00> : vector<64x256xf32>
    %132 = tpu.matmul %126, %131, %cst_40 {dimension_numbers = #tpu.dot_dimension_numbers<[1], [0], [0], [1], [0, 0, 1, 1], [], []>} : vector<64x256xf32>, vector<256x256xf32>, vector<64x256xf32> -> vector<64x256xf32>
    %c1_41 = arith.constant 1 : index
    %c0_42 = arith.constant 0 : index
    %c0_43 = arith.constant 0 : index
    %133 = vector.load %arg3[%c1_41, %c0_42, %c0_43] : memref<3x256x256xf32, #tpu.memory_space<vmem>>, vector<1x256x256xf32>
    %134 = vector.shape_cast %133 : vector<1x256x256xf32> to vector<256x256xf32>
    %cst_44 = arith.constant dense<0.000000e+00> : vector<64x256xf32>
    %135 = tpu.matmul %123, %134, %cst_44 {dimension_numbers = #tpu.dot_dimension_numbers<[1], [0], [0], [1], [0, 0, 1, 1], [], []>} : vector<64x256xf32>, vector<256x256xf32>, vector<64x256xf32> -> vector<64x256xf32>
    %136 = arith.addf %132, %135 : vector<64x256xf32>
    %c2_45 = arith.constant 2 : index
    %c0_46 = arith.constant 0 : index
    %c0_47 = arith.constant 0 : index
    %137 = vector.load %arg3[%c2_45, %c0_46, %c0_47] : memref<3x256x256xf32, #tpu.memory_space<vmem>>, vector<1x256x256xf32>
    %138 = vector.shape_cast %137 : vector<1x256x256xf32> to vector<256x256xf32>
    %cst_48 = arith.constant dense<0.000000e+00> : vector<64x256xf32>
    %139 = tpu.matmul %129, %138, %cst_48 {dimension_numbers = #tpu.dot_dimension_numbers<[1], [0], [0], [1], [0, 0, 1, 1], [], []>} : vector<64x256xf32>, vector<256x256xf32>, vector<64x256xf32> -> vector<64x256xf32>
    %140 = arith.addf %136, %139 : vector<64x256xf32>
    %141 = vector.broadcast %6 : vector<1x256xf32> to vector<64x256xf32>
    %142 = arith.addf %140, %141 : vector<64x256xf32>
    %143 = vector.shape_cast %142 : vector<64x256xf32> to vector<4x16x256xf32>
    %cst_49 = arith.constant dense<0.000000e+00> : vector<4x256xf32>
    %144 = vector.multi_reduction <add>, %143, %cst_49 [1] : vector<4x16x256xf32> to vector<4x256xf32>
    %145 = arith.mulf %143, %143 : vector<4x16x256xf32>
    %cst_50 = arith.constant dense<0.000000e+00> : vector<4x256xf32>
    %146 = vector.multi_reduction <add>, %145, %cst_50 [1] : vector<4x16x256xf32> to vector<4x256xf32>
    %147 = vector.shape_cast %144 : vector<4x256xf32> to vector<4x1x256xf32>
    %148 = vector.shape_cast %9 : vector<2x256xf32> to vector<1x2x256xf32>
    %149 = vector.broadcast %147 : vector<4x1x256xf32> to vector<4x2x256xf32>
    %150 = vector.broadcast %148 : vector<1x2x256xf32> to vector<4x2x256xf32>
    %151 = arith.mulf %149, %150 : vector<4x2x256xf32>
    %cst_51 = arith.constant dense<0.000000e+00> : vector<4x2xf32>
    %152 = vector.multi_reduction <add>, %151, %cst_51 [2] : vector<4x2x256xf32> to vector<4x2xf32>
    %153 = vector.shape_cast %152 : vector<4x2xf32> to vector<4x2x1xf32>
    %154 = vector.shape_cast %146 : vector<4x256xf32> to vector<4x1x256xf32>
    %155 = vector.shape_cast %9 : vector<2x256xf32> to vector<1x2x256xf32>
    %156 = vector.broadcast %154 : vector<4x1x256xf32> to vector<4x2x256xf32>
    %157 = vector.broadcast %155 : vector<1x2x256xf32> to vector<4x2x256xf32>
    %158 = arith.mulf %156, %157 : vector<4x2x256xf32>
    %cst_52 = arith.constant dense<0.000000e+00> : vector<4x2xf32>
    %159 = vector.multi_reduction <add>, %158, %cst_52 [2] : vector<4x2x256xf32> to vector<4x2xf32>
    %160 = vector.shape_cast %159 : vector<4x2xf32> to vector<4x2x1xf32>
    %cst_53 = arith.constant 4.8828125E-4 : f32
    %161 = vector.broadcast %cst_53 : f32 to vector<4x2x1xf32>
    %162 = arith.mulf %153, %161 : vector<4x2x1xf32>
    %cst_54 = arith.constant 4.8828125E-4 : f32
    %163 = vector.broadcast %cst_54 : f32 to vector<4x2x1xf32>
    %164 = arith.mulf %160, %163 : vector<4x2x1xf32>
    %165 = arith.mulf %162, %162 : vector<4x2x1xf32>
    %166 = arith.subf %164, %165 : vector<4x2x1xf32>
    %cst_55 = arith.constant 0.000000e+00 : f32
    %167 = vector.broadcast %cst_55 : f32 to vector<4x2x1xf32>
    %168 = arith.maximumf %166, %167 : vector<4x2x1xf32>
    %169 = vector.shape_cast %9 : vector<2x256xf32> to vector<1x2x256xf32>
    %170 = vector.broadcast %169 : vector<1x2x256xf32> to vector<4x2x256xf32>
    %171 = vector.broadcast %162 : vector<4x2x1xf32> to vector<4x2x256xf32>
    %172 = arith.mulf %170, %171 : vector<4x2x256xf32>
    %cst_56 = arith.constant dense<0.000000e+00> : vector<4x256xf32>
    %173 = vector.multi_reduction <add>, %172, %cst_56 [1] : vector<4x2x256xf32> to vector<4x256xf32>
    %174 = vector.shape_cast %9 : vector<2x256xf32> to vector<1x2x256xf32>
    %175 = vector.broadcast %174 : vector<1x2x256xf32> to vector<4x2x256xf32>
    %176 = vector.broadcast %168 : vector<4x2x1xf32> to vector<4x2x256xf32>
    %177 = arith.mulf %175, %176 : vector<4x2x256xf32>
    %cst_57 = arith.constant dense<0.000000e+00> : vector<4x256xf32>
    %178 = vector.multi_reduction <add>, %177, %cst_57 [1] : vector<4x2x256xf32> to vector<4x256xf32>
    %cst_58 = arith.constant 9.99999974E-6 : f32
    %179 = vector.broadcast %cst_58 : f32 to vector<4x256xf32>
    %180 = arith.addf %178, %179 : vector<4x256xf32>
    %181 = math.rsqrt %180 : vector<4x256xf32>
    %182 = vector.shape_cast %173 : vector<4x256xf32> to vector<4x1x256xf32>
    %183 = vector.broadcast %182 : vector<4x1x256xf32> to vector<4x16x256xf32>
    %184 = arith.subf %143, %183 : vector<4x16x256xf32>
    %185 = vector.shape_cast %181 : vector<4x256xf32> to vector<4x1x256xf32>
    %186 = vector.broadcast %185 : vector<4x1x256xf32> to vector<4x16x256xf32>
    %187 = arith.mulf %184, %186 : vector<4x16x256xf32>
    %188 = vector.shape_cast %7 : vector<1x256xf32> to vector<1x1x256xf32>
    %189 = vector.broadcast %188 : vector<1x1x256xf32> to vector<4x16x256xf32>
    %190 = arith.mulf %187, %189 : vector<4x16x256xf32>
    %191 = vector.shape_cast %8 : vector<1x256xf32> to vector<1x1x256xf32>
    %192 = vector.broadcast %191 : vector<1x1x256xf32> to vector<4x16x256xf32>
    %193 = arith.addf %190, %192 : vector<4x16x256xf32>
    %cst_59 = arith.constant 0.000000e+00 : f32
    %194 = vector.broadcast %cst_59 : f32 to vector<4x16x256xf32>
    %195 = arith.maximumf %193, %194 : vector<4x16x256xf32>
    %196 = vector.shape_cast %195 : vector<4x16x256xf32> to vector<64x256xf32>
    %197 = arith.addf %1, %196 : vector<64x256xf32>
    %cst_60 = arith.constant 0.000000e+00 : f32
    %198 = vector.broadcast %cst_60 : f32 to vector<64x256xf32>
    %199 = arith.maximumf %197, %198 : vector<64x256xf32>
    %200 = vector.shape_cast %199 : vector<64x256xf32> to vector<4x16x256xf32>
    %c0_61 = arith.constant 0 : index
    %c0_62 = arith.constant 0 : index
    %c0_63 = arith.constant 0 : index
    %201 = vector.load %arg5[%c0_61, %c0_62, %c0_63] : memref<4x16x256xf32, #tpu.memory_space<vmem>>, vector<4x16x256xf32>
    tpu.vector_store %arg5[%c0_61, %c0_62, %c0_63], %200 {strides = array<i32>} : memref<4x16x256xf32, #tpu.memory_space<vmem>>, vector<4x16x256xf32>,
    return
  }
  func.func @transform_0(%arg0: i32) -> (i32, i32, i32) {
    %c0_i32 = arith.constant 0 : i32
    %c0_i32_0 = arith.constant 0 : i32
    %c0_i32_1 = arith.constant 0 : i32
    return %arg0, %c0_i32, %c0_i32_0 : i32, i32, i32
  }
  func.func @transform_1(%arg0: i32) -> (i32, i32, i32) {
    %c0_i32 = arith.constant 0 : i32
    %c0_i32_0 = arith.constant 0 : i32
    %c0_i32_1 = arith.constant 0 : i32
    %c0_i32_2 = arith.constant 0 : i32
    return %c0_i32, %c0_i32_0, %c0_i32_1 : i32, i32, i32
  }
  func.func @transform_2(%arg0: i32) -> (i32, i32, i32) {
    %c0_i32 = arith.constant 0 : i32
    %c0_i32_0 = arith.constant 0 : i32
    %c0_i32_1 = arith.constant 0 : i32
    %c0_i32_2 = arith.constant 0 : i32
    return %c0_i32, %c0_i32_0, %c0_i32_1 : i32, i32, i32
  }
  func.func @transform_3(%arg0: i32) -> (i32, i32) {
    %c0_i32 = arith.constant 0 : i32
    %c0_i32_0 = arith.constant 0 : i32
    %c0_i32_1 = arith.constant 0 : i32
    return %c0_i32, %c0_i32_0 : i32, i32
  }
  func.func @transform_4(%arg0: i32) -> (i32, i32, i32) {
    %c0_i32 = arith.constant 0 : i32
    %c0_i32_0 = arith.constant 0 : i32
    %c0_i32_1 = arith.constant 0 : i32
    return %arg0, %c0_i32, %c0_i32_0 : i32, i32, i32
  }
}

module attributes {stable_mosaic.version = 11 : i64} {
  func.func @residual_block_kernel(%arg0: i32, %arg1: memref<4x16x256xf32, #tpu.memory_space<vmem>>, %arg2: memref<3x256x256xf32, #tpu.memory_space<vmem>>, %arg3: memref<3x256x256xf32, #tpu.memory_space<vmem>>, %arg4: memref<8x256xf32, #tpu.memory_space<vmem>>, %arg5: memref<4x16x256xf32, #tpu.memory_space<vmem>>) attributes {dimension_semantics = [#tpu.dimension_semantics<parallel>], iteration_bounds = array<i64: 2>, scalar_prefetch = 0 : i64, scratch_operands = 0 : i64, tpu.core_type = #tpu.core_type<tc>, window_params = [{transform_indices = @transform_0, window_bounds = array<i64: 4, 16, 256>}, {pipeline_mode = #tpu.pipeline_mode<synchronous>, transform_indices = @transform_1, window_bounds = array<i64: 3, 256, 256>}, {pipeline_mode = #tpu.pipeline_mode<synchronous>, transform_indices = @transform_2, window_bounds = array<i64: 3, 256, 256>}, {pipeline_mode = #tpu.pipeline_mode<synchronous>, transform_indices = @transform_3, window_bounds = array<i64: 8, 256>}, {transform_indices = @transform_4, window_bounds = array<i64: 4, 16, 256>}]} {
    %c0 = arith.constant 0 : index
    %c0_0 = arith.constant 0 : index
    %c0_1 = arith.constant 0 : index
    %0 = vector.load %arg1[%c0, %c0_0, %c0_1] : memref<4x16x256xf32, #tpu.memory_space<vmem>>, vector<4x16x256xf32>
    %1 = vector.shape_cast %0 : vector<4x16x256xf32> to vector<64x256xf32>
    %c0_2 = arith.constant 0 : index
    %c0_3 = arith.constant 0 : index
    %2 = vector.load %arg4[%c0_2, %c0_3] : memref<8x256xf32, #tpu.memory_space<vmem>>, vector<8x256xf32>
    %3 = vector.extract_strided_slice %2 {offsets = [0, 0], sizes = [1, 256], strides = [1, 1]} : vector<8x256xf32> to vector<1x256xf32>
    %4 = vector.extract_strided_slice %2 {offsets = [1, 0], sizes = [1, 256], strides = [1, 1]} : vector<8x256xf32> to vector<1x256xf32>
    %5 = vector.extract_strided_slice %2 {offsets = [2, 0], sizes = [1, 256], strides = [1, 1]} : vector<8x256xf32> to vector<1x256xf32>
    %6 = vector.extract_strided_slice %2 {offsets = [3, 0], sizes = [1, 256], strides = [1, 1]} : vector<8x256xf32> to vector<1x256xf32>
    %7 = vector.extract_strided_slice %2 {offsets = [4, 0], sizes = [1, 256], strides = [1, 1]} : vector<8x256xf32> to vector<1x256xf32>
    %8 = vector.extract_strided_slice %2 {offsets = [5, 0], sizes = [1, 256], strides = [1, 1]} : vector<8x256xf32> to vector<1x256xf32>
    %9 = vector.extract_strided_slice %2 {offsets = [6, 0], sizes = [2, 256], strides = [1, 1]} : vector<8x256xf32> to vector<2x256xf32>
    %10 = tpu.iota {dimensions = array<i32: 0>} : vector<64x1xi32>
    %c16_i32 = arith.constant 16 : i32
    %c0_i32 = arith.constant 0 : i32
    %11 = arith.cmpi eq, %c16_i32, %c0_i32 : i32
    %c1_i32 = arith.constant 1 : i32
    %12 = arith.select %11, %c1_i32, %c16_i32 : i32
    %13 = vector.broadcast %12 : i32 to vector<64x1xi32>
    %14 = arith.remsi %10, %13 : vector<64x1xi32>
    %c0_i32_4 = arith.constant 0 : i32
    %15 = vector.broadcast %c0_i32_4 : i32 to vector<64x1xi32>
    %16 = arith.cmpi ne, %14, %15 : vector<64x1xi32>
    %c0_i32_5 = arith.constant 0 : i32
    %17 = vector.broadcast %c0_i32_5 : i32 to vector<64x1xi32>
    %18 = arith.cmpi slt, %14, %17 : vector<64x1xi32>
    %c0_i32_6 = arith.constant 0 : i32
    %19 = arith.cmpi slt, %12, %c0_i32_6 : i32
    %20 = vector.broadcast %19 : i1 to vector<64x1xi1>
    %21 = vector.broadcast %20 : vector<64x1xi1> to vector<64x1xi1>
    %22 = arith.xori %18, %21 : vector<64x1xi1>
    %23 = arith.andi %22, %16 : vector<64x1xi1>
    %24 = vector.broadcast %12 : i32 to vector<64x1xi32>
    %25 = arith.addi %14, %24 : vector<64x1xi32>
    %26 = arith.select %23, %25, %14 : vector<64x1xi1>, vector<64x1xi32>
    %c0_i32_7 = arith.constant 0 : i32
    %27 = vector.broadcast %c0_i32_7 : i32 to vector<64x1xi32>
    %28 = arith.cmpi ne, %26, %27 : vector<64x1xi32>
    %29 = arith.extui %28 : vector<64x1xi1> to vector<64x1xi32>
    %30 = arith.sitofp %29 : vector<64x1xi32> to vector<64x1xf32>
    %c16_i32_8 = arith.constant 16 : i32
    %c0_i32_9 = arith.constant 0 : i32
    %31 = arith.cmpi eq, %c16_i32_8, %c0_i32_9 : i32
    %c1_i32_10 = arith.constant 1 : i32
    %32 = arith.select %31, %c1_i32_10, %c16_i32_8 : i32
    %33 = vector.broadcast %32 : i32 to vector<64x1xi32>
    %34 = arith.remsi %10, %33 : vector<64x1xi32>
    %c0_i32_11 = arith.constant 0 : i32
    %35 = vector.broadcast %c0_i32_11 : i32 to vector<64x1xi32>
    %36 = arith.cmpi ne, %34, %35 : vector<64x1xi32>
    %c0_i32_12 = arith.constant 0 : i32
    %37 = vector.broadcast %c0_i32_12 : i32 to vector<64x1xi32>
    %38 = arith.cmpi slt, %34, %37 : vector<64x1xi32>
    %c0_i32_13 = arith.constant 0 : i32
    %39 = arith.cmpi slt, %32, %c0_i32_13 : i32
    %40 = vector.broadcast %39 : i1 to vector<64x1xi1>
    %41 = vector.broadcast %40 : vector<64x1xi1> to vector<64x1xi1>
    %42 = arith.xori %38, %41 : vector<64x1xi1>
    %43 = arith.andi %42, %36 : vector<64x1xi1>
    %44 = vector.broadcast %32 : i32 to vector<64x1xi32>
    %45 = arith.addi %34, %44 : vector<64x1xi32>
    %46 = arith.select %43, %45, %34 : vector<64x1xi1>, vector<64x1xi32>
    %c15_i32 = arith.constant 15 : i32
    %47 = vector.broadcast %c15_i32 : i32 to vector<64x1xi32>
    %48 = arith.cmpi ne, %46, %47 : vector<64x1xi32>
    %49 = arith.extui %48 : vector<64x1xi1> to vector<64x1xi32>
    %50 = arith.sitofp %49 : vector<64x1xi32> to vector<64x1xf32>
    %c1_i32_14 = arith.constant 1 : i32
    %51 = tpu.dynamic_rotate %1 by %c1_i32_14 dim 0 : vector<64x256xf32>, i32 -> vector<64x256xf32>
    %52 = vector.broadcast %30 : vector<64x1xf32> to vector<64x256xf32>
    %53 = arith.mulf %51, %52 : vector<64x256xf32>
    %c63_i32 = arith.constant 63 : i32
    %54 = tpu.dynamic_rotate %1 by %c63_i32 dim 0 : vector<64x256xf32>, i32 -> vector<64x256xf32>
    %55 = vector.broadcast %50 : vector<64x1xf32> to vector<64x256xf32>
    %56 = arith.mulf %54, %55 : vector<64x256xf32>
    %c0_15 = arith.constant 0 : index
    %c0_16 = arith.constant 0 : index
    %c0_17 = arith.constant 0 : index
    %57 = vector.load %arg2[%c0_15, %c0_16, %c0_17] : memref<3x256x256xf32, #tpu.memory_space<vmem>>, vector<1x256x256xf32>
    %58 = vector.shape_cast %57 : vector<1x256x256xf32> to vector<256x256xf32>
    %cst = arith.constant dense<0.000000e+00> : vector<64x256xf32>
    %59 = tpu.matmul %53, %58, %cst {dimension_numbers = #tpu.dot_dimension_numbers<[1], [0], [0], [1], [0, 0, 1, 1], [], []>} : vector<64x256xf32>, vector<256x256xf32>, vector<64x256xf32> -> vector<64x256xf32>
    %c1 = arith.constant 1 : index
    %c0_18 = arith.constant 0 : index
    %c0_19 = arith.constant 0 : index
    %60 = vector.load %arg2[%c1, %c0_18, %c0_19] : memref<3x256x256xf32, #tpu.memory_space<vmem>>, vector<1x256x256xf32>
    %61 = vector.shape_cast %60 : vector<1x256x256xf32> to vector<256x256xf32>
    %cst_20 = arith.constant dense<0.000000e+00> : vector<64x256xf32>
    %62 = tpu.matmul %1, %61, %cst_20 {dimension_numbers = #tpu.dot_dimension_numbers<[1], [0], [0], [1], [0, 0, 1, 1], [], []>} : vector<64x256xf32>, vector<256x256xf32>, vector<64x256xf32> -> vector<64x256xf32>
    %63 = arith.addf %59, %62 : vector<64x256xf32>
    %c2 = arith.constant 2 : index
    %c0_21 = arith.constant 0 : index
    %c0_22 = arith.constant 0 : index
    %64 = vector.load %arg2[%c2, %c0_21, %c0_22] : memref<3x256x256xf32, #tpu.memory_space<vmem>>, vector<1x256x256xf32>
    %65 = vector.shape_cast %64 : vector<1x256x256xf32> to vector<256x256xf32>
    %cst_23 = arith.constant dense<0.000000e+00> : vector<64x256xf32>
    %66 = tpu.matmul %56, %65, %cst_23 {dimension_numbers = #tpu.dot_dimension_numbers<[1], [0], [0], [1], [0, 0, 1, 1], [], []>} : vector<64x256xf32>, vector<256x256xf32>, vector<64x256xf32> -> vector<64x256xf32>
    %67 = arith.addf %63, %66 : vector<64x256xf32>
    %68 = vector.broadcast %3 : vector<1x256xf32> to vector<64x256xf32>
    %69 = arith.addf %67, %68 : vector<64x256xf32>
    %70 = vector.shape_cast %69 : vector<64x256xf32> to vector<4x16x256xf32>
    %cst_24 = arith.constant dense<0.000000e+00> : vector<4x256xf32>
    %71 = vector.multi_reduction <add>, %70, %cst_24 [1] : vector<4x16x256xf32> to vector<4x256xf32>
    %72 = arith.mulf %70, %70 : vector<4x16x256xf32>
    %cst_25 = arith.constant dense<0.000000e+00> : vector<4x256xf32>
    %73 = vector.multi_reduction <add>, %72, %cst_25 [1] : vector<4x16x256xf32> to vector<4x256xf32>
    %74 = vector.shape_cast %71 : vector<4x256xf32> to vector<4x1x256xf32>
    %75 = vector.shape_cast %9 : vector<2x256xf32> to vector<1x2x256xf32>
    %76 = vector.broadcast %74 : vector<4x1x256xf32> to vector<4x2x256xf32>
    %77 = vector.broadcast %75 : vector<1x2x256xf32> to vector<4x2x256xf32>
    %78 = arith.mulf %76, %77 : vector<4x2x256xf32>
    %cst_26 = arith.constant dense<0.000000e+00> : vector<4x2xf32>
    %79 = vector.multi_reduction <add>, %78, %cst_26 [2] : vector<4x2x256xf32> to vector<4x2xf32>
    %80 = vector.shape_cast %79 : vector<4x2xf32> to vector<4x2x1xf32>
    %81 = vector.shape_cast %73 : vector<4x256xf32> to vector<4x1x256xf32>
    %82 = vector.shape_cast %9 : vector<2x256xf32> to vector<1x2x256xf32>
    %83 = vector.broadcast %81 : vector<4x1x256xf32> to vector<4x2x256xf32>
    %84 = vector.broadcast %82 : vector<1x2x256xf32> to vector<4x2x256xf32>
    %85 = arith.mulf %83, %84 : vector<4x2x256xf32>
    %cst_27 = arith.constant dense<0.000000e+00> : vector<4x2xf32>
    %86 = vector.multi_reduction <add>, %85, %cst_27 [2] : vector<4x2x256xf32> to vector<4x2xf32>
    %87 = vector.shape_cast %86 : vector<4x2xf32> to vector<4x2x1xf32>
    %cst_28 = arith.constant 4.8828125E-4 : f32
    %88 = vector.broadcast %cst_28 : f32 to vector<4x2x1xf32>
    %89 = arith.mulf %80, %88 : vector<4x2x1xf32>
    %cst_29 = arith.constant 4.8828125E-4 : f32
    %90 = vector.broadcast %cst_29 : f32 to vector<4x2x1xf32>
    %91 = arith.mulf %87, %90 : vector<4x2x1xf32>
    %92 = arith.mulf %89, %89 : vector<4x2x1xf32>
    %93 = arith.subf %91, %92 : vector<4x2x1xf32>
    %cst_30 = arith.constant 0.000000e+00 : f32
    %94 = vector.broadcast %cst_30 : f32 to vector<4x2x1xf32>
    %95 = arith.maximumf %93, %94 : vector<4x2x1xf32>
    %96 = vector.shape_cast %9 : vector<2x256xf32> to vector<1x2x256xf32>
    %97 = vector.broadcast %96 : vector<1x2x256xf32> to vector<4x2x256xf32>
    %98 = vector.broadcast %89 : vector<4x2x1xf32> to vector<4x2x256xf32>
    %99 = arith.mulf %97, %98 : vector<4x2x256xf32>
    %cst_31 = arith.constant dense<0.000000e+00> : vector<4x256xf32>
    %100 = vector.multi_reduction <add>, %99, %cst_31 [1] : vector<4x2x256xf32> to vector<4x256xf32>
    %101 = vector.shape_cast %9 : vector<2x256xf32> to vector<1x2x256xf32>
    %102 = vector.broadcast %101 : vector<1x2x256xf32> to vector<4x2x256xf32>
    %103 = vector.broadcast %95 : vector<4x2x1xf32> to vector<4x2x256xf32>
    %104 = arith.mulf %102, %103 : vector<4x2x256xf32>
    %cst_32 = arith.constant dense<0.000000e+00> : vector<4x256xf32>
    %105 = vector.multi_reduction <add>, %104, %cst_32 [1] : vector<4x2x256xf32> to vector<4x256xf32>
    %cst_33 = arith.constant 9.99999974E-6 : f32
    %106 = vector.broadcast %cst_33 : f32 to vector<4x256xf32>
    %107 = arith.addf %105, %106 : vector<4x256xf32>
    %108 = math.rsqrt %107 : vector<4x256xf32>
    %109 = vector.shape_cast %100 : vector<4x256xf32> to vector<4x1x256xf32>
    %110 = vector.broadcast %109 : vector<4x1x256xf32> to vector<4x16x256xf32>
    %111 = arith.subf %70, %110 : vector<4x16x256xf32>
    %112 = vector.shape_cast %108 : vector<4x256xf32> to vector<4x1x256xf32>
    %113 = vector.broadcast %112 : vector<4x1x256xf32> to vector<4x16x256xf32>
    %114 = arith.mulf %111, %113 : vector<4x16x256xf32>
    %115 = vector.shape_cast %4 : vector<1x256xf32> to vector<1x1x256xf32>
    %116 = vector.broadcast %115 : vector<1x1x256xf32> to vector<4x16x256xf32>
    %117 = arith.mulf %114, %116 : vector<4x16x256xf32>
    %118 = vector.shape_cast %5 : vector<1x256xf32> to vector<1x1x256xf32>
    %119 = vector.broadcast %118 : vector<1x1x256xf32> to vector<4x16x256xf32>
    %120 = arith.addf %117, %119 : vector<4x16x256xf32>
    %cst_34 = arith.constant 0.000000e+00 : f32
    %121 = vector.broadcast %cst_34 : f32 to vector<4x16x256xf32>
    %122 = arith.maximumf %120, %121 : vector<4x16x256xf32>
    %123 = vector.shape_cast %122 : vector<4x16x256xf32> to vector<64x256xf32>
    %c1_i32_35 = arith.constant 1 : i32
    %124 = tpu.dynamic_rotate %123 by %c1_i32_35 dim 0 : vector<64x256xf32>, i32 -> vector<64x256xf32>
    %125 = vector.broadcast %30 : vector<64x1xf32> to vector<64x256xf32>
    %126 = arith.mulf %124, %125 : vector<64x256xf32>
    %c63_i32_36 = arith.constant 63 : i32
    %127 = tpu.dynamic_rotate %123 by %c63_i32_36 dim 0 : vector<64x256xf32>, i32 -> vector<64x256xf32>
    %128 = vector.broadcast %50 : vector<64x1xf32> to vector<64x256xf32>
    %129 = arith.mulf %127, %128 : vector<64x256xf32>
    %c0_37 = arith.constant 0 : index
    %c0_38 = arith.constant 0 : index
    %c0_39 = arith.constant 0 : index
    %130 = vector.load %arg3[%c0_37, %c0_38, %c0_39] : memref<3x256x256xf32, #tpu.memory_space<vmem>>, vector<1x256x256xf32>
    %131 = vector.shape_cast %130 : vector<1x256x256xf32> to vector<256x256xf32>
    %cst_40 = arith.constant dense<0.000000e+00> : vector<64x256xf32>
    %132 = tpu.matmul %126, %131, %cst_40 {dimension_numbers = #tpu.dot_dimension_numbers<[1], [0], [0], [1], [0, 0, 1, 1], [], []>} : vector<64x256xf32>, vector<256x256xf32>, vector<64x256xf32> -> vector<64x256xf32>
    %c1_41 = arith.constant 1 : index
    %c0_42 = arith.constant 0 : index
    %c0_43 = arith.constant 0 : index
    %133 = vector.load %arg3[%c1_41, %c0_42, %c0_43] : memref<3x256x256xf32, #tpu.memory_space<vmem>>, vector<1x256x256xf32>
    %134 = vector.shape_cast %133 : vector<1x256x256xf32> to vector<256x256xf32>
    %cst_44 = arith.constant dense<0.000000e+00> : vector<64x256xf32>
    %135 = tpu.matmul %123, %134, %cst_44 {dimension_numbers = #tpu.dot_dimension_numbers<[1], [0], [0], [1], [0, 0, 1, 1], [], []>} : vector<64x256xf32>, vector<256x256xf32>, vector<64x256xf32> -> vector<64x256xf32>
    %136 = arith.addf %132, %135 : vector<64x256xf32>
    %c2_45 = arith.constant 2 : index
    %c0_46 = arith.constant 0 : index
    %c0_47 = arith.constant 0 : index
    %137 = vector.load %arg3[%c2_45, %c0_46, %c0_47] : memref<3x256x256xf32, #tpu.memory_space<vmem>>, vector<1x256x256xf32>
    %138 = vector.shape_cast %137 : vector<1x256x256xf32> to vector<256x256xf32>
    %cst_48 = arith.constant dense<0.000000e+00> : vector<64x256xf32>
    %139 = tpu.matmul %129, %138, %cst_48 {dimension_numbers = #tpu.dot_dimension_numbers<[1], [0], [0], [1], [0, 0, 1, 1], [], []>} : vector<64x256xf32>, vector<256x256xf32>, vector<64x256xf32> -> vector<64x256xf32>
    %140 = arith.addf %136, %139 : vector<64x256xf32>
    %141 = vector.broadcast %6 : vector<1x256xf32> to vector<64x256xf32>
    %142 = arith.addf %140, %141 : vector<64x256xf32>
    %143 = vector.shape_cast %142 : vector<64x256xf32> to vector<4x16x256xf32>
    %cst_49 = arith.constant dense<0.000000e+00> : vector<4x256xf32>
    %144 = vector.multi_reduction <add>, %143, %cst_49 [1] : vector<4x16x256xf32> to vector<4x256xf32>
    %145 = arith.mulf %143, %143 : vector<4x16x256xf32>
    %cst_50 = arith.constant dense<0.000000e+00> : vector<4x256xf32>
    %146 = vector.multi_reduction <add>, %145, %cst_50 [1] : vector<4x16x256xf32> to vector<4x256xf32>
    %147 = vector.shape_cast %144 : vector<4x256xf32> to vector<4x1x256xf32>
    %148 = vector.shape_cast %9 : vector<2x256xf32> to vector<1x2x256xf32>
    %149 = vector.broadcast %147 : vector<4x1x256xf32> to vector<4x2x256xf32>
    %150 = vector.broadcast %148 : vector<1x2x256xf32> to vector<4x2x256xf32>
    %151 = arith.mulf %149, %150 : vector<4x2x256xf32>
    %cst_51 = arith.constant dense<0.000000e+00> : vector<4x2xf32>
    %152 = vector.multi_reduction <add>, %151, %cst_51 [2] : vector<4x2x256xf32> to vector<4x2xf32>
    %153 = vector.shape_cast %152 : vector<4x2xf32> to vector<4x2x1xf32>
    %154 = vector.shape_cast %146 : vector<4x256xf32> to vector<4x1x256xf32>
    %155 = vector.shape_cast %9 : vector<2x256xf32> to vector<1x2x256xf32>
    %156 = vector.broadcast %154 : vector<4x1x256xf32> to vector<4x2x256xf32>
    %157 = vector.broadcast %155 : vector<1x2x256xf32> to vector<4x2x256xf32>
    %158 = arith.mulf %156, %157 : vector<4x2x256xf32>
    %cst_52 = arith.constant dense<0.000000e+00> : vector<4x2xf32>
    %159 = vector.multi_reduction <add>, %158, %cst_52 [2] : vector<4x2x256xf32> to vector<4x2xf32>
    %160 = vector.shape_cast %159 : vector<4x2xf32> to vector<4x2x1xf32>
    %cst_53 = arith.constant 4.8828125E-4 : f32
    %161 = vector.broadcast %cst_53 : f32 to vector<4x2x1xf32>
    %162 = arith.mulf %153, %161 : vector<4x2x1xf32>
    %cst_54 = arith.constant 4.8828125E-4 : f32
    %163 = vector.broadcast %cst_54 : f32 to vector<4x2x1xf32>
    %164 = arith.mulf %160, %163 : vector<4x2x1xf32>
    %165 = arith.mulf %162, %162 : vector<4x2x1xf32>
    %166 = arith.subf %164, %165 : vector<4x2x1xf32>
    %cst_55 = arith.constant 0.000000e+00 : f32
    %167 = vector.broadcast %cst_55 : f32 to vector<4x2x1xf32>
    %168 = arith.maximumf %166, %167 : vector<4x2x1xf32>
    %169 = vector.shape_cast %9 : vector<2x256xf32> to vector<1x2x256xf32>
    %170 = vector.broadcast %169 : vector<1x2x256xf32> to vector<4x2x256xf32>
    %171 = vector.broadcast %162 : vector<4x2x1xf32> to vector<4x2x256xf32>
    %172 = arith.mulf %170, %171 : vector<4x2x256xf32>
    %cst_56 = arith.constant dense<0.000000e+00> : vector<4x256xf32>
    %173 = vector.multi_reduction <add>, %172, %cst_56 [1] : vector<4x2x256xf32> to vector<4x256xf32>
    %174 = vector.shape_cast %9 : vector<2x256xf32> to vector<1x2x256xf32>
    %175 = vector.broadcast %174 : vector<1x2x256xf32> to vector<4x2x256xf32>
    %176 = vector.broadcast %168 : vector<4x2x1xf32> to vector<4x2x256xf32>
    %177 = arith.mulf %175, %176 : vector<4x2x256xf32>
    %cst_57 = arith.constant dense<0.000000e+00> : vector<4x256xf32>
    %178 = vector.multi_reduction <add>, %177, %cst_57 [1] : vector<4x2x256xf32> to vector<4x256xf32>
    %cst_58 = arith.constant 9.99999974E-6 : f32
    %179 = vector.broadcast %cst_58 : f32 to vector<4x256xf32>
    %180 = arith.addf %178, %179 : vector<4x256xf32>
    %181 = math.rsqrt %180 : vector<4x256xf32>
    %182 = vector.shape_cast %173 : vector<4x256xf32> to vector<4x1x256xf32>
    %183 = vector.broadcast %182 : vector<4x1x256xf32> to vector<4x16x256xf32>
    %184 = arith.subf %143, %183 : vector<4x16x256xf32>
    %185 = vector.shape_cast %181 : vector<4x256xf32> to vector<4x1x256xf32>
    %186 = vector.broadcast %185 : vector<4x1x256xf32> to vector<4x16x256xf32>
    %187 = arith.mulf %184, %186 : vector<4x16x256xf32>
    %188 = vector.shape_cast %7 : vector<1x256xf32> to vector<1x1x256xf32>
    %189 = vector.broadcast %188 : vector<1x1x256xf32> to vector<4x16x256xf32>
    %190 = arith.mulf %187, %189 : vector<4x16x256xf32>
    %191 = vector.shape_cast %8 : vector<1x256xf32> to vector<1x1x256xf32>
    %192 = vector.broadcast %191 : vector<1x1x256xf32> to vector<4x16x256xf32>
    %193 = arith.addf %190, %192 : vector<4x16x256xf32>
    %cst_59 = arith.constant 0.000000e+00 : f32
    %194 = vector.broadcast %cst_59 : f32 to vector<4x16x256xf32>
    %195 = arith.maximumf %193, %194 : vector<4x16x256xf32>
    %196 = vector.shape_cast %195 : vector<4x16x256xf32> to vector<64x256xf32>
    %197 = arith.addf %1, %196 : vector<64x256xf32>
    %cst_60 = arith.constant 0.000000e+00 : f32
    %198 = vector.broadcast %cst_60 : f32 to vector<64x256xf32>
    %199 = arith.maximumf %197, %198 : vector<64x256xf32>
    %200 = vector.shape_cast %199 : vector<64x256xf32> to vector<4x16x256xf32>
    %c0_61 = arith.constant 0 : index
    %c0_62 = arith.constant 0 : index
    %c0_63 = arith.constant 0 : index
    %201 = vector.load %arg5[%c0_61, %c0_62, %c0_63] : memref<4x16x256xf32, #tpu.memory_space<vmem>>, vector<4x16x256xf32>
    tpu.vector_store %arg5[%c0_61, %c0_62, %c0_63], %200 {strides = array<i32>} : memref<4x16x256xf32, #tpu.memory_space<vmem>>, vector<4x16x256xf32>,
    return
  }
  func.func @transform_0(%arg0: i32) -> (i32, i32, i32) {
    %c0_i32 = arith.constant 0 : i32
    %c0_i32_0 = arith.constant 0 : i32
    %c0_i32_1 = arith.constant 0 : i32
    return %arg0, %c0_i32, %c0_i32_0 : i32, i32, i32
  }
  func.func @transform_1(%arg0: i32) -> (i32, i32, i32) {
    %c0_i32 = arith.constant 0 : i32
    %c0_i32_0 = arith.constant 0 : i32
    %c0_i32_1 = arith.constant 0 : i32
    %c0_i32_2 = arith.constant 0 : i32
    return %c0_i32, %c0_i32_0, %c0_i32_1 : i32, i32, i32
  }
  func.func @transform_2(%arg0: i32) -> (i32, i32, i32) {
    %c0_i32 = arith.constant 0 : i32
    %c0_i32_0 = arith.constant 0 : i32
    %c0_i32_1 = arith.constant 0 : i32
    %c0_i32_2 = arith.constant 0 : i32
    return %c0_i32, %c0_i32_0, %c0_i32_1 : i32, i32, i32
  }
  func.func @transform_3(%arg0: i32) -> (i32, i32) {
    %c0_i32 = arith.constant 0 : i32
    %c0_i32_0 = arith.constant 0 : i32
    %c0_i32_1 = arith.constant 0 : i32
    return %c0_i32, %c0_i32_0 : i32, i32
  }
  func.func @transform_4(%arg0: i32) -> (i32, i32, i32) {
    %c0_i32 = arith.constant 0 : i32
    %c0_i32_0 = arith.constant 0 : i32
    %c0_i32_1 = arith.constant 0 : i32
    return %arg0, %c0_i32, %c0_i32_0 : i32, i32, i32
  }
}

</mosaic_0001>

<llo_original>
// kernel: tpu_custom_call.1
$region0: #{tpu_custom_call.1}
  #allocation0 [shape = 'u32[]', space=smem, size = 0x4, offset = 0x4, fixed_abs, tag = 'smem constant byte address 0x4 - core index']
  #allocation1 [shape = 'u32[144,128]{1,0:T(1,128)}', space=vmem, size = 0x12000, scoped, tag = 'internal scratch']
  %s0 = inlined_call_operand.hbm [shape: f32[8,16,256], index: 0, kind: input, shape index: {}]
  %s1 = inlined_call_operand.hbm [shape: f32[3,256,256], index: 1, kind: input, shape index: {}]
  %s2 = inlined_call_operand.hbm [shape: f32[3,256,256], index: 2, kind: input, shape index: {}]
  %s3 = inlined_call_operand.hbm [shape: f32[8,256], index: 3, kind: input, shape index: {}]
  %s4 = inlined_call_operand.hbm [shape: f32[8,16,256], index: 4, kind: output, shape index: {}]
  %s5 = sld [smem:[#allocation0]]
  $region65: #{tpu_custom_call.1} parent=0
    _
  %s7 = ssub.s32 1, %s5
  %s8 = scalar_select 0, %s7, %s5
  $region1: #{tpu_custom_call.1} parent=0
    #allocation2 [shape = 'u8[131072]{0}', space=vmem, size = 0x20000, scoped, tag = 'input window, operand 0']
    #allocation3 [shape = 's32[2]{0}', space=sflag, size = 0x8, scoped, tag = 'scoped memory for tpu_custom_call.1']
    #allocation4 [shape = 's32[2]{0}', space=sflag, size = 0x8, scoped, tag = 'scoped memory for tpu_custom_call.1']
    #allocation5 [shape = 'u8[786432]{0}', space=vmem, size = 0xc0000, scoped, tag = 'input window, operand 1, single buffered']
    #allocation6 [shape = 's32[1]{0}', space=sflag, size = 0x4, scoped, tag = 'scoped memory for tpu_custom_call.1']
    #allocation7 [shape = 'u8[786432]{0}', space=vmem, size = 0xc0000, scoped, tag = 'input window, operand 2, single buffered']
    #allocation8 [shape = 'u8[8192]{0}', space=vmem, size = 0x2000, scoped, tag = 'input window, operand 3, single buffered']
    #allocation9 [shape = 's32[1]{0}', space=sflag, size = 0x4, scoped, tag = 'scoped memory for tpu_custom_call.1']
    #allocation10 [shape = 'u8[131072]{0}', space=vmem, size = 0x20000, scoped, tag = 'output window, operand 0']
    %9 = vsyncpa [#allocation3], 0
    %s10 = scalar_lea.sflag [#allocation3], 1
    %11 = vsyncpa %s10, 0
    %12 = vsyncpa [#allocation6], 0
    %13 = vsyncpa [#allocation9], 0
    %14 = vsyncpa [#allocation4], 0
    %s15 = scalar_lea.sflag [#allocation4], 1
    %16 = vsyncpa %s15, 0
    loop: start=0, step=1, limit=4
    $region2: #{tpu_custom_call.1} parent=1 // loop_pre_header
      _
    $region3: #{tpu_custom_call.1} parent=1 // loop_header
      %s18 = sphi 0, %s22
      %p19 = scmp.ge.s32.totalorder %s18, 4
      %s28 = sphi 0, %s30
      %s31 = sphi 0, %s28
      %s32 = sphi 0, %s31
      %s48 = sphi 0, %s32
      %s52 = sphi 0, %s52
      %s54 = sphi 0, %s52
      %s55 = sphi 0, %s54
      %s69 = sphi 0, %s55
      %s73 = sphi 0, %s73
      %s75 = sphi 0, %s73
      %s76 = sphi 0, %s75
      %s90 = sphi 0, %s76
      %s94 = sphi 0, %s94
      %s96 = sphi 0, %s94
      %s97 = sphi 0, %s96
      %s111 = sphi 0, %s97
      %s117 = sphi 0, %s119
      %s120 = sphi 0, %s117
      %s121 = sphi 0, %s120
      %s137 = sphi 0, %s121
    $region4: #{tpu_custom_call.1} parent=1 // loop_header_branch
      %21 = sbr.rel (%p19) target = $region8
    $region5: #{tpu_custom_call.1} parent=1 // loop_body
      %s23 = ssub.s32 %s18, 1
      %s24 = ssub.s32 %s18, 2
      %s25 = sadd.s32 %s18, 1
      %s26 = ssub.s32 %s18, %s25
      %p27 = scmp.eq.s32.totalorder %s26, 0
      %s29 = sadd.s32 %s28, 1
      %s30 = scalar_select %p27, %s28, %s29
      %p33 = pneg %p27
      %p34 = scmp.eq.s32.totalorder %s18, 1
      %p35 = por %p33, %p34
      %p36 = scmp.ne.s32.totalorder %s28, %s31
      %p37 = scmp.eq.s32.totalorder %s18, 0
      %p38 = por %p36, %p37
      %p39 = scmp.ne.s32.totalorder %s28, %s31
      %p40 = scmp.eq.s32.totalorder %s23, 1
      %p41 = por %p39, %p40
      %p42 = scmp.ne.s32.totalorder %s31, %s32
      %p43 = scmp.eq.s32.totalorder %s23, 0
      %p44 = por %p42, %p43
      %p45 = scmp.ne.s32.totalorder %s31, %s32
      %p46 = scmp.eq.s32.totalorder %s24, 1
      %p47 = por %p45, %p46
      %p49 = scmp.ne.s32.totalorder %s32, %s48
      %p50 = scmp.eq.s32.totalorder %s24, 0
      %p51 = por %p49, %p50
      %s53 = sadd.s32 %s52, 1
      %p56 = scmp.eq.s32.totalorder %s18, 1
      %p57 = scmp.ne.s32.totalorder %s52, %s54
      %p58 = scmp.eq.s32.totalorder %s18, 0
      %p59 = por %p57, %p58
      %p60 = scmp.ne.s32.totalorder %s52, %s54
      %p61 = scmp.eq.s32.totalorder %s23, 1
      %p62 = por %p60, %p61
      %p63 = scmp.ne.s32.totalorder %s54, %s55
      %p64 = scmp.eq.s32.totalorder %s23, 0
      %p65 = por %p63, %p64
      %p66 = scmp.ne.s32.totalorder %s54, %s55
      %p67 = scmp.eq.s32.totalorder %s24, 1
      %p68 = por %p66, %p67
      %p70 = scmp.ne.s32.totalorder %s55, %s69
      %p71 = scmp.eq.s32.totalorder %s24, 0
      %p72 = por %p70, %p71
      %s74 = sadd.s32 %s73, 1
      %p77 = scmp.eq.s32.totalorder %s18, 1
      %p78 = scmp.ne.s32.totalorder %s73, %s75
      %p79 = scmp.eq.s32.totalorder %s18, 0
      %p80 = por %p78, %p79
      %p81 = scmp.ne.s32.totalorder %s73, %s75
      %p82 = scmp.eq.s32.totalorder %s23, 1
      %p83 = por %p81, %p82
      %p84 = scmp.ne.s32.totalorder %s75, %s76
      %p85 = scmp.eq.s32.totalorder %s23, 0
      %p86 = por %p84, %p85
      %p87 = scmp.ne.s32.totalorder %s75, %s76
      %p88 = scmp.eq.s32.totalorder %s24, 1
      %p89 = por %p87, %p88
      %p91 = scmp.ne.s32.totalorder %s76, %s90
      %p92 = scmp.eq.s32.totalorder %s24, 0
      %p93 = por %p91, %p92
      %s95 = sadd.s32 %s94, 1
      %p98 = scmp.eq.s32.totalorder %s18, 1
      %p99 = scmp.ne.s32.totalorder %s94, %s96
      %p100 = scmp.eq.s32.totalorder %s18, 0
      %p101 = por %p99, %p100
      %p102 = scmp.ne.s32.totalorder %s94, %s96
      %p103 = scmp.eq.s32.totalorder %s23, 1
      %p104 = por %p102, %p103
      %p105 = scmp.ne.s32.totalorder %s96, %s97
      %p106 = scmp.eq.s32.totalorder %s23, 0
      %p107 = por %p105, %p106
      %p108 = scmp.ne.s32.totalorder %s96, %s97
      %p109 = scmp.eq.s32.totalorder %s24, 1
      %p110 = por %p108, %p109
      %p112 = scmp.ne.s32.totalorder %s97, %s111
      %p113 = scmp.eq.s32.totalorder %s24, 0
      %p114 = por %p112, %p113
      %s115 = ssub.s32 %s18, %s25
      %p116 = scmp.eq.s32.totalorder %s115, 0
      %s118 = sadd.s32 %s117, 1
      %s119 = scalar_select %p116, %s117, %s118
      %p122 = pneg %p116
      %p123 = scmp.eq.s32.totalorder %s18, 1
      %p124 = por %p122, %p123
      %p125 = scmp.ne.s32.totalorder %s117, %s120
      %p126 = scmp.eq.s32.totalorder %s18, 0
      %p127 = por %p125, %p126
      %p128 = scmp.ne.s32.totalorder %s117, %s120
      %p129 = scmp.eq.s32.totalorder %s23, 1
      %p130 = por %p128, %p129
      %p131 = scmp.ne.s32.totalorder %s120, %s121
      %p132 = scmp.eq.s32.totalorder %s23, 0
      %p133 = por %p131, %p132
      %p134 = scmp.ne.s32.totalorder %s120, %s121
      %p135 = scmp.eq.s32.totalorder %s24, 1
      %p136 = por %p134, %p135
      %p138 = scmp.ne.s32.totalorder %s121, %s137
      %p139 = scmp.eq.s32.totalorder %s24, 0
      %p140 = por %p138, %p139
      %p141 = scmp.le.s32.totalorder 1, %s18
      %p142 = scmp.lt.s32.totalorder %s18, 3
      %p143 = pnand %p141, %p142
      %p144 = pneg %p143
      // Predicated region
      $region9: #{tpu_custom_call.1} parent=5 // pred_check
        _
      $region10: #{tpu_custom_call.1} parent=5 // pred_check_branch
        %146 = sbr.rel (%p143) target = $region12
      $region11: #{tpu_custom_call.1} parent=5 // pred_region
        %s147 = ssub.s32 %s18, 1
        // Predicated region
        $region13: #{tpu_custom_call.1} parent=11 // pred_check
          %p148 = pneg %p65
        $region14: #{tpu_custom_call.1} parent=11 // pred_check_branch
          %150 = sbr.rel (%p148) target = $region16
        $region15: #{tpu_custom_call.1} parent=11 // pred_region
          %s152 = ssub.s32 24576, 24576
          %153 = vsyncadd [#allocation6], %s152
          %s154 = sshll.u32 [#allocation5], 4
          %s155 = int_to_ptr.vmem [resolvable:$true] %s154
          %160 = dma.hbm_to_vmem [thread:$0]  %s1, 24576, %s155, [#allocation6], 256, 256, 16
        $region16: #{tpu_custom_call.1} parent=11 // pred_fallthru
          _
        // Predicated region
        $region17: #{tpu_custom_call.1} parent=11 // pred_check
          %p161 = pneg %p86
        $region18: #{tpu_custom_call.1} parent=11 // pred_check_branch
          %163 = sbr.rel (%p161) target = $region20
        $region19: #{tpu_custom_call.1} parent=11 // pred_region
          %s165 = ssub.s32 24576, 24576
          %166 = vsyncadd [#allocation6], %s165
          %s167 = sshll.u32 [#allocation7], 4
          %s168 = int_to_ptr.vmem [resolvable:$true] %s167
          %173 = dma.hbm_to_vmem [thread:$0]  %s2, 24576, %s168, [#allocation6], 256, 256, 16
        $region20: #{tpu_custom_call.1} parent=11 // pred_fallthru
          _
        // Predicated region
        $region21: #{tpu_custom_call.1} parent=11 // pred_check
          %p174 = pneg %p107
        $region22: #{tpu_custom_call.1} parent=11 // pred_check_branch
          %176 = sbr.rel (%p174) target = $region24
        $region23: #{tpu_custom_call.1} parent=11 // pred_region
          %s178 = ssub.s32 256, 256
          %179 = vsyncadd [#allocation9], %s178
          %s181 = sshll.u32 [#allocation8], 4
          %s182 = int_to_ptr.vmem [resolvable:$true] %s181
          %184 = dma.hbm_to_vmem [thread:$0]  %s3, 256, %s182, [#allocation9]
        $region24: #{tpu_custom_call.1} parent=11 // pred_fallthru
          _
      $region12: #{tpu_custom_call.1} parent=5 // pred_fallthru
        _
      %p185 = scmp.lt.s32.totalorder %s18, 2
      // Predicated region
      $region25: #{tpu_custom_call.1} parent=5 // pred_check
        %p186 = pneg %p185
      $region26: #{tpu_custom_call.1} parent=5 // pred_check_branch
        %188 = sbr.rel (%p186) target = $region28
      $region27: #{tpu_custom_call.1} parent=5 // pred_region
        // Predicated region
        $region29: #{tpu_custom_call.1} parent=27 // pred_check
          %p189 = pneg %p38
        $region30: #{tpu_custom_call.1} parent=27 // pred_check_branch
          %191 = sbr.rel (%p189) target = $region32
        $region31: #{tpu_custom_call.1} parent=27 // pred_region
          %s192 = sand.u32 %s28, 1
          %s193 = scalar_lea.sflag [#allocation3], %s192
          %s194 = sand.u32 %s28, 1
          %s195 = smul.addr %s194, 128
          %s196 = scalar_lea.vmem [#allocation2], %s195
          %s197 = smul.u32 4, %s18
          %s199 = ssub.s32 2048, 2048
          %200 = vsyncadd %s193, %s199
          %s201 = smul.addr %s197, 4
          %s202 = smul.addr %s201, 128
          %s203 = scalar_lea.hbm %s0, %s202
          %s204 = sshll.u32 %s196, 4
          %s205 = int_to_ptr.vmem [resolvable:$true] %s204
          %210 = dma.hbm_to_vmem [thread:$0]  %s203, 2048, %s205, %s193, 256, 256, 16
        $region32: #{tpu_custom_call.1} parent=27 // pred_fallthru
          _
      $region28: #{tpu_custom_call.1} parent=5 // pred_fallthru
        _
      %p211 = scmp.le.s32.totalorder 1, %s18
      %p212 = scmp.lt.s32.totalorder %s18, 3
      %p213 = pnand %p211, %p212
      %p214 = pneg %p213
      // Predicated region
      $region33: #{tpu_custom_call.1} parent=5 // pred_check
        _
      $region34: #{tpu_custom_call.1} parent=5 // pred_check_branch
        %216 = sbr.rel (%p213) target = $region36
      $region35: #{tpu_custom_call.1} parent=5 // pred_region
        %s217 = ssub.s32 %s18, 1
        %s218 = sand.u32 %s31, 1
        %s219 = scalar_lea.sflag [#allocation3], %s218
        %s220 = sand.u32 %s31, 1
        %s221 = smul.addr %s220, 128
        %s222 = scalar_lea.vmem [#allocation2], %s221
        // Predicated region
        $region37: #{tpu_custom_call.1} parent=35 // pred_check
          %p223 = pneg %p44
        $region38: #{tpu_custom_call.1} parent=35 // pred_check_branch
          %225 = sbr.rel (%p223) target = $region40
        $region39: #{tpu_custom_call.1} parent=35 // pred_region
          %226 = dma.done %s219, 2048
        $region40: #{tpu_custom_call.1} parent=35 // pred_fallthru
          _
        // Predicated region
        $region41: #{tpu_custom_call.1} parent=35 // pred_check
          %p227 = pneg %p65
        $region42: #{tpu_custom_call.1} parent=35 // pred_check_branch
          %229 = sbr.rel (%p227) target = $region44
        $region43: #{tpu_custom_call.1} parent=35 // pred_region
          %230 = dma.done [#allocation6], 24576
        $region44: #{tpu_custom_call.1} parent=35 // pred_fallthru
          _
        // Predicated region
        $region45: #{tpu_custom_call.1} parent=35 // pred_check
          %p231 = pneg %p86
        $region46: #{tpu_custom_call.1} parent=35 // pred_check_branch
          %233 = sbr.rel (%p231) target = $region48
        $region47: #{tpu_custom_call.1} parent=35 // pred_region
          %234 = dma.done [#allocation6], 24576
        $region48: #{tpu_custom_call.1} parent=35 // pred_fallthru
          _
        // Predicated region
        $region49: #{tpu_custom_call.1} parent=35 // pred_check
          %p235 = pneg %p107
        $region50: #{tpu_custom_call.1} parent=35 // pred_check_branch
          %237 = sbr.rel (%p235) target = $region52
        $region51: #{tpu_custom_call.1} parent=35 // pred_region
          %238 = dma.done [#allocation9], 256
        $region52: #{tpu_custom_call.1} parent=35 // pred_fallthru
          _
        %s239 = sand.u32 %s31, 1
        %s240 = scalar_lea.sflag [#allocation3], %s239
        %s241 = sand.u32 %s31, 1
        %s242 = smul.addr %s241, 128
        %s243 = scalar_lea.vmem [#allocation2], %s242
        %p244 = pneg %p44
        %p245 = pneg %p41
        %p246 = pneg %p65
        %p247 = pneg %p62
        %p248 = pneg %p86
        %p249 = pneg %p83
        %p250 = pneg %p107
        %p251 = pneg %p104
        %p252 = pneg %p133
        %p253 = pneg %p130
        %s254 = sand.u32 %s120, 1
        %s255 = scalar_lea.sflag [#allocation4], %s254
        %s256 = sand.u32 %s120, 1
        %s257 = smul.addr %s256, 128
        %s258 = scalar_lea.vmem [#allocation10], %s257
        %s259 = smul.u32 4, %s23
        %s260 = smul.u32 4, %s23
        %v261 = vld [vmem:[%s222] sm:$0xff]
        %v262 = vld [vmem:[%s222 + $0x8] sm:$0xff]
        %v263 = vld [vmem:[%s222 + $0x10] sm:$0xff]
        %v264 = vld [vmem:[%s222 + $0x18] sm:$0xff]
        %v265 = vld [vmem:[%s222 + $0x20] sm:$0xff]
        %v266 = vld [vmem:[%s222 + $0x28] sm:$0xff]
        %v267 = vld [vmem:[%s222 + $0x30] sm:$0xff]
        %v268 = vld [vmem:[%s222 + $0x38] sm:$0xff]
        %v269 = vld [vmem:[%s222 + $0x40] sm:$0xff]
        %v270 = vld [vmem:[%s222 + $0x48] sm:$0xff]
        %v271 = vld [vmem:[%s222 + $0x50] sm:$0xff]
        %v272 = vld [vmem:[%s222 + $0x58] sm:$0xff]
        %v273 = vld [vmem:[%s222 + $0x60] sm:$0xff]
        %v274 = vld [vmem:[%s222 + $0x68] sm:$0xff]
        %v275 = vld [vmem:[%s222 + $0x70] sm:$0xff]
        %v276 = vld [vmem:[%s222 + $0x78] sm:$0xff]
        %v277 = vld [vmem:[#allocation8] sm:$0xff]
        %v278 = vld [vmem:[#allocation8 + $0x8] sm:$0xff]
        %v279 = vlaneseq
        %v280 = vshrl.u32 %v279, 7
        %v281 = vadd.s32 %v280, 8
        %v282 = vadd.s32 %v280, 16
        %v283 = vadd.s32 %v280, 24
        %v284 = vadd.s32 %v280, 32
        %v285 = vadd.s32 %v280, 40
        %v286 = vadd.s32 %v280, 48
        %v287 = vadd.s32 %v280, 56
        %vm288 = vcmp.lt.s32.totalorder %v280, 0
        %v289 = vsub.s32 0, %v280
        %v290 = vsel %vm288, %v289, %v280
        %v291 = vshrl.u32 %v290, 4
        %v292 = vand.u32 %v290, 15
        %v293 = vsub.s32 0, %v292
        %v294 = vsel %vm288, %v293, %v292
        %vm295 = vcmp.lt.s32.totalorder %v281, 0
        %v296 = vsub.s32 0, %v281
        %v297 = vsel %vm295, %v296, %v281
        %v298 = vshrl.u32 %v297, 4
        %v299 = vand.u32 %v297, 15
        %v300 = vsub.s32 0, %v299
        %v301 = vsel %vm295, %v300, %v299
        %vm302 = vcmp.lt.s32.totalorder %v282, 0
        %v303 = vsub.s32 0, %v282
        %v304 = vsel %vm302, %v303, %v282
        %v305 = vshrl.u32 %v304, 4
        %v306 = vand.u32 %v304, 15
        %v307 = vsub.s32 0, %v306
        %v308 = vsel %vm302, %v307, %v306
        %vm309 = vcmp.lt.s32.totalorder %v283, 0
        %v310 = vsub.s32 0, %v283
        %v311 = vsel %vm309, %v310, %v283
        %v312 = vshrl.u32 %v311, 4
        %v313 = vand.u32 %v311, 15
        %v314 = vsub.s32 0, %v313
        %v315 = vsel %vm309, %v314, %v313
        %vm316 = vcmp.lt.s32.totalorder %v284, 0
        %v317 = vsub.s32 0, %v284
        %v318 = vsel %vm316, %v317, %v284
        %v319 = vshrl.u32 %v318, 4
        %v320 = vand.u32 %v318, 15
        %v321 = vsub.s32 0, %v320
        %v322 = vsel %vm316, %v321, %v320
        %vm323 = vcmp.lt.s32.totalorder %v285, 0
        %v324 = vsub.s32 0, %v285
        %v325 = vsel %vm323, %v324, %v285
        %v326 = vshrl.u32 %v325, 4
        %v327 = vand.u32 %v325, 15
        %v328 = vsub.s32 0, %v327
        %v329 = vsel %vm323, %v328, %v327
        %vm330 = vcmp.lt.s32.totalorder %v286, 0
        %v331 = vsub.s32 0, %v286
        %v332 = vsel %vm330, %v331, %v286
        %v333 = vshrl.u32 %v332, 4
        %v334 = vand.u32 %v332, 15
        %v335 = vsub.s32 0, %v334
        %v336 = vsel %vm330, %v335, %v334
        %vm337 = vcmp.lt.s32.totalorder %v287, 0
        %v338 = vsub.s32 0, %v287
        %v339 = vsel %vm337, %v338, %v287
        %v340 = vshrl.u32 %v339, 4
        %v341 = vand.u32 %v339, 15
        %v342 = vsub.s32 0, %v341
        %v343 = vsel %vm337, %v342, %v341
        %vm344 = vcmp.ne.s32.totalorder %v294, 0
        %vm345 = vcmp.ne.s32.totalorder %v301, 0
        %vm346 = vcmp.ne.s32.totalorder %v308, 0
        %vm347 = vcmp.ne.s32.totalorder %v315, 0
        %vm348 = vcmp.ne.s32.totalorder %v322, 0
        %vm349 = vcmp.ne.s32.totalorder %v329, 0
        %vm350 = vcmp.ne.s32.totalorder %v336, 0
        %vm351 = vcmp.ne.s32.totalorder %v343, 0
        %vm352 = vcmp.lt.s32.totalorder %v294, 0
        %vm353 = vcmp.lt.s32.totalorder %v301, 0
        %vm354 = vcmp.lt.s32.totalorder %v308, 0
        %vm355 = vcmp.lt.s32.totalorder %v315, 0
        %vm356 = vcmp.lt.s32.totalorder %v322, 0
        %vm357 = vcmp.lt.s32.totalorder %v329, 0
        %vm358 = vcmp.lt.s32.totalorder %v336, 0
        %vm359 = vcmp.lt.s32.totalorder %v343, 0
        %vm360 = vmand %vm352, %vm344
        %vm361 = vmand %vm353, %vm345
        %vm362 = vmand %vm354, %vm346
        %vm363 = vmand %vm355, %vm347
        %vm364 = vmand %vm356, %vm348
        %vm365 = vmand %vm357, %vm349
        %vm366 = vmand %vm358, %vm350
        %vm367 = vmand %vm359, %vm351
        %v368 = vadd.s32 %v294, 16
        %v369 = vadd.s32 %v301, 16
        %v370 = vadd.s32 %v308, 16
        %v371 = vadd.s32 %v315, 16
        %v372 = vadd.s32 %v322, 16
        %v373 = vadd.s32 %v329, 16
        %v374 = vadd.s32 %v336, 16
        %v375 = vadd.s32 %v343, 16
        %v376 = vsel %vm360, %v368, %v294
        %v377 = vsel %vm361, %v369, %v301
        %v378 = vsel %vm362, %v370, %v308
        %v379 = vsel %vm363, %v371, %v315
        %v380 = vsel %vm364, %v372, %v322
        %v381 = vsel %vm365, %v373, %v329
        %v382 = vsel %vm366, %v374, %v336
        %v383 = vsel %vm367, %v375, %v343
        %vm384 = vcmp.ne.s32.totalorder %v376, 0
        %vm385 = vcmp.ne.s32.totalorder %v377, 0
        %vm386 = vcmp.ne.s32.totalorder %v378, 0
        %vm387 = vcmp.ne.s32.totalorder %v379, 0
        %vm388 = vcmp.ne.s32.totalorder %v380, 0
        %vm389 = vcmp.ne.s32.totalorder %v381, 0
        %vm390 = vcmp.ne.s32.totalorder %v382, 0
        %vm391 = vcmp.ne.s32.totalorder %v383, 0
        %v392 = vsel %vm384, 1, 0
        %v393 = vsel %vm385, 1, 0
        %v394 = vsel %vm386, 1, 0
        %v395 = vsel %vm387, 1, 0
        %v396 = vsel %vm388, 1, 0
        %v397 = vsel %vm389, 1, 0
        %v398 = vsel %vm390, 1, 0
        %v399 = vsel %vm391, 1, 0
        %v400 = vcvt.s32.f32 %v392
        %v401 = vcvt.s32.f32 %v393
        %v402 = vcvt.s32.f32 %v394
        %v403 = vcvt.s32.f32 %v395
        %v404 = vcvt.s32.f32 %v396
        %v405 = vcvt.s32.f32 %v397
        %v406 = vcvt.s32.f32 %v398
        %v407 = vcvt.s32.f32 %v399
        %vm408 = vcmp.ne.s32.totalorder %v376, 15
        %vm409 = vcmp.ne.s32.totalorder %v377, 15
        %vm410 = vcmp.ne.s32.totalorder %v378, 15
        %vm411 = vcmp.ne.s32.totalorder %v379, 15
        %vm412 = vcmp.ne.s32.totalorder %v380, 15
        %vm413 = vcmp.ne.s32.totalorder %v381, 15
        %vm414 = vcmp.ne.s32.totalorder %v382, 15
        %vm415 = vcmp.ne.s32.totalorder %v383, 15
        %v416 = vsel %vm408, 1, 0
        %v417 = vsel %vm409, 1, 0
        %v418 = vsel %vm410, 1, 0
        %v419 = vsel %vm411, 1, 0
        %v420 = vsel %vm412, 1, 0
        %v421 = vsel %vm413, 1, 0
        %v422 = vsel %vm414, 1, 0
        %v423 = vsel %vm415, 1, 0
        %v424 = vcvt.s32.f32 %v416
        %v425 = vcvt.s32.f32 %v417
        %v426 = vcvt.s32.f32 %v418
        %v427 = vcvt.s32.f32 %v419
        %v428 = vcvt.s32.f32 %v420
        %v429 = vcvt.s32.f32 %v421
        %v430 = vcvt.s32.f32 %v422
        %v431 = vcvt.s32.f32 %v423
        %v432 = vrot.slane %v261, 7
        %v433 = vrot.slane %v262, 7
        %v434 = vrot.slane %v263, 7
        %v435 = vrot.slane %v264, 7
        %v436 = vrot.slane %v265, 7
        %v437 = vrot.slane %v266, 7
        %v438 = vrot.slane %v267, 7
        %v439 = vrot.slane %v268, 7
        %v440 = vrot.slane %v269, 7
        %v441 = vrot.slane %v270, 7
        %v442 = vrot.slane %v271, 7
        %v443 = vrot.slane %v272, 7
        %v444 = vrot.slane %v273, 7
        %v445 = vrot.slane %v274, 7
        %v446 = vrot.slane %v275, 7
        %v447 = vrot.slane %v276, 7
        %vm448 = vcmp.lt.s32.totalorder %v280, 1
        %v449 = vsel %vm448, %v444, %v446
        %v450 = vsel %vm448, %v445, %v447
        %v451 = vsel %vm448, %v442, %v444
        %v452 = vsel %vm448, %v443, %v445
        %v453 = vsel %vm448, %v440, %v442
        %v454 = vsel %vm448, %v441, %v443
        %v455 = vsel %vm448, %v438, %v440
        %v456 = vsel %vm448, %v439, %v441
        %v457 = vsel %vm448, %v436, %v438
        %v458 = vsel %vm448, %v437, %v439
        %v459 = vsel %vm448, %v434, %v436
        %v460 = vsel %vm448, %v435, %v437
        %v461 = vsel %vm448, %v432, %v434
        %v462 = vsel %vm448, %v433, %v435
        %v463 = vsel %vm448, %v446, %v432
        %v464 = vsel %vm448, %v447, %v433
        %v465 = vmul.f32 %v463, %v400
        %v466 = vmul.f32 %v464, %v400
        %v467 = vmul.f32 %v461, %v401
        %v468 = vmul.f32 %v462, %v401
        %v469 = vmul.f32 %v459, %v402
        %v470 = vmul.f32 %v460, %v402
        %v471 = vmul.f32 %v457, %v403
        %v472 = vmul.f32 %v458, %v403
        %v473 = vmul.f32 %v455, %v404
        %v474 = vmul.f32 %v456, %v404
        %v475 = vmul.f32 %v453, %v405
        %v476 = vmul.f32 %v454, %v405
        %v477 = vmul.f32 %v451, %v406
        %v478 = vmul.f32 %v452, %v406
        %v479 = vmul.f32 %v449, %v407
        %v480 = vmul.f32 %v450, %v407
        %v481 = vrot.slane %v261, 1
        %v482 = vrot.slane %v262, 1
        %v483 = vrot.slane %v263, 1
        %v484 = vrot.slane %v264, 1
        %v485 = vrot.slane %v265, 1
        %v486 = vrot.slane %v266, 1
        %v487 = vrot.slane %v267, 1
        %v488 = vrot.slane %v268, 1
        %v489 = vrot.slane %v269, 1
        %v490 = vrot.slane %v270, 1
        %v491 = vrot.slane %v271, 1
        %v492 = vrot.slane %v272, 1
        %v493 = vrot.slane %v273, 1
        %v494 = vrot.slane %v274, 1
        %v495 = vrot.slane %v275, 1
        %v496 = vrot.slane %v276, 1
        %vm497 = vcmp.lt.s32.totalorder %v280, 7
        %v498 = vsel %vm497, %v493, %v495
        %v499 = vsel %vm497, %v494, %v496
        %v500 = vsel %vm497, %v491, %v493
        %v501 = vsel %vm497, %v492, %v494
        %v502 = vsel %vm497, %v489, %v491
        %v503 = vsel %vm497, %v490, %v492
        %v504 = vsel %vm497, %v487, %v489
        %v505 = vsel %vm497, %v488, %v490
        %v506 = vsel %vm497, %v485, %v487
        %v507 = vsel %vm497, %v486, %v488
        %v508 = vsel %vm497, %v483, %v485
        %v509 = vsel %vm497, %v484, %v486
        %v510 = vsel %vm497, %v481, %v483
        %v511 = vsel %vm497, %v482, %v484
        %v512 = vsel %vm497, %v495, %v481
        %v513 = vsel %vm497, %v496, %v482
        %v514 = vmul.f32 %v510, %v424
        %v515 = vmul.f32 %v511, %v424
        %v516 = vmul.f32 %v508, %v425
        %v517 = vmul.f32 %v509, %v425
        %v518 = vmul.f32 %v506, %v426
        %v519 = vmul.f32 %v507, %v426
        %v520 = vmul.f32 %v504, %v427
        %v521 = vmul.f32 %v505, %v427
        %v522 = vmul.f32 %v502, %v428
        %v523 = vmul.f32 %v503, %v428
        %v524 = vmul.f32 %v500, %v429
        %v525 = vmul.f32 %v501, %v429
        %v526 = vmul.f32 %v498, %v430
        %v527 = vmul.f32 %v499, %v430
        %v528 = vmul.f32 %v512, %v431
        %v529 = vmul.f32 %v513, %v431
        %v530 = vld [vmem:[#allocation5] sm:$0xff]
        %v531 = vld [vmem:[#allocation5 + $0x8] sm:$0xff]
        %v532 = vld [vmem:[#allocation5 + $0x10] sm:$0xff]
        %v533 = vld [vmem:[#allocation5 + $0x18] sm:$0xff]
        %v534 = vld [vmem:[#allocation5 + $0x20] sm:$0xff]
        %v535 = vld [vmem:[#allocation5 + $0x28] sm:$0xff]
        %v536 = vld [vmem:[#allocation5 + $0x30] sm:$0xff]
        %v537 = vld [vmem:[#allocation5 + $0x38] sm:$0xff]
        %v538 = vld [vmem:[#allocation5 + $0x40] sm:$0xff]
        %v539 = vld [vmem:[#allocation5 + $0x48] sm:$0xff]
        %v540 = vld [vmem:[#allocation5 + $0x50] sm:$0xff]
        %v541 = vld [vmem:[#allocation5 + $0x58] sm:$0xff]
        %v542 = vld [vmem:[#allocation5 + $0x60] sm:$0xff]
        %v543 = vld [vmem:[#allocation5 + $0x68] sm:$0xff]
        %v544 = vld [vmem:[#allocation5 + $0x70] sm:$0xff]
        %v545 = vld [vmem:[#allocation5 + $0x78] sm:$0xff]
        %v546 = vld [vmem:[#allocation5 + $0x80] sm:$0xff]
        %v547 = vld [vmem:[#allocation5 + $0x88] sm:$0xff]
        %v548 = vld [vmem:[#allocation5 + $0x90] sm:$0xff]
        %v549 = vld [vmem:[#allocation5 + $0x98] sm:$0xff]
        %v550 = vld [vmem:[#allocation5 + $0xa0] sm:$0xff]
        %v551 = vld [vmem:[#allocation5 + $0xa8] sm:$0xff]
        %v552 = vld [vmem:[#allocation5 + $0xb0] sm:$0xff]
        %v553 = vld [vmem:[#allocation5 + $0xb8] sm:$0xff]
        %v554 = vld [vmem:[#allocation5 + $0xc0] sm:$0xff]
        %v555 = vld [vmem:[#allocation5 + $0xc8] sm:$0xff]
        %v556 = vld [vmem:[#allocation5 + $0xd0] sm:$0xff]
        %v557 = vld [vmem:[#allocation5 + $0xd8] sm:$0xff]
        %v558 = vld [vmem:[#allocation5 + $0xe0] sm:$0xff]
        %v559 = vld [vmem:[#allocation5 + $0xe8] sm:$0xff]
        %v560 = vld [vmem:[#allocation5 + $0xf0] sm:$0xff]
        %v561 = vld [vmem:[#allocation5 + $0xf8] sm:$0xff]
        %v562 = vld [vmem:[#allocation5 + $0x100] sm:$0xff]
        %v563 = vld [vmem:[#allocation5 + $0x108] sm:$0xff]
        %v564 = vld [vmem:[#allocation5 + $0x110] sm:$0xff]
        %v565 = vld [vmem:[#allocation5 + $0x118] sm:$0xff]
        %v566 = vld [vmem:[#allocation5 + $0x120] sm:$0xff]
        %v567 = vld [vmem:[#allocation5 + $0x128] sm:$0xff]
        %v568 = vld [vmem:[#allocation5 + $0x130] sm:$0xff]
        %v569 = vld [vmem:[#allocation5 + $0x138] sm:$0xff]
        %v570 = vld [vmem:[#allocation5 + $0x140] sm:$0xff]
        %v571 = vld [vmem:[#allocation5 + $0x148] sm:$0xff]
        %v572 = vld [vmem:[#allocation5 + $0x150] sm:$0xff]
        %v573 = vld [vmem:[#allocation5 + $0x158] sm:$0xff]
        %v574 = vld [vmem:[#allocation5 + $0x160] sm:$0xff]
        %v575 = vld [vmem:[#allocation5 + $0x168] sm:$0xff]
        %v576 = vld [vmem:[#allocation5 + $0x170] sm:$0xff]
        %v577 = vld [vmem:[#allocation5 + $0x178] sm:$0xff]
        %v578 = vld [vmem:[#allocation5 + $0x180] sm:$0xff]
        %v579 = vld [vmem:[#allocation5 + $0x188] sm:$0xff]
        %v580 = vld [vmem:[#allocation5 + $0x190] sm:$0xff]
        %v581 = vld [vmem:[#allocation5 + $0x198] sm:$0xff]
        %v582 = vld [vmem:[#allocation5 + $0x1a0] sm:$0xff]
        %v583 = vld [vmem:[#allocation5 + $0x1a8] sm:$0xff]
        %v584 = vld [vmem:[#allocation5 + $0x1b0] sm:$0xff]
        %v585 = vld [vmem:[#allocation5 + $0x1b8] sm:$0xff]
        %v586 = vld [vmem:[#allocation5 + $0x1c0] sm:$0xff]
        %v587 = vld [vmem:[#allocation5 + $0x1c8] sm:$0xff]
        %v588 = vld [vmem:[#allocation5 + $0x1d0] sm:$0xff]
        %v589 = vld [vmem:[#allocation5 + $0x1d8] sm:$0xff]
        %v590 = vld [vmem:[#allocation5 + $0x1e0] sm:$0xff]
        %v591 = vld [vmem:[#allocation5 + $0x1e8] sm:$0xff]
        %v592 = vld [vmem:[#allocation5 + $0x1f0] sm:$0xff]
        %v593 = vld [vmem:[#allocation5 + $0x1f8] sm:$0xff]
        %s594 = scalar_lea.vmem [#allocation5], 512
        %v595 = vld [vmem:[%s594] sm:$0xff]
        %v596 = vld [vmem:[%s594 + $0x8] sm:$0xff]
        %v597 = vld [vmem:[%s594 + $0x10] sm:$0xff]
        %v598 = vld [vmem:[%s594 + $0x18] sm:$0xff]
        %v599 = vld [vmem:[%s594 + $0x20] sm:$0xff]
        %v600 = vld [vmem:[%s594 + $0x28] sm:$0xff]
        %v601 = vld [vmem:[%s594 + $0x30] sm:$0xff]
        %v602 = vld [vmem:[%s594 + $0x38] sm:$0xff]
        %v603 = vld [vmem:[%s594 + $0x40] sm:$0xff]
        %v604 = vld [vmem:[%s594 + $0x48] sm:$0xff]
        %v605 = vld [vmem:[%s594 + $0x50] sm:$0xff]
        %v606 = vld [vmem:[%s594 + $0x58] sm:$0xff]
        %v607 = vld [vmem:[%s594 + $0x60] sm:$0xff]
        %v608 = vld [vmem:[%s594 + $0x68] sm:$0xff]
        %v609 = vld [vmem:[%s594 + $0x70] sm:$0xff]
        %v610 = vld [vmem:[%s594 + $0x78] sm:$0xff]
        %v611 = vld [vmem:[%s594 + $0x80] sm:$0xff]
        %v612 = vld [vmem:[%s594 + $0x88] sm:$0xff]
        %v613 = vld [vmem:[%s594 + $0x90] sm:$0xff]
        %v614 = vld [vmem:[%s594 + $0x98] sm:$0xff]
        %v615 = vld [vmem:[%s594 + $0xa0] sm:$0xff]
        %v616 = vld [vmem:[%s594 + $0xa8] sm:$0xff]
        %v617 = vld [vmem:[%s594 + $0xb0] sm:$0xff]
        %v618 = vld [vmem:[%s594 + $0xb8] sm:$0xff]
        %v619 = vld [vmem:[%s594 + $0xc0] sm:$0xff]
        %v620 = vld [vmem:[%s594 + $0xc8] sm:$0xff]
        %v621 = vld [vmem:[%s594 + $0xd0] sm:$0xff]
        %v622 = vld [vmem:[%s594 + $0xd8] sm:$0xff]
        %v623 = vld [vmem:[%s594 + $0xe0] sm:$0xff]
        %v624 = vld [vmem:[%s594 + $0xe8] sm:$0xff]
        %v625 = vld [vmem:[%s594 + $0xf0] sm:$0xff]
        %v626 = vld [vmem:[%s594 + $0xf8] sm:$0xff]
        %v627 = vld [vmem:[%s594 + $0x100] sm:$0xff]
        %v628 = vld [vmem:[%s594 + $0x108] sm:$0xff]
        %v629 = vld [vmem:[%s594 + $0x110] sm:$0xff]
        %v630 = vld [vmem:[%s594 + $0x118] sm:$0xff]
        %v631 = vld [vmem:[%s594 + $0x120] sm:$0xff]
        %v632 = vld [vmem:[%s594 + $0x128] sm:$0xff]
        %v633 = vld [vmem:[%s594 + $0x130] sm:$0xff]
        %v634 = vld [vmem:[%s594 + $0x138] sm:$0xff]
        %v635 = vld [vmem:[%s594 + $0x140] sm:$0xff]
        %v636 = vld [vmem:[%s594 + $0x148] sm:$0xff]
        %v637 = vld [vmem:[%s594 + $0x150] sm:$0xff]
        %v638 = vld [vmem:[%s594 + $0x158] sm:$0xff]
        %v639 = vld [vmem:[%s594 + $0x160] sm:$0xff]
        %v640 = vld [vmem:[%s594 + $0x168] sm:$0xff]
        %v641 = vld [vmem:[%s594 + $0x170] sm:$0xff]
        %v642 = vld [vmem:[%s594 + $0x178] sm:$0xff]
        %v643 = vld [vmem:[%s594 + $0x180] sm:$0xff]
        %v644 = vld [vmem:[%s594 + $0x188] sm:$0xff]
        %v645 = vld [vmem:[%s594 + $0x190] sm:$0xff]
        %v646 = vld [vmem:[%s594 + $0x198] sm:$0xff]
        %v647 = vld [vmem:[%s594 + $0x1a0] sm:$0xff]
        %v648 = vld [vmem:[%s594 + $0x1a8] sm:$0xff]
        %v649 = vld [vmem:[%s594 + $0x1b0] sm:$0xff]
        %v650 = vld [vmem:[%s594 + $0x1b8] sm:$0xff]
        %v651 = vld [vmem:[%s594 + $0x1c0] sm:$0xff]
        %v652 = vld [vmem:[%s594 + $0x1c8] sm:$0xff]
        %v653 = vld [vmem:[%s594 + $0x1d0] sm:$0xff]
        %v654 = vld [vmem:[%s594 + $0x1d8] sm:$0xff]
        %v655 = vld [vmem:[%s594 + $0x1e0] sm:$0xff]
        %v656 = vld [vmem:[%s594 + $0x1e8] sm:$0xff]
        %v657 = vld [vmem:[%s594 + $0x1f0] sm:$0xff]
        %v658 = vld [vmem:[%s594 + $0x1f8] sm:$0xff]
        %659 = vmatprep.subr.mxu0 %v626
        %660 = vmatpush1.msra.mxu0 %v625
        %661 = vmatprep.subr.mxu0 %v624
        %662 = vmatpush1.msra.mxu0 %v623
        %663 = vmatprep.subr.mxu0 %v622
        %664 = vmatpush1.msra.mxu0 %v621
        %665 = vmatprep.subr.mxu0 %v620
        %666 = vmatpush1.msra.mxu0 %v619
        %667 = vmatprep.subr.mxu0 %v618
        %668 = vmatpush1.msra.mxu0 %v617
        %669 = vmatprep.subr.mxu0 %v616
        %670 = vmatpush1.msra.mxu0 %v615
        %671 = vmatprep.subr.mxu0 %v614
        %672 = vmatpush1.msra.mxu0 %v613
        %673 = vmatprep.subr.mxu0 %v612
        %674 = vmatpush1.msra.mxu0 %v611
        %675 = vmatprep.subr.mxu0 %v610
        %676 = vmatpush1.msra.mxu0 %v609
        %677 = vmatprep.subr.mxu0 %v608
        %678 = vmatpush1.msra.mxu0 %v607
        %679 = vmatprep.subr.mxu0 %v606
        %680 = vmatpush1.msra.mxu0 %v605
        %681 = vmatprep.subr.mxu0 %v604
        %682 = vmatpush1.msra.mxu0 %v603
        %683 = vmatprep.subr.mxu0 %v602
        %684 = vmatpush1.msra.mxu0 %v601
        %685 = vmatprep.subr.mxu0 %v600
        %686 = vmatpush1.msra.mxu0 %v599
        %687 = vmatprep.subr.mxu0 %v598
        %688 = vmatpush1.msra.mxu0 %v597
        %689 = vmatprep.subr.mxu0 %v596
        %690 = vmatpush1.msra.mxu0 %v595
        %691 = vmatprep.subr.mxu0 %v658
        %692 = vmatpush2.msra.mxu0 %v657
        %693 = vmatprep.subr.mxu0 %v656
        %694 = vmatpush2.msra.mxu0 %v655
        %695 = vmatprep.subr.mxu0 %v654
        %696 = vmatpush2.msra.mxu0 %v653
        %697 = vmatprep.subr.mxu0 %v652
        %698 = vmatpush2.msra.mxu0 %v651
        %699 = vmatprep.subr.mxu0 %v650
        %700 = vmatpush2.msra.mxu0 %v649
        %701 = vmatprep.subr.mxu0 %v648
        %702 = vmatpush2.msra.mxu0 %v647
        %703 = vmatprep.subr.mxu0 %v646
        %704 = vmatpush2.msra.mxu0 %v645
        %705 = vmatprep.subr.mxu0 %v644
        %706 = vmatpush2.msra.mxu0 %v643
        %707 = vmatprep.subr.mxu0 %v642
        %708 = vmatpush2.msra.mxu0 %v641
        %709 = vmatprep.subr.mxu0 %v640
        %710 = vmatpush2.msra.mxu0 %v639
        %711 = vmatprep.subr.mxu0 %v638
        %712 = vmatpush2.msra.mxu0 %v637
        %713 = vmatprep.subr.mxu0 %v636
        %714 = vmatpush2.msra.mxu0 %v635
        %715 = vmatprep.subr.mxu0 %v634
        %716 = vmatpush2.msra.mxu0 %v633
        %717 = vmatprep.subr.mxu0 %v632
        %718 = vmatpush2.msra.mxu0 %v631
        %719 = vmatprep.subr.mxu0 %v630
        %720 = vmatpush2.msra.mxu0 %v629
        %721 = vmatprep.subr.mxu0 %v628
        %722 = vmatpush2.msra.mxu0 %v627
        %723 = vmatprep.mubr.f32.mxu0 %v262
        %724 = vmatmul.mubr.f32.gmra.mxu0 %v261
        %v725 = vpop.f32.mrf.mxu0
        %v726 = vadd.f32 0.0, %v725
        %v727 = vpop.f32.mrf.mxu0
        %v728 = vadd.f32 0.0, %v727
        %729 = vmatprep.mubr.f32.mxu0 %v264
        %730 = vmatmul.mubr.f32.gmra.mxu0 %v263
        %v731 = vpop.f32.mrf.mxu0
        %v732 = vadd.f32 0.0, %v731
        %v733 = vpop.f32.mrf.mxu0
        %v734 = vadd.f32 0.0, %v733
        %735 = vmatprep.mubr.f32.mxu0 %v266
        %736 = vmatmul.mubr.f32.gmra.mxu0 %v265
        %v737 = vpop.f32.mrf.mxu0
        %v738 = vadd.f32 0.0, %v737
        %v739 = vpop.f32.mrf.mxu0
        %v740 = vadd.f32 0.0, %v739
        %741 = vmatprep.mubr.f32.mxu0 %v268
        %742 = vmatmul.mubr.f32.gmra.mxu0 %v267
        %v743 = vpop.f32.mrf.mxu0
        %v744 = vadd.f32 0.0, %v743
        %v745 = vpop.f32.mrf.mxu0
        %v746 = vadd.f32 0.0, %v745
        %747 = vmatprep.mubr.f32.mxu0 %v270
        %748 = vmatmul.mubr.f32.gmra.mxu0 %v269
        %v749 = vpop.f32.mrf.mxu0
        %v750 = vadd.f32 0.0, %v749
        %v751 = vpop.f32.mrf.mxu0
        %v752 = vadd.f32 0.0, %v751
        %753 = vmatprep.mubr.f32.mxu0 %v272
        %754 = vmatmul.mubr.f32.gmra.mxu0 %v271
        %v755 = vpop.f32.mrf.mxu0
        %v756 = vadd.f32 0.0, %v755
        %v757 = vpop.f32.mrf.mxu0
        %v758 = vadd.f32 0.0, %v757
        %759 = vmatprep.mubr.f32.mxu0 %v274
        %760 = vmatmul.mubr.f32.gmra.mxu0 %v273
        %v761 = vpop.f32.mrf.mxu0
        %v762 = vadd.f32 0.0, %v761
        %v763 = vpop.f32.mrf.mxu0
        %v764 = vadd.f32 0.0, %v763
        %765 = vmatprep.mubr.f32.mxu0 %v276
        %766 = vmatmul.mubr.f32.gmra.mxu0 %v275
        %v767 = vpop.f32.mrf.mxu0
        %v768 = vadd.f32 0.0, %v767
        %v769 = vpop.f32.mrf.mxu0
        %v770 = vadd.f32 0.0, %v769
        %771 = vdwg.mxu0
        %772 = vmatprep.subr.mxu0 %v561
        %773 = vmatpush1.msra.mxu0 %v560
        %774 = vmatprep.subr.mxu0 %v559
        %775 = vmatpush1.msra.mxu0 %v558
        %776 = vmatprep.subr.mxu0 %v557
        %777 = vmatpush1.msra.mxu0 %v556
        %778 = vmatprep.subr.mxu0 %v555
        %779 = vmatpush1.msra.mxu0 %v554
        %780 = vmatprep.subr.mxu0 %v553
        %781 = vmatpush1.msra.mxu0 %v552
        %782 = vmatprep.subr.mxu0 %v551
        %783 = vmatpush1.msra.mxu0 %v550
        %784 = vmatprep.subr.mxu0 %v549
        %785 = vmatpush1.msra.mxu0 %v548
        %786 = vmatprep.subr.mxu0 %v547
        %787 = vmatpush1.msra.mxu0 %v546
        %788 = vmatprep.subr.mxu0 %v545
        %789 = vmatpush1.msra.mxu0 %v544
        %790 = vmatprep.subr.mxu0 %v543
        %791 = vmatpush1.msra.mxu0 %v542
        %792 = vmatprep.subr.mxu0 %v541
        %793 = vmatpush1.msra.mxu0 %v540
        %794 = vmatprep.subr.mxu0 %v539
        %795 = vmatpush1.msra.mxu0 %v538
        %796 = vmatprep.subr.mxu0 %v537
        %797 = vmatpush1.msra.mxu0 %v536
        %798 = vmatprep.subr.mxu0 %v535
        %799 = vmatpush1.msra.mxu0 %v534
        %800 = vmatprep.subr.mxu0 %v533
        %801 = vmatpush1.msra.mxu0 %v532
        %802 = vmatprep.subr.mxu0 %v531
        %803 = vmatpush1.msra.mxu0 %v530
        %804 = vmatprep.subr.mxu0 %v593
        %805 = vmatpush2.msra.mxu0 %v592
        %806 = vmatprep.subr.mxu0 %v591
        %807 = vmatpush2.msra.mxu0 %v590
        %808 = vmatprep.subr.mxu0 %v589
        %809 = vmatpush2.msra.mxu0 %v588
        %810 = vmatprep.subr.mxu0 %v587
        %811 = vmatpush2.msra.mxu0 %v586
        %812 = vmatprep.subr.mxu0 %v585
        %813 = vmatpush2.msra.mxu0 %v584
        %814 = vmatprep.subr.mxu0 %v583
        %815 = vmatpush2.msra.mxu0 %v582
        %816 = vmatprep.subr.mxu0 %v581
        %817 = vmatpush2.msra.mxu0 %v580
        %818 = vmatprep.subr.mxu0 %v579
        %819 = vmatpush2.msra.mxu0 %v578
        %820 = vmatprep.subr.mxu0 %v577
        %821 = vmatpush2.msra.mxu0 %v576
        %822 = vmatprep.subr.mxu0 %v575
        %823 = vmatpush2.msra.mxu0 %v574
        %824 = vmatprep.subr.mxu0 %v573
        %825 = vmatpush2.msra.mxu0 %v572
        %826 = vmatprep.subr.mxu0 %v571
        %827 = vmatpush2.msra.mxu0 %v570
        %828 = vmatprep.subr.mxu0 %v569
        %829 = vmatpush2.msra.mxu0 %v568
        %830 = vmatprep.subr.mxu0 %v567
        %831 = vmatpush2.msra.mxu0 %v566
        %832 = vmatprep.subr.mxu0 %v565
        %833 = vmatpush2.msra.mxu0 %v564
        %834 = vmatprep.subr.mxu0 %v563
        %835 = vmatpush2.msra.mxu0 %v562
        %836 = vmatprep.mubr.f32.mxu0 %v466
        %837 = vmatmul.mubr.f32.gmra.mxu0 %v465
        %v838 = vpop.f32.mrf.mxu0
        %v839 = vadd.f32 %v726, %v838
        %v840 = vpop.f32.mrf.mxu0
        %v841 = vadd.f32 %v728, %v840
        %842 = vmatprep.mubr.f32.mxu0 %v468
        %843 = vmatmul.mubr.f32.gmra.mxu0 %v467
        %v844 = vpop.f32.mrf.mxu0
        %v845 = vadd.f32 %v732, %v844
        %v846 = vpop.f32.mrf.mxu0
        %v847 = vadd.f32 %v734, %v846
        %848 = vmatprep.mubr.f32.mxu0 %v470
        %849 = vmatmul.mubr.f32.gmra.mxu0 %v469
        %v850 = vpop.f32.mrf.mxu0
        %v851 = vadd.f32 %v738, %v850
        %v852 = vpop.f32.mrf.mxu0
        %v853 = vadd.f32 %v740, %v852
        %854 = vmatprep.mubr.f32.mxu0 %v472
        %855 = vmatmul.mubr.f32.gmra.mxu0 %v471
        %v856 = vpop.f32.mrf.mxu0
        %v857 = vadd.f32 %v744, %v856
        %v858 = vpop.f32.mrf.mxu0
        %v859 = vadd.f32 %v746, %v858
        %860 = vmatprep.mubr.f32.mxu0 %v474
        %861 = vmatmul.mubr.f32.gmra.mxu0 %v473
        %v862 = vpop.f32.mrf.mxu0
        %v863 = vadd.f32 %v750, %v862
        %v864 = vpop.f32.mrf.mxu0
        %v865 = vadd.f32 %v752, %v864
        %866 = vmatprep.mubr.f32.mxu0 %v476
        %867 = vmatmul.mubr.f32.gmra.mxu0 %v475
        %v868 = vpop.f32.mrf.mxu0
        %v869 = vadd.f32 %v756, %v868
        %v870 = vpop.f32.mrf.mxu0
        %v871 = vadd.f32 %v758, %v870
        %872 = vmatprep.mubr.f32.mxu0 %v478
        %873 = vmatmul.mubr.f32.gmra.mxu0 %v477
        %v874 = vpop.f32.mrf.mxu0
        %v875 = vadd.f32 %v762, %v874
        %v876 = vpop.f32.mrf.mxu0
        %v877 = vadd.f32 %v764, %v876
        %878 = vmatprep.mubr.f32.mxu0 %v480
        %879 = vmatmul.mubr.f32.gmra.mxu0 %v479
        %v880 = vpop.f32.mrf.mxu0
        %v881 = vadd.f32 %v768, %v880
        %v882 = vpop.f32.mrf.mxu0
        %v883 = vadd.f32 %v770, %v882
        %884 = vdwg.mxu0
        %s885 = scalar_lea.vmem [#allocation5], 1024
        %v886 = vld [vmem:[%s885] sm:$0xff]
        %v887 = vld [vmem:[%s885 + $0x8] sm:$0xff]
        %v888 = vld [vmem:[%s885 + $0x10] sm:$0xff]
        %v889 = vld [vmem:[%s885 + $0x18] sm:$0xff]
        %v890 = vld [vmem:[%s885 + $0x20] sm:$0xff]
        %v891 = vld [vmem:[%s885 + $0x28] sm:$0xff]
        %v892 = vld [vmem:[%s885 + $0x30] sm:$0xff]
        %v893 = vld [vmem:[%s885 + $0x38] sm:$0xff]
        %v894 = vld [vmem:[%s885 + $0x40] sm:$0xff]
        %v895 = vld [vmem:[%s885 + $0x48] sm:$0xff]
        %v896 = vld [vmem:[%s885 + $0x50] sm:$0xff]
        %v897 = vld [vmem:[%s885 + $0x58] sm:$0xff]
        %v898 = vld [vmem:[%s885 + $0x60] sm:$0xff]
        %v899 = vld [vmem:[%s885 + $0x68] sm:$0xff]
        %v900 = vld [vmem:[%s885 + $0x70] sm:$0xff]
        %v901 = vld [vmem:[%s885 + $0x78] sm:$0xff]
        %v902 = vld [vmem:[%s885 + $0x80] sm:$0xff]
        %v903 = vld [vmem:[%s885 + $0x88] sm:$0xff]
        %v904 = vld [vmem:[%s885 + $0x90] sm:$0xff]
        %v905 = vld [vmem:[%s885 + $0x98] sm:$0xff]
        %v906 = vld [vmem:[%s885 + $0xa0] sm:$0xff]
        %v907 = vld [vmem:[%s885 + $0xa8] sm:$0xff]
        %v908 = vld [vmem:[%s885 + $0xb0] sm:$0xff]
        %v909 = vld [vmem:[%s885 + $0xb8] sm:$0xff]
        %v910 = vld [vmem:[%s885 + $0xc0] sm:$0xff]
        %v911 = vld [vmem:[%s885 + $0xc8] sm:$0xff]
        %v912 = vld [vmem:[%s885 + $0xd0] sm:$0xff]
        %v913 = vld [vmem:[%s885 + $0xd8] sm:$0xff]
        %v914 = vld [vmem:[%s885 + $0xe0] sm:$0xff]
        %v915 = vld [vmem:[%s885 + $0xe8] sm:$0xff]
        %v916 = vld [vmem:[%s885 + $0xf0] sm:$0xff]
        %v917 = vld [vmem:[%s885 + $0xf8] sm:$0xff]
        %v918 = vld [vmem:[%s885 + $0x100] sm:$0xff]
        %v919 = vld [vmem:[%s885 + $0x108] sm:$0xff]
        %v920 = vld [vmem:[%s885 + $0x110] sm:$0xff]
        %v921 = vld [vmem:[%s885 + $0x118] sm:$0xff]
        %v922 = vld [vmem:[%s885 + $0x120] sm:$0xff]
        %v923 = vld [vmem:[%s885 + $0x128] sm:$0xff]
        %v924 = vld [vmem:[%s885 + $0x130] sm:$0xff]
        %v925 = vld [vmem:[%s885 + $0x138] sm:$0xff]
        %v926 = vld [vmem:[%s885 + $0x140] sm:$0xff]
        %v927 = vld [vmem:[%s885 + $0x148] sm:$0xff]
        %v928 = vld [vmem:[%s885 + $0x150] sm:$0xff]
        %v929 = vld [vmem:[%s885 + $0x158] sm:$0xff]
        %v930 = vld [vmem:[%s885 + $0x160] sm:$0xff]
        %v931 = vld [vmem:[%s885 + $0x168] sm:$0xff]
        %v932 = vld [vmem:[%s885 + $0x170] sm:$0xff]
        %v933 = vld [vmem:[%s885 + $0x178] sm:$0xff]
        %v934 = vld [vmem:[%s885 + $0x180] sm:$0xff]
        %v935 = vld [vmem:[%s885 + $0x188] sm:$0xff]
        %v936 = vld [vmem:[%s885 + $0x190] sm:$0xff]
        %v937 = vld [vmem:[%s885 + $0x198] sm:$0xff]
        %v938 = vld [vmem:[%s885 + $0x1a0] sm:$0xff]
        %v939 = vld [vmem:[%s885 + $0x1a8] sm:$0xff]
        %v940 = vld [vmem:[%s885 + $0x1b0] sm:$0xff]
        %v941 = vld [vmem:[%s885 + $0x1b8] sm:$0xff]
        %v942 = vld [vmem:[%s885 + $0x1c0] sm:$0xff]
        %v943 = vld [vmem:[%s885 + $0x1c8] sm:$0xff]
        %v944 = vld [vmem:[%s885 + $0x1d0] sm:$0xff]
        %v945 = vld [vmem:[%s885 + $0x1d8] sm:$0xff]
        %v946 = vld [vmem:[%s885 + $0x1e0] sm:$0xff]
        %v947 = vld [vmem:[%s885 + $0x1e8] sm:$0xff]
        %v948 = vld [vmem:[%s885 + $0x1f0] sm:$0xff]
        %v949 = vld [vmem:[%s885 + $0x1f8] sm:$0xff]
        %950 = vmatprep.subr.mxu0 %v917
        %951 = vmatpush1.msra.mxu0 %v916
        %952 = vmatprep.subr.mxu0 %v915
        %953 = vmatpush1.msra.mxu0 %v914
        %954 = vmatprep.subr.mxu0 %v913
        %955 = vmatpush1.msra.mxu0 %v912
        %956 = vmatprep.subr.mxu0 %v911
        %957 = vmatpush1.msra.mxu0 %v910
        %958 = vmatprep.subr.mxu0 %v909
        %959 = vmatpush1.msra.mxu0 %v908
        %960 = vmatprep.subr.mxu0 %v907
        %961 = vmatpush1.msra.mxu0 %v906
        %962 = vmatprep.subr.mxu0 %v905
        %963 = vmatpush1.msra.mxu0 %v904
        %964 = vmatprep.subr.mxu0 %v903
        %965 = vmatpush1.msra.mxu0 %v902
        %966 = vmatprep.subr.mxu0 %v901
        %967 = vmatpush1.msra.mxu0 %v900
        %968 = vmatprep.subr.mxu0 %v899
        %969 = vmatpush1.msra.mxu0 %v898
        %970 = vmatprep.subr.mxu0 %v897
        %971 = vmatpush1.msra.mxu0 %v896
        %972 = vmatprep.subr.mxu0 %v895
        %973 = vmatpush1.msra.mxu0 %v894
        %974 = vmatprep.subr.mxu0 %v893
        %975 = vmatpush1.msra.mxu0 %v892
        %976 = vmatprep.subr.mxu0 %v891
        %977 = vmatpush1.msra.mxu0 %v890
        %978 = vmatprep.subr.mxu0 %v889
        %979 = vmatpush1.msra.mxu0 %v888
        %980 = vmatprep.subr.mxu0 %v887
        %981 = vmatpush1.msra.mxu0 %v886
        %982 = vmatprep.subr.mxu0 %v949
        %983 = vmatpush2.msra.mxu0 %v948
        %984 = vmatprep.subr.mxu0 %v947
        %985 = vmatpush2.msra.mxu0 %v946
        %986 = vmatprep.subr.mxu0 %v945
        %987 = vmatpush2.msra.mxu0 %v944
        %988 = vmatprep.subr.mxu0 %v943
        %989 = vmatpush2.msra.mxu0 %v942
        %990 = vmatprep.subr.mxu0 %v941
        %991 = vmatpush2.msra.mxu0 %v940
        %992 = vmatprep.subr.mxu0 %v939
        %993 = vmatpush2.msra.mxu0 %v938
        %994 = vmatprep.subr.mxu0 %v937
        %995 = vmatpush2.msra.mxu0 %v936
        %996 = vmatprep.subr.mxu0 %v935
        %997 = vmatpush2.msra.mxu0 %v934
        %998 = vmatprep.subr.mxu0 %v933
        %999 = vmatpush2.msra.mxu0 %v932
        %1000 = vmatprep.subr.mxu0 %v931
        %1001 = vmatpush2.msra.mxu0 %v930
        %1002 = vmatprep.subr.mxu0 %v929
        %1003 = vmatpush2.msra.mxu0 %v928
        %1004 = vmatprep.subr.mxu0 %v927
        %1005 = vmatpush2.msra.mxu0 %v926
        %1006 = vmatprep.subr.mxu0 %v925
        %1007 = vmatpush2.msra.mxu0 %v924
        %1008 = vmatprep.subr.mxu0 %v923
        %1009 = vmatpush2.msra.mxu0 %v922
        %1010 = vmatprep.subr.mxu0 %v921
        %1011 = vmatpush2.msra.mxu0 %v920
        %1012 = vmatprep.subr.mxu0 %v919
        %1013 = vmatpush2.msra.mxu0 %v918
        %1014 = vmatprep.mubr.f32.mxu0 %v515
        %1015 = vmatmul.mubr.f32.gmra.mxu0 %v514
        %v1016 = vpop.f32.mrf.mxu0
        %v1017 = vadd.f32 0.0, %v1016
        %v1018 = vpop.f32.mrf.mxu0
        %v1019 = vadd.f32 0.0, %v1018
        %1020 = vmatprep.mubr.f32.mxu0 %v517
        %1021 = vmatmul.mubr.f32.gmra.mxu0 %v516
        %v1022 = vpop.f32.mrf.mxu0
        %v1023 = vadd.f32 0.0, %v1022
        %v1024 = vpop.f32.mrf.mxu0
        %v1025 = vadd.f32 0.0, %v1024
        %1026 = vmatprep.mubr.f32.mxu0 %v519
        %1027 = vmatmul.mubr.f32.gmra.mxu0 %v518
        %v1028 = vpop.f32.mrf.mxu0
        %v1029 = vadd.f32 0.0, %v1028
        %v1030 = vpop.f32.mrf.mxu0
        %v1031 = vadd.f32 0.0, %v1030
        %1032 = vmatprep.mubr.f32.mxu0 %v521
        %1033 = vmatmul.mubr.f32.gmra.mxu0 %v520
        %v1034 = vpop.f32.mrf.mxu0
        %v1035 = vadd.f32 0.0, %v1034
        %v1036 = vpop.f32.mrf.mxu0
        %v1037 = vadd.f32 0.0, %v1036
        %1038 = vmatprep.mubr.f32.mxu0 %v523
        %1039 = vmatmul.mubr.f32.gmra.mxu0 %v522
        %v1040 = vpop.f32.mrf.mxu0
        %v1041 = vadd.f32 0.0, %v1040
        %v1042 = vpop.f32.mrf.mxu0
        %v1043 = vadd.f32 0.0, %v1042
        %1044 = vmatprep.mubr.f32.mxu0 %v525
        %1045 = vmatmul.mubr.f32.gmra.mxu0 %v524
        %v1046 = vpop.f32.mrf.mxu0
        %v1047 = vadd.f32 0.0, %v1046
        %v1048 = vpop.f32.mrf.mxu0
        %v1049 = vadd.f32 0.0, %v1048
        %1050 = vmatprep.mubr.f32.mxu0 %v527
        %1051 = vmatmul.mubr.f32.gmra.mxu0 %v526
        %v1052 = vpop.f32.mrf.mxu0
        %v1053 = vadd.f32 0.0, %v1052
        %v1054 = vpop.f32.mrf.mxu0
        %v1055 = vadd.f32 0.0, %v1054
        %1056 = vmatprep.mubr.f32.mxu0 %v529
        %1057 = vmatmul.mubr.f32.gmra.mxu0 %v528
        %v1058 = vpop.f32.mrf.mxu0
        %v1059 = vadd.f32 0.0, %v1058
        %v1060 = vpop.f32.mrf.mxu0
        %v1061 = vadd.f32 0.0, %v1060
        %1062 = vdwg.mxu0
        %v1063 = vadd.f32 %v839, %v1017
        %v1064 = vadd.f32 %v841, %v1019
        %v1065 = vadd.f32 %v845, %v1023
        %v1066 = vadd.f32 %v847, %v1025
        %v1067 = vadd.f32 %v851, %v1029
        %v1068 = vadd.f32 %v853, %v1031
        %v1069 = vadd.f32 %v857, %v1035
        %v1070 = vadd.f32 %v859, %v1037
        %v1071 = vadd.f32 %v863, %v1041
        %v1072 = vadd.f32 %v865, %v1043
        %v1073 = vadd.f32 %v869, %v1047
        %v1074 = vadd.f32 %v871, %v1049
        %v1075 = vadd.f32 %v875, %v1053
        %v1076 = vadd.f32 %v877, %v1055
        %v1077 = vadd.f32 %v881, %v1059
        %v1078 = vadd.f32 %v883, %v1061
        %v1079 = vlaneseq
        %v1080 = vshrl.u32 %v1079, 7
        %v1081 = vsub.s32 0, %v1080
        %v1082 = vrot.slane %v277, %v1081
        %v1083 = vlaneseq
        %v1084 = vshrl.u32 %v1083, 7
        %v1085 = vsub.s32 0, %v1084
        %v1086 = vrot.slane %v278, %v1085
        %v1087 = vadd.f32 %v1063, %v1082
        %v1088 = vadd.f32 %v1064, %v1086
        %v1089 = vadd.f32 %v1065, %v1082
        %v1090 = vadd.f32 %v1066, %v1086
        %v1091 = vadd.f32 %v1067, %v1082
        %v1092 = vadd.f32 %v1068, %v1086
        %v1093 = vadd.f32 %v1069, %v1082
        %v1094 = vadd.f32 %v1070, %v1086
        %v1095 = vadd.f32 %v1071, %v1082
        %v1096 = vadd.f32 %v1072, %v1086
        %v1097 = vadd.f32 %v1073, %v1082
        %v1098 = vadd.f32 %v1074, %v1086
        %v1099 = vadd.f32 %v1075, %v1082
        %v1100 = vadd.f32 %v1076, %v1086
        %v1101 = vadd.f32 %v1077, %v1082
        %v1102 = vadd.f32 %v1078, %v1086
        %v1103 = vadd.f32 %v1087, %v1089
        %v1104 = vrot.slane %v1103, 4
        %v1105 = vadd.f32 %v1103, %v1104
        %v1106 = vrot.slane %v1105, 2
        %v1107 = vadd.f32 %v1105, %v1106
        %v1108 = vrot.slane %v1107, 1
        %v1109 = vadd.f32 %v1107, %v1108
        %v1110 = vadd.f32 %v1088, %v1090
        %v1111 = vrot.slane %v1110, 4
        %v1112 = vadd.f32 %v1110, %v1111
        %v1113 = vrot.slane %v1112, 2
        %v1114 = vadd.f32 %v1112, %v1113
        %v1115 = vrot.slane %v1114, 1
        %v1116 = vadd.f32 %v1114, %v1115
        %v1117 = vadd.f32 %v1091, %v1093
        %v1118 = vrot.slane %v1117, 4
        %v1119 = vadd.f32 %v1117, %v1118
        %v1120 = vrot.slane %v1119, 2
        %v1121 = vadd.f32 %v1119, %v1120
        %v1122 = vrot.slane %v1121, 1
        %v1123 = vadd.f32 %v1121, %v1122
        %v1124 = vadd.f32 %v1092, %v1094
        %v1125 = vrot.slane %v1124, 4
        %v1126 = vadd.f32 %v1124, %v1125
        %v1127 = vrot.slane %v1126, 2
        %v1128 = vadd.f32 %v1126, %v1127
        %v1129 = vrot.slane %v1128, 1
        %v1130 = vadd.f32 %v1128, %v1129
        %v1131 = vadd.f32 %v1095, %v1097
        %v1132 = vrot.slane %v1131, 4
        %v1133 = vadd.f32 %v1131, %v1132
        %v1134 = vrot.slane %v1133, 2
        %v1135 = vadd.f32 %v1133, %v1134
        %v1136 = vrot.slane %v1135, 1
        %v1137 = vadd.f32 %v1135, %v1136
        %v1138 = vadd.f32 %v1096, %v1098
        %v1139 = vrot.slane %v1138, 4
        %v1140 = vadd.f32 %v1138, %v1139
        %v1141 = vrot.slane %v1140, 2
        %v1142 = vadd.f32 %v1140, %v1141
        %v1143 = vrot.slane %v1142, 1
        %v1144 = vadd.f32 %v1142, %v1143
        %v1145 = vadd.f32 %v1099, %v1101
        %v1146 = vrot.slane %v1145, 4
        %v1147 = vadd.f32 %v1145, %v1146
        %v1148 = vrot.slane %v1147, 2
        %v1149 = vadd.f32 %v1147, %v1148
        %v1150 = vrot.slane %v1149, 1
        %v1151 = vadd.f32 %v1149, %v1150
        %v1152 = vadd.f32 %v1100, %v1102
        %v1153 = vrot.slane %v1152, 4
        %v1154 = vadd.f32 %v1152, %v1153
        %v1155 = vrot.slane %v1154, 2
        %v1156 = vadd.f32 %v1154, %v1155
        %v1157 = vrot.slane %v1156, 1
        %v1158 = vadd.f32 %v1156, %v1157
        %v1159 = vmul.f32 %v1087, %v1087
        %v1160 = vmul.f32 %v1088, %v1088
        %v1161 = vmul.f32 %v1089, %v1089
        %v1162 = vmul.f32 %v1090, %v1090
        %v1163 = vmul.f32 %v1091, %v1091
        %v1164 = vmul.f32 %v1092, %v1092
        %v1165 = vmul.f32 %v1093, %v1093
        %v1166 = vmul.f32 %v1094, %v1094
        %v1167 = vmul.f32 %v1095, %v1095
        %v1168 = vmul.f32 %v1096, %v1096
        %v1169 = vmul.f32 %v1097, %v1097
        %v1170 = vmul.f32 %v1098, %v1098
        %v1171 = vmul.f32 %v1099, %v1099
        %v1172 = vmul.f32 %v1100, %v1100
        %v1173 = vmul.f32 %v1101, %v1101
        %v1174 = vmul.f32 %v1102, %v1102
        %v1175 = vadd.f32 %v1159, %v1161
        %v1176 = vrot.slane %v1175, 4
        %v1177 = vadd.f32 %v1175, %v1176
        %v1178 = vrot.slane %v1177, 2
        %v1179 = vadd.f32 %v1177, %v1178
        %v1180 = vrot.slane %v1179, 1
        %v1181 = vadd.f32 %v1179, %v1180
        %v1182 = vadd.f32 %v1160, %v1162
        %v1183 = vrot.slane %v1182, 4
        %v1184 = vadd.f32 %v1182, %v1183
        %v1185 = vrot.slane %v1184, 2
        %v1186 = vadd.f32 %v1184, %v1185
        %v1187 = vrot.slane %v1186, 1
        %v1188 = vadd.f32 %v1186, %v1187
        %v1189 = vadd.f32 %v1163, %v1165
        %v1190 = vrot.slane %v1189, 4
        %v1191 = vadd.f32 %v1189, %v1190
        %v1192 = vrot.slane %v1191, 2
        %v1193 = vadd.f32 %v1191, %v1192
        %v1194 = vrot.slane %v1193, 1
        %v1195 = vadd.f32 %v1193, %v1194
        %v1196 = vadd.f32 %v1164, %v1166
        %v1197 = vrot.slane %v1196, 4
        %v1198 = vadd.f32 %v1196, %v1197
        %v1199 = vrot.slane %v1198, 2
        %v1200 = vadd.f32 %v1198, %v1199
        %v1201 = vrot.slane %v1200, 1
        %v1202 = vadd.f32 %v1200, %v1201
        %v1203 = vadd.f32 %v1167, %v1169
        %v1204 = vrot.slane %v1203, 4
        %v1205 = vadd.f32 %v1203, %v1204
        %v1206 = vrot.slane %v1205, 2
        %v1207 = vadd.f32 %v1205, %v1206
        %v1208 = vrot.slane %v1207, 1
        %v1209 = vadd.f32 %v1207, %v1208
        %v1210 = vadd.f32 %v1168, %v1170
        %v1211 = vrot.slane %v1210, 4
        %v1212 = vadd.f32 %v1210, %v1211
        %v1213 = vrot.slane %v1212, 2
        %v1214 = vadd.f32 %v1212, %v1213
        %v1215 = vrot.slane %v1214, 1
        %v1216 = vadd.f32 %v1214, %v1215
        %v1217 = vadd.f32 %v1171, %v1173
        %v1218 = vrot.slane %v1217, 4
        %v1219 = vadd.f32 %v1217, %v1218
        %v1220 = vrot.slane %v1219, 2
        %v1221 = vadd.f32 %v1219, %v1220
        %v1222 = vrot.slane %v1221, 1
        %v1223 = vadd.f32 %v1221, %v1222
        %v1224 = vadd.f32 %v1172, %v1174
        %v1225 = vrot.slane %v1224, 4
        %v1226 = vadd.f32 %v1224, %v1225
        %v1227 = vrot.slane %v1226, 2
        %v1228 = vadd.f32 %v1226, %v1227
        %v1229 = vrot.slane %v1228, 1
        %v1230 = vadd.f32 %v1228, %v1229
        %v1231 = vmul.f32 %v1109, %v277
        %v1232 = vmul.f32 %v1116, %v278
        %v1233 = vmul.f32 %v1123, %v277
        %v1234 = vmul.f32 %v1130, %v278
        %v1235 = vmul.f32 %v1137, %v277
        %v1236 = vmul.f32 %v1144, %v278
        %v1237 = vmul.f32 %v1151, %v277
        %v1238 = vmul.f32 %v1158, %v278
        %vm1239 = vcmask 1047558
        %v1240 = vsel %vm1239, %v1231, 0.0
        %v1241 = vsel %vm1239, %v1232, 0.0
        %v1242 = vadd.f32 %v1240, %v1241
        %1243 = vadd.xlane.f32.xlu0 %v1242
        %v1244 = vpop.xlane.xlu0 %1243
        %v1245 = vsel %vm1239, %v1233, 0.0
        %v1246 = vsel %vm1239, %v1234, 0.0
        %v1247 = vadd.f32 %v1245, %v1246
        %1248 = vadd.xlane.f32.xlu0 %v1247
        %v1249 = vpop.xlane.xlu0 %1248
        %v1250 = vsel %vm1239, %v1235, 0.0
        %v1251 = vsel %vm1239, %v1236, 0.0
        %v1252 = vadd.f32 %v1250, %v1251
        %1253 = vadd.xlane.f32.xlu0 %v1252
        %v1254 = vpop.xlane.xlu0 %1253
        %v1255 = vsel %vm1239, %v1237, 0.0
        %v1256 = vsel %vm1239, %v1238, 0.0
        %v1257 = vadd.f32 %v1255, %v1256
        %1258 = vadd.xlane.f32.xlu0 %v1257
        %v1259 = vpop.xlane.xlu0 %1258
        %v1260 = vmul.f32 %v1181, %v277
        %v1261 = vmul.f32 %v1188, %v278
        %v1262 = vmul.f32 %v1195, %v277
        %v1263 = vmul.f32 %v1202, %v278
        %v1264 = vmul.f32 %v1209, %v277
        %v1265 = vmul.f32 %v1216, %v278
        %v1266 = vmul.f32 %v1223, %v277
        %v1267 = vmul.f32 %v1230, %v278
        %v1268 = vsel %vm1239, %v1260, 0.0
        %v1269 = vsel %vm1239, %v1261, 0.0
        %v1270 = vadd.f32 %v1268, %v1269
        %1271 = vadd.xlane.f32.xlu0 %v1270
        %v1272 = vpop.xlane.xlu0 %1271
        %v1273 = vsel %vm1239, %v1262, 0.0
        %v1274 = vsel %vm1239, %v1263, 0.0
        %v1275 = vadd.f32 %v1273, %v1274
        %1276 = vadd.xlane.f32.xlu0 %v1275
        %v1277 = vpop.xlane.xlu0 %1276
        %v1278 = vsel %vm1239, %v1264, 0.0
        %v1279 = vsel %vm1239, %v1265, 0.0
        %v1280 = vadd.f32 %v1278, %v1279
        %1281 = vadd.xlane.f32.xlu0 %v1280
        %v1282 = vpop.xlane.xlu0 %1281
        %v1283 = vsel %vm1239, %v1266, 0.0
        %v1284 = vsel %vm1239, %v1267, 0.0
        %v1285 = vadd.f32 %v1283, %v1284
        %1286 = vadd.xlane.f32.xlu0 %v1285
        %v1287 = vpop.xlane.xlu0 %1286
        %v1288 = vmul.f32 %v1244, 0.00048828125
        %v1289 = vmul.f32 %v1249, 0.00048828125
        %v1290 = vmul.f32 %v1254, 0.00048828125
        %v1291 = vmul.f32 %v1259, 0.00048828125
        %v1292 = vmul.f32 %v1272, 0.00048828125
        %v1293 = vmul.f32 %v1277, 0.00048828125
        %v1294 = vmul.f32 %v1282, 0.00048828125
        %v1295 = vmul.f32 %v1287, 0.00048828125
        %v1296 = vmul.f32 %v1288, %v1288
        %v1297 = vmul.f32 %v1289, %v1289
        %v1298 = vmul.f32 %v1290, %v1290
        %v1299 = vmul.f32 %v1291, %v1291
        %v1300 = vsub.f32 %v1292, %v1296
        %v1301 = vsub.f32 %v1293, %v1297
        %v1302 = vsub.f32 %v1294, %v1298
        %v1303 = vsub.f32 %v1295, %v1299
        %v1304 = vmax.f32 %v1300, 0.0
        %v1305 = vmax.f32 %v1301, 0.0
        %v1306 = vmax.f32 %v1302, 0.0
        %v1307 = vmax.f32 %v1303, 0.0
        %v1308 = vmul.f32 %v277, %v1288
        %v1309 = vmul.f32 %v278, %v1288
        %v1310 = vmul.f32 %v277, %v1289
        %v1311 = vmul.f32 %v278, %v1289
        %v1312 = vmul.f32 %v277, %v1290
        %v1313 = vmul.f32 %v278, %v1290
        %v1314 = vmul.f32 %v277, %v1291
        %v1315 = vmul.f32 %v278, %v1291
        %v1324 = vrot.slane %v1308, 6
        %v1325 = vrot.slane %v1309, 6
        %v1326 = vrot.slane %v1310, 6
        %v1327 = vrot.slane %v1311, 6
        %v1328 = vrot.slane %v1312, 6
        %v1329 = vrot.slane %v1313, 6
        %v1330 = vrot.slane %v1314, 6
        %v1331 = vrot.slane %v1315, 6
        %vm1340 = vcmask 1041408
        %v1341 = vsel %vm1340, %v1324, 0.0
        %v1342 = vrot.slane %v1341, 4
        %v1343 = vadd.f32 %v1341, %v1342
        %v1344 = vrot.slane %v1343, 2
        %v1345 = vadd.f32 %v1343, %v1344
        %v1346 = vrot.slane %v1345, 1
        %v1347 = vadd.f32 %v1345, %v1346
        %v1348 = vsel %vm1340, %v1325, 0.0
        %v1349 = vrot.slane %v1348, 4
        %v1350 = vadd.f32 %v1348, %v1349
        %v1351 = vrot.slane %v1350, 2
        %v1352 = vadd.f32 %v1350, %v1351
        %v1353 = vrot.slane %v1352, 1
        %v1354 = vadd.f32 %v1352, %v1353
        %v1355 = vsel %vm1340, %v1326, 0.0
        %v1356 = vrot.slane %v1355, 4
        %v1357 = vadd.f32 %v1355, %v1356
        %v1358 = vrot.slane %v1357, 2
        %v1359 = vadd.f32 %v1357, %v1358
        %v1360 = vrot.slane %v1359, 1
        %v1361 = vadd.f32 %v1359, %v1360
        %v1362 = vsel %vm1340, %v1327, 0.0
        %v1363 = vrot.slane %v1362, 4
        %v1364 = vadd.f32 %v1362, %v1363
        %v1365 = vrot.slane %v1364, 2
        %v1366 = vadd.f32 %v1364, %v1365
        %v1367 = vrot.slane %v1366, 1
        %v1368 = vadd.f32 %v1366, %v1367
        %v1369 = vsel %vm1340, %v1328, 0.0
        %v1370 = vrot.slane %v1369, 4
        %v1371 = vadd.f32 %v1369, %v1370
        %v1372 = vrot.slane %v1371, 2
        %v1373 = vadd.f32 %v1371, %v1372
        %v1374 = vrot.slane %v1373, 1
        %v1375 = vadd.f32 %v1373, %v1374
        %v1376 = vsel %vm1340, %v1329, 0.0
        %v1377 = vrot.slane %v1376, 4
        %v1378 = vadd.f32 %v1376, %v1377
        %v1379 = vrot.slane %v1378, 2
        %v1380 = vadd.f32 %v1378, %v1379
        %v1381 = vrot.slane %v1380, 1
        %v1382 = vadd.f32 %v1380, %v1381
        %v1383 = vsel %vm1340, %v1330, 0.0
        %v1384 = vrot.slane %v1383, 4
        %v1385 = vadd.f32 %v1383, %v1384
        %v1386 = vrot.slane %v1385, 2
        %v1387 = vadd.f32 %v1385, %v1386
        %v1388 = vrot.slane %v1387, 1
        %v1389 = vadd.f32 %v1387, %v1388
        %v1390 = vsel %vm1340, %v1331, 0.0
        %v1391 = vrot.slane %v1390, 4
        %v1392 = vadd.f32 %v1390, %v1391
        %v1393 = vrot.slane %v1392, 2
        %v1394 = vadd.f32 %v1392, %v1393
        %v1395 = vrot.slane %v1394, 1
        %v1396 = vadd.f32 %v1394, %v1395
        %v1397 = vmul.f32 %v277, %v1304
        %v1398 = vmul.f32 %v278, %v1304
        %v1399 = vmul.f32 %v277, %v1305
        %v1400 = vmul.f32 %v278, %v1305
        %v1401 = vmul.f32 %v277, %v1306
        %v1402 = vmul.f32 %v278, %v1306
        %v1403 = vmul.f32 %v277, %v1307
        %v1404 = vmul.f32 %v278, %v1307
        %v1413 = vrot.slane %v1397, 6
        %v1414 = vrot.slane %v1398, 6
        %v1415 = vrot.slane %v1399, 6
        %v1416 = vrot.slane %v1400, 6
        %v1417 = vrot.slane %v1401, 6
        %v1418 = vrot.slane %v1402, 6
        %v1419 = vrot.slane %v1403, 6
        %v1420 = vrot.slane %v1404, 6
        %v1429 = vsel %vm1340, %v1413, 0.0
        %v1430 = vrot.slane %v1429, 4
        %v1431 = vadd.f32 %v1429, %v1430
        %v1432 = vrot.slane %v1431, 2
        %v1433 = vadd.f32 %v1431, %v1432
        %v1434 = vrot.slane %v1433, 1
        %v1435 = vadd.f32 %v1433, %v1434
        %v1436 = vsel %vm1340, %v1414, 0.0
        %v1437 = vrot.slane %v1436, 4
        %v1438 = vadd.f32 %v1436, %v1437
        %v1439 = vrot.slane %v1438, 2
        %v1440 = vadd.f32 %v1438, %v1439
        %v1441 = vrot.slane %v1440, 1
        %v1442 = vadd.f32 %v1440, %v1441
        %v1443 = vsel %vm1340, %v1415, 0.0
        %v1444 = vrot.slane %v1443, 4
        %v1445 = vadd.f32 %v1443, %v1444
        %v1446 = vrot.slane %v1445, 2
        %v1447 = vadd.f32 %v1445, %v1446
        %v1448 = vrot.slane %v1447, 1
        %v1449 = vadd.f32 %v1447, %v1448
        %v1450 = vsel %vm1340, %v1416, 0.0
        %v1451 = vrot.slane %v1450, 4
        %v1452 = vadd.f32 %v1450, %v1451
        %v1453 = vrot.slane %v1452, 2
        %v1454 = vadd.f32 %v1452, %v1453
        %v1455 = vrot.slane %v1454, 1
        %v1456 = vadd.f32 %v1454, %v1455
        %v1457 = vsel %vm1340, %v1417, 0.0
        %v1458 = vrot.slane %v1457, 4
        %v1459 = vadd.f32 %v1457, %v1458
        %v1460 = vrot.slane %v1459, 2
        %v1461 = vadd.f32 %v1459, %v1460
        %v1462 = vrot.slane %v1461, 1
        %v1463 = vadd.f32 %v1461, %v1462
        %v1464 = vsel %vm1340, %v1418, 0.0
        %v1465 = vrot.slane %v1464, 4
        %v1466 = vadd.f32 %v1464, %v1465
        %v1467 = vrot.slane %v1466, 2
        %v1468 = vadd.f32 %v1466, %v1467
        %v1469 = vrot.slane %v1468, 1
        %v1470 = vadd.f32 %v1468, %v1469
        %v1471 = vsel %vm1340, %v1419, 0.0
        %v1472 = vrot.slane %v1471, 4
        %v1473 = vadd.f32 %v1471, %v1472
        %v1474 = vrot.slane %v1473, 2
        %v1475 = vadd.f32 %v1473, %v1474
        %v1476 = vrot.slane %v1475, 1
        %v1477 = vadd.f32 %v1475, %v1476
        %v1478 = vsel %vm1340, %v1420, 0.0
        %v1479 = vrot.slane %v1478, 4
        %v1480 = vadd.f32 %v1478, %v1479
        %v1481 = vrot.slane %v1480, 2
        %v1482 = vadd.f32 %v1480, %v1481
        %v1483 = vrot.slane %v1482, 1
        %v1484 = vadd.f32 %v1482, %v1483
        %v1485 = vadd.f32 %v1435, 1e-05
        %v1486 = vadd.f32 %v1442, 1e-05
        %v1487 = vadd.f32 %v1449, 1e-05
        %v1488 = vadd.f32 %v1456, 1e-05
        %v1489 = vadd.f32 %v1463, 1e-05
        %v1490 = vadd.f32 %v1470, 1e-05
        %v1491 = vadd.f32 %v1477, 1e-05
        %v1492 = vadd.f32 %v1484, 1e-05
        %v1493 = vrsqrt.pop %v1485
        %v1494 = vrsqrt.pop %v1486
        %v1495 = vrsqrt.pop %v1487
        %v1496 = vrsqrt.pop %v1488
        %v1497 = vrsqrt.pop %v1489
        %v1498 = vrsqrt.pop %v1490
        %v1499 = vrsqrt.pop %v1491
        %v1500 = vrsqrt.pop %v1492
        %v1501 = vsub.f32 %v1087, %v1347
        %v1502 = vsub.f32 %v1088, %v1354
        %v1503 = vsub.f32 %v1089, %v1347
        %v1504 = vsub.f32 %v1090, %v1354
        %v1505 = vsub.f32 %v1091, %v1361
        %v1506 = vsub.f32 %v1092, %v1368
        %v1507 = vsub.f32 %v1093, %v1361
        %v1508 = vsub.f32 %v1094, %v1368
        %v1509 = vsub.f32 %v1095, %v1375
        %v1510 = vsub.f32 %v1096, %v1382
        %v1511 = vsub.f32 %v1097, %v1375
        %v1512 = vsub.f32 %v1098, %v1382
        %v1513 = vsub.f32 %v1099, %v1389
        %v1514 = vsub.f32 %v1100, %v1396
        %v1515 = vsub.f32 %v1101, %v1389
        %v1516 = vsub.f32 %v1102, %v1396
        %v1517 = vmul.f32 %v1501, %v1493
        %v1518 = vmul.f32 %v1502, %v1494
        %v1519 = vmul.f32 %v1503, %v1493
        %v1520 = vmul.f32 %v1504, %v1494
        %v1521 = vmul.f32 %v1505, %v1495
        %v1522 = vmul.f32 %v1506, %v1496
        %v1523 = vmul.f32 %v1507, %v1495
        %v1524 = vmul.f32 %v1508, %v1496
        %v1525 = vmul.f32 %v1509, %v1497
        %v1526 = vmul.f32 %v1510, %v1498
        %v1527 = vmul.f32 %v1511, %v1497
        %v1528 = vmul.f32 %v1512, %v1498
        %v1529 = vmul.f32 %v1513, %v1499
        %v1530 = vmul.f32 %v1514, %v1500
        %v1531 = vmul.f32 %v1515, %v1499
        %v1532 = vmul.f32 %v1516, %v1500
        %v1533 = vlaneseq
        %v1534 = vshrl.u32 %v1533, 7
        %v1535 = vsub.s32 1, %v1534
        %v1536 = vrot.slane %v277, %v1535
        %v1537 = vlaneseq
        %v1538 = vshrl.u32 %v1537, 7
        %v1539 = vsub.s32 1, %v1538
        %v1540 = vrot.slane %v278, %v1539
        %v1541 = vmul.f32 %v1517, %v1536
        %v1542 = vmul.f32 %v1518, %v1540
        %v1543 = vmul.f32 %v1519, %v1536
        %v1544 = vmul.f32 %v1520, %v1540
        %v1545 = vmul.f32 %v1521, %v1536
        %v1546 = vmul.f32 %v1522, %v1540
        %v1547 = vmul.f32 %v1523, %v1536
        %v1548 = vmul.f32 %v1524, %v1540
        %v1549 = vmul.f32 %v1525, %v1536
        %v1550 = vmul.f32 %v1526, %v1540
        %v1551 = vmul.f32 %v1527, %v1536
        %v1552 = vmul.f32 %v1528, %v1540
        %v1553 = vmul.f32 %v1529, %v1536
        %v1554 = vmul.f32 %v1530, %v1540
        %v1555 = vmul.f32 %v1531, %v1536
        %v1556 = vmul.f32 %v1532, %v1540
        %v1557 = vlaneseq
        %v1558 = vshrl.u32 %v1557, 7
        %v1559 = vsub.s32 2, %v1558
        %v1560 = vrot.slane %v277, %v1559
        %v1561 = vlaneseq
        %v1562 = vshrl.u32 %v1561, 7
        %v1563 = vsub.s32 2, %v1562
        %v1564 = vrot.slane %v278, %v1563
        %v1565 = vadd.f32 %v1541, %v1560
        %v1566 = vadd.f32 %v1542, %v1564
        %v1567 = vadd.f32 %v1543, %v1560
        %v1568 = vadd.f32 %v1544, %v1564
        %v1569 = vadd.f32 %v1545, %v1560
        %v1570 = vadd.f32 %v1546, %v1564
        %v1571 = vadd.f32 %v1547, %v1560
        %v1572 = vadd.f32 %v1548, %v1564
        %v1573 = vadd.f32 %v1549, %v1560
        %v1574 = vadd.f32 %v1550, %v1564
        %v1575 = vadd.f32 %v1551, %v1560
        %v1576 = vadd.f32 %v1552, %v1564
        %v1577 = vadd.f32 %v1553, %v1560
        %v1578 = vadd.f32 %v1554, %v1564
        %v1579 = vadd.f32 %v1555, %v1560
        %v1580 = vadd.f32 %v1556, %v1564
        %v1581 = vmax.f32 %v1565, 0.0
        %v1582 = vmax.f32 %v1566, 0.0
        %v1583 = vmax.f32 %v1567, 0.0
        %v1584 = vmax.f32 %v1568, 0.0
        %v1585 = vmax.f32 %v1569, 0.0
        %v1586 = vmax.f32 %v1570, 0.0
        %v1587 = vmax.f32 %v1571, 0.0
        %v1588 = vmax.f32 %v1572, 0.0
        %v1589 = vmax.f32 %v1573, 0.0
        %v1590 = vmax.f32 %v1574, 0.0
        %v1591 = vmax.f32 %v1575, 0.0
        %v1592 = vmax.f32 %v1576, 0.0
        %v1593 = vmax.f32 %v1577, 0.0
        %v1594 = vmax.f32 %v1578, 0.0
        %v1595 = vmax.f32 %v1579, 0.0
        %v1596 = vmax.f32 %v1580, 0.0
        %v1597 = vrot.slane %v1581, 7
        %v1598 = vrot.slane %v1582, 7
        %v1599 = vrot.slane %v1583, 7
        %v1600 = vrot.slane %v1584, 7
        %v1601 = vrot.slane %v1585, 7
        %v1602 = vrot.slane %v1586, 7
        %v1603 = vrot.slane %v1587, 7
        %v1604 = vrot.slane %v1588, 7
        %v1605 = vrot.slane %v1589, 7
        %v1606 = vrot.slane %v1590, 7
        %v1607 = vrot.slane %v1591, 7
        %v1608 = vrot.slane %v1592, 7
        %v1609 = vrot.slane %v1593, 7
        %v1610 = vrot.slane %v1594, 7
        %v1611 = vrot.slane %v1595, 7
        %v1612 = vrot.slane %v1596, 7
        %v1613 = vsel %vm448, %v1609, %v1611
        %v1614 = vsel %vm448, %v1610, %v1612
        %v1615 = vsel %vm448, %v1607, %v1609
        %v1616 = vsel %vm448, %v1608, %v1610
        %v1617 = vsel %vm448, %v1605, %v1607
        %v1618 = vsel %vm448, %v1606, %v1608
        %v1619 = vsel %vm448, %v1603, %v1605
        %v1620 = vsel %vm448, %v1604, %v1606
        %v1621 = vsel %vm448, %v1601, %v1603
        %v1622 = vsel %vm448, %v1602, %v1604
        %v1623 = vsel %vm448, %v1599, %v1601
        %v1624 = vsel %vm448, %v1600, %v1602
        %v1625 = vsel %vm448, %v1597, %v1599
        %v1626 = vsel %vm448, %v1598, %v1600
        %v1627 = vsel %vm448, %v1611, %v1597
        %v1628 = vsel %vm448, %v1612, %v1598
        %v1629 = vmul.f32 %v1627, %v400
        %v1630 = vmul.f32 %v1628, %v400
        %v1631 = vmul.f32 %v1625, %v401
        %v1632 = vmul.f32 %v1626, %v401
        %v1633 = vmul.f32 %v1623, %v402
        %v1634 = vmul.f32 %v1624, %v402
        %v1635 = vmul.f32 %v1621, %v403
        %v1636 = vmul.f32 %v1622, %v403
        %v1637 = vmul.f32 %v1619, %v404
        %v1638 = vmul.f32 %v1620, %v404
        %v1639 = vmul.f32 %v1617, %v405
        %v1640 = vmul.f32 %v1618, %v405
        %v1641 = vmul.f32 %v1615, %v406
        %v1642 = vmul.f32 %v1616, %v406
        %v1643 = vmul.f32 %v1613, %v407
        %v1644 = vmul.f32 %v1614, %v407
        %v1645 = vrot.slane %v1581, 1
        %v1646 = vrot.slane %v1582, 1
        %v1647 = vrot.slane %v1583, 1
        %v1648 = vrot.slane %v1584, 1
        %v1649 = vrot.slane %v1585, 1
        %v1650 = vrot.slane %v1586, 1
        %v1651 = vrot.slane %v1587, 1
        %v1652 = vrot.slane %v1588, 1
        %v1653 = vrot.slane %v1589, 1
        %v1654 = vrot.slane %v1590, 1
        %v1655 = vrot.slane %v1591, 1
        %v1656 = vrot.slane %v1592, 1
        %v1657 = vrot.slane %v1593, 1
        %v1658 = vrot.slane %v1594, 1
        %v1659 = vrot.slane %v1595, 1
        %v1660 = vrot.slane %v1596, 1
        %v1661 = vsel %vm497, %v1657, %v1659
        %v1662 = vsel %vm497, %v1658, %v1660
        %v1663 = vsel %vm497, %v1655, %v1657
        %v1664 = vsel %vm497, %v1656, %v1658
        %v1665 = vsel %vm497, %v1653, %v1655
        %v1666 = vsel %vm497, %v1654, %v1656
        %v1667 = vsel %vm497, %v1651, %v1653
        %v1668 = vsel %vm497, %v1652, %v1654
        %v1669 = vsel %vm497, %v1649, %v1651
        %v1670 = vsel %vm497, %v1650, %v1652
        %v1671 = vsel %vm497, %v1647, %v1649
        %v1672 = vsel %vm497, %v1648, %v1650
        %v1673 = vsel %vm497, %v1645, %v1647
        %v1674 = vsel %vm497, %v1646, %v1648
        %v1675 = vsel %vm497, %v1659, %v1645
        %v1676 = vsel %vm497, %v1660, %v1646
        %v1677 = vmul.f32 %v1673, %v424
        %v1678 = vmul.f32 %v1674, %v424
        %v1679 = vmul.f32 %v1671, %v425
        %v1680 = vmul.f32 %v1672, %v425
        %v1681 = vmul.f32 %v1669, %v426
        %v1682 = vmul.f32 %v1670, %v426
        %v1683 = vmul.f32 %v1667, %v427
        %v1684 = vmul.f32 %v1668, %v427
        %v1685 = vmul.f32 %v1665, %v428
        %v1686 = vmul.f32 %v1666, %v428
        %v1687 = vmul.f32 %v1663, %v429
        %v1688 = vmul.f32 %v1664, %v429
        %v1689 = vmul.f32 %v1661, %v430
        %v1690 = vmul.f32 %v1662, %v430
        %v1691 = vmul.f32 %v1675, %v431
        %v1692 = vmul.f32 %v1676, %v431
        %v1693 = vld [vmem:[#allocation7] sm:$0xff]
        %v1694 = vld [vmem:[#allocation7 + $0x8] sm:$0xff]
        %v1695 = vld [vmem:[#allocation7 + $0x10] sm:$0xff]
        %v1696 = vld [vmem:[#allocation7 + $0x18] sm:$0xff]
        %v1697 = vld [vmem:[#allocation7 + $0x20] sm:$0xff]
        %v1698 = vld [vmem:[#allocation7 + $0x28] sm:$0xff]
        %v1699 = vld [vmem:[#allocation7 + $0x30] sm:$0xff]
        %v1700 = vld [vmem:[#allocation7 + $0x38] sm:$0xff]
        %v1701 = vld [vmem:[#allocation7 + $0x40] sm:$0xff]
        %v1702 = vld [vmem:[#allocation7 + $0x48] sm:$0xff]
        %v1703 = vld [vmem:[#allocation7 + $0x50] sm:$0xff]
        %v1704 = vld [vmem:[#allocation7 + $0x58] sm:$0xff]
        %v1705 = vld [vmem:[#allocation7 + $0x60] sm:$0xff]
        %v1706 = vld [vmem:[#allocation7 + $0x68] sm:$0xff]
        %v1707 = vld [vmem:[#allocation7 + $0x70] sm:$0xff]
        %v1708 = vld [vmem:[#allocation7 + $0x78] sm:$0xff]
        %v1709 = vld [vmem:[#allocation7 + $0x80] sm:$0xff]
        %v1710 = vld [vmem:[#allocation7 + $0x88] sm:$0xff]
        %v1711 = vld [vmem:[#allocation7 + $0x90] sm:$0xff]
        %v1712 = vld [vmem:[#allocation7 + $0x98] sm:$0xff]
        %v1713 = vld [vmem:[#allocation7 + $0xa0] sm:$0xff]
        %v1714 = vld [vmem:[#allocation7 + $0xa8] sm:$0xff]
        %v1715 = vld [vmem:[#allocation7 + $0xb0] sm:$0xff]
        %v1716 = vld [vmem:[#allocation7 + $0xb8] sm:$0xff]
        %v1717 = vld [vmem:[#allocation7 + $0xc0] sm:$0xff]
        %v1718 = vld [vmem:[#allocation7 + $0xc8] sm:$0xff]
        %v1719 = vld [vmem:[#allocation7 + $0xd0] sm:$0xff]
        %v1720 = vld [vmem:[#allocation7 + $0xd8] sm:$0xff]
        %v1721 = vld [vmem:[#allocation7 + $0xe0] sm:$0xff]
        %v1722 = vld [vmem:[#allocation7 + $0xe8] sm:$0xff]
        %v1723 = vld [vmem:[#allocation7 + $0xf0] sm:$0xff]
        %v1724 = vld [vmem:[#allocation7 + $0xf8] sm:$0xff]
        %v1725 = vld [vmem:[#allocation7 + $0x100] sm:$0xff]
        %v1726 = vld [vmem:[#allocation7 + $0x108] sm:$0xff]
        %v1727 = vld [vmem:[#allocation7 + $0x110] sm:$0xff]
        %v1728 = vld [vmem:[#allocation7 + $0x118] sm:$0xff]
        %v1729 = vld [vmem:[#allocation7 + $0x120] sm:$0xff]
        %v1730 = vld [vmem:[#allocation7 + $0x128] sm:$0xff]
        %v1731 = vld [vmem:[#allocation7 + $0x130] sm:$0xff]
        %v1732 = vld [vmem:[#allocation7 + $0x138] sm:$0xff]
        %v1733 = vld [vmem:[#allocation7 + $0x140] sm:$0xff]
        %v1734 = vld [vmem:[#allocation7 + $0x148] sm:$0xff]
        %v1735 = vld [vmem:[#allocation7 + $0x150] sm:$0xff]
        %v1736 = vld [vmem:[#allocation7 + $0x158] sm:$0xff]
        %v1737 = vld [vmem:[#allocation7 + $0x160] sm:$0xff]
        %v1738 = vld [vmem:[#allocation7 + $0x168] sm:$0xff]
        %v1739 = vld [vmem:[#allocation7 + $0x170] sm:$0xff]
        %v1740 = vld [vmem:[#allocation7 + $0x178] sm:$0xff]
        %v1741 = vld [vmem:[#allocation7 + $0x180] sm:$0xff]
        %v1742 = vld [vmem:[#allocation7 + $0x188] sm:$0xff]
        %v1743 = vld [vmem:[#allocation7 + $0x190] sm:$0xff]
        %v1744 = vld [vmem:[#allocation7 + $0x198] sm:$0xff]
        %v1745 = vld [vmem:[#allocation7 + $0x1a0] sm:$0xff]
        %v1746 = vld [vmem:[#allocation7 + $0x1a8] sm:$0xff]
        %v1747 = vld [vmem:[#allocation7 + $0x1b0] sm:$0xff]
        %v1748 = vld [vmem:[#allocation7 + $0x1b8] sm:$0xff]
        %v1749 = vld [vmem:[#allocation7 + $0x1c0] sm:$0xff]
        %v1750 = vld [vmem:[#allocation7 + $0x1c8] sm:$0xff]
        %v1751 = vld [vmem:[#allocation7 + $0x1d0] sm:$0xff]
        %v1752 = vld [vmem:[#allocation7 + $0x1d8] sm:$0xff]
        %v1753 = vld [vmem:[#allocation7 + $0x1e0] sm:$0xff]
        %v1754 = vld [vmem:[#allocation7 + $0x1e8] sm:$0xff]
        %v1755 = vld [vmem:[#allocation7 + $0x1f0] sm:$0xff]
        %v1756 = vld [vmem:[#allocation7 + $0x1f8] sm:$0xff]
        %s1757 = scalar_lea.vmem [#allocation7], 512
        %v1758 = vld [vmem:[%s1757] sm:$0xff]
        %v1759 = vld [vmem:[%s1757 + $0x8] sm:$0xff]
        %v1760 = vld [vmem:[%s1757 + $0x10] sm:$0xff]
        %v1761 = vld [vmem:[%s1757 + $0x18] sm:$0xff]
        %v1762 = vld [vmem:[%s1757 + $0x20] sm:$0xff]
        %v1763 = vld [vmem:[%s1757 + $0x28] sm:$0xff]
        %v1764 = vld [vmem:[%s1757 + $0x30] sm:$0xff]
        %v1765 = vld [vmem:[%s1757 + $0x38] sm:$0xff]
        %v1766 = vld [vmem:[%s1757 + $0x40] sm:$0xff]
        %v1767 = vld [vmem:[%s1757 + $0x48] sm:$0xff]
        %v1768 = vld [vmem:[%s1757 + $0x50] sm:$0xff]
        %v1769 = vld [vmem:[%s1757 + $0x58] sm:$0xff]
        %v1770 = vld [vmem:[%s1757 + $0x60] sm:$0xff]
        %v1771 = vld [vmem:[%s1757 + $0x68] sm:$0xff]
        %v1772 = vld [vmem:[%s1757 + $0x70] sm:$0xff]
        %v1773 = vld [vmem:[%s1757 + $0x78] sm:$0xff]
        %v1774 = vld [vmem:[%s1757 + $0x80] sm:$0xff]
        %v1775 = vld [vmem:[%s1757 + $0x88] sm:$0xff]
        %v1776 = vld [vmem:[%s1757 + $0x90] sm:$0xff]
        %v1777 = vld [vmem:[%s1757 + $0x98] sm:$0xff]
        %v1778 = vld [vmem:[%s1757 + $0xa0] sm:$0xff]
        %v1779 = vld [vmem:[%s1757 + $0xa8] sm:$0xff]
        %v1780 = vld [vmem:[%s1757 + $0xb0] sm:$0xff]
        %v1781 = vld [vmem:[%s1757 + $0xb8] sm:$0xff]
        %v1782 = vld [vmem:[%s1757 + $0xc0] sm:$0xff]
        %v1783 = vld [vmem:[%s1757 + $0xc8] sm:$0xff]
        %v1784 = vld [vmem:[%s1757 + $0xd0] sm:$0xff]
        %v1785 = vld [vmem:[%s1757 + $0xd8] sm:$0xff]
        %v1786 = vld [vmem:[%s1757 + $0xe0] sm:$0xff]
        %v1787 = vld [vmem:[%s1757 + $0xe8] sm:$0xff]
        %v1788 = vld [vmem:[%s1757 + $0xf0] sm:$0xff]
        %v1789 = vld [vmem:[%s1757 + $0xf8] sm:$0xff]
        %v1790 = vld [vmem:[%s1757 + $0x100] sm:$0xff]
        %v1791 = vld [vmem:[%s1757 + $0x108] sm:$0xff]
        %v1792 = vld [vmem:[%s1757 + $0x110] sm:$0xff]
        %v1793 = vld [vmem:[%s1757 + $0x118] sm:$0xff]
        %v1794 = vld [vmem:[%s1757 + $0x120] sm:$0xff]
        %v1795 = vld [vmem:[%s1757 + $0x128] sm:$0xff]
        %v1796 = vld [vmem:[%s1757 + $0x130] sm:$0xff]
        %v1797 = vld [vmem:[%s1757 + $0x138] sm:$0xff]
        %v1798 = vld [vmem:[%s1757 + $0x140] sm:$0xff]
        %v1799 = vld [vmem:[%s1757 + $0x148] sm:$0xff]
        %v1800 = vld [vmem:[%s1757 + $0x150] sm:$0xff]
        %v1801 = vld [vmem:[%s1757 + $0x158] sm:$0xff]
        %v1802 = vld [vmem:[%s1757 + $0x160] sm:$0xff]
        %v1803 = vld [vmem:[%s1757 + $0x168] sm:$0xff]
        %v1804 = vld [vmem:[%s1757 + $0x170] sm:$0xff]
        %v1805 = vld [vmem:[%s1757 + $0x178] sm:$0xff]
        %v1806 = vld [vmem:[%s1757 + $0x180] sm:$0xff]
        %v1807 = vld [vmem:[%s1757 + $0x188] sm:$0xff]
        %v1808 = vld [vmem:[%s1757 + $0x190] sm:$0xff]
        %v1809 = vld [vmem:[%s1757 + $0x198] sm:$0xff]
        %v1810 = vld [vmem:[%s1757 + $0x1a0] sm:$0xff]
        %v1811 = vld [vmem:[%s1757 + $0x1a8] sm:$0xff]
        %v1812 = vld [vmem:[%s1757 + $0x1b0] sm:$0xff]
        %v1813 = vld [vmem:[%s1757 + $0x1b8] sm:$0xff]
        %v1814 = vld [vmem:[%s1757 + $0x1c0] sm:$0xff]
        %v1815 = vld [vmem:[%s1757 + $0x1c8] sm:$0xff]
        %v1816 = vld [vmem:[%s1757 + $0x1d0] sm:$0xff]
        %v1817 = vld [vmem:[%s1757 + $0x1d8] sm:$0xff]
        %v1818 = vld [vmem:[%s1757 + $0x1e0] sm:$0xff]
        %v1819 = vld [vmem:[%s1757 + $0x1e8] sm:$0xff]
        %v1820 = vld [vmem:[%s1757 + $0x1f0] sm:$0xff]
        %v1821 = vld [vmem:[%s1757 + $0x1f8] sm:$0xff]
        %1822 = vmatprep.subr.mxu0 %v1789
        %1823 = vmatpush1.msra.mxu0 %v1788
        %1824 = vmatprep.subr.mxu0 %v1787
        %1825 = vmatpush1.msra.mxu0 %v1786
        %1826 = vmatprep.subr.mxu0 %v1785
        %1827 = vmatpush1.msra.mxu0 %v1784
        %1828 = vmatprep.subr.mxu0 %v1783
        %1829 = vmatpush1.msra.mxu0 %v1782
        %1830 = vmatprep.subr.mxu0 %v1781
        %1831 = vmatpush1.msra.mxu0 %v1780
        %1832 = vmatprep.subr.mxu0 %v1779
        %1833 = vmatpush1.msra.mxu0 %v1778
        %1834 = vmatprep.subr.mxu0 %v1777
        %1835 = vmatpush1.msra.mxu0 %v1776
        %1836 = vmatprep.subr.mxu0 %v1775
        %1837 = vmatpush1.msra.mxu0 %v1774
        %1838 = vmatprep.subr.mxu0 %v1773
        %1839 = vmatpush1.msra.mxu0 %v1772
        %1840 = vmatprep.subr.mxu0 %v1771
        %1841 = vmatpush1.msra.mxu0 %v1770
        %1842 = vmatprep.subr.mxu0 %v1769
        %1843 = vmatpush1.msra.mxu0 %v1768
        %1844 = vmatprep.subr.mxu0 %v1767
        %1845 = vmatpush1.msra.mxu0 %v1766
        %1846 = vmatprep.subr.mxu0 %v1765
        %1847 = vmatpush1.msra.mxu0 %v1764
        %1848 = vmatprep.subr.mxu0 %v1763
        %1849 = vmatpush1.msra.mxu0 %v1762
        %1850 = vmatprep.subr.mxu0 %v1761
        %1851 = vmatpush1.msra.mxu0 %v1760
        %1852 = vmatprep.subr.mxu0 %v1759
        %1853 = vmatpush1.msra.mxu0 %v1758
        %1854 = vmatprep.subr.mxu0 %v1821
        %1855 = vmatpush2.msra.mxu0 %v1820
        %1856 = vmatprep.subr.mxu0 %v1819
        %1857 = vmatpush2.msra.mxu0 %v1818
        %1858 = vmatprep.subr.mxu0 %v1817
        %1859 = vmatpush2.msra.mxu0 %v1816
        %1860 = vmatprep.subr.mxu0 %v1815
        %1861 = vmatpush2.msra.mxu0 %v1814
        %1862 = vmatprep.subr.mxu0 %v1813
        %1863 = vmatpush2.msra.mxu0 %v1812
        %1864 = vmatprep.subr.mxu0 %v1811
        %1865 = vmatpush2.msra.mxu0 %v1810
        %1866 = vmatprep.subr.mxu0 %v1809
        %1867 = vmatpush2.msra.mxu0 %v1808
        %1868 = vmatprep.subr.mxu0 %v1807
        %1869 = vmatpush2.msra.mxu0 %v1806
        %1870 = vmatprep.subr.mxu0 %v1805
        %1871 = vmatpush2.msra.mxu0 %v1804
        %1872 = vmatprep.subr.mxu0 %v1803
        %1873 = vmatpush2.msra.mxu0 %v1802
        %1874 = vmatprep.subr.mxu0 %v1801
        %1875 = vmatpush2.msra.mxu0 %v1800
        %1876 = vmatprep.subr.mxu0 %v1799
        %1877 = vmatpush2.msra.mxu0 %v1798
        %1878 = vmatprep.subr.mxu0 %v1797
        %1879 = vmatpush2.msra.mxu0 %v1796
        %1880 = vmatprep.subr.mxu0 %v1795
        %1881 = vmatpush2.msra.mxu0 %v1794
        %1882 = vmatprep.subr.mxu0 %v1793
        %1883 = vmatpush2.msra.mxu0 %v1792
        %1884 = vmatprep.subr.mxu0 %v1791
        %1885 = vmatpush2.msra.mxu0 %v1790
        %1886 = vmatprep.mubr.f32.mxu0 %v1582
        %1887 = vmatmul.mubr.f32.gmra.mxu0 %v1581
        %v1888 = vpop.f32.mrf.mxu0
        %v1889 = vadd.f32 0.0, %v1888
        %v1890 = vpop.f32.mrf.mxu0
        %v1891 = vadd.f32 0.0, %v1890
        %1892 = vmatprep.mubr.f32.mxu0 %v1584
        %1893 = vmatmul.mubr.f32.gmra.mxu0 %v1583
        %v1894 = vpop.f32.mrf.mxu0
        %v1895 = vadd.f32 0.0, %v1894
        %v1896 = vpop.f32.mrf.mxu0
        %v1897 = vadd.f32 0.0, %v1896
        %1898 = vmatprep.mubr.f32.mxu0 %v1586
        %1899 = vmatmul.mubr.f32.gmra.mxu0 %v1585
        %v1900 = vpop.f32.mrf.mxu0
        %v1901 = vadd.f32 0.0, %v1900
        %v1902 = vpop.f32.mrf.mxu0
        %v1903 = vadd.f32 0.0, %v1902
        %1904 = vmatprep.mubr.f32.mxu0 %v1588
        %1905 = vmatmul.mubr.f32.gmra.mxu0 %v1587
        %v1906 = vpop.f32.mrf.mxu0
        %v1907 = vadd.f32 0.0, %v1906
        %v1908 = vpop.f32.mrf.mxu0
        %v1909 = vadd.f32 0.0, %v1908
        %1910 = vmatprep.mubr.f32.mxu0 %v1590
        %1911 = vmatmul.mubr.f32.gmra.mxu0 %v1589
        %v1912 = vpop.f32.mrf.mxu0
        %v1913 = vadd.f32 0.0, %v1912
        %v1914 = vpop.f32.mrf.mxu0
        %v1915 = vadd.f32 0.0, %v1914
        %1916 = vmatprep.mubr.f32.mxu0 %v1592
        %1917 = vmatmul.mubr.f32.gmra.mxu0 %v1591
        %v1918 = vpop.f32.mrf.mxu0
        %v1919 = vadd.f32 0.0, %v1918
        %v1920 = vpop.f32.mrf.mxu0
        %v1921 = vadd.f32 0.0, %v1920
        %1922 = vmatprep.mubr.f32.mxu0 %v1594
        %1923 = vmatmul.mubr.f32.gmra.mxu0 %v1593
        %v1924 = vpop.f32.mrf.mxu0
        %v1925 = vadd.f32 0.0, %v1924
        %v1926 = vpop.f32.mrf.mxu0
        %v1927 = vadd.f32 0.0, %v1926
        %1928 = vmatprep.mubr.f32.mxu0 %v1596
        %1929 = vmatmul.mubr.f32.gmra.mxu0 %v1595
        %v1930 = vpop.f32.mrf.mxu0
        %v1931 = vadd.f32 0.0, %v1930
        %v1932 = vpop.f32.mrf.mxu0
        %v1933 = vadd.f32 0.0, %v1932
        %1934 = vdwg.mxu0
        %1935 = vmatprep.subr.mxu0 %v1724
        %1936 = vmatpush1.msra.mxu0 %v1723
        %1937 = vmatprep.subr.mxu0 %v1722
        %1938 = vmatpush1.msra.mxu0 %v1721
        %1939 = vmatprep.subr.mxu0 %v1720
        %1940 = vmatpush1.msra.mxu0 %v1719
        %1941 = vmatprep.subr.mxu0 %v1718
        %1942 = vmatpush1.msra.mxu0 %v1717
        %1943 = vmatprep.subr.mxu0 %v1716
        %1944 = vmatpush1.msra.mxu0 %v1715
        %1945 = vmatprep.subr.mxu0 %v1714
        %1946 = vmatpush1.msra.mxu0 %v1713
        %1947 = vmatprep.subr.mxu0 %v1712
        %1948 = vmatpush1.msra.mxu0 %v1711
        %1949 = vmatprep.subr.mxu0 %v1710
        %1950 = vmatpush1.msra.mxu0 %v1709
        %1951 = vmatprep.subr.mxu0 %v1708
        %1952 = vmatpush1.msra.mxu0 %v1707
        %1953 = vmatprep.subr.mxu0 %v1706
        %1954 = vmatpush1.msra.mxu0 %v1705
        %1955 = vmatprep.subr.mxu0 %v1704
        %1956 = vmatpush1.msra.mxu0 %v1703
        %1957 = vmatprep.subr.mxu0 %v1702
        %1958 = vmatpush1.msra.mxu0 %v1701
        %1959 = vmatprep.subr.mxu0 %v1700
        %1960 = vmatpush1.msra.mxu0 %v1699
        %1961 = vmatprep.subr.mxu0 %v1698
        %1962 = vmatpush1.msra.mxu0 %v1697
        %1963 = vmatprep.subr.mxu0 %v1696
        %1964 = vmatpush1.msra.mxu0 %v1695
        %1965 = vmatprep.subr.mxu0 %v1694
        %1966 = vmatpush1.msra.mxu0 %v1693
        %1967 = vmatprep.subr.mxu0 %v1756
        %1968 = vmatpush2.msra.mxu0 %v1755
        %1969 = vmatprep.subr.mxu0 %v1754
        %1970 = vmatpush2.msra.mxu0 %v1753
        %1971 = vmatprep.subr.mxu0 %v1752
        %1972 = vmatpush2.msra.mxu0 %v1751
        %1973 = vmatprep.subr.mxu0 %v1750
        %1974 = vmatpush2.msra.mxu0 %v1749
        %1975 = vmatprep.subr.mxu0 %v1748
        %1976 = vmatpush2.msra.mxu0 %v1747
        %1977 = vmatprep.subr.mxu0 %v1746
        %1978 = vmatpush2.msra.mxu0 %v1745
        %1979 = vmatprep.subr.mxu0 %v1744
        %1980 = vmatpush2.msra.mxu0 %v1743
        %1981 = vmatprep.subr.mxu0 %v1742
        %1982 = vmatpush2.msra.mxu0 %v1741
        %1983 = vmatprep.subr.mxu0 %v1740
        %1984 = vmatpush2.msra.mxu0 %v1739
        %1985 = vmatprep.subr.mxu0 %v1738
        %1986 = vmatpush2.msra.mxu0 %v1737
        %1987 = vmatprep.subr.mxu0 %v1736
        %1988 = vmatpush2.msra.mxu0 %v1735
        %1989 = vmatprep.subr.mxu0 %v1734
        %1990 = vmatpush2.msra.mxu0 %v1733
        %1991 = vmatprep.subr.mxu0 %v1732
        %1992 = vmatpush2.msra.mxu0 %v1731
        %1993 = vmatprep.subr.mxu0 %v1730
        %1994 = vmatpush2.msra.mxu0 %v1729
        %1995 = vmatprep.subr.mxu0 %v1728
        %1996 = vmatpush2.msra.mxu0 %v1727
        %1997 = vmatprep.subr.mxu0 %v1726
        %1998 = vmatpush2.msra.mxu0 %v1725
        %1999 = vmatprep.mubr.f32.mxu0 %v1630
        %2000 = vmatmul.mubr.f32.gmra.mxu0 %v1629
        %v2001 = vpop.f32.mrf.mxu0
        %v2002 = vadd.f32 %v1889, %v2001
        %v2003 = vpop.f32.mrf.mxu0
        %v2004 = vadd.f32 %v1891, %v2003
        %2005 = vmatprep.mubr.f32.mxu0 %v1632
        %2006 = vmatmul.mubr.f32.gmra.mxu0 %v1631
        %v2007 = vpop.f32.mrf.mxu0
        %v2008 = vadd.f32 %v1895, %v2007
        %v2009 = vpop.f32.mrf.mxu0
        %v2010 = vadd.f32 %v1897, %v2009
        %2011 = vmatprep.mubr.f32.mxu0 %v1634
        %2012 = vmatmul.mubr.f32.gmra.mxu0 %v1633
        %v2013 = vpop.f32.mrf.mxu0
        %v2014 = vadd.f32 %v1901, %v2013
        %v2015 = vpop.f32.mrf.mxu0
        %v2016 = vadd.f32 %v1903, %v2015
        %2017 = vmatprep.mubr.f32.mxu0 %v1636
        %2018 = vmatmul.mubr.f32.gmra.mxu0 %v1635
        %v2019 = vpop.f32.mrf.mxu0
        %v2020 = vadd.f32 %v1907, %v2019
        %v2021 = vpop.f32.mrf.mxu0
        %v2022 = vadd.f32 %v1909, %v2021
        %2023 = vmatprep.mubr.f32.mxu0 %v1638
        %2024 = vmatmul.mubr.f32.gmra.mxu0 %v1637
        %v2025 = vpop.f32.mrf.mxu0
        %v2026 = vadd.f32 %v1913, %v2025
        %v2027 = vpop.f32.mrf.mxu0
        %v2028 = vadd.f32 %v1915, %v2027
        %2029 = vmatprep.mubr.f32.mxu0 %v1640
        %2030 = vmatmul.mubr.f32.gmra.mxu0 %v1639
        %v2031 = vpop.f32.mrf.mxu0
        %v2032 = vadd.f32 %v1919, %v2031
        %v2033 = vpop.f32.mrf.mxu0
        %v2034 = vadd.f32 %v1921, %v2033
        %2035 = vmatprep.mubr.f32.mxu0 %v1642
        %2036 = vmatmul.mubr.f32.gmra.mxu0 %v1641
        %v2037 = vpop.f32.mrf.mxu0
        %v2038 = vadd.f32 %v1925, %v2037
        %v2039 = vpop.f32.mrf.mxu0
        %v2040 = vadd.f32 %v1927, %v2039
        %2041 = vmatprep.mubr.f32.mxu0 %v1644
        %2042 = vmatmul.mubr.f32.gmra.mxu0 %v1643
        %v2043 = vpop.f32.mrf.mxu0
        %v2044 = vadd.f32 %v1931, %v2043
        %v2045 = vpop.f32.mrf.mxu0
        %v2046 = vadd.f32 %v1933, %v2045
        %2047 = vdwg.mxu0
        %s2048 = scalar_lea.vmem [#allocation7], 1024
        %v2049 = vld [vmem:[%s2048] sm:$0xff]
        %v2050 = vld [vmem:[%s2048 + $0x8] sm:$0xff]
        %v2051 = vld [vmem:[%s2048 + $0x10] sm:$0xff]
        %v2052 = vld [vmem:[%s2048 + $0x18] sm:$0xff]
        %v2053 = vld [vmem:[%s2048 + $0x20] sm:$0xff]
        %v2054 = vld [vmem:[%s2048 + $0x28] sm:$0xff]
        %v2055 = vld [vmem:[%s2048 + $0x30] sm:$0xff]
        %v2056 = vld [vmem:[%s2048 + $0x38] sm:$0xff]
        %v2057 = vld [vmem:[%s2048 + $0x40] sm:$0xff]
        %v2058 = vld [vmem:[%s2048 + $0x48] sm:$0xff]
        %v2059 = vld [vmem:[%s2048 + $0x50] sm:$0xff]
        %v2060 = vld [vmem:[%s2048 + $0x58] sm:$0xff]
        %v2061 = vld [vmem:[%s2048 + $0x60] sm:$0xff]
        %v2062 = vld [vmem:[%s2048 + $0x68] sm:$0xff]
        %v2063 = vld [vmem:[%s2048 + $0x70] sm:$0xff]
        %v2064 = vld [vmem:[%s2048 + $0x78] sm:$0xff]
        %v2065 = vld [vmem:[%s2048 + $0x80] sm:$0xff]
        %v2066 = vld [vmem:[%s2048 + $0x88] sm:$0xff]
        %v2067 = vld [vmem:[%s2048 + $0x90] sm:$0xff]
        %v2068 = vld [vmem:[%s2048 + $0x98] sm:$0xff]
        %v2069 = vld [vmem:[%s2048 + $0xa0] sm:$0xff]
        %v2070 = vld [vmem:[%s2048 + $0xa8] sm:$0xff]
        %v2071 = vld [vmem:[%s2048 + $0xb0] sm:$0xff]
        %v2072 = vld [vmem:[%s2048 + $0xb8] sm:$0xff]
        %v2073 = vld [vmem:[%s2048 + $0xc0] sm:$0xff]
        %v2074 = vld [vmem:[%s2048 + $0xc8] sm:$0xff]
        %v2075 = vld [vmem:[%s2048 + $0xd0] sm:$0xff]
        %v2076 = vld [vmem:[%s2048 + $0xd8] sm:$0xff]
        %v2077 = vld [vmem:[%s2048 + $0xe0] sm:$0xff]
        %v2078 = vld [vmem:[%s2048 + $0xe8] sm:$0xff]
        %v2079 = vld [vmem:[%s2048 + $0xf0] sm:$0xff]
        %v2080 = vld [vmem:[%s2048 + $0xf8] sm:$0xff]
        %v2081 = vld [vmem:[%s2048 + $0x100] sm:$0xff]
        %v2082 = vld [vmem:[%s2048 + $0x108] sm:$0xff]
        %v2083 = vld [vmem:[%s2048 + $0x110] sm:$0xff]
        %v2084 = vld [vmem:[%s2048 + $0x118] sm:$0xff]
        %v2085 = vld [vmem:[%s2048 + $0x120] sm:$0xff]
        %v2086 = vld [vmem:[%s2048 + $0x128] sm:$0xff]
        %v2087 = vld [vmem:[%s2048 + $0x130] sm:$0xff]
        %v2088 = vld [vmem:[%s2048 + $0x138] sm:$0xff]
        %v2089 = vld [vmem:[%s2048 + $0x140] sm:$0xff]
        %v2090 = vld [vmem:[%s2048 + $0x148] sm:$0xff]
        %v2091 = vld [vmem:[%s2048 + $0x150] sm:$0xff]
        %v2092 = vld [vmem:[%s2048 + $0x158] sm:$0xff]
        %v2093 = vld [vmem:[%s2048 + $0x160] sm:$0xff]
        %v2094 = vld [vmem:[%s2048 + $0x168] sm:$0xff]
        %v2095 = vld [vmem:[%s2048 + $0x170] sm:$0xff]
        %v2096 = vld [vmem:[%s2048 + $0x178] sm:$0xff]
        %v2097 = vld [vmem:[%s2048 + $0x180] sm:$0xff]
        %v2098 = vld [vmem:[%s2048 + $0x188] sm:$0xff]
        %v2099 = vld [vmem:[%s2048 + $0x190] sm:$0xff]
        %v2100 = vld [vmem:[%s2048 + $0x198] sm:$0xff]
        %v2101 = vld [vmem:[%s2048 + $0x1a0] sm:$0xff]
        %v2102 = vld [vmem:[%s2048 + $0x1a8] sm:$0xff]
        %v2103 = vld [vmem:[%s2048 + $0x1b0] sm:$0xff]
        %v2104 = vld [vmem:[%s2048 + $0x1b8] sm:$0xff]
        %v2105 = vld [vmem:[%s2048 + $0x1c0] sm:$0xff]
        %v2106 = vld [vmem:[%s2048 + $0x1c8] sm:$0xff]
        %v2107 = vld [vmem:[%s2048 + $0x1d0] sm:$0xff]
        %v2108 = vld [vmem:[%s2048 + $0x1d8] sm:$0xff]
        %v2109 = vld [vmem:[%s2048 + $0x1e0] sm:$0xff]
        %v2110 = vld [vmem:[%s2048 + $0x1e8] sm:$0xff]
        %v2111 = vld [vmem:[%s2048 + $0x1f0] sm:$0xff]
        %v2112 = vld [vmem:[%s2048 + $0x1f8] sm:$0xff]
        %2113 = vmatprep.subr.mxu0 %v2080
        %2114 = vmatpush1.msra.mxu0 %v2079
        %2115 = vmatprep.subr.mxu0 %v2078
        %2116 = vmatpush1.msra.mxu0 %v2077
        %2117 = vmatprep.subr.mxu0 %v2076
        %2118 = vmatpush1.msra.mxu0 %v2075
        %2119 = vmatprep.subr.mxu0 %v2074
        %2120 = vmatpush1.msra.mxu0 %v2073
        %2121 = vmatprep.subr.mxu0 %v2072
        %2122 = vmatpush1.msra.mxu0 %v2071
        %2123 = vmatprep.subr.mxu0 %v2070
        %2124 = vmatpush1.msra.mxu0 %v2069
        %2125 = vmatprep.subr.mxu0 %v2068
        %2126 = vmatpush1.msra.mxu0 %v2067
        %2127 = vmatprep.subr.mxu0 %v2066
        %2128 = vmatpush1.msra.mxu0 %v2065
        %2129 = vmatprep.subr.mxu0 %v2064
        %2130 = vmatpush1.msra.mxu0 %v2063
        %2131 = vmatprep.subr.mxu0 %v2062
        %2132 = vmatpush1.msra.mxu0 %v2061
        %2133 = vmatprep.subr.mxu0 %v2060
        %2134 = vmatpush1.msra.mxu0 %v2059
        %2135 = vmatprep.subr.mxu0 %v2058
        %2136 = vmatpush1.msra.mxu0 %v2057
        %2137 = vmatprep.subr.mxu0 %v2056
        %2138 = vmatpush1.msra.mxu0 %v2055
        %2139 = vmatprep.subr.mxu0 %v2054
        %2140 = vmatpush1.msra.mxu0 %v2053
        %2141 = vmatprep.subr.mxu0 %v2052
        %2142 = vmatpush1.msra.mxu0 %v2051
        %2143 = vmatprep.subr.mxu0 %v2050
        %2144 = vmatpush1.msra.mxu0 %v2049
        %2145 = vmatprep.subr.mxu0 %v2112
        %2146 = vmatpush2.msra.mxu0 %v2111
        %2147 = vmatprep.subr.mxu0 %v2110
        %2148 = vmatpush2.msra.mxu0 %v2109
        %2149 = vmatprep.subr.mxu0 %v2108
        %2150 = vmatpush2.msra.mxu0 %v2107
        %2151 = vmatprep.subr.mxu0 %v2106
        %2152 = vmatpush2.msra.mxu0 %v2105
        %2153 = vmatprep.subr.mxu0 %v2104
        %2154 = vmatpush2.msra.mxu0 %v2103
        %2155 = vmatprep.subr.mxu0 %v2102
        %2156 = vmatpush2.msra.mxu0 %v2101
        %2157 = vmatprep.subr.mxu0 %v2100
        %2158 = vmatpush2.msra.mxu0 %v2099
        %2159 = vmatprep.subr.mxu0 %v2098
        %2160 = vmatpush2.msra.mxu0 %v2097
        %2161 = vmatprep.subr.mxu0 %v2096
        %2162 = vmatpush2.msra.mxu0 %v2095
        %2163 = vmatprep.subr.mxu0 %v2094
        %2164 = vmatpush2.msra.mxu0 %v2093
        %2165 = vmatprep.subr.mxu0 %v2092
        %2166 = vmatpush2.msra.mxu0 %v2091
        %2167 = vmatprep.subr.mxu0 %v2090
        %2168 = vmatpush2.msra.mxu0 %v2089
        %2169 = vmatprep.subr.mxu0 %v2088
        %2170 = vmatpush2.msra.mxu0 %v2087
        %2171 = vmatprep.subr.mxu0 %v2086
        %2172 = vmatpush2.msra.mxu0 %v2085
        %2173 = vmatprep.subr.mxu0 %v2084
        %2174 = vmatpush2.msra.mxu0 %v2083
        %2175 = vmatprep.subr.mxu0 %v2082
        %2176 = vmatpush2.msra.mxu0 %v2081
        %2177 = vmatprep.mubr.f32.mxu0 %v1678
        %2178 = vmatmul.mubr.f32.gmra.mxu0 %v1677
        %v2179 = vpop.f32.mrf.mxu0
        %v2180 = vadd.f32 0.0, %v2179
        %v2181 = vpop.f32.mrf.mxu0
        %v2182 = vadd.f32 0.0, %v2181
        %2183 = vmatprep.mubr.f32.mxu0 %v1680
        %2184 = vmatmul.mubr.f32.gmra.mxu0 %v1679
        %v2185 = vpop.f32.mrf.mxu0
        %v2186 = vadd.f32 0.0, %v2185
        %v2187 = vpop.f32.mrf.mxu0
        %v2188 = vadd.f32 0.0, %v2187
        %2189 = vmatprep.mubr.f32.mxu0 %v1682
        %2190 = vmatmul.mubr.f32.gmra.mxu0 %v1681
        %v2191 = vpop.f32.mrf.mxu0
        %v2192 = vadd.f32 0.0, %v2191
        %v2193 = vpop.f32.mrf.mxu0
        %v2194 = vadd.f32 0.0, %v2193
        %2195 = vmatprep.mubr.f32.mxu0 %v1684
        %2196 = vmatmul.mubr.f32.gmra.mxu0 %v1683
        %v2197 = vpop.f32.mrf.mxu0
        %v2198 = vadd.f32 0.0, %v2197
        %v2199 = vpop.f32.mrf.mxu0
        %v2200 = vadd.f32 0.0, %v2199
        %2201 = vmatprep.mubr.f32.mxu0 %v1686
        %2202 = vmatmul.mubr.f32.gmra.mxu0 %v1685
        %v2203 = vpop.f32.mrf.mxu0
        %v2204 = vadd.f32 0.0, %v2203
        %v2205 = vpop.f32.mrf.mxu0
        %v2206 = vadd.f32 0.0, %v2205
        %2207 = vmatprep.mubr.f32.mxu0 %v1688
        %2208 = vmatmul.mubr.f32.gmra.mxu0 %v1687
        %v2209 = vpop.f32.mrf.mxu0
        %v2210 = vadd.f32 0.0, %v2209
        %v2211 = vpop.f32.mrf.mxu0
        %v2212 = vadd.f32 0.0, %v2211
        %2213 = vmatprep.mubr.f32.mxu0 %v1690
        %2214 = vmatmul.mubr.f32.gmra.mxu0 %v1689
        %v2215 = vpop.f32.mrf.mxu0
        %v2216 = vadd.f32 0.0, %v2215
        %v2217 = vpop.f32.mrf.mxu0
        %v2218 = vadd.f32 0.0, %v2217
        %2219 = vmatprep.mubr.f32.mxu0 %v1692
        %2220 = vmatmul.mubr.f32.gmra.mxu0 %v1691
        %v2221 = vpop.f32.mrf.mxu0
        %v2222 = vadd.f32 0.0, %v2221
        %v2223 = vpop.f32.mrf.mxu0
        %v2224 = vadd.f32 0.0, %v2223
        %2225 = vdwg.mxu0
        %v2226 = vadd.f32 %v2002, %v2180
        %v2227 = vadd.f32 %v2004, %v2182
        %v2228 = vadd.f32 %v2008, %v2186
        %v2229 = vadd.f32 %v2010, %v2188
        %v2230 = vadd.f32 %v2014, %v2192
        %v2231 = vadd.f32 %v2016, %v2194
        %v2232 = vadd.f32 %v2020, %v2198
        %v2233 = vadd.f32 %v2022, %v2200
        %v2234 = vadd.f32 %v2026, %v2204
        %v2235 = vadd.f32 %v2028, %v2206
        %v2236 = vadd.f32 %v2032, %v2210
        %v2237 = vadd.f32 %v2034, %v2212
        %v2238 = vadd.f32 %v2038, %v2216
        %v2239 = vadd.f32 %v2040, %v2218
        %v2240 = vadd.f32 %v2044, %v2222
        %v2241 = vadd.f32 %v2046, %v2224
        %v2242 = vlaneseq
        %v2243 = vshrl.u32 %v2242, 7
        %v2244 = vsub.s32 3, %v2243
        %v2245 = vrot.slane %v277, %v2244
        %v2246 = vlaneseq
        %v2247 = vshrl.u32 %v2246, 7
        %v2248 = vsub.s32 3, %v2247
        %v2249 = vrot.slane %v278, %v2248
        %v2250 = vadd.f32 %v2226, %v2245
        %v2251 = vadd.f32 %v2227, %v2249
        %v2252 = vadd.f32 %v2228, %v2245
        %v2253 = vadd.f32 %v2229, %v2249
        %v2254 = vadd.f32 %v2230, %v2245
        %v2255 = vadd.f32 %v2231, %v2249
        %v2256 = vadd.f32 %v2232, %v2245
        %v2257 = vadd.f32 %v2233, %v2249
        %v2258 = vadd.f32 %v2234, %v2245
        %v2259 = vadd.f32 %v2235, %v2249
        %v2260 = vadd.f32 %v2236, %v2245
        %v2261 = vadd.f32 %v2237, %v2249
        %v2262 = vadd.f32 %v2238, %v2245
        %v2263 = vadd.f32 %v2239, %v2249
        %v2264 = vadd.f32 %v2240, %v2245
        %v2265 = vadd.f32 %v2241, %v2249
        %v2266 = vadd.f32 %v2250, %v2252
        %v2267 = vrot.slane %v2266, 4
        %v2268 = vadd.f32 %v2266, %v2267
        %v2269 = vrot.slane %v2268, 2
        %v2270 = vadd.f32 %v2268, %v2269
        %v2271 = vrot.slane %v2270, 1
        %v2272 = vadd.f32 %v2270, %v2271
        %v2273 = vadd.f32 %v2251, %v2253
        %v2274 = vrot.slane %v2273, 4
        %v2275 = vadd.f32 %v2273, %v2274
        %v2276 = vrot.slane %v2275, 2
        %v2277 = vadd.f32 %v2275, %v2276
        %v2278 = vrot.slane %v2277, 1
        %v2279 = vadd.f32 %v2277, %v2278
        %v2280 = vadd.f32 %v2254, %v2256
        %v2281 = vrot.slane %v2280, 4
        %v2282 = vadd.f32 %v2280, %v2281
        %v2283 = vrot.slane %v2282, 2
        %v2284 = vadd.f32 %v2282, %v2283
        %v2285 = vrot.slane %v2284, 1
        %v2286 = vadd.f32 %v2284, %v2285
        %v2287 = vadd.f32 %v2255, %v2257
        %v2288 = vrot.slane %v2287, 4
        %v2289 = vadd.f32 %v2287, %v2288
        %v2290 = vrot.slane %v2289, 2
        %v2291 = vadd.f32 %v2289, %v2290
        %v2292 = vrot.slane %v2291, 1
        %v2293 = vadd.f32 %v2291, %v2292
        %v2294 = vadd.f32 %v2258, %v2260
        %v2295 = vrot.slane %v2294, 4
        %v2296 = vadd.f32 %v2294, %v2295
        %v2297 = vrot.slane %v2296, 2
        %v2298 = vadd.f32 %v2296, %v2297
        %v2299 = vrot.slane %v2298, 1
        %v2300 = vadd.f32 %v2298, %v2299
        %v2301 = vadd.f32 %v2259, %v2261
        %v2302 = vrot.slane %v2301, 4
        %v2303 = vadd.f32 %v2301, %v2302
        %v2304 = vrot.slane %v2303, 2
        %v2305 = vadd.f32 %v2303, %v2304
        %v2306 = vrot.slane %v2305, 1
        %v2307 = vadd.f32 %v2305, %v2306
        %v2308 = vadd.f32 %v2262, %v2264
        %v2309 = vrot.slane %v2308, 4
        %v2310 = vadd.f32 %v2308, %v2309
        %v2311 = vrot.slane %v2310, 2
        %v2312 = vadd.f32 %v2310, %v2311
        %v2313 = vrot.slane %v2312, 1
        %v2314 = vadd.f32 %v2312, %v2313
        %v2315 = vadd.f32 %v2263, %v2265
        %v2316 = vrot.slane %v2315, 4
        %v2317 = vadd.f32 %v2315, %v2316
        %v2318 = vrot.slane %v2317, 2
        %v2319 = vadd.f32 %v2317, %v2318
        %v2320 = vrot.slane %v2319, 1
        %v2321 = vadd.f32 %v2319, %v2320
        %v2322 = vmul.f32 %v2250, %v2250
        %v2323 = vmul.f32 %v2251, %v2251
        %v2324 = vmul.f32 %v2252, %v2252
        %v2325 = vmul.f32 %v2253, %v2253
        %v2326 = vmul.f32 %v2254, %v2254
        %v2327 = vmul.f32 %v2255, %v2255
        %v2328 = vmul.f32 %v2256, %v2256
        %v2329 = vmul.f32 %v2257, %v2257
        %v2330 = vmul.f32 %v2258, %v2258
        %v2331 = vmul.f32 %v2259, %v2259
        %v2332 = vmul.f32 %v2260, %v2260
        %v2333 = vmul.f32 %v2261, %v2261
        %v2334 = vmul.f32 %v2262, %v2262
        %v2335 = vmul.f32 %v2263, %v2263
        %v2336 = vmul.f32 %v2264, %v2264
        %v2337 = vmul.f32 %v2265, %v2265
        %v2338 = vadd.f32 %v2322, %v2324
        %v2339 = vrot.slane %v2338, 4
        %v2340 = vadd.f32 %v2338, %v2339
        %v2341 = vrot.slane %v2340, 2
        %v2342 = vadd.f32 %v2340, %v2341
        %v2343 = vrot.slane %v2342, 1
        %v2344 = vadd.f32 %v2342, %v2343
        %v2345 = vadd.f32 %v2323, %v2325
        %v2346 = vrot.slane %v2345, 4
        %v2347 = vadd.f32 %v2345, %v2346
        %v2348 = vrot.slane %v2347, 2
        %v2349 = vadd.f32 %v2347, %v2348
        %v2350 = vrot.slane %v2349, 1
        %v2351 = vadd.f32 %v2349, %v2350
        %v2352 = vadd.f32 %v2326, %v2328
        %v2353 = vrot.slane %v2352, 4
        %v2354 = vadd.f32 %v2352, %v2353
        %v2355 = vrot.slane %v2354, 2
        %v2356 = vadd.f32 %v2354, %v2355
        %v2357 = vrot.slane %v2356, 1
        %v2358 = vadd.f32 %v2356, %v2357
        %v2359 = vadd.f32 %v2327, %v2329
        %v2360 = vrot.slane %v2359, 4
        %v2361 = vadd.f32 %v2359, %v2360
        %v2362 = vrot.slane %v2361, 2
        %v2363 = vadd.f32 %v2361, %v2362
        %v2364 = vrot.slane %v2363, 1
        %v2365 = vadd.f32 %v2363, %v2364
        %v2366 = vadd.f32 %v2330, %v2332
        %v2367 = vrot.slane %v2366, 4
        %v2368 = vadd.f32 %v2366, %v2367
        %v2369 = vrot.slane %v2368, 2
        %v2370 = vadd.f32 %v2368, %v2369
        %v2371 = vrot.slane %v2370, 1
        %v2372 = vadd.f32 %v2370, %v2371
        %v2373 = vadd.f32 %v2331, %v2333
        %v2374 = vrot.slane %v2373, 4
        %v2375 = vadd.f32 %v2373, %v2374
        %v2376 = vrot.slane %v2375, 2
        %v2377 = vadd.f32 %v2375, %v2376
        %v2378 = vrot.slane %v2377, 1
        %v2379 = vadd.f32 %v2377, %v2378
        %v2380 = vadd.f32 %v2334, %v2336
        %v2381 = vrot.slane %v2380, 4
        %v2382 = vadd.f32 %v2380, %v2381
        %v2383 = vrot.slane %v2382, 2
        %v2384 = vadd.f32 %v2382, %v2383
        %v2385 = vrot.slane %v2384, 1
        %v2386 = vadd.f32 %v2384, %v2385
        %v2387 = vadd.f32 %v2335, %v2337
        %v2388 = vrot.slane %v2387, 4
        %v2389 = vadd.f32 %v2387, %v2388
        %v2390 = vrot.slane %v2389, 2
        %v2391 = vadd.f32 %v2389, %v2390
        %v2392 = vrot.slane %v2391, 1
        %v2393 = vadd.f32 %v2391, %v2392
        %v2394 = vmul.f32 %v2272, %v277
        %v2395 = vmul.f32 %v2279, %v278
        %v2396 = vmul.f32 %v2286, %v277
        %v2397 = vmul.f32 %v2293, %v278
        %v2398 = vmul.f32 %v2300, %v277
        %v2399 = vmul.f32 %v2307, %v278
        %v2400 = vmul.f32 %v2314, %v277
        %v2401 = vmul.f32 %v2321, %v278
        %v2402 = vsel %vm1239, %v2394, 0.0
        %v2403 = vsel %vm1239, %v2395, 0.0
        %v2404 = vadd.f32 %v2402, %v2403
        %2405 = vadd.xlane.f32.xlu0 %v2404
        %v2406 = vpop.xlane.xlu0 %2405
        %v2407 = vsel %vm1239, %v2396, 0.0
        %v2408 = vsel %vm1239, %v2397, 0.0
        %v2409 = vadd.f32 %v2407, %v2408
        %2410 = vadd.xlane.f32.xlu0 %v2409
        %v2411 = vpop.xlane.xlu0 %2410
        %v2412 = vsel %vm1239, %v2398, 0.0
        %v2413 = vsel %vm1239, %v2399, 0.0
        %v2414 = vadd.f32 %v2412, %v2413
        %2415 = vadd.xlane.f32.xlu0 %v2414
        %v2416 = vpop.xlane.xlu0 %2415
        %v2417 = vsel %vm1239, %v2400, 0.0
        %v2418 = vsel %vm1239, %v2401, 0.0
        %v2419 = vadd.f32 %v2417, %v2418
        %2420 = vadd.xlane.f32.xlu0 %v2419
        %v2421 = vpop.xlane.xlu0 %2420
        %v2422 = vmul.f32 %v2344, %v277
        %v2423 = vmul.f32 %v2351, %v278
        %v2424 = vmul.f32 %v2358, %v277
        %v2425 = vmul.f32 %v2365, %v278
        %v2426 = vmul.f32 %v2372, %v277
        %v2427 = vmul.f32 %v2379, %v278
        %v2428 = vmul.f32 %v2386, %v277
        %v2429 = vmul.f32 %v2393, %v278
        %v2430 = vsel %vm1239, %v2422, 0.0
        %v2431 = vsel %vm1239, %v2423, 0.0
        %v2432 = vadd.f32 %v2430, %v2431
        %2433 = vadd.xlane.f32.xlu0 %v2432
        %v2434 = vpop.xlane.xlu0 %2433
        %v2435 = vsel %vm1239, %v2424, 0.0
        %v2436 = vsel %vm1239, %v2425, 0.0
        %v2437 = vadd.f32 %v2435, %v2436
        %2438 = vadd.xlane.f32.xlu0 %v2437
        %v2439 = vpop.xlane.xlu0 %2438
        %v2440 = vsel %vm1239, %v2426, 0.0
        %v2441 = vsel %vm1239, %v2427, 0.0
        %v2442 = vadd.f32 %v2440, %v2441
        %2443 = vadd.xlane.f32.xlu0 %v2442
        %v2444 = vpop.xlane.xlu0 %2443
        %v2445 = vsel %vm1239, %v2428, 0.0
        %v2446 = vsel %vm1239, %v2429, 0.0
        %v2447 = vadd.f32 %v2445, %v2446
        %2448 = vadd.xlane.f32.xlu0 %v2447
        %v2449 = vpop.xlane.xlu0 %2448
        %v2450 = vmul.f32 %v2406, 0.00048828125
        %v2451 = vmul.f32 %v2411, 0.00048828125
        %v2452 = vmul.f32 %v2416, 0.00048828125
        %v2453 = vmul.f32 %v2421, 0.00048828125
        %v2454 = vmul.f32 %v2434, 0.00048828125
        %v2455 = vmul.f32 %v2439, 0.00048828125
        %v2456 = vmul.f32 %v2444, 0.00048828125
        %v2457 = vmul.f32 %v2449, 0.00048828125
        %v2458 = vmul.f32 %v2450, %v2450
        %v2459 = vmul.f32 %v2451, %v2451
        %v2460 = vmul.f32 %v2452, %v2452
        %v2461 = vmul.f32 %v2453, %v2453
        %v2462 = vsub.f32 %v2454, %v2458
        %v2463 = vsub.f32 %v2455, %v2459
        %v2464 = vsub.f32 %v2456, %v2460
        %v2465 = vsub.f32 %v2457, %v2461
        %v2466 = vmax.f32 %v2462, 0.0
        %v2467 = vmax.f32 %v2463, 0.0
        %v2468 = vmax.f32 %v2464, 0.0
        %v2469 = vmax.f32 %v2465, 0.0
        %v2470 = vmul.f32 %v277, %v2450
        %v2471 = vmul.f32 %v278, %v2450
        %v2472 = vmul.f32 %v277, %v2451
        %v2473 = vmul.f32 %v278, %v2451
        %v2474 = vmul.f32 %v277, %v2452
        %v2475 = vmul.f32 %v278, %v2452
        %v2476 = vmul.f32 %v277, %v2453
        %v2477 = vmul.f32 %v278, %v2453
        %v2486 = vrot.slane %v2470, 6
        %v2487 = vrot.slane %v2471, 6
        %v2488 = vrot.slane %v2472, 6
        %v2489 = vrot.slane %v2473, 6
        %v2490 = vrot.slane %v2474, 6
        %v2491 = vrot.slane %v2475, 6
        %v2492 = vrot.slane %v2476, 6
        %v2493 = vrot.slane %v2477, 6
        %v2502 = vsel %vm1340, %v2486, 0.0
        %v2503 = vrot.slane %v2502, 4
        %v2504 = vadd.f32 %v2502, %v2503
        %v2505 = vrot.slane %v2504, 2
        %v2506 = vadd.f32 %v2504, %v2505
        %v2507 = vrot.slane %v2506, 1
        %v2508 = vadd.f32 %v2506, %v2507
        %v2509 = vsel %vm1340, %v2487, 0.0
        %v2510 = vrot.slane %v2509, 4
        %v2511 = vadd.f32 %v2509, %v2510
        %v2512 = vrot.slane %v2511, 2
        %v2513 = vadd.f32 %v2511, %v2512
        %v2514 = vrot.slane %v2513, 1
        %v2515 = vadd.f32 %v2513, %v2514
        %v2516 = vsel %vm1340, %v2488, 0.0
        %v2517 = vrot.slane %v2516, 4
        %v2518 = vadd.f32 %v2516, %v2517
        %v2519 = vrot.slane %v2518, 2
        %v2520 = vadd.f32 %v2518, %v2519
        %v2521 = vrot.slane %v2520, 1
        %v2522 = vadd.f32 %v2520, %v2521
        %v2523 = vsel %vm1340, %v2489, 0.0
        %v2524 = vrot.slane %v2523, 4
        %v2525 = vadd.f32 %v2523, %v2524
        %v2526 = vrot.slane %v2525, 2
        %v2527 = vadd.f32 %v2525, %v2526
        %v2528 = vrot.slane %v2527, 1
        %v2529 = vadd.f32 %v2527, %v2528
        %v2530 = vsel %vm1340, %v2490, 0.0
        %v2531 = vrot.slane %v2530, 4
        %v2532 = vadd.f32 %v2530, %v2531
        %v2533 = vrot.slane %v2532, 2
        %v2534 = vadd.f32 %v2532, %v2533
        %v2535 = vrot.slane %v2534, 1
        %v2536 = vadd.f32 %v2534, %v2535
        %v2537 = vsel %vm1340, %v2491, 0.0
        %v2538 = vrot.slane %v2537, 4
        %v2539 = vadd.f32 %v2537, %v2538
        %v2540 = vrot.slane %v2539, 2
        %v2541 = vadd.f32 %v2539, %v2540
        %v2542 = vrot.slane %v2541, 1
        %v2543 = vadd.f32 %v2541, %v2542
        %v2544 = vsel %vm1340, %v2492, 0.0
        %v2545 = vrot.slane %v2544, 4
        %v2546 = vadd.f32 %v2544, %v2545
        %v2547 = vrot.slane %v2546, 2
        %v2548 = vadd.f32 %v2546, %v2547
        %v2549 = vrot.slane %v2548, 1
        %v2550 = vadd.f32 %v2548, %v2549
        %v2551 = vsel %vm1340, %v2493, 0.0
        %v2552 = vrot.slane %v2551, 4
        %v2553 = vadd.f32 %v2551, %v2552
        %v2554 = vrot.slane %v2553, 2
        %v2555 = vadd.f32 %v2553, %v2554
        %v2556 = vrot.slane %v2555, 1
        %v2557 = vadd.f32 %v2555, %v2556
        %v2558 = vmul.f32 %v277, %v2466
        %v2559 = vmul.f32 %v278, %v2466
        %v2560 = vmul.f32 %v277, %v2467
        %v2561 = vmul.f32 %v278, %v2467
        %v2562 = vmul.f32 %v277, %v2468
        %v2563 = vmul.f32 %v278, %v2468
        %v2564 = vmul.f32 %v277, %v2469
        %v2565 = vmul.f32 %v278, %v2469
        %v2574 = vrot.slane %v2558, 6
        %v2575 = vrot.slane %v2559, 6
        %v2576 = vrot.slane %v2560, 6
        %v2577 = vrot.slane %v2561, 6
        %v2578 = vrot.slane %v2562, 6
        %v2579 = vrot.slane %v2563, 6
        %v2580 = vrot.slane %v2564, 6
        %v2581 = vrot.slane %v2565, 6
        %v2590 = vsel %vm1340, %v2574, 0.0
        %v2591 = vrot.slane %v2590, 4
        %v2592 = vadd.f32 %v2590, %v2591
        %v2593 = vrot.slane %v2592, 2
        %v2594 = vadd.f32 %v2592, %v2593
        %v2595 = vrot.slane %v2594, 1
        %v2596 = vadd.f32 %v2594, %v2595
        %v2597 = vsel %vm1340, %v2575, 0.0
        %v2598 = vrot.slane %v2597, 4
        %v2599 = vadd.f32 %v2597, %v2598
        %v2600 = vrot.slane %v2599, 2
        %v2601 = vadd.f32 %v2599, %v2600
        %v2602 = vrot.slane %v2601, 1
        %v2603 = vadd.f32 %v2601, %v2602
        %v2604 = vsel %vm1340, %v2576, 0.0
        %v2605 = vrot.slane %v2604, 4
        %v2606 = vadd.f32 %v2604, %v2605
        %v2607 = vrot.slane %v2606, 2
        %v2608 = vadd.f32 %v2606, %v2607
        %v2609 = vrot.slane %v2608, 1
        %v2610 = vadd.f32 %v2608, %v2609
        %v2611 = vsel %vm1340, %v2577, 0.0
        %v2612 = vrot.slane %v2611, 4
        %v2613 = vadd.f32 %v2611, %v2612
        %v2614 = vrot.slane %v2613, 2
        %v2615 = vadd.f32 %v2613, %v2614
        %v2616 = vrot.slane %v2615, 1
        %v2617 = vadd.f32 %v2615, %v2616
        %v2618 = vsel %vm1340, %v2578, 0.0
        %v2619 = vrot.slane %v2618, 4
        %v2620 = vadd.f32 %v2618, %v2619
        %v2621 = vrot.slane %v2620, 2
        %v2622 = vadd.f32 %v2620, %v2621
        %v2623 = vrot.slane %v2622, 1
        %v2624 = vadd.f32 %v2622, %v2623
        %v2625 = vsel %vm1340, %v2579, 0.0
        %v2626 = vrot.slane %v2625, 4
        %v2627 = vadd.f32 %v2625, %v2626
        %v2628 = vrot.slane %v2627, 2
        %v2629 = vadd.f32 %v2627, %v2628
        %v2630 = vrot.slane %v2629, 1
        %v2631 = vadd.f32 %v2629, %v2630
        %v2632 = vsel %vm1340, %v2580, 0.0
        %v2633 = vrot.slane %v2632, 4
        %v2634 = vadd.f32 %v2632, %v2633
        %v2635 = vrot.slane %v2634, 2
        %v2636 = vadd.f32 %v2634, %v2635
        %v2637 = vrot.slane %v2636, 1
        %v2638 = vadd.f32 %v2636, %v2637
        %v2639 = vsel %vm1340, %v2581, 0.0
        %v2640 = vrot.slane %v2639, 4
        %v2641 = vadd.f32 %v2639, %v2640
        %v2642 = vrot.slane %v2641, 2
        %v2643 = vadd.f32 %v2641, %v2642
        %v2644 = vrot.slane %v2643, 1
        %v2645 = vadd.f32 %v2643, %v2644
        %v2646 = vadd.f32 %v2596, 1e-05
        %v2647 = vadd.f32 %v2603, 1e-05
        %v2648 = vadd.f32 %v2610, 1e-05
        %v2649 = vadd.f32 %v2617, 1e-05
        %v2650 = vadd.f32 %v2624, 1e-05
        %v2651 = vadd.f32 %v2631, 1e-05
        %v2652 = vadd.f32 %v2638, 1e-05
        %v2653 = vadd.f32 %v2645, 1e-05
        %v2654 = vrsqrt.pop %v2646
        %v2655 = vrsqrt.pop %v2647
        %v2656 = vrsqrt.pop %v2648
        %v2657 = vrsqrt.pop %v2649
        %v2658 = vrsqrt.pop %v2650
        %v2659 = vrsqrt.pop %v2651
        %v2660 = vrsqrt.pop %v2652
        %v2661 = vrsqrt.pop %v2653
        %v2662 = vsub.f32 %v2250, %v2508
        %v2663 = vsub.f32 %v2251, %v2515
        %v2664 = vsub.f32 %v2252, %v2508
        %v2665 = vsub.f32 %v2253, %v2515
        %v2666 = vsub.f32 %v2254, %v2522
        %v2667 = vsub.f32 %v2255, %v2529
        %v2668 = vsub.f32 %v2256, %v2522
        %v2669 = vsub.f32 %v2257, %v2529
        %v2670 = vsub.f32 %v2258, %v2536
        %v2671 = vsub.f32 %v2259, %v2543
        %v2672 = vsub.f32 %v2260, %v2536
        %v2673 = vsub.f32 %v2261, %v2543
        %v2674 = vsub.f32 %v2262, %v2550
        %v2675 = vsub.f32 %v2263, %v2557
        %v2676 = vsub.f32 %v2264, %v2550
        %v2677 = vsub.f32 %v2265, %v2557
        %v2678 = vmul.f32 %v2662, %v2654
        %v2679 = vmul.f32 %v2663, %v2655
        %v2680 = vmul.f32 %v2664, %v2654
        %v2681 = vmul.f32 %v2665, %v2655
        %v2682 = vmul.f32 %v2666, %v2656
        %v2683 = vmul.f32 %v2667, %v2657
        %v2684 = vmul.f32 %v2668, %v2656
        %v2685 = vmul.f32 %v2669, %v2657
        %v2686 = vmul.f32 %v2670, %v2658
        %v2687 = vmul.f32 %v2671, %v2659
        %v2688 = vmul.f32 %v2672, %v2658
        %v2689 = vmul.f32 %v2673, %v2659
        %v2690 = vmul.f32 %v2674, %v2660
        %v2691 = vmul.f32 %v2675, %v2661
        %v2692 = vmul.f32 %v2676, %v2660
        %v2693 = vmul.f32 %v2677, %v2661
        %v2694 = vlaneseq
        %v2695 = vshrl.u32 %v2694, 7
        %v2696 = vsub.s32 4, %v2695
        %v2697 = vrot.slane %v277, %v2696
        %v2698 = vlaneseq
        %v2699 = vshrl.u32 %v2698, 7
        %v2700 = vsub.s32 4, %v2699
        %v2701 = vrot.slane %v278, %v2700
        %v2702 = vmul.f32 %v2678, %v2697
        %v2703 = vmul.f32 %v2679, %v2701
        %v2704 = vmul.f32 %v2680, %v2697
        %v2705 = vmul.f32 %v2681, %v2701
        %v2706 = vmul.f32 %v2682, %v2697
        %v2707 = vmul.f32 %v2683, %v2701
        %v2708 = vmul.f32 %v2684, %v2697
        %v2709 = vmul.f32 %v2685, %v2701
        %v2710 = vmul.f32 %v2686, %v2697
        %v2711 = vmul.f32 %v2687, %v2701
        %v2712 = vmul.f32 %v2688, %v2697
        %v2713 = vmul.f32 %v2689, %v2701
        %v2714 = vmul.f32 %v2690, %v2697
        %v2715 = vmul.f32 %v2691, %v2701
        %v2716 = vmul.f32 %v2692, %v2697
        %v2717 = vmul.f32 %v2693, %v2701
        %v2718 = vlaneseq
        %v2719 = vshrl.u32 %v2718, 7
        %v2720 = vsub.s32 5, %v2719
        %v2721 = vrot.slane %v277, %v2720
        %v2722 = vlaneseq
        %v2723 = vshrl.u32 %v2722, 7
        %v2724 = vsub.s32 5, %v2723
        %v2725 = vrot.slane %v278, %v2724
        %v2726 = vadd.f32 %v2702, %v2721
        %v2727 = vadd.f32 %v2703, %v2725
        %v2728 = vadd.f32 %v2704, %v2721
        %v2729 = vadd.f32 %v2705, %v2725
        %v2730 = vadd.f32 %v2706, %v2721
        %v2731 = vadd.f32 %v2707, %v2725
        %v2732 = vadd.f32 %v2708, %v2721
        %v2733 = vadd.f32 %v2709, %v2725
        %v2734 = vadd.f32 %v2710, %v2721
        %v2735 = vadd.f32 %v2711, %v2725
        %v2736 = vadd.f32 %v2712, %v2721
        %v2737 = vadd.f32 %v2713, %v2725
        %v2738 = vadd.f32 %v2714, %v2721
        %v2739 = vadd.f32 %v2715, %v2725
        %v2740 = vadd.f32 %v2716, %v2721
        %v2741 = vadd.f32 %v2717, %v2725
        %v2742 = vmax.f32 %v2726, 0.0
        %v2743 = vmax.f32 %v2727, 0.0
        %v2744 = vmax.f32 %v2728, 0.0
        %v2745 = vmax.f32 %v2729, 0.0
        %v2746 = vmax.f32 %v2730, 0.0
        %v2747 = vmax.f32 %v2731, 0.0
        %v2748 = vmax.f32 %v2732, 0.0
        %v2749 = vmax.f32 %v2733, 0.0
        %v2750 = vmax.f32 %v2734, 0.0
        %v2751 = vmax.f32 %v2735, 0.0
        %v2752 = vmax.f32 %v2736, 0.0
        %v2753 = vmax.f32 %v2737, 0.0
        %v2754 = vmax.f32 %v2738, 0.0
        %v2755 = vmax.f32 %v2739, 0.0
        %v2756 = vmax.f32 %v2740, 0.0
        %v2757 = vmax.f32 %v2741, 0.0
        %v2758 = vadd.f32 %v261, %v2742
        %v2759 = vadd.f32 %v262, %v2743
        %v2760 = vadd.f32 %v263, %v2744
        %v2761 = vadd.f32 %v264, %v2745
        %v2762 = vadd.f32 %v265, %v2746
        %v2763 = vadd.f32 %v266, %v2747
        %v2764 = vadd.f32 %v267, %v2748
        %v2765 = vadd.f32 %v268, %v2749
        %v2766 = vadd.f32 %v269, %v2750
        %v2767 = vadd.f32 %v270, %v2751
        %v2768 = vadd.f32 %v271, %v2752
        %v2769 = vadd.f32 %v272, %v2753
        %v2770 = vadd.f32 %v273, %v2754
        %v2771 = vadd.f32 %v274, %v2755
        %v2772 = vadd.f32 %v275, %v2756
        %v2773 = vadd.f32 %v276, %v2757
        %v2774 = vmax.f32 %v2758, 0.0
        %v2775 = vmax.f32 %v2759, 0.0
        %v2776 = vmax.f32 %v2760, 0.0
        %v2777 = vmax.f32 %v2761, 0.0
        %v2778 = vmax.f32 %v2762, 0.0
        %v2779 = vmax.f32 %v2763, 0.0
        %v2780 = vmax.f32 %v2764, 0.0
        %v2781 = vmax.f32 %v2765, 0.0
        %v2782 = vmax.f32 %v2766, 0.0
        %v2783 = vmax.f32 %v2767, 0.0
        %v2784 = vmax.f32 %v2768, 0.0
        %v2785 = vmax.f32 %v2769, 0.0
        %v2786 = vmax.f32 %v2770, 0.0
        %v2787 = vmax.f32 %v2771, 0.0
        %v2788 = vmax.f32 %v2772, 0.0
        %v2789 = vmax.f32 %v2773, 0.0
        %2790 = vst [vmem:[%s258] sm:$0xff] %v2774
        %2791 = vst [vmem:[%s258 + $0x8] sm:$0xff] %v2775
        %2792 = vst [vmem:[%s258 + $0x10] sm:$0xff] %v2776
        %2793 = vst [vmem:[%s258 + $0x18] sm:$0xff] %v2777
        %2794 = vst [vmem:[%s258 + $0x20] sm:$0xff] %v2778
        %2795 = vst [vmem:[%s258 + $0x28] sm:$0xff] %v2779
        %2796 = vst [vmem:[%s258 + $0x30] sm:$0xff] %v2780
        %2797 = vst [vmem:[%s258 + $0x38] sm:$0xff] %v2781
        %2798 = vst [vmem:[%s258 + $0x40] sm:$0xff] %v2782
        %2799 = vst [vmem:[%s258 + $0x48] sm:$0xff] %v2783
        %2800 = vst [vmem:[%s258 + $0x50] sm:$0xff] %v2784
        %2801 = vst [vmem:[%s258 + $0x58] sm:$0xff] %v2785
        %2802 = vst [vmem:[%s258 + $0x60] sm:$0xff] %v2786
        %2803 = vst [vmem:[%s258 + $0x68] sm:$0xff] %v2787
        %2804 = vst [vmem:[%s258 + $0x70] sm:$0xff] %v2788
        %2805 = vst [vmem:[%s258 + $0x78] sm:$0xff] %v2789
        %s2806 = sand.u32 %s120, 1
        %s2807 = scalar_lea.sflag [#allocation4], %s2806
        %s2808 = sand.u32 %s120, 1
        %s2809 = smul.addr %s2808, 128
        %s2810 = scalar_lea.vmem [#allocation10], %s2809
        // Predicated region
        $region53: #{tpu_custom_call.1} parent=35 // pred_check
          %p2811 = pneg %p130
        $region54: #{tpu_custom_call.1} parent=35 // pred_check_branch
          %2813 = sbr.rel (%p2811) target = $region56
        $region55: #{tpu_custom_call.1} parent=35 // pred_region
          %s2814 = smul.u32 4, %s23
          %s2816 = ssub.s32 2048, 2048
          %2817 = vsyncadd %s2807, %s2816
          %s2818 = smul.addr %s2814, 4
          %s2819 = smul.addr %s2818, 128
          %s2820 = scalar_lea.hbm %s4, %s2819
          %s2821 = sshll.u32 %s2810, 4
          %s2822 = int_to_ptr.vmem [resolvable:$true] %s2821
          %2827 = dma.vmem_to_hbm [thread:$0]  %s2822, 2048, %s2820, %s2807, 256, 256, 16
        $region56: #{tpu_custom_call.1} parent=35 // pred_fallthru
          _
      $region36: #{tpu_custom_call.1} parent=5 // pred_fallthru
        _
      %p2828 = scmp.le.s32.totalorder 2, %s18
      // Predicated region
      $region57: #{tpu_custom_call.1} parent=5 // pred_check
        %p2829 = pneg %p2828
      $region58: #{tpu_custom_call.1} parent=5 // pred_check_branch
        %2831 = sbr.rel (%p2829) target = $region60
      $region59: #{tpu_custom_call.1} parent=5 // pred_region
        %s2832 = ssub.s32 %s18, 2
        // Predicated region
        $region61: #{tpu_custom_call.1} parent=59 // pred_check
          %p2833 = pneg %p136
        $region62: #{tpu_custom_call.1} parent=59 // pred_check_branch
          %2835 = sbr.rel (%p2833) target = $region64
        $region63: #{tpu_custom_call.1} parent=59 // pred_region
          %s2836 = sand.u32 %s121, 1
          %s2837 = scalar_lea.sflag [#allocation4], %s2836
          %s2838 = sand.u32 %s121, 1
          %s2839 = smul.addr %s2838, 128
          %s2840 = scalar_lea.vmem [#allocation10], %s2839
          %2841 = dma.done %s2837, 2048
        $region64: #{tpu_custom_call.1} parent=59 // pred_fallthru
          _
      $region60: #{tpu_custom_call.1} parent=5 // pred_fallthru
        _
    $region6: #{tpu_custom_call.1} parent=1 // loop_footer
      %s22 = sadd.s32 1, %s18
    $region7: #{tpu_custom_call.1} parent=1 // loop_footer_branch
      %17 = sbr.rel target = $region3
    $region8: #{tpu_custom_call.1} parent=1 // loop_exit
      _
    %2842 = vsyncpa [#allocation3], 1
    %s2843 = scalar_lea.sflag [#allocation3], 1
    %2844 = vsyncpa %s2843, 1
    %2845 = vsyncpa [#allocation6], 1
    %2846 = vsyncpa [#allocation9], 1
    %2847 = vsyncpa [#allocation4], 1
    %s2848 = scalar_lea.sflag [#allocation4], 1
    %2849 = vsyncpa %s2848, 1

// kernel: tpu_custom_call.1
$region0: #{tpu_custom_call.1}
  #allocation0 [shape = 'u32[]', space=smem, size = 0x4, offset = 0x4, fixed_abs, tag = 'smem constant byte address 0x4 - core index']
  #allocation1 [shape = 'u32[144,128]{1,0:T(1,128)}', space=vmem, size = 0x12000, scoped, tag = 'internal scratch']
  %s0 = inlined_call_operand.hbm [shape: f32[8,16,256], index: 0, kind: input, shape index: {}]
  %s1 = inlined_call_operand.hbm [shape: f32[3,256,256], index: 1, kind: input, shape index: {}]
  %s2 = inlined_call_operand.hbm [shape: f32[3,256,256], index: 2, kind: input, shape index: {}]
  %s3 = inlined_call_operand.hbm [shape: f32[8,256], index: 3, kind: input, shape index: {}]
  %s4 = inlined_call_operand.hbm [shape: f32[8,16,256], index: 4, kind: output, shape index: {}]
  %s5 = sld [smem:[#allocation0]]
  $region65: #{tpu_custom_call.1} parent=0
    _
  %s7 = ssub.s32 1, %s5
  %s8 = scalar_select 0, %s7, %s5
  $region1: #{tpu_custom_call.1} parent=0
    #allocation2 [shape = 'u8[131072]{0}', space=vmem, size = 0x20000, scoped, tag = 'input window, operand 0']
    #allocation3 [shape = 's32[2]{0}', space=sflag, size = 0x8, scoped, tag = 'scoped memory for tpu_custom_call.1']
    #allocation4 [shape = 's32[2]{0}', space=sflag, size = 0x8, scoped, tag = 'scoped memory for tpu_custom_call.1']
    #allocation5 [shape = 'u8[786432]{0}', space=vmem, size = 0xc0000, scoped, tag = 'input window, operand 1, single buffered']
    #allocation6 [shape = 's32[1]{0}', space=sflag, size = 0x4, scoped, tag = 'scoped memory for tpu_custom_call.1']
    #allocation7 [shape = 'u8[786432]{0}', space=vmem, size = 0xc0000, scoped, tag = 'input window, operand 2, single buffered']
    #allocation8 [shape = 'u8[8192]{0}', space=vmem, size = 0x2000, scoped, tag = 'input window, operand 3, single buffered']
    #allocation9 [shape = 's32[1]{0}', space=sflag, size = 0x4, scoped, tag = 'scoped memory for tpu_custom_call.1']
    #allocation10 [shape = 'u8[131072]{0}', space=vmem, size = 0x20000, scoped, tag = 'output window, operand 0']
    %9 = vsyncpa [#allocation3], 0
    %s10 = scalar_lea.sflag [#allocation3], 1
    %11 = vsyncpa %s10, 0
    %12 = vsyncpa [#allocation6], 0
    %13 = vsyncpa [#allocation9], 0
    %14 = vsyncpa [#allocation4], 0
    %s15 = scalar_lea.sflag [#allocation4], 1
    %16 = vsyncpa %s15, 0
    loop: start=0, step=1, limit=4
    $region2: #{tpu_custom_call.1} parent=1 // loop_pre_header
      _
    $region3: #{tpu_custom_call.1} parent=1 // loop_header
      %s18 = sphi 0, %s22
      %p19 = scmp.ge.s32.totalorder %s18, 4
      %s28 = sphi 0, %s30
      %s31 = sphi 0, %s28
      %s32 = sphi 0, %s31
      %s48 = sphi 0, %s32
      %s52 = sphi 0, %s52
      %s54 = sphi 0, %s52
      %s55 = sphi 0, %s54
      %s69 = sphi 0, %s55
      %s73 = sphi 0, %s73
      %s75 = sphi 0, %s73
      %s76 = sphi 0, %s75
      %s90 = sphi 0, %s76
      %s94 = sphi 0, %s94
      %s96 = sphi 0, %s94
      %s97 = sphi 0, %s96
      %s111 = sphi 0, %s97
      %s117 = sphi 0, %s119
      %s120 = sphi 0, %s117
      %s121 = sphi 0, %s120
      %s137 = sphi 0, %s121
    $region4: #{tpu_custom_call.1} parent=1 // loop_header_branch
      %21 = sbr.rel (%p19) target = $region8
    $region5: #{tpu_custom_call.1} parent=1 // loop_body
      %s23 = ssub.s32 %s18, 1
      %s24 = ssub.s32 %s18, 2
      %s25 = sadd.s32 %s18, 1
      %s26 = ssub.s32 %s18, %s25
      %p27 = scmp.eq.s32.totalorder %s26, 0
      %s29 = sadd.s32 %s28, 1
      %s30 = scalar_select %p27, %s28, %s29
      %p33 = pneg %p27
      %p34 = scmp.eq.s32.totalorder %s18, 1
      %p35 = por %p33, %p34
      %p36 = scmp.ne.s32.totalorder %s28, %s31
      %p37 = scmp.eq.s32.totalorder %s18, 0
      %p38 = por %p36, %p37
      %p39 = scmp.ne.s32.totalorder %s28, %s31
      %p40 = scmp.eq.s32.totalorder %s23, 1
      %p41 = por %p39, %p40
      %p42 = scmp.ne.s32.totalorder %s31, %s32
      %p43 = scmp.eq.s32.totalorder %s23, 0
      %p44 = por %p42, %p43
      %p45 = scmp.ne.s32.totalorder %s31, %s32
      %p46 = scmp.eq.s32.totalorder %s24, 1
      %p47 = por %p45, %p46
      %p49 = scmp.ne.s32.totalorder %s32, %s48
      %p50 = scmp.eq.s32.totalorder %s24, 0
      %p51 = por %p49, %p50
      %s53 = sadd.s32 %s52, 1
      %p56 = scmp.eq.s32.totalorder %s18, 1
      %p57 = scmp.ne.s32.totalorder %s52, %s54
      %p58 = scmp.eq.s32.totalorder %s18, 0
      %p59 = por %p57, %p58
      %p60 = scmp.ne.s32.totalorder %s52, %s54
      %p61 = scmp.eq.s32.totalorder %s23, 1
      %p62 = por %p60, %p61
      %p63 = scmp.ne.s32.totalorder %s54, %s55
      %p64 = scmp.eq.s32.totalorder %s23, 0
      %p65 = por %p63, %p64
      %p66 = scmp.ne.s32.totalorder %s54, %s55
      %p67 = scmp.eq.s32.totalorder %s24, 1
      %p68 = por %p66, %p67
      %p70 = scmp.ne.s32.totalorder %s55, %s69
      %p71 = scmp.eq.s32.totalorder %s24, 0
      %p72 = por %p70, %p71
      %s74 = sadd.s32 %s73, 1
      %p77 = scmp.eq.s32.totalorder %s18, 1
      %p78 = scmp.ne.s32.totalorder %s73, %s75
      %p79 = scmp.eq.s32.totalorder %s18, 0
      %p80 = por %p78, %p79
      %p81 = scmp.ne.s32.totalorder %s73, %s75
      %p82 = scmp.eq.s32.totalorder %s23, 1
      %p83 = por %p81, %p82
      %p84 = scmp.ne.s32.totalorder %s75, %s76
      %p85 = scmp.eq.s32.totalorder %s23, 0
      %p86 = por %p84, %p85
      %p87 = scmp.ne.s32.totalorder %s75, %s76
      %p88 = scmp.eq.s32.totalorder %s24, 1
      %p89 = por %p87, %p88
      %p91 = scmp.ne.s32.totalorder %s76, %s90
      %p92 = scmp.eq.s32.totalorder %s24, 0
      %p93 = por %p91, %p92
      %s95 = sadd.s32 %s94, 1
      %p98 = scmp.eq.s32.totalorder %s18, 1
      %p99 = scmp.ne.s32.totalorder %s94, %s96
      %p100 = scmp.eq.s32.totalorder %s18, 0
      %p101 = por %p99, %p100
      %p102 = scmp.ne.s32.totalorder %s94, %s96
      %p103 = scmp.eq.s32.totalorder %s23, 1
      %p104 = por %p102, %p103
      %p105 = scmp.ne.s32.totalorder %s96, %s97
      %p106 = scmp.eq.s32.totalorder %s23, 0
      %p107 = por %p105, %p106
      %p108 = scmp.ne.s32.totalorder %s96, %s97
      %p109 = scmp.eq.s32.totalorder %s24, 1
      %p110 = por %p108, %p109
      %p112 = scmp.ne.s32.totalorder %s97, %s111
      %p113 = scmp.eq.s32.totalorder %s24, 0
      %p114 = por %p112, %p113
      %s115 = ssub.s32 %s18, %s25
      %p116 = scmp.eq.s32.totalorder %s115, 0
      %s118 = sadd.s32 %s117, 1
      %s119 = scalar_select %p116, %s117, %s118
      %p122 = pneg %p116
      %p123 = scmp.eq.s32.totalorder %s18, 1
      %p124 = por %p122, %p123
      %p125 = scmp.ne.s32.totalorder %s117, %s120
      %p126 = scmp.eq.s32.totalorder %s18, 0
      %p127 = por %p125, %p126
      %p128 = scmp.ne.s32.totalorder %s117, %s120
      %p129 = scmp.eq.s32.totalorder %s23, 1
      %p130 = por %p128, %p129
      %p131 = scmp.ne.s32.totalorder %s120, %s121
      %p132 = scmp.eq.s32.totalorder %s23, 0
      %p133 = por %p131, %p132
      %p134 = scmp.ne.s32.totalorder %s120, %s121
      %p135 = scmp.eq.s32.totalorder %s24, 1
      %p136 = por %p134, %p135
      %p138 = scmp.ne.s32.totalorder %s121, %s137
      %p139 = scmp.eq.s32.totalorder %s24, 0
      %p140 = por %p138, %p139
      %p141 = scmp.le.s32.totalorder 1, %s18
      %p142 = scmp.lt.s32.totalorder %s18, 3
      %p143 = pnand %p141, %p142
      %p144 = pneg %p143
      // Predicated region
      $region9: #{tpu_custom_call.1} parent=5 // pred_check
        _
      $region10: #{tpu_custom_call.1} parent=5 // pred_check_branch
        %146 = sbr.rel (%p143) target = $region12
      $region11: #{tpu_custom_call.1} parent=5 // pred_region
        %s147 = ssub.s32 %s18, 1
        // Predicated region
        $region13: #{tpu_custom_call.1} parent=11 // pred_check
          %p148 = pneg %p65
        $region14: #{tpu_custom_call.1} parent=11 // pred_check_branch
          %150 = sbr.rel (%p148) target = $region16
        $region15: #{tpu_custom_call.1} parent=11 // pred_region
          %s152 = ssub.s32 24576, 24576
          %153 = vsyncadd [#allocation6], %s152
          %s154 = sshll.u32 [#allocation5], 4
          %s155 = int_to_ptr.vmem [resolvable:$true] %s154
          %160 = dma.hbm_to_vmem [thread:$0]  %s1, 24576, %s155, [#allocation6], 256, 256, 16
        $region16: #{tpu_custom_call.1} parent=11 // pred_fallthru
          _
        // Predicated region
        $region17: #{tpu_custom_call.1} parent=11 // pred_check
          %p161 = pneg %p86
        $region18: #{tpu_custom_call.1} parent=11 // pred_check_branch
          %163 = sbr.rel (%p161) target = $region20
        $region19: #{tpu_custom_call.1} parent=11 // pred_region
          %s165 = ssub.s32 24576, 24576
          %166 = vsyncadd [#allocation6], %s165
          %s167 = sshll.u32 [#allocation7], 4
          %s168 = int_to_ptr.vmem [resolvable:$true] %s167
          %173 = dma.hbm_to_vmem [thread:$0]  %s2, 24576, %s168, [#allocation6], 256, 256, 16
        $region20: #{tpu_custom_call.1} parent=11 // pred_fallthru
          _
        // Predicated region
        $region21: #{tpu_custom_call.1} parent=11 // pred_check
          %p174 = pneg %p107
        $region22: #{tpu_custom_call.1} parent=11 // pred_check_branch
          %176 = sbr.rel (%p174) target = $region24
        $region23: #{tpu_custom_call.1} parent=11 // pred_region
          %s178 = ssub.s32 256, 256
          %179 = vsyncadd [#allocation9], %s178
          %s181 = sshll.u32 [#allocation8], 4
          %s182 = int_to_ptr.vmem [resolvable:$true] %s181
          %184 = dma.hbm_to_vmem [thread:$0]  %s3, 256, %s182, [#allocation9]
        $region24: #{tpu_custom_call.1} parent=11 // pred_fallthru
          _
      $region12: #{tpu_custom_call.1} parent=5 // pred_fallthru
        _
      %p185 = scmp.lt.s32.totalorder %s18, 2
      // Predicated region
      $region25: #{tpu_custom_call.1} parent=5 // pred_check
        %p186 = pneg %p185
      $region26: #{tpu_custom_call.1} parent=5 // pred_check_branch
        %188 = sbr.rel (%p186) target = $region28
      $region27: #{tpu_custom_call.1} parent=5 // pred_region
        // Predicated region
        $region29: #{tpu_custom_call.1} parent=27 // pred_check
          %p189 = pneg %p38
        $region30: #{tpu_custom_call.1} parent=27 // pred_check_branch
          %191 = sbr.rel (%p189) target = $region32
        $region31: #{tpu_custom_call.1} parent=27 // pred_region
          %s192 = sand.u32 %s28, 1
          %s193 = scalar_lea.sflag [#allocation3], %s192
          %s194 = sand.u32 %s28, 1
          %s195 = smul.addr %s194, 128
          %s196 = scalar_lea.vmem [#allocation2], %s195
          %s197 = smul.u32 4, %s18
          %s199 = ssub.s32 2048, 2048
          %200 = vsyncadd %s193, %s199
          %s201 = smul.addr %s197, 4
          %s202 = smul.addr %s201, 128
          %s203 = scalar_lea.hbm %s0, %s202
          %s204 = sshll.u32 %s196, 4
          %s205 = int_to_ptr.vmem [resolvable:$true] %s204
          %210 = dma.hbm_to_vmem [thread:$0]  %s203, 2048, %s205, %s193, 256, 256, 16
        $region32: #{tpu_custom_call.1} parent=27 // pred_fallthru
          _
      $region28: #{tpu_custom_call.1} parent=5 // pred_fallthru
        _
      %p211 = scmp.le.s32.totalorder 1, %s18
      %p212 = scmp.lt.s32.totalorder %s18, 3
      %p213 = pnand %p211, %p212
      %p214 = pneg %p213
      // Predicated region
      $region33: #{tpu_custom_call.1} parent=5 // pred_check
        _
      $region34: #{tpu_custom_call.1} parent=5 // pred_check_branch
        %216 = sbr.rel (%p213) target = $region36
      $region35: #{tpu_custom_call.1} parent=5 // pred_region
        %s217 = ssub.s32 %s18, 1
        %s218 = sand.u32 %s31, 1
        %s219 = scalar_lea.sflag [#allocation3], %s218
        %s220 = sand.u32 %s31, 1
        %s221 = smul.addr %s220, 128
        %s222 = scalar_lea.vmem [#allocation2], %s221
        // Predicated region
        $region37: #{tpu_custom_call.1} parent=35 // pred_check
          %p223 = pneg %p44
        $region38: #{tpu_custom_call.1} parent=35 // pred_check_branch
          %225 = sbr.rel (%p223) target = $region40
        $region39: #{tpu_custom_call.1} parent=35 // pred_region
          %226 = dma.done %s219, 2048
        $region40: #{tpu_custom_call.1} parent=35 // pred_fallthru
          _
        // Predicated region
        $region41: #{tpu_custom_call.1} parent=35 // pred_check
          %p227 = pneg %p65
        $region42: #{tpu_custom_call.1} parent=35 // pred_check_branch
          %229 = sbr.rel (%p227) target = $region44
        $region43: #{tpu_custom_call.1} parent=35 // pred_region
          %230 = dma.done [#allocation6], 24576
        $region44: #{tpu_custom_call.1} parent=35 // pred_fallthru
          _
        // Predicated region
        $region45: #{tpu_custom_call.1} parent=35 // pred_check
          %p231 = pneg %p86
        $region46: #{tpu_custom_call.1} parent=35 // pred_check_branch
          %233 = sbr.rel (%p231) target = $region48
        $region47: #{tpu_custom_call.1} parent=35 // pred_region
          %234 = dma.done [#allocation6], 24576
        $region48: #{tpu_custom_call.1} parent=35 // pred_fallthru
          _
        // Predicated region
        $region49: #{tpu_custom_call.1} parent=35 // pred_check
          %p235 = pneg %p107
        $region50: #{tpu_custom_call.1} parent=35 // pred_check_branch
          %237 = sbr.rel (%p235) target = $region52
        $region51: #{tpu_custom_call.1} parent=35 // pred_region
          %238 = dma.done [#allocation9], 256
        $region52: #{tpu_custom_call.1} parent=35 // pred_fallthru
          _
        %s239 = sand.u32 %s31, 1
        %s240 = scalar_lea.sflag [#allocation3], %s239
        %s241 = sand.u32 %s31, 1
        %s242 = smul.addr %s241, 128
        %s243 = scalar_lea.vmem [#allocation2], %s242
        %p244 = pneg %p44
        %p245 = pneg %p41
        %p246 = pneg %p65
        %p247 = pneg %p62
        %p248 = pneg %p86
        %p249 = pneg %p83
        %p250 = pneg %p107
        %p251 = pneg %p104
        %p252 = pneg %p133
        %p253 = pneg %p130
        %s254 = sand.u32 %s120, 1
        %s255 = scalar_lea.sflag [#allocation4], %s254
        %s256 = sand.u32 %s120, 1
        %s257 = smul.addr %s256, 128
        %s258 = scalar_lea.vmem [#allocation10], %s257
        %s259 = smul.u32 4, %s23
        %s260 = smul.u32 4, %s23
        %v261 = vld [vmem:[%s222] sm:$0xff]
        %v262 = vld [vmem:[%s222 + $0x8] sm:$0xff]
        %v263 = vld [vmem:[%s222 + $0x10] sm:$0xff]
        %v264 = vld [vmem:[%s222 + $0x18] sm:$0xff]
        %v265 = vld [vmem:[%s222 + $0x20] sm:$0xff]
        %v266 = vld [vmem:[%s222 + $0x28] sm:$0xff]
        %v267 = vld [vmem:[%s222 + $0x30] sm:$0xff]
        %v268 = vld [vmem:[%s222 + $0x38] sm:$0xff]
        %v269 = vld [vmem:[%s222 + $0x40] sm:$0xff]
        %v270 = vld [vmem:[%s222 + $0x48] sm:$0xff]
        %v271 = vld [vmem:[%s222 + $0x50] sm:$0xff]
        %v272 = vld [vmem:[%s222 + $0x58] sm:$0xff]
        %v273 = vld [vmem:[%s222 + $0x60] sm:$0xff]
        %v274 = vld [vmem:[%s222 + $0x68] sm:$0xff]
        %v275 = vld [vmem:[%s222 + $0x70] sm:$0xff]
        %v276 = vld [vmem:[%s222 + $0x78] sm:$0xff]
        %v277 = vld [vmem:[#allocation8] sm:$0xff]
        %v278 = vld [vmem:[#allocation8 + $0x8] sm:$0xff]
        %v279 = vlaneseq
        %v280 = vshrl.u32 %v279, 7
        %v281 = vadd.s32 %v280, 8
        %v282 = vadd.s32 %v280, 16
        %v283 = vadd.s32 %v280, 24
        %v284 = vadd.s32 %v280, 32
        %v285 = vadd.s32 %v280, 40
        %v286 = vadd.s32 %v280, 48
        %v287 = vadd.s32 %v280, 56
        %vm288 = vcmp.lt.s32.totalorder %v280, 0
        %v289 = vsub.s32 0, %v280
        %v290 = vsel %vm288, %v289, %v280
        %v291 = vshrl.u32 %v290, 4
        %v292 = vand.u32 %v290, 15
        %v293 = vsub.s32 0, %v292
        %v294 = vsel %vm288, %v293, %v292
        %vm295 = vcmp.lt.s32.totalorder %v281, 0
        %v296 = vsub.s32 0, %v281
        %v297 = vsel %vm295, %v296, %v281
        %v298 = vshrl.u32 %v297, 4
        %v299 = vand.u32 %v297, 15
        %v300 = vsub.s32 0, %v299
        %v301 = vsel %vm295, %v300, %v299
        %vm302 = vcmp.lt.s32.totalorder %v282, 0
        %v303 = vsub.s32 0, %v282
        %v304 = vsel %vm302, %v303, %v282
        %v305 = vshrl.u32 %v304, 4
        %v306 = vand.u32 %v304, 15
        %v307 = vsub.s32 0, %v306
        %v308 = vsel %vm302, %v307, %v306
        %vm309 = vcmp.lt.s32.totalorder %v283, 0
        %v310 = vsub.s32 0, %v283
        %v311 = vsel %vm309, %v310, %v283
        %v312 = vshrl.u32 %v311, 4
        %v313 = vand.u32 %v311, 15
        %v314 = vsub.s32 0, %v313
        %v315 = vsel %vm309, %v314, %v313
        %vm316 = vcmp.lt.s32.totalorder %v284, 0
        %v317 = vsub.s32 0, %v284
        %v318 = vsel %vm316, %v317, %v284
        %v319 = vshrl.u32 %v318, 4
        %v320 = vand.u32 %v318, 15
        %v321 = vsub.s32 0, %v320
        %v322 = vsel %vm316, %v321, %v320
        %vm323 = vcmp.lt.s32.totalorder %v285, 0
        %v324 = vsub.s32 0, %v285
        %v325 = vsel %vm323, %v324, %v285
        %v326 = vshrl.u32 %v325, 4
        %v327 = vand.u32 %v325, 15
        %v328 = vsub.s32 0, %v327
        %v329 = vsel %vm323, %v328, %v327
        %vm330 = vcmp.lt.s32.totalorder %v286, 0
        %v331 = vsub.s32 0, %v286
        %v332 = vsel %vm330, %v331, %v286
        %v333 = vshrl.u32 %v332, 4
        %v334 = vand.u32 %v332, 15
        %v335 = vsub.s32 0, %v334
        %v336 = vsel %vm330, %v335, %v334
        %vm337 = vcmp.lt.s32.totalorder %v287, 0
        %v338 = vsub.s32 0, %v287
        %v339 = vsel %vm337, %v338, %v287
        %v340 = vshrl.u32 %v339, 4
        %v341 = vand.u32 %v339, 15
        %v342 = vsub.s32 0, %v341
        %v343 = vsel %vm337, %v342, %v341
        %vm344 = vcmp.ne.s32.totalorder %v294, 0
        %vm345 = vcmp.ne.s32.totalorder %v301, 0
        %vm346 = vcmp.ne.s32.totalorder %v308, 0
        %vm347 = vcmp.ne.s32.totalorder %v315, 0
        %vm348 = vcmp.ne.s32.totalorder %v322, 0
        %vm349 = vcmp.ne.s32.totalorder %v329, 0
        %vm350 = vcmp.ne.s32.totalorder %v336, 0
        %vm351 = vcmp.ne.s32.totalorder %v343, 0
        %vm352 = vcmp.lt.s32.totalorder %v294, 0
        %vm353 = vcmp.lt.s32.totalorder %v301, 0
        %vm354 = vcmp.lt.s32.totalorder %v308, 0
        %vm355 = vcmp.lt.s32.totalorder %v315, 0
        %vm356 = vcmp.lt.s32.totalorder %v322, 0
        %vm357 = vcmp.lt.s32.totalorder %v329, 0
        %vm358 = vcmp.lt.s32.totalorder %v336, 0
        %vm359 = vcmp.lt.s32.totalorder %v343, 0
        %vm360 = vmand %vm352, %vm344
        %vm361 = vmand %vm353, %vm345
        %vm362 = vmand %vm354, %vm346
        %vm363 = vmand %vm355, %vm347
        %vm364 = vmand %vm356, %vm348
        %vm365 = vmand %vm357, %vm349
        %vm366 = vmand %vm358, %vm350
        %vm367 = vmand %vm359, %vm351
        %v368 = vadd.s32 %v294, 16
        %v369 = vadd.s32 %v301, 16
        %v370 = vadd.s32 %v308, 16
        %v371 = vadd.s32 %v315, 16
        %v372 = vadd.s32 %v322, 16
        %v373 = vadd.s32 %v329, 16
        %v374 = vadd.s32 %v336, 16
        %v375 = vadd.s32 %v343, 16
        %v376 = vsel %vm360, %v368, %v294
        %v377 = vsel %vm361, %v369, %v301
        %v378 = vsel %vm362, %v370, %v308
        %v379 = vsel %vm363, %v371, %v315
        %v380 = vsel %vm364, %v372, %v322
        %v381 = vsel %vm365, %v373, %v329
        %v382 = vsel %vm366, %v374, %v336
        %v383 = vsel %vm367, %v375, %v343
        %vm384 = vcmp.ne.s32.totalorder %v376, 0
        %vm385 = vcmp.ne.s32.totalorder %v377, 0
        %vm386 = vcmp.ne.s32.totalorder %v378, 0
        %vm387 = vcmp.ne.s32.totalorder %v379, 0
        %vm388 = vcmp.ne.s32.totalorder %v380, 0
        %vm389 = vcmp.ne.s32.totalorder %v381, 0
        %vm390 = vcmp.ne.s32.totalorder %v382, 0
        %vm391 = vcmp.ne.s32.totalorder %v383, 0
        %v392 = vsel %vm384, 1, 0
        %v393 = vsel %vm385, 1, 0
        %v394 = vsel %vm386, 1, 0
        %v395 = vsel %vm387, 1, 0
        %v396 = vsel %vm388, 1, 0
        %v397 = vsel %vm389, 1, 0
        %v398 = vsel %vm390, 1, 0
        %v399 = vsel %vm391, 1, 0
        %v400 = vcvt.s32.f32 %v392
        %v401 = vcvt.s32.f32 %v393
        %v402 = vcvt.s32.f32 %v394
        %v403 = vcvt.s32.f32 %v395
        %v404 = vcvt.s32.f32 %v396
        %v405 = vcvt.s32.f32 %v397
        %v406 = vcvt.s32.f32 %v398
        %v407 = vcvt.s32.f32 %v399
        %vm408 = vcmp.ne.s32.totalorder %v376, 15
        %vm409 = vcmp.ne.s32.totalorder %v377, 15
        %vm410 = vcmp.ne.s32.totalorder %v378, 15
        %vm411 = vcmp.ne.s32.totalorder %v379, 15
        %vm412 = vcmp.ne.s32.totalorder %v380, 15
        %vm413 = vcmp.ne.s32.totalorder %v381, 15
        %vm414 = vcmp.ne.s32.totalorder %v382, 15
        %vm415 = vcmp.ne.s32.totalorder %v383, 15
        %v416 = vsel %vm408, 1, 0
        %v417 = vsel %vm409, 1, 0
        %v418 = vsel %vm410, 1, 0
        %v419 = vsel %vm411, 1, 0
        %v420 = vsel %vm412, 1, 0
        %v421 = vsel %vm413, 1, 0
        %v422 = vsel %vm414, 1, 0
        %v423 = vsel %vm415, 1, 0
        %v424 = vcvt.s32.f32 %v416
        %v425 = vcvt.s32.f32 %v417
        %v426 = vcvt.s32.f32 %v418
        %v427 = vcvt.s32.f32 %v419
        %v428 = vcvt.s32.f32 %v420
        %v429 = vcvt.s32.f32 %v421
        %v430 = vcvt.s32.f32 %v422
        %v431 = vcvt.s32.f32 %v423
        %v432 = vrot.slane %v261, 7
        %v433 = vrot.slane %v262, 7
        %v434 = vrot.slane %v263, 7
        %v435 = vrot.slane %v264, 7
        %v436 = vrot.slane %v265, 7
        %v437 = vrot.slane %v266, 7
        %v438 = vrot.slane %v267, 7
        %v439 = vrot.slane %v268, 7
        %v440 = vrot.slane %v269, 7
        %v441 = vrot.slane %v270, 7
        %v442 = vrot.slane %v271, 7
        %v443 = vrot.slane %v272, 7
        %v444 = vrot.slane %v273, 7
        %v445 = vrot.slane %v274, 7
        %v446 = vrot.slane %v275, 7
        %v447 = vrot.slane %v276, 7
        %vm448 = vcmp.lt.s32.totalorder %v280, 1
        %v449 = vsel %vm448, %v444, %v446
        %v450 = vsel %vm448, %v445, %v447
        %v451 = vsel %vm448, %v442, %v444
        %v452 = vsel %vm448, %v443, %v445
        %v453 = vsel %vm448, %v440, %v442
        %v454 = vsel %vm448, %v441, %v443
        %v455 = vsel %vm448, %v438, %v440
        %v456 = vsel %vm448, %v439, %v441
        %v457 = vsel %vm448, %v436, %v438
        %v458 = vsel %vm448, %v437, %v439
        %v459 = vsel %vm448, %v434, %v436
        %v460 = vsel %vm448, %v435, %v437
        %v461 = vsel %vm448, %v432, %v434
        %v462 = vsel %vm448, %v433, %v435
        %v463 = vsel %vm448, %v446, %v432
        %v464 = vsel %vm448, %v447, %v433
        %v465 = vmul.f32 %v463, %v400
        %v466 = vmul.f32 %v464, %v400
        %v467 = vmul.f32 %v461, %v401
        %v468 = vmul.f32 %v462, %v401
        %v469 = vmul.f32 %v459, %v402
        %v470 = vmul.f32 %v460, %v402
        %v471 = vmul.f32 %v457, %v403
        %v472 = vmul.f32 %v458, %v403
        %v473 = vmul.f32 %v455, %v404
        %v474 = vmul.f32 %v456, %v404
        %v475 = vmul.f32 %v453, %v405
        %v476 = vmul.f32 %v454, %v405
        %v477 = vmul.f32 %v451, %v406
        %v478 = vmul.f32 %v452, %v406
        %v479 = vmul.f32 %v449, %v407
        %v480 = vmul.f32 %v450, %v407
        %v481 = vrot.slane %v261, 1
        %v482 = vrot.slane %v262, 1
        %v483 = vrot.slane %v263, 1
        %v484 = vrot.slane %v264, 1
        %v485 = vrot.slane %v265, 1
        %v486 = vrot.slane %v266, 1
        %v487 = vrot.slane %v267, 1
        %v488 = vrot.slane %v268, 1
        %v489 = vrot.slane %v269, 1
        %v490 = vrot.slane %v270, 1
        %v491 = vrot.slane %v271, 1
        %v492 = vrot.slane %v272, 1
        %v493 = vrot.slane %v273, 1
        %v494 = vrot.slane %v274, 1
        %v495 = vrot.slane %v275, 1
        %v496 = vrot.slane %v276, 1
        %vm497 = vcmp.lt.s32.totalorder %v280, 7
        %v498 = vsel %vm497, %v493, %v495
        %v499 = vsel %vm497, %v494, %v496
        %v500 = vsel %vm497, %v491, %v493
        %v501 = vsel %vm497, %v492, %v494
        %v502 = vsel %vm497, %v489, %v491
        %v503 = vsel %vm497, %v490, %v492
        %v504 = vsel %vm497, %v487, %v489
        %v505 = vsel %vm497, %v488, %v490
        %v506 = vsel %vm497, %v485, %v487
        %v507 = vsel %vm497, %v486, %v488
        %v508 = vsel %vm497, %v483, %v485
        %v509 = vsel %vm497, %v484, %v486
        %v510 = vsel %vm497, %v481, %v483
        %v511 = vsel %vm497, %v482, %v484
        %v512 = vsel %vm497, %v495, %v481
        %v513 = vsel %vm497, %v496, %v482
        %v514 = vmul.f32 %v510, %v424
        %v515 = vmul.f32 %v511, %v424
        %v516 = vmul.f32 %v508, %v425
        %v517 = vmul.f32 %v509, %v425
        %v518 = vmul.f32 %v506, %v426
        %v519 = vmul.f32 %v507, %v426
        %v520 = vmul.f32 %v504, %v427
        %v521 = vmul.f32 %v505, %v427
        %v522 = vmul.f32 %v502, %v428
        %v523 = vmul.f32 %v503, %v428
        %v524 = vmul.f32 %v500, %v429
        %v525 = vmul.f32 %v501, %v429
        %v526 = vmul.f32 %v498, %v430
        %v527 = vmul.f32 %v499, %v430
        %v528 = vmul.f32 %v512, %v431
        %v529 = vmul.f32 %v513, %v431
        %v530 = vld [vmem:[#allocation5] sm:$0xff]
        %v531 = vld [vmem:[#allocation5 + $0x8] sm:$0xff]
        %v532 = vld [vmem:[#allocation5 + $0x10] sm:$0xff]
        %v533 = vld [vmem:[#allocation5 + $0x18] sm:$0xff]
        %v534 = vld [vmem:[#allocation5 + $0x20] sm:$0xff]
        %v535 = vld [vmem:[#allocation5 + $0x28] sm:$0xff]
        %v536 = vld [vmem:[#allocation5 + $0x30] sm:$0xff]
        %v537 = vld [vmem:[#allocation5 + $0x38] sm:$0xff]
        %v538 = vld [vmem:[#allocation5 + $0x40] sm:$0xff]
        %v539 = vld [vmem:[#allocation5 + $0x48] sm:$0xff]
        %v540 = vld [vmem:[#allocation5 + $0x50] sm:$0xff]
        %v541 = vld [vmem:[#allocation5 + $0x58] sm:$0xff]
        %v542 = vld [vmem:[#allocation5 + $0x60] sm:$0xff]
        %v543 = vld [vmem:[#allocation5 + $0x68] sm:$0xff]
        %v544 = vld [vmem:[#allocation5 + $0x70] sm:$0xff]
        %v545 = vld [vmem:[#allocation5 + $0x78] sm:$0xff]
        %v546 = vld [vmem:[#allocation5 + $0x80] sm:$0xff]
        %v547 = vld [vmem:[#allocation5 + $0x88] sm:$0xff]
        %v548 = vld [vmem:[#allocation5 + $0x90] sm:$0xff]
        %v549 = vld [vmem:[#allocation5 + $0x98] sm:$0xff]
        %v550 = vld [vmem:[#allocation5 + $0xa0] sm:$0xff]
        %v551 = vld [vmem:[#allocation5 + $0xa8] sm:$0xff]
        %v552 = vld [vmem:[#allocation5 + $0xb0] sm:$0xff]
        %v553 = vld [vmem:[#allocation5 + $0xb8] sm:$0xff]
        %v554 = vld [vmem:[#allocation5 + $0xc0] sm:$0xff]
        %v555 = vld [vmem:[#allocation5 + $0xc8] sm:$0xff]
        %v556 = vld [vmem:[#allocation5 + $0xd0] sm:$0xff]
        %v557 = vld [vmem:[#allocation5 + $0xd8] sm:$0xff]
        %v558 = vld [vmem:[#allocation5 + $0xe0] sm:$0xff]
        %v559 = vld [vmem:[#allocation5 + $0xe8] sm:$0xff]
        %v560 = vld [vmem:[#allocation5 + $0xf0] sm:$0xff]
        %v561 = vld [vmem:[#allocation5 + $0xf8] sm:$0xff]
        %v562 = vld [vmem:[#allocation5 + $0x100] sm:$0xff]
        %v563 = vld [vmem:[#allocation5 + $0x108] sm:$0xff]
        %v564 = vld [vmem:[#allocation5 + $0x110] sm:$0xff]
        %v565 = vld [vmem:[#allocation5 + $0x118] sm:$0xff]
        %v566 = vld [vmem:[#allocation5 + $0x120] sm:$0xff]
        %v567 = vld [vmem:[#allocation5 + $0x128] sm:$0xff]
        %v568 = vld [vmem:[#allocation5 + $0x130] sm:$0xff]
        %v569 = vld [vmem:[#allocation5 + $0x138] sm:$0xff]
        %v570 = vld [vmem:[#allocation5 + $0x140] sm:$0xff]
        %v571 = vld [vmem:[#allocation5 + $0x148] sm:$0xff]
        %v572 = vld [vmem:[#allocation5 + $0x150] sm:$0xff]
        %v573 = vld [vmem:[#allocation5 + $0x158] sm:$0xff]
        %v574 = vld [vmem:[#allocation5 + $0x160] sm:$0xff]
        %v575 = vld [vmem:[#allocation5 + $0x168] sm:$0xff]
        %v576 = vld [vmem:[#allocation5 + $0x170] sm:$0xff]
        %v577 = vld [vmem:[#allocation5 + $0x178] sm:$0xff]
        %v578 = vld [vmem:[#allocation5 + $0x180] sm:$0xff]
        %v579 = vld [vmem:[#allocation5 + $0x188] sm:$0xff]
        %v580 = vld [vmem:[#allocation5 + $0x190] sm:$0xff]
        %v581 = vld [vmem:[#allocation5 + $0x198] sm:$0xff]
        %v582 = vld [vmem:[#allocation5 + $0x1a0] sm:$0xff]
        %v583 = vld [vmem:[#allocation5 + $0x1a8] sm:$0xff]
        %v584 = vld [vmem:[#allocation5 + $0x1b0] sm:$0xff]
        %v585 = vld [vmem:[#allocation5 + $0x1b8] sm:$0xff]
        %v586 = vld [vmem:[#allocation5 + $0x1c0] sm:$0xff]
        %v587 = vld [vmem:[#allocation5 + $0x1c8] sm:$0xff]
        %v588 = vld [vmem:[#allocation5 + $0x1d0] sm:$0xff]
        %v589 = vld [vmem:[#allocation5 + $0x1d8] sm:$0xff]
        %v590 = vld [vmem:[#allocation5 + $0x1e0] sm:$0xff]
        %v591 = vld [vmem:[#allocation5 + $0x1e8] sm:$0xff]
        %v592 = vld [vmem:[#allocation5 + $0x1f0] sm:$0xff]
        %v593 = vld [vmem:[#allocation5 + $0x1f8] sm:$0xff]
        %s594 = scalar_lea.vmem [#allocation5], 512
        %v595 = vld [vmem:[%s594] sm:$0xff]
        %v596 = vld [vmem:[%s594 + $0x8] sm:$0xff]
        %v597 = vld [vmem:[%s594 + $0x10] sm:$0xff]
        %v598 = vld [vmem:[%s594 + $0x18] sm:$0xff]
        %v599 = vld [vmem:[%s594 + $0x20] sm:$0xff]
        %v600 = vld [vmem:[%s594 + $0x28] sm:$0xff]
        %v601 = vld [vmem:[%s594 + $0x30] sm:$0xff]
        %v602 = vld [vmem:[%s594 + $0x38] sm:$0xff]
        %v603 = vld [vmem:[%s594 + $0x40] sm:$0xff]
        %v604 = vld [vmem:[%s594 + $0x48] sm:$0xff]
        %v605 = vld [vmem:[%s594 + $0x50] sm:$0xff]
        %v606 = vld [vmem:[%s594 + $0x58] sm:$0xff]
        %v607 = vld [vmem:[%s594 + $0x60] sm:$0xff]
        %v608 = vld [vmem:[%s594 + $0x68] sm:$0xff]
        %v609 = vld [vmem:[%s594 + $0x70] sm:$0xff]
        %v610 = vld [vmem:[%s594 + $0x78] sm:$0xff]
        %v611 = vld [vmem:[%s594 + $0x80] sm:$0xff]
        %v612 = vld [vmem:[%s594 + $0x88] sm:$0xff]
        %v613 = vld [vmem:[%s594 + $0x90] sm:$0xff]
        %v614 = vld [vmem:[%s594 + $0x98] sm:$0xff]
        %v615 = vld [vmem:[%s594 + $0xa0] sm:$0xff]
        %v616 = vld [vmem:[%s594 + $0xa8] sm:$0xff]
        %v617 = vld [vmem:[%s594 + $0xb0] sm:$0xff]
        %v618 = vld [vmem:[%s594 + $0xb8] sm:$0xff]
        %v619 = vld [vmem:[%s594 + $0xc0] sm:$0xff]
        %v620 = vld [vmem:[%s594 + $0xc8] sm:$0xff]
        %v621 = vld [vmem:[%s594 + $0xd0] sm:$0xff]
        %v622 = vld [vmem:[%s594 + $0xd8] sm:$0xff]
        %v623 = vld [vmem:[%s594 + $0xe0] sm:$0xff]
        %v624 = vld [vmem:[%s594 + $0xe8] sm:$0xff]
        %v625 = vld [vmem:[%s594 + $0xf0] sm:$0xff]
        %v626 = vld [vmem:[%s594 + $0xf8] sm:$0xff]
        %v627 = vld [vmem:[%s594 + $0x100] sm:$0xff]
        %v628 = vld [vmem:[%s594 + $0x108] sm:$0xff]
        %v629 = vld [vmem:[%s594 + $0x110] sm:$0xff]
        %v630 = vld [vmem:[%s594 + $0x118] sm:$0xff]
        %v631 = vld [vmem:[%s594 + $0x120] sm:$0xff]
        %v632 = vld [vmem:[%s594 + $0x128] sm:$0xff]
        %v633 = vld [vmem:[%s594 + $0x130] sm:$0xff]
        %v634 = vld [vmem:[%s594 + $0x138] sm:$0xff]
        %v635 = vld [vmem:[%s594 + $0x140] sm:$0xff]
        %v636 = vld [vmem:[%s594 + $0x148] sm:$0xff]
        %v637 = vld [vmem:[%s594 + $0x150] sm:$0xff]
        %v638 = vld [vmem:[%s594 + $0x158] sm:$0xff]
        %v639 = vld [vmem:[%s594 + $0x160] sm:$0xff]
        %v640 = vld [vmem:[%s594 + $0x168] sm:$0xff]
        %v641 = vld [vmem:[%s594 + $0x170] sm:$0xff]
        %v642 = vld [vmem:[%s594 + $0x178] sm:$0xff]
        %v643 = vld [vmem:[%s594 + $0x180] sm:$0xff]
        %v644 = vld [vmem:[%s594 + $0x188] sm:$0xff]
        %v645 = vld [vmem:[%s594 + $0x190] sm:$0xff]
        %v646 = vld [vmem:[%s594 + $0x198] sm:$0xff]
        %v647 = vld [vmem:[%s594 + $0x1a0] sm:$0xff]
        %v648 = vld [vmem:[%s594 + $0x1a8] sm:$0xff]
        %v649 = vld [vmem:[%s594 + $0x1b0] sm:$0xff]
        %v650 = vld [vmem:[%s594 + $0x1b8] sm:$0xff]
        %v651 = vld [vmem:[%s594 + $0x1c0] sm:$0xff]
        %v652 = vld [vmem:[%s594 + $0x1c8] sm:$0xff]
        %v653 = vld [vmem:[%s594 + $0x1d0] sm:$0xff]
        %v654 = vld [vmem:[%s594 + $0x1d8] sm:$0xff]
        %v655 = vld [vmem:[%s594 + $0x1e0] sm:$0xff]
        %v656 = vld [vmem:[%s594 + $0x1e8] sm:$0xff]
        %v657 = vld [vmem:[%s594 + $0x1f0] sm:$0xff]
        %v658 = vld [vmem:[%s594 + $0x1f8] sm:$0xff]
        %659 = vmatprep.subr.mxu0 %v626
        %660 = vmatpush1.msra.mxu0 %v625
        %661 = vmatprep.subr.mxu0 %v624
        %662 = vmatpush1.msra.mxu0 %v623
        %663 = vmatprep.subr.mxu0 %v622
        %664 = vmatpush1.msra.mxu0 %v621
        %665 = vmatprep.subr.mxu0 %v620
        %666 = vmatpush1.msra.mxu0 %v619
        %667 = vmatprep.subr.mxu0 %v618
        %668 = vmatpush1.msra.mxu0 %v617
        %669 = vmatprep.subr.mxu0 %v616
        %670 = vmatpush1.msra.mxu0 %v615
        %671 = vmatprep.subr.mxu0 %v614
        %672 = vmatpush1.msra.mxu0 %v613
        %673 = vmatprep.subr.mxu0 %v612
        %674 = vmatpush1.msra.mxu0 %v611
        %675 = vmatprep.subr.mxu0 %v610
        %676 = vmatpush1.msra.mxu0 %v609
        %677 = vmatprep.subr.mxu0 %v608
        %678 = vmatpush1.msra.mxu0 %v607
        %679 = vmatprep.subr.mxu0 %v606
        %680 = vmatpush1.msra.mxu0 %v605
        %681 = vmatprep.subr.mxu0 %v604
        %682 = vmatpush1.msra.mxu0 %v603
        %683 = vmatprep.subr.mxu0 %v602
        %684 = vmatpush1.msra.mxu0 %v601
        %685 = vmatprep.subr.mxu0 %v600
        %686 = vmatpush1.msra.mxu0 %v599
        %687 = vmatprep.subr.mxu0 %v598
        %688 = vmatpush1.msra.mxu0 %v597
        %689 = vmatprep.subr.mxu0 %v596
        %690 = vmatpush1.msra.mxu0 %v595
        %691 = vmatprep.subr.mxu0 %v658
        %692 = vmatpush2.msra.mxu0 %v657
        %693 = vmatprep.subr.mxu0 %v656
        %694 = vmatpush2.msra.mxu0 %v655
        %695 = vmatprep.subr.mxu0 %v654
        %696 = vmatpush2.msra.mxu0 %v653
        %697 = vmatprep.subr.mxu0 %v652
        %698 = vmatpush2.msra.mxu0 %v651
        %699 = vmatprep.subr.mxu0 %v650
        %700 = vmatpush2.msra.mxu0 %v649
        %701 = vmatprep.subr.mxu0 %v648
        %702 = vmatpush2.msra.mxu0 %v647
        %703 = vmatprep.subr.mxu0 %v646
        %704 = vmatpush2.msra.mxu0 %v645
        %705 = vmatprep.subr.mxu0 %v644
        %706 = vmatpush2.msra.mxu0 %v643
        %707 = vmatprep.subr.mxu0 %v642
        %708 = vmatpush2.msra.mxu0 %v641
        %709 = vmatprep.subr.mxu0 %v640
        %710 = vmatpush2.msra.mxu0 %v639
        %711 = vmatprep.subr.mxu0 %v638
        %712 = vmatpush2.msra.mxu0 %v637
        %713 = vmatprep.subr.mxu0 %v636
        %714 = vmatpush2.msra.mxu0 %v635
        %715 = vmatprep.subr.mxu0 %v634
        %716 = vmatpush2.msra.mxu0 %v633
        %717 = vmatprep.subr.mxu0 %v632
        %718 = vmatpush2.msra.mxu0 %v631
        %719 = vmatprep.subr.mxu0 %v630
        %720 = vmatpush2.msra.mxu0 %v629
        %721 = vmatprep.subr.mxu0 %v628
        %722 = vmatpush2.msra.mxu0 %v627
        %723 = vmatprep.mubr.f32.mxu0 %v262
        %724 = vmatmul.mubr.f32.gmra.mxu0 %v261
        %v725 = vpop.f32.mrf.mxu0
        %v726 = vadd.f32 0.0, %v725
        %v727 = vpop.f32.mrf.mxu0
        %v728 = vadd.f32 0.0, %v727
        %729 = vmatprep.mubr.f32.mxu0 %v264
        %730 = vmatmul.mubr.f32.gmra.mxu0 %v263
        %v731 = vpop.f32.mrf.mxu0
        %v732 = vadd.f32 0.0, %v731
        %v733 = vpop.f32.mrf.mxu0
        %v734 = vadd.f32 0.0, %v733
        %735 = vmatprep.mubr.f32.mxu0 %v266
        %736 = vmatmul.mubr.f32.gmra.mxu0 %v265
        %v737 = vpop.f32.mrf.mxu0
        %v738 = vadd.f32 0.0, %v737
        %v739 = vpop.f32.mrf.mxu0
        %v740 = vadd.f32 0.0, %v739
        %741 = vmatprep.mubr.f32.mxu0 %v268
        %742 = vmatmul.mubr.f32.gmra.mxu0 %v267
        %v743 = vpop.f32.mrf.mxu0
        %v744 = vadd.f32 0.0, %v743
        %v745 = vpop.f32.mrf.mxu0
        %v746 = vadd.f32 0.0, %v745
        %747 = vmatprep.mubr.f32.mxu0 %v270
        %748 = vmatmul.mubr.f32.gmra.mxu0 %v269
        %v749 = vpop.f32.mrf.mxu0
        %v750 = vadd.f32 0.0, %v749
        %v751 = vpop.f32.mrf.mxu0
        %v752 = vadd.f32 0.0, %v751
        %753 = vmatprep.mubr.f32.mxu0 %v272
        %754 = vmatmul.mubr.f32.gmra.mxu0 %v271
        %v755 = vpop.f32.mrf.mxu0
        %v756 = vadd.f32 0.0, %v755
        %v757 = vpop.f32.mrf.mxu0
        %v758 = vadd.f32 0.0, %v757
        %759 = vmatprep.mubr.f32.mxu0 %v274
        %760 = vmatmul.mubr.f32.gmra.mxu0 %v273
        %v761 = vpop.f32.mrf.mxu0
        %v762 = vadd.f32 0.0, %v761
        %v763 = vpop.f32.mrf.mxu0
        %v764 = vadd.f32 0.0, %v763
        %765 = vmatprep.mubr.f32.mxu0 %v276
        %766 = vmatmul.mubr.f32.gmra.mxu0 %v275
        %v767 = vpop.f32.mrf.mxu0
        %v768 = vadd.f32 0.0, %v767
        %v769 = vpop.f32.mrf.mxu0
        %v770 = vadd.f32 0.0, %v769
        %771 = vdwg.mxu0
        %772 = vmatprep.subr.mxu0 %v561
        %773 = vmatpush1.msra.mxu0 %v560
        %774 = vmatprep.subr.mxu0 %v559
        %775 = vmatpush1.msra.mxu0 %v558
        %776 = vmatprep.subr.mxu0 %v557
        %777 = vmatpush1.msra.mxu0 %v556
        %778 = vmatprep.subr.mxu0 %v555
        %779 = vmatpush1.msra.mxu0 %v554
        %780 = vmatprep.subr.mxu0 %v553
        %781 = vmatpush1.msra.mxu0 %v552
        %782 = vmatprep.subr.mxu0 %v551
        %783 = vmatpush1.msra.mxu0 %v550
        %784 = vmatprep.subr.mxu0 %v549
        %785 = vmatpush1.msra.mxu0 %v548
        %786 = vmatprep.subr.mxu0 %v547
        %787 = vmatpush1.msra.mxu0 %v546
        %788 = vmatprep.subr.mxu0 %v545
        %789 = vmatpush1.msra.mxu0 %v544
        %790 = vmatprep.subr.mxu0 %v543
        %791 = vmatpush1.msra.mxu0 %v542
        %792 = vmatprep.subr.mxu0 %v541
        %793 = vmatpush1.msra.mxu0 %v540
        %794 = vmatprep.subr.mxu0 %v539
        %795 = vmatpush1.msra.mxu0 %v538
        %796 = vmatprep.subr.mxu0 %v537
        %797 = vmatpush1.msra.mxu0 %v536
        %798 = vmatprep.subr.mxu0 %v535
        %799 = vmatpush1.msra.mxu0 %v534
        %800 = vmatprep.subr.mxu0 %v533
        %801 = vmatpush1.msra.mxu0 %v532
        %802 = vmatprep.subr.mxu0 %v531
        %803 = vmatpush1.msra.mxu0 %v530
        %804 = vmatprep.subr.mxu0 %v593
        %805 = vmatpush2.msra.mxu0 %v592
        %806 = vmatprep.subr.mxu0 %v591
        %807 = vmatpush2.msra.mxu0 %v590
        %808 = vmatprep.subr.mxu0 %v589
        %809 = vmatpush2.msra.mxu0 %v588
        %810 = vmatprep.subr.mxu0 %v587
        %811 = vmatpush2.msra.mxu0 %v586
        %812 = vmatprep.subr.mxu0 %v585
        %813 = vmatpush2.msra.mxu0 %v584
        %814 = vmatprep.subr.mxu0 %v583
        %815 = vmatpush2.msra.mxu0 %v582
        %816 = vmatprep.subr.mxu0 %v581
        %817 = vmatpush2.msra.mxu0 %v580
        %818 = vmatprep.subr.mxu0 %v579
        %819 = vmatpush2.msra.mxu0 %v578
        %820 = vmatprep.subr.mxu0 %v577
        %821 = vmatpush2.msra.mxu0 %v576
        %822 = vmatprep.subr.mxu0 %v575
        %823 = vmatpush2.msra.mxu0 %v574
        %824 = vmatprep.subr.mxu0 %v573
        %825 = vmatpush2.msra.mxu0 %v572
        %826 = vmatprep.subr.mxu0 %v571
        %827 = vmatpush2.msra.mxu0 %v570
        %828 = vmatprep.subr.mxu0 %v569
        %829 = vmatpush2.msra.mxu0 %v568
        %830 = vmatprep.subr.mxu0 %v567
        %831 = vmatpush2.msra.mxu0 %v566
        %832 = vmatprep.subr.mxu0 %v565
        %833 = vmatpush2.msra.mxu0 %v564
        %834 = vmatprep.subr.mxu0 %v563
        %835 = vmatpush2.msra.mxu0 %v562
        %836 = vmatprep.mubr.f32.mxu0 %v466
        %837 = vmatmul.mubr.f32.gmra.mxu0 %v465
        %v838 = vpop.f32.mrf.mxu0
        %v839 = vadd.f32 %v726, %v838
        %v840 = vpop.f32.mrf.mxu0
        %v841 = vadd.f32 %v728, %v840
        %842 = vmatprep.mubr.f32.mxu0 %v468
        %843 = vmatmul.mubr.f32.gmra.mxu0 %v467
        %v844 = vpop.f32.mrf.mxu0
        %v845 = vadd.f32 %v732, %v844
        %v846 = vpop.f32.mrf.mxu0
        %v847 = vadd.f32 %v734, %v846
        %848 = vmatprep.mubr.f32.mxu0 %v470
        %849 = vmatmul.mubr.f32.gmra.mxu0 %v469
        %v850 = vpop.f32.mrf.mxu0
        %v851 = vadd.f32 %v738, %v850
        %v852 = vpop.f32.mrf.mxu0
        %v853 = vadd.f32 %v740, %v852
        %854 = vmatprep.mubr.f32.mxu0 %v472
        %855 = vmatmul.mubr.f32.gmra.mxu0 %v471
        %v856 = vpop.f32.mrf.mxu0
        %v857 = vadd.f32 %v744, %v856
        %v858 = vpop.f32.mrf.mxu0
        %v859 = vadd.f32 %v746, %v858
        %860 = vmatprep.mubr.f32.mxu0 %v474
        %861 = vmatmul.mubr.f32.gmra.mxu0 %v473
        %v862 = vpop.f32.mrf.mxu0
        %v863 = vadd.f32 %v750, %v862
        %v864 = vpop.f32.mrf.mxu0
        %v865 = vadd.f32 %v752, %v864
        %866 = vmatprep.mubr.f32.mxu0 %v476
        %867 = vmatmul.mubr.f32.gmra.mxu0 %v475
        %v868 = vpop.f32.mrf.mxu0
        %v869 = vadd.f32 %v756, %v868
        %v870 = vpop.f32.mrf.mxu0
        %v871 = vadd.f32 %v758, %v870
        %872 = vmatprep.mubr.f32.mxu0 %v478
        %873 = vmatmul.mubr.f32.gmra.mxu0 %v477
        %v874 = vpop.f32.mrf.mxu0
        %v875 = vadd.f32 %v762, %v874
        %v876 = vpop.f32.mrf.mxu0
        %v877 = vadd.f32 %v764, %v876
        %878 = vmatprep.mubr.f32.mxu0 %v480
        %879 = vmatmul.mubr.f32.gmra.mxu0 %v479
        %v880 = vpop.f32.mrf.mxu0
        %v881 = vadd.f32 %v768, %v880
        %v882 = vpop.f32.mrf.mxu0
        %v883 = vadd.f32 %v770, %v882
        %884 = vdwg.mxu0
        %s885 = scalar_lea.vmem [#allocation5], 1024
        %v886 = vld [vmem:[%s885] sm:$0xff]
        %v887 = vld [vmem:[%s885 + $0x8] sm:$0xff]
        %v888 = vld [vmem:[%s885 + $0x10] sm:$0xff]
        %v889 = vld [vmem:[%s885 + $0x18] sm:$0xff]
        %v890 = vld [vmem:[%s885 + $0x20] sm:$0xff]
        %v891 = vld [vmem:[%s885 + $0x28] sm:$0xff]
        %v892 = vld [vmem:[%s885 + $0x30] sm:$0xff]
        %v893 = vld [vmem:[%s885 + $0x38] sm:$0xff]
        %v894 = vld [vmem:[%s885 + $0x40] sm:$0xff]
        %v895 = vld [vmem:[%s885 + $0x48] sm:$0xff]
        %v896 = vld [vmem:[%s885 + $0x50] sm:$0xff]
        %v897 = vld [vmem:[%s885 + $0x58] sm:$0xff]
        %v898 = vld [vmem:[%s885 + $0x60] sm:$0xff]
        %v899 = vld [vmem:[%s885 + $0x68] sm:$0xff]
        %v900 = vld [vmem:[%s885 + $0x70] sm:$0xff]
        %v901 = vld [vmem:[%s885 + $0x78] sm:$0xff]
        %v902 = vld [vmem:[%s885 + $0x80] sm:$0xff]
        %v903 = vld [vmem:[%s885 + $0x88] sm:$0xff]
        %v904 = vld [vmem:[%s885 + $0x90] sm:$0xff]
        %v905 = vld [vmem:[%s885 + $0x98] sm:$0xff]
        %v906 = vld [vmem:[%s885 + $0xa0] sm:$0xff]
        %v907 = vld [vmem:[%s885 + $0xa8] sm:$0xff]
        %v908 = vld [vmem:[%s885 + $0xb0] sm:$0xff]
        %v909 = vld [vmem:[%s885 + $0xb8] sm:$0xff]
        %v910 = vld [vmem:[%s885 + $0xc0] sm:$0xff]
        %v911 = vld [vmem:[%s885 + $0xc8] sm:$0xff]
        %v912 = vld [vmem:[%s885 + $0xd0] sm:$0xff]
        %v913 = vld [vmem:[%s885 + $0xd8] sm:$0xff]
        %v914 = vld [vmem:[%s885 + $0xe0] sm:$0xff]
        %v915 = vld [vmem:[%s885 + $0xe8] sm:$0xff]
        %v916 = vld [vmem:[%s885 + $0xf0] sm:$0xff]
        %v917 = vld [vmem:[%s885 + $0xf8] sm:$0xff]
        %v918 = vld [vmem:[%s885 + $0x100] sm:$0xff]
        %v919 = vld [vmem:[%s885 + $0x108] sm:$0xff]
        %v920 = vld [vmem:[%s885 + $0x110] sm:$0xff]
        %v921 = vld [vmem:[%s885 + $0x118] sm:$0xff]
        %v922 = vld [vmem:[%s885 + $0x120] sm:$0xff]
        %v923 = vld [vmem:[%s885 + $0x128] sm:$0xff]
        %v924 = vld [vmem:[%s885 + $0x130] sm:$0xff]
        %v925 = vld [vmem:[%s885 + $0x138] sm:$0xff]
        %v926 = vld [vmem:[%s885 + $0x140] sm:$0xff]
        %v927 = vld [vmem:[%s885 + $0x148] sm:$0xff]
        %v928 = vld [vmem:[%s885 + $0x150] sm:$0xff]
        %v929 = vld [vmem:[%s885 + $0x158] sm:$0xff]
        %v930 = vld [vmem:[%s885 + $0x160] sm:$0xff]
        %v931 = vld [vmem:[%s885 + $0x168] sm:$0xff]
        %v932 = vld [vmem:[%s885 + $0x170] sm:$0xff]
        %v933 = vld [vmem:[%s885 + $0x178] sm:$0xff]
        %v934 = vld [vmem:[%s885 + $0x180] sm:$0xff]
        %v935 = vld [vmem:[%s885 + $0x188] sm:$0xff]
        %v936 = vld [vmem:[%s885 + $0x190] sm:$0xff]
        %v937 = vld [vmem:[%s885 + $0x198] sm:$0xff]
        %v938 = vld [vmem:[%s885 + $0x1a0] sm:$0xff]
        %v939 = vld [vmem:[%s885 + $0x1a8] sm:$0xff]
        %v940 = vld [vmem:[%s885 + $0x1b0] sm:$0xff]
        %v941 = vld [vmem:[%s885 + $0x1b8] sm:$0xff]
        %v942 = vld [vmem:[%s885 + $0x1c0] sm:$0xff]
        %v943 = vld [vmem:[%s885 + $0x1c8] sm:$0xff]
        %v944 = vld [vmem:[%s885 + $0x1d0] sm:$0xff]
        %v945 = vld [vmem:[%s885 + $0x1d8] sm:$0xff]
        %v946 = vld [vmem:[%s885 + $0x1e0] sm:$0xff]
        %v947 = vld [vmem:[%s885 + $0x1e8] sm:$0xff]
        %v948 = vld [vmem:[%s885 + $0x1f0] sm:$0xff]
        %v949 = vld [vmem:[%s885 + $0x1f8] sm:$0xff]
        %950 = vmatprep.subr.mxu0 %v917
        %951 = vmatpush1.msra.mxu0 %v916
        %952 = vmatprep.subr.mxu0 %v915
        %953 = vmatpush1.msra.mxu0 %v914
        %954 = vmatprep.subr.mxu0 %v913
        %955 = vmatpush1.msra.mxu0 %v912
        %956 = vmatprep.subr.mxu0 %v911
        %957 = vmatpush1.msra.mxu0 %v910
        %958 = vmatprep.subr.mxu0 %v909
        %959 = vmatpush1.msra.mxu0 %v908
        %960 = vmatprep.subr.mxu0 %v907
        %961 = vmatpush1.msra.mxu0 %v906
        %962 = vmatprep.subr.mxu0 %v905
        %963 = vmatpush1.msra.mxu0 %v904
        %964 = vmatprep.subr.mxu0 %v903
        %965 = vmatpush1.msra.mxu0 %v902
        %966 = vmatprep.subr.mxu0 %v901
        %967 = vmatpush1.msra.mxu0 %v900
        %968 = vmatprep.subr.mxu0 %v899
        %969 = vmatpush1.msra.mxu0 %v898
        %970 = vmatprep.subr.mxu0 %v897
        %971 = vmatpush1.msra.mxu0 %v896
        %972 = vmatprep.subr.mxu0 %v895
        %973 = vmatpush1.msra.mxu0 %v894
        %974 = vmatprep.subr.mxu0 %v893
        %975 = vmatpush1.msra.mxu0 %v892
        %976 = vmatprep.subr.mxu0 %v891
        %977 = vmatpush1.msra.mxu0 %v890
        %978 = vmatprep.subr.mxu0 %v889
        %979 = vmatpush1.msra.mxu0 %v888
        %980 = vmatprep.subr.mxu0 %v887
        %981 = vmatpush1.msra.mxu0 %v886
        %982 = vmatprep.subr.mxu0 %v949
        %983 = vmatpush2.msra.mxu0 %v948
        %984 = vmatprep.subr.mxu0 %v947
        %985 = vmatpush2.msra.mxu0 %v946
        %986 = vmatprep.subr.mxu0 %v945
        %987 = vmatpush2.msra.mxu0 %v944
        %988 = vmatprep.subr.mxu0 %v943
        %989 = vmatpush2.msra.mxu0 %v942
        %990 = vmatprep.subr.mxu0 %v941
        %991 = vmatpush2.msra.mxu0 %v940
        %992 = vmatprep.subr.mxu0 %v939
        %993 = vmatpush2.msra.mxu0 %v938
        %994 = vmatprep.subr.mxu0 %v937
        %995 = vmatpush2.msra.mxu0 %v936
        %996 = vmatprep.subr.mxu0 %v935
        %997 = vmatpush2.msra.mxu0 %v934
        %998 = vmatprep.subr.mxu0 %v933
        %999 = vmatpush2.msra.mxu0 %v932
        %1000 = vmatprep.subr.mxu0 %v931
        %1001 = vmatpush2.msra.mxu0 %v930
        %1002 = vmatprep.subr.mxu0 %v929
        %1003 = vmatpush2.msra.mxu0 %v928
        %1004 = vmatprep.subr.mxu0 %v927
        %1005 = vmatpush2.msra.mxu0 %v926
        %1006 = vmatprep.subr.mxu0 %v925
        %1007 = vmatpush2.msra.mxu0 %v924
        %1008 = vmatprep.subr.mxu0 %v923
        %1009 = vmatpush2.msra.mxu0 %v922
        %1010 = vmatprep.subr.mxu0 %v921
        %1011 = vmatpush2.msra.mxu0 %v920
        %1012 = vmatprep.subr.mxu0 %v919
        %1013 = vmatpush2.msra.mxu0 %v918
        %1014 = vmatprep.mubr.f32.mxu0 %v515
        %1015 = vmatmul.mubr.f32.gmra.mxu0 %v514
        %v1016 = vpop.f32.mrf.mxu0
        %v1017 = vadd.f32 0.0, %v1016
        %v1018 = vpop.f32.mrf.mxu0
        %v1019 = vadd.f32 0.0, %v1018
        %1020 = vmatprep.mubr.f32.mxu0 %v517
        %1021 = vmatmul.mubr.f32.gmra.mxu0 %v516
        %v1022 = vpop.f32.mrf.mxu0
        %v1023 = vadd.f32 0.0, %v1022
        %v1024 = vpop.f32.mrf.mxu0
        %v1025 = vadd.f32 0.0, %v1024
        %1026 = vmatprep.mubr.f32.mxu0 %v519
        %1027 = vmatmul.mubr.f32.gmra.mxu0 %v518
        %v1028 = vpop.f32.mrf.mxu0
        %v1029 = vadd.f32 0.0, %v1028
        %v1030 = vpop.f32.mrf.mxu0
        %v1031 = vadd.f32 0.0, %v1030
        %1032 = vmatprep.mubr.f32.mxu0 %v521
        %1033 = vmatmul.mubr.f32.gmra.mxu0 %v520
        %v1034 = vpop.f32.mrf.mxu0
        %v1035 = vadd.f32 0.0, %v1034
        %v1036 = vpop.f32.mrf.mxu0
        %v1037 = vadd.f32 0.0, %v1036
        %1038 = vmatprep.mubr.f32.mxu0 %v523
        %1039 = vmatmul.mubr.f32.gmra.mxu0 %v522
        %v1040 = vpop.f32.mrf.mxu0
        %v1041 = vadd.f32 0.0, %v1040
        %v1042 = vpop.f32.mrf.mxu0
        %v1043 = vadd.f32 0.0, %v1042
        %1044 = vmatprep.mubr.f32.mxu0 %v525
        %1045 = vmatmul.mubr.f32.gmra.mxu0 %v524
        %v1046 = vpop.f32.mrf.mxu0
        %v1047 = vadd.f32 0.0, %v1046
        %v1048 = vpop.f32.mrf.mxu0
        %v1049 = vadd.f32 0.0, %v1048
        %1050 = vmatprep.mubr.f32.mxu0 %v527
        %1051 = vmatmul.mubr.f32.gmra.mxu0 %v526
        %v1052 = vpop.f32.mrf.mxu0
        %v1053 = vadd.f32 0.0, %v1052
        %v1054 = vpop.f32.mrf.mxu0
        %v1055 = vadd.f32 0.0, %v1054
        %1056 = vmatprep.mubr.f32.mxu0 %v529
        %1057 = vmatmul.mubr.f32.gmra.mxu0 %v528
        %v1058 = vpop.f32.mrf.mxu0
        %v1059 = vadd.f32 0.0, %v1058
        %v1060 = vpop.f32.mrf.mxu0
        %v1061 = vadd.f32 0.0, %v1060
        %1062 = vdwg.mxu0
        %v1063 = vadd.f32 %v839, %v1017
        %v1064 = vadd.f32 %v841, %v1019
        %v1065 = vadd.f32 %v845, %v1023
        %v1066 = vadd.f32 %v847, %v1025
        %v1067 = vadd.f32 %v851, %v1029
        %v1068 = vadd.f32 %v853, %v1031
        %v1069 = vadd.f32 %v857, %v1035
        %v1070 = vadd.f32 %v859, %v1037
        %v1071 = vadd.f32 %v863, %v1041
        %v1072 = vadd.f32 %v865, %v1043
        %v1073 = vadd.f32 %v869, %v1047
        %v1074 = vadd.f32 %v871, %v1049
        %v1075 = vadd.f32 %v875, %v1053
        %v1076 = vadd.f32 %v877, %v1055
        %v1077 = vadd.f32 %v881, %v1059
        %v1078 = vadd.f32 %v883, %v1061
        %v1079 = vlaneseq
        %v1080 = vshrl.u32 %v1079, 7
        %v1081 = vsub.s32 0, %v1080
        %v1082 = vrot.slane %v277, %v1081
        %v1083 = vlaneseq
        %v1084 = vshrl.u32 %v1083, 7
        %v1085 = vsub.s32 0, %v1084
        %v1086 = vrot.slane %v278, %v1085
        %v1087 = vadd.f32 %v1063, %v1082
        %v1088 = vadd.f32 %v1064, %v1086
        %v1089 = vadd.f32 %v1065, %v1082
        %v1090 = vadd.f32 %v1066, %v1086
        %v1091 = vadd.f32 %v1067, %v1082
        %v1092 = vadd.f32 %v1068, %v1086
        %v1093 = vadd.f32 %v1069, %v1082
        %v1094 = vadd.f32 %v1070, %v1086
        %v1095 = vadd.f32 %v1071, %v1082
        %v1096 = vadd.f32 %v1072, %v1086
        %v1097 = vadd.f32 %v1073, %v1082
        %v1098 = vadd.f32 %v1074, %v1086
        %v1099 = vadd.f32 %v1075, %v1082
        %v1100 = vadd.f32 %v1076, %v1086
        %v1101 = vadd.f32 %v1077, %v1082
        %v1102 = vadd.f32 %v1078, %v1086
        %v1103 = vadd.f32 %v1087, %v1089
        %v1104 = vrot.slane %v1103, 4
        %v1105 = vadd.f32 %v1103, %v1104
        %v1106 = vrot.slane %v1105, 2
        %v1107 = vadd.f32 %v1105, %v1106
        %v1108 = vrot.slane %v1107, 1
        %v1109 = vadd.f32 %v1107, %v1108
        %v1110 = vadd.f32 %v1088, %v1090
        %v1111 = vrot.slane %v1110, 4
        %v1112 = vadd.f32 %v1110, %v1111
        %v1113 = vrot.slane %v1112, 2
        %v1114 = vadd.f32 %v1112, %v1113
        %v1115 = vrot.slane %v1114, 1
        %v1116 = vadd.f32 %v1114, %v1115
        %v1117 = vadd.f32 %v1091, %v1093
        %v1118 = vrot.slane %v1117, 4
        %v1119 = vadd.f32 %v1117, %v1118
        %v1120 = vrot.slane %v1119, 2
        %v1121 = vadd.f32 %v1119, %v1120
        %v1122 = vrot.slane %v1121, 1
        %v1123 = vadd.f32 %v1121, %v1122
        %v1124 = vadd.f32 %v1092, %v1094
        %v1125 = vrot.slane %v1124, 4
        %v1126 = vadd.f32 %v1124, %v1125
        %v1127 = vrot.slane %v1126, 2
        %v1128 = vadd.f32 %v1126, %v1127
        %v1129 = vrot.slane %v1128, 1
        %v1130 = vadd.f32 %v1128, %v1129
        %v1131 = vadd.f32 %v1095, %v1097
        %v1132 = vrot.slane %v1131, 4
        %v1133 = vadd.f32 %v1131, %v1132
        %v1134 = vrot.slane %v1133, 2
        %v1135 = vadd.f32 %v1133, %v1134
        %v1136 = vrot.slane %v1135, 1
        %v1137 = vadd.f32 %v1135, %v1136
        %v1138 = vadd.f32 %v1096, %v1098
        %v1139 = vrot.slane %v1138, 4
        %v1140 = vadd.f32 %v1138, %v1139
        %v1141 = vrot.slane %v1140, 2
        %v1142 = vadd.f32 %v1140, %v1141
        %v1143 = vrot.slane %v1142, 1
        %v1144 = vadd.f32 %v1142, %v1143
        %v1145 = vadd.f32 %v1099, %v1101
        %v1146 = vrot.slane %v1145, 4
        %v1147 = vadd.f32 %v1145, %v1146
        %v1148 = vrot.slane %v1147, 2
        %v1149 = vadd.f32 %v1147, %v1148
        %v1150 = vrot.slane %v1149, 1
        %v1151 = vadd.f32 %v1149, %v1150
        %v1152 = vadd.f32 %v1100, %v1102
        %v1153 = vrot.slane %v1152, 4
        %v1154 = vadd.f32 %v1152, %v1153
        %v1155 = vrot.slane %v1154, 2
        %v1156 = vadd.f32 %v1154, %v1155
        %v1157 = vrot.slane %v1156, 1
        %v1158 = vadd.f32 %v1156, %v1157
        %v1159 = vmul.f32 %v1087, %v1087
        %v1160 = vmul.f32 %v1088, %v1088
        %v1161 = vmul.f32 %v1089, %v1089
        %v1162 = vmul.f32 %v1090, %v1090
        %v1163 = vmul.f32 %v1091, %v1091
        %v1164 = vmul.f32 %v1092, %v1092
        %v1165 = vmul.f32 %v1093, %v1093
        %v1166 = vmul.f32 %v1094, %v1094
        %v1167 = vmul.f32 %v1095, %v1095
        %v1168 = vmul.f32 %v1096, %v1096
        %v1169 = vmul.f32 %v1097, %v1097
        %v1170 = vmul.f32 %v1098, %v1098
        %v1171 = vmul.f32 %v1099, %v1099
        %v1172 = vmul.f32 %v1100, %v1100
        %v1173 = vmul.f32 %v1101, %v1101
        %v1174 = vmul.f32 %v1102, %v1102
        %v1175 = vadd.f32 %v1159, %v1161
        %v1176 = vrot.slane %v1175, 4
        %v1177 = vadd.f32 %v1175, %v1176
        %v1178 = vrot.slane %v1177, 2
        %v1179 = vadd.f32 %v1177, %v1178
        %v1180 = vrot.slane %v1179, 1
        %v1181 = vadd.f32 %v1179, %v1180
        %v1182 = vadd.f32 %v1160, %v1162
        %v1183 = vrot.slane %v1182, 4
        %v1184 = vadd.f32 %v1182, %v1183
        %v1185 = vrot.slane %v1184, 2
        %v1186 = vadd.f32 %v1184, %v1185
        %v1187 = vrot.slane %v1186, 1
        %v1188 = vadd.f32 %v1186, %v1187
        %v1189 = vadd.f32 %v1163, %v1165
        %v1190 = vrot.slane %v1189, 4
        %v1191 = vadd.f32 %v1189, %v1190
        %v1192 = vrot.slane %v1191, 2
        %v1193 = vadd.f32 %v1191, %v1192
        %v1194 = vrot.slane %v1193, 1
        %v1195 = vadd.f32 %v1193, %v1194
        %v1196 = vadd.f32 %v1164, %v1166
        %v1197 = vrot.slane %v1196, 4
        %v1198 = vadd.f32 %v1196, %v1197
        %v1199 = vrot.slane %v1198, 2
        %v1200 = vadd.f32 %v1198, %v1199
        %v1201 = vrot.slane %v1200, 1
        %v1202 = vadd.f32 %v1200, %v1201
        %v1203 = vadd.f32 %v1167, %v1169
        %v1204 = vrot.slane %v1203, 4
        %v1205 = vadd.f32 %v1203, %v1204
        %v1206 = vrot.slane %v1205, 2
        %v1207 = vadd.f32 %v1205, %v1206
        %v1208 = vrot.slane %v1207, 1
        %v1209 = vadd.f32 %v1207, %v1208
        %v1210 = vadd.f32 %v1168, %v1170
        %v1211 = vrot.slane %v1210, 4
        %v1212 = vadd.f32 %v1210, %v1211
        %v1213 = vrot.slane %v1212, 2
        %v1214 = vadd.f32 %v1212, %v1213
        %v1215 = vrot.slane %v1214, 1
        %v1216 = vadd.f32 %v1214, %v1215
        %v1217 = vadd.f32 %v1171, %v1173
        %v1218 = vrot.slane %v1217, 4
        %v1219 = vadd.f32 %v1217, %v1218
        %v1220 = vrot.slane %v1219, 2
        %v1221 = vadd.f32 %v1219, %v1220
        %v1222 = vrot.slane %v1221, 1
        %v1223 = vadd.f32 %v1221, %v1222
        %v1224 = vadd.f32 %v1172, %v1174
        %v1225 = vrot.slane %v1224, 4
        %v1226 = vadd.f32 %v1224, %v1225
        %v1227 = vrot.slane %v1226, 2
        %v1228 = vadd.f32 %v1226, %v1227
        %v1229 = vrot.slane %v1228, 1
        %v1230 = vadd.f32 %v1228, %v1229
        %v1231 = vmul.f32 %v1109, %v277
        %v1232 = vmul.f32 %v1116, %v278
        %v1233 = vmul.f32 %v1123, %v277
        %v1234 = vmul.f32 %v1130, %v278
        %v1235 = vmul.f32 %v1137, %v277
        %v1236 = vmul.f32 %v1144, %v278
        %v1237 = vmul.f32 %v1151, %v277
        %v1238 = vmul.f32 %v1158, %v278
        %vm1239 = vcmask 1047558
        %v1240 = vsel %vm1239, %v1231, 0.0
        %v1241 = vsel %vm1239, %v1232, 0.0
        %v1242 = vadd.f32 %v1240, %v1241
        %1243 = vadd.xlane.f32.xlu0 %v1242
        %v1244 = vpop.xlane.xlu0 %1243
        %v1245 = vsel %vm1239, %v1233, 0.0
        %v1246 = vsel %vm1239, %v1234, 0.0
        %v1247 = vadd.f32 %v1245, %v1246
        %1248 = vadd.xlane.f32.xlu0 %v1247
        %v1249 = vpop.xlane.xlu0 %1248
        %v1250 = vsel %vm1239, %v1235, 0.0
        %v1251 = vsel %vm1239, %v1236, 0.0
        %v1252 = vadd.f32 %v1250, %v1251
        %1253 = vadd.xlane.f32.xlu0 %v1252
        %v1254 = vpop.xlane.xlu0 %1253
        %v1255 = vsel %vm1239, %v1237, 0.0
        %v1256 = vsel %vm1239, %v1238, 0.0
        %v1257 = vadd.f32 %v1255, %v1256
        %1258 = vadd.xlane.f32.xlu0 %v1257
        %v1259 = vpop.xlane.xlu0 %1258
        %v1260 = vmul.f32 %v1181, %v277
        %v1261 = vmul.f32 %v1188, %v278
        %v1262 = vmul.f32 %v1195, %v277
        %v1263 = vmul.f32 %v1202, %v278
        %v1264 = vmul.f32 %v1209, %v277
        %v1265 = vmul.f32 %v1216, %v278
        %v1266 = vmul.f32 %v1223, %v277
        %v1267 = vmul.f32 %v1230, %v278
        %v1268 = vsel %vm1239, %v1260, 0.0
        %v1269 = vsel %vm1239, %v1261, 0.0
        %v1270 = vadd.f32 %v1268, %v1269
        %1271 = vadd.xlane.f32.xlu0 %v1270
        %v1272 = vpop.xlane.xlu0 %1271
        %v1273 = vsel %vm1239, %v1262, 0.0
        %v1274 = vsel %vm1239, %v1263, 0.0
        %v1275 = vadd.f32 %v1273, %v1274
        %1276 = vadd.xlane.f32.xlu0 %v1275
        %v1277 = vpop.xlane.xlu0 %1276
        %v1278 = vsel %vm1239, %v1264, 0.0
        %v1279 = vsel %vm1239, %v1265, 0.0
        %v1280 = vadd.f32 %v1278, %v1279
        %1281 = vadd.xlane.f32.xlu0 %v1280
        %v1282 = vpop.xlane.xlu0 %1281
        %v1283 = vsel %vm1239, %v1266, 0.0
        %v1284 = vsel %vm1239, %v1267, 0.0
        %v1285 = vadd.f32 %v1283, %v1284
        %1286 = vadd.xlane.f32.xlu0 %v1285
        %v1287 = vpop.xlane.xlu0 %1286
        %v1288 = vmul.f32 %v1244, 0.00048828125
        %v1289 = vmul.f32 %v1249, 0.00048828125
        %v1290 = vmul.f32 %v1254, 0.00048828125
        %v1291 = vmul.f32 %v1259, 0.00048828125
        %v1292 = vmul.f32 %v1272, 0.00048828125
        %v1293 = vmul.f32 %v1277, 0.00048828125
        %v1294 = vmul.f32 %v1282, 0.00048828125
        %v1295 = vmul.f32 %v1287, 0.00048828125
        %v1296 = vmul.f32 %v1288, %v1288
        %v1297 = vmul.f32 %v1289, %v1289
        %v1298 = vmul.f32 %v1290, %v1290
        %v1299 = vmul.f32 %v1291, %v1291
        %v1300 = vsub.f32 %v1292, %v1296
        %v1301 = vsub.f32 %v1293, %v1297
        %v1302 = vsub.f32 %v1294, %v1298
        %v1303 = vsub.f32 %v1295, %v1299
        %v1304 = vmax.f32 %v1300, 0.0
        %v1305 = vmax.f32 %v1301, 0.0
        %v1306 = vmax.f32 %v1302, 0.0
        %v1307 = vmax.f32 %v1303, 0.0
        %v1308 = vmul.f32 %v277, %v1288
        %v1309 = vmul.f32 %v278, %v1288
        %v1310 = vmul.f32 %v277, %v1289
        %v1311 = vmul.f32 %v278, %v1289
        %v1312 = vmul.f32 %v277, %v1290
        %v1313 = vmul.f32 %v278, %v1290
        %v1314 = vmul.f32 %v277, %v1291
        %v1315 = vmul.f32 %v278, %v1291
        %v1324 = vrot.slane %v1308, 6
        %v1325 = vrot.slane %v1309, 6
        %v1326 = vrot.slane %v1310, 6
        %v1327 = vrot.slane %v1311, 6
        %v1328 = vrot.slane %v1312, 6
        %v1329 = vrot.slane %v1313, 6
        %v1330 = vrot.slane %v1314, 6
        %v1331 = vrot.slane %v1315, 6
        %vm1340 = vcmask 1041408
        %v1341 = vsel %vm1340, %v1324, 0.0
        %v1342 = vrot.slane %v1341, 4
        %v1343 = vadd.f32 %v1341, %v1342
        %v1344 = vrot.slane %v1343, 2
        %v1345 = vadd.f32 %v1343, %v1344
        %v1346 = vrot.slane %v1345, 1
        %v1347 = vadd.f32 %v1345, %v1346
        %v1348 = vsel %vm1340, %v1325, 0.0
        %v1349 = vrot.slane %v1348, 4
        %v1350 = vadd.f32 %v1348, %v1349
        %v1351 = vrot.slane %v1350, 2
        %v1352 = vadd.f32 %v1350, %v1351
        %v1353 = vrot.slane %v1352, 1
        %v1354 = vadd.f32 %v1352, %v1353
        %v1355 = vsel %vm1340, %v1326, 0.0
        %v1356 = vrot.slane %v1355, 4
        %v1357 = vadd.f32 %v1355, %v1356
        %v1358 = vrot.slane %v1357, 2
        %v1359 = vadd.f32 %v1357, %v1358
        %v1360 = vrot.slane %v1359, 1
        %v1361 = vadd.f32 %v1359, %v1360
        %v1362 = vsel %vm1340, %v1327, 0.0
        %v1363 = vrot.slane %v1362, 4
        %v1364 = vadd.f32 %v1362, %v1363
        %v1365 = vrot.slane %v1364, 2
        %v1366 = vadd.f32 %v1364, %v1365
        %v1367 = vrot.slane %v1366, 1
        %v1368 = vadd.f32 %v1366, %v1367
        %v1369 = vsel %vm1340, %v1328, 0.0
        %v1370 = vrot.slane %v1369, 4
        %v1371 = vadd.f32 %v1369, %v1370
        %v1372 = vrot.slane %v1371, 2
        %v1373 = vadd.f32 %v1371, %v1372
        %v1374 = vrot.slane %v1373, 1
        %v1375 = vadd.f32 %v1373, %v1374
        %v1376 = vsel %vm1340, %v1329, 0.0
        %v1377 = vrot.slane %v1376, 4
        %v1378 = vadd.f32 %v1376, %v1377
        %v1379 = vrot.slane %v1378, 2
        %v1380 = vadd.f32 %v1378, %v1379
        %v1381 = vrot.slane %v1380, 1
        %v1382 = vadd.f32 %v1380, %v1381
        %v1383 = vsel %vm1340, %v1330, 0.0
        %v1384 = vrot.slane %v1383, 4
        %v1385 = vadd.f32 %v1383, %v1384
        %v1386 = vrot.slane %v1385, 2
        %v1387 = vadd.f32 %v1385, %v1386
        %v1388 = vrot.slane %v1387, 1
        %v1389 = vadd.f32 %v1387, %v1388
        %v1390 = vsel %vm1340, %v1331, 0.0
        %v1391 = vrot.slane %v1390, 4
        %v1392 = vadd.f32 %v1390, %v1391
        %v1393 = vrot.slane %v1392, 2
        %v1394 = vadd.f32 %v1392, %v1393
        %v1395 = vrot.slane %v1394, 1
        %v1396 = vadd.f32 %v1394, %v1395
        %v1397 = vmul.f32 %v277, %v1304
        %v1398 = vmul.f32 %v278, %v1304
        %v1399 = vmul.f32 %v277, %v1305
        %v1400 = vmul.f32 %v278, %v1305
        %v1401 = vmul.f32 %v277, %v1306
        %v1402 = vmul.f32 %v278, %v1306
        %v1403 = vmul.f32 %v277, %v1307
        %v1404 = vmul.f32 %v278, %v1307
        %v1413 = vrot.slane %v1397, 6
        %v1414 = vrot.slane %v1398, 6
        %v1415 = vrot.slane %v1399, 6
        %v1416 = vrot.slane %v1400, 6
        %v1417 = vrot.slane %v1401, 6
        %v1418 = vrot.slane %v1402, 6
        %v1419 = vrot.slane %v1403, 6
        %v1420 = vrot.slane %v1404, 6
        %v1429 = vsel %vm1340, %v1413, 0.0
        %v1430 = vrot.slane %v1429, 4
        %v1431 = vadd.f32 %v1429, %v1430
        %v1432 = vrot.slane %v1431, 2
        %v1433 = vadd.f32 %v1431, %v1432
        %v1434 = vrot.slane %v1433, 1
        %v1435 = vadd.f32 %v1433, %v1434
        %v1436 = vsel %vm1340, %v1414, 0.0
        %v1437 = vrot.slane %v1436, 4
        %v1438 = vadd.f32 %v1436, %v1437
        %v1439 = vrot.slane %v1438, 2
        %v1440 = vadd.f32 %v1438, %v1439
        %v1441 = vrot.slane %v1440, 1
        %v1442 = vadd.f32 %v1440, %v1441
        %v1443 = vsel %vm1340, %v1415, 0.0
        %v1444 = vrot.slane %v1443, 4
        %v1445 = vadd.f32 %v1443, %v1444
        %v1446 = vrot.slane %v1445, 2
        %v1447 = vadd.f32 %v1445, %v1446
        %v1448 = vrot.slane %v1447, 1
        %v1449 = vadd.f32 %v1447, %v1448
        %v1450 = vsel %vm1340, %v1416, 0.0
        %v1451 = vrot.slane %v1450, 4
        %v1452 = vadd.f32 %v1450, %v1451
        %v1453 = vrot.slane %v1452, 2
        %v1454 = vadd.f32 %v1452, %v1453
        %v1455 = vrot.slane %v1454, 1
        %v1456 = vadd.f32 %v1454, %v1455
        %v1457 = vsel %vm1340, %v1417, 0.0
        %v1458 = vrot.slane %v1457, 4
        %v1459 = vadd.f32 %v1457, %v1458
        %v1460 = vrot.slane %v1459, 2
        %v1461 = vadd.f32 %v1459, %v1460
        %v1462 = vrot.slane %v1461, 1
        %v1463 = vadd.f32 %v1461, %v1462
        %v1464 = vsel %vm1340, %v1418, 0.0
        %v1465 = vrot.slane %v1464, 4
        %v1466 = vadd.f32 %v1464, %v1465
        %v1467 = vrot.slane %v1466, 2
        %v1468 = vadd.f32 %v1466, %v1467
        %v1469 = vrot.slane %v1468, 1
        %v1470 = vadd.f32 %v1468, %v1469
        %v1471 = vsel %vm1340, %v1419, 0.0
        %v1472 = vrot.slane %v1471, 4
        %v1473 = vadd.f32 %v1471, %v1472
        %v1474 = vrot.slane %v1473, 2
        %v1475 = vadd.f32 %v1473, %v1474
        %v1476 = vrot.slane %v1475, 1
        %v1477 = vadd.f32 %v1475, %v1476
        %v1478 = vsel %vm1340, %v1420, 0.0
        %v1479 = vrot.slane %v1478, 4
        %v1480 = vadd.f32 %v1478, %v1479
        %v1481 = vrot.slane %v1480, 2
        %v1482 = vadd.f32 %v1480, %v1481
        %v1483 = vrot.slane %v1482, 1
        %v1484 = vadd.f32 %v1482, %v1483
        %v1485 = vadd.f32 %v1435, 1e-05
        %v1486 = vadd.f32 %v1442, 1e-05
        %v1487 = vadd.f32 %v1449, 1e-05
        %v1488 = vadd.f32 %v1456, 1e-05
        %v1489 = vadd.f32 %v1463, 1e-05
        %v1490 = vadd.f32 %v1470, 1e-05
        %v1491 = vadd.f32 %v1477, 1e-05
        %v1492 = vadd.f32 %v1484, 1e-05
        %v1493 = vrsqrt.pop %v1485
        %v1494 = vrsqrt.pop %v1486
        %v1495 = vrsqrt.pop %v1487
        %v1496 = vrsqrt.pop %v1488
        %v1497 = vrsqrt.pop %v1489
        %v1498 = vrsqrt.pop %v1490
        %v1499 = vrsqrt.pop %v1491
        %v1500 = vrsqrt.pop %v1492
        %v1501 = vsub.f32 %v1087, %v1347
        %v1502 = vsub.f32 %v1088, %v1354
        %v1503 = vsub.f32 %v1089, %v1347
        %v1504 = vsub.f32 %v1090, %v1354
        %v1505 = vsub.f32 %v1091, %v1361
        %v1506 = vsub.f32 %v1092, %v1368
        %v1507 = vsub.f32 %v1093, %v1361
        %v1508 = vsub.f32 %v1094, %v1368
        %v1509 = vsub.f32 %v1095, %v1375
        %v1510 = vsub.f32 %v1096, %v1382
        %v1511 = vsub.f32 %v1097, %v1375
        %v1512 = vsub.f32 %v1098, %v1382
        %v1513 = vsub.f32 %v1099, %v1389
        %v1514 = vsub.f32 %v1100, %v1396
        %v1515 = vsub.f32 %v1101, %v1389
        %v1516 = vsub.f32 %v1102, %v1396
        %v1517 = vmul.f32 %v1501, %v1493
        %v1518 = vmul.f32 %v1502, %v1494
        %v1519 = vmul.f32 %v1503, %v1493
        %v1520 = vmul.f32 %v1504, %v1494
        %v1521 = vmul.f32 %v1505, %v1495
        %v1522 = vmul.f32 %v1506, %v1496
        %v1523 = vmul.f32 %v1507, %v1495
        %v1524 = vmul.f32 %v1508, %v1496
        %v1525 = vmul.f32 %v1509, %v1497
        %v1526 = vmul.f32 %v1510, %v1498
        %v1527 = vmul.f32 %v1511, %v1497
        %v1528 = vmul.f32 %v1512, %v1498
        %v1529 = vmul.f32 %v1513, %v1499
        %v1530 = vmul.f32 %v1514, %v1500
        %v1531 = vmul.f32 %v1515, %v1499
        %v1532 = vmul.f32 %v1516, %v1500
        %v1533 = vlaneseq
        %v1534 = vshrl.u32 %v1533, 7
        %v1535 = vsub.s32 1, %v1534
        %v1536 = vrot.slane %v277, %v1535
        %v1537 = vlaneseq
        %v1538 = vshrl.u32 %v1537, 7
        %v1539 = vsub.s32 1, %v1538
        %v1540 = vrot.slane %v278, %v1539
        %v1541 = vmul.f32 %v1517, %v1536
        %v1542 = vmul.f32 %v1518, %v1540
        %v1543 = vmul.f32 %v1519, %v1536
        %v1544 = vmul.f32 %v1520, %v1540
        %v1545 = vmul.f32 %v1521, %v1536
        %v1546 = vmul.f32 %v1522, %v1540
        %v1547 = vmul.f32 %v1523, %v1536
        %v1548 = vmul.f32 %v1524, %v1540
        %v1549 = vmul.f32 %v1525, %v1536
        %v1550 = vmul.f32 %v1526, %v1540
        %v1551 = vmul.f32 %v1527, %v1536
        %v1552 = vmul.f32 %v1528, %v1540
        %v1553 = vmul.f32 %v1529, %v1536
        %v1554 = vmul.f32 %v1530, %v1540
        %v1555 = vmul.f32 %v1531, %v1536
        %v1556 = vmul.f32 %v1532, %v1540
        %v1557 = vlaneseq
        %v1558 = vshrl.u32 %v1557, 7
        %v1559 = vsub.s32 2, %v1558
        %v1560 = vrot.slane %v277, %v1559
        %v1561 = vlaneseq
        %v1562 = vshrl.u32 %v1561, 7
        %v1563 = vsub.s32 2, %v1562
        %v1564 = vrot.slane %v278, %v1563
        %v1565 = vadd.f32 %v1541, %v1560
        %v1566 = vadd.f32 %v1542, %v1564
        %v1567 = vadd.f32 %v1543, %v1560
        %v1568 = vadd.f32 %v1544, %v1564
        %v1569 = vadd.f32 %v1545, %v1560
        %v1570 = vadd.f32 %v1546, %v1564
        %v1571 = vadd.f32 %v1547, %v1560
        %v1572 = vadd.f32 %v1548, %v1564
        %v1573 = vadd.f32 %v1549, %v1560
        %v1574 = vadd.f32 %v1550, %v1564
        %v1575 = vadd.f32 %v1551, %v1560
        %v1576 = vadd.f32 %v1552, %v1564
        %v1577 = vadd.f32 %v1553, %v1560
        %v1578 = vadd.f32 %v1554, %v1564
        %v1579 = vadd.f32 %v1555, %v1560
        %v1580 = vadd.f32 %v1556, %v1564
        %v1581 = vmax.f32 %v1565, 0.0
        %v1582 = vmax.f32 %v1566, 0.0
        %v1583 = vmax.f32 %v1567, 0.0
        %v1584 = vmax.f32 %v1568, 0.0
        %v1585 = vmax.f32 %v1569, 0.0
        %v1586 = vmax.f32 %v1570, 0.0
        %v1587 = vmax.f32 %v1571, 0.0
        %v1588 = vmax.f32 %v1572, 0.0
        %v1589 = vmax.f32 %v1573, 0.0
        %v1590 = vmax.f32 %v1574, 0.0
        %v1591 = vmax.f32 %v1575, 0.0
        %v1592 = vmax.f32 %v1576, 0.0
        %v1593 = vmax.f32 %v1577, 0.0
        %v1594 = vmax.f32 %v1578, 0.0
        %v1595 = vmax.f32 %v1579, 0.0
        %v1596 = vmax.f32 %v1580, 0.0
        %v1597 = vrot.slane %v1581, 7
        %v1598 = vrot.slane %v1582, 7
        %v1599 = vrot.slane %v1583, 7
        %v1600 = vrot.slane %v1584, 7
        %v1601 = vrot.slane %v1585, 7
        %v1602 = vrot.slane %v1586, 7
        %v1603 = vrot.slane %v1587, 7
        %v1604 = vrot.slane %v1588, 7
        %v1605 = vrot.slane %v1589, 7
        %v1606 = vrot.slane %v1590, 7
        %v1607 = vrot.slane %v1591, 7
        %v1608 = vrot.slane %v1592, 7
        %v1609 = vrot.slane %v1593, 7
        %v1610 = vrot.slane %v1594, 7
        %v1611 = vrot.slane %v1595, 7
        %v1612 = vrot.slane %v1596, 7
        %v1613 = vsel %vm448, %v1609, %v1611
        %v1614 = vsel %vm448, %v1610, %v1612
        %v1615 = vsel %vm448, %v1607, %v1609
        %v1616 = vsel %vm448, %v1608, %v1610
        %v1617 = vsel %vm448, %v1605, %v1607
        %v1618 = vsel %vm448, %v1606, %v1608
        %v1619 = vsel %vm448, %v1603, %v1605
        %v1620 = vsel %vm448, %v1604, %v1606
        %v1621 = vsel %vm448, %v1601, %v1603
        %v1622 = vsel %vm448, %v1602, %v1604
        %v1623 = vsel %vm448, %v1599, %v1601
        %v1624 = vsel %vm448, %v1600, %v1602
        %v1625 = vsel %vm448, %v1597, %v1599
        %v1626 = vsel %vm448, %v1598, %v1600
        %v1627 = vsel %vm448, %v1611, %v1597
        %v1628 = vsel %vm448, %v1612, %v1598
        %v1629 = vmul.f32 %v1627, %v400
        %v1630 = vmul.f32 %v1628, %v400
        %v1631 = vmul.f32 %v1625, %v401
        %v1632 = vmul.f32 %v1626, %v401
        %v1633 = vmul.f32 %v1623, %v402
        %v1634 = vmul.f32 %v1624, %v402
        %v1635 = vmul.f32 %v1621, %v403
        %v1636 = vmul.f32 %v1622, %v403
        %v1637 = vmul.f32 %v1619, %v404
        %v1638 = vmul.f32 %v1620, %v404
        %v1639 = vmul.f32 %v1617, %v405
        %v1640 = vmul.f32 %v1618, %v405
        %v1641 = vmul.f32 %v1615, %v406
        %v1642 = vmul.f32 %v1616, %v406
        %v1643 = vmul.f32 %v1613, %v407
        %v1644 = vmul.f32 %v1614, %v407
        %v1645 = vrot.slane %v1581, 1
        %v1646 = vrot.slane %v1582, 1
        %v1647 = vrot.slane %v1583, 1
        %v1648 = vrot.slane %v1584, 1
        %v1649 = vrot.slane %v1585, 1
        %v1650 = vrot.slane %v1586, 1
        %v1651 = vrot.slane %v1587, 1
        %v1652 = vrot.slane %v1588, 1
        %v1653 = vrot.slane %v1589, 1
        %v1654 = vrot.slane %v1590, 1
        %v1655 = vrot.slane %v1591, 1
        %v1656 = vrot.slane %v1592, 1
        %v1657 = vrot.slane %v1593, 1
        %v1658 = vrot.slane %v1594, 1
        %v1659 = vrot.slane %v1595, 1
        %v1660 = vrot.slane %v1596, 1
        %v1661 = vsel %vm497, %v1657, %v1659
        %v1662 = vsel %vm497, %v1658, %v1660
        %v1663 = vsel %vm497, %v1655, %v1657
        %v1664 = vsel %vm497, %v1656, %v1658
        %v1665 = vsel %vm497, %v1653, %v1655
        %v1666 = vsel %vm497, %v1654, %v1656
        %v1667 = vsel %vm497, %v1651, %v1653
        %v1668 = vsel %vm497, %v1652, %v1654
        %v1669 = vsel %vm497, %v1649, %v1651
        %v1670 = vsel %vm497, %v1650, %v1652
        %v1671 = vsel %vm497, %v1647, %v1649
        %v1672 = vsel %vm497, %v1648, %v1650
        %v1673 = vsel %vm497, %v1645, %v1647
        %v1674 = vsel %vm497, %v1646, %v1648
        %v1675 = vsel %vm497, %v1659, %v1645
        %v1676 = vsel %vm497, %v1660, %v1646
        %v1677 = vmul.f32 %v1673, %v424
        %v1678 = vmul.f32 %v1674, %v424
        %v1679 = vmul.f32 %v1671, %v425
        %v1680 = vmul.f32 %v1672, %v425
        %v1681 = vmul.f32 %v1669, %v426
        %v1682 = vmul.f32 %v1670, %v426
        %v1683 = vmul.f32 %v1667, %v427
        %v1684 = vmul.f32 %v1668, %v427
        %v1685 = vmul.f32 %v1665, %v428
        %v1686 = vmul.f32 %v1666, %v428
        %v1687 = vmul.f32 %v1663, %v429
        %v1688 = vmul.f32 %v1664, %v429
        %v1689 = vmul.f32 %v1661, %v430
        %v1690 = vmul.f32 %v1662, %v430
        %v1691 = vmul.f32 %v1675, %v431
        %v1692 = vmul.f32 %v1676, %v431
        %v1693 = vld [vmem:[#allocation7] sm:$0xff]
        %v1694 = vld [vmem:[#allocation7 + $0x8] sm:$0xff]
        %v1695 = vld [vmem:[#allocation7 + $0x10] sm:$0xff]
        %v1696 = vld [vmem:[#allocation7 + $0x18] sm:$0xff]
        %v1697 = vld [vmem:[#allocation7 + $0x20] sm:$0xff]
        %v1698 = vld [vmem:[#allocation7 + $0x28] sm:$0xff]
        %v1699 = vld [vmem:[#allocation7 + $0x30] sm:$0xff]
        %v1700 = vld [vmem:[#allocation7 + $0x38] sm:$0xff]
        %v1701 = vld [vmem:[#allocation7 + $0x40] sm:$0xff]
        %v1702 = vld [vmem:[#allocation7 + $0x48] sm:$0xff]
        %v1703 = vld [vmem:[#allocation7 + $0x50] sm:$0xff]
        %v1704 = vld [vmem:[#allocation7 + $0x58] sm:$0xff]
        %v1705 = vld [vmem:[#allocation7 + $0x60] sm:$0xff]
        %v1706 = vld [vmem:[#allocation7 + $0x68] sm:$0xff]
        %v1707 = vld [vmem:[#allocation7 + $0x70] sm:$0xff]
        %v1708 = vld [vmem:[#allocation7 + $0x78] sm:$0xff]
        %v1709 = vld [vmem:[#allocation7 + $0x80] sm:$0xff]
        %v1710 = vld [vmem:[#allocation7 + $0x88] sm:$0xff]
        %v1711 = vld [vmem:[#allocation7 + $0x90] sm:$0xff]
        %v1712 = vld [vmem:[#allocation7 + $0x98] sm:$0xff]
        %v1713 = vld [vmem:[#allocation7 + $0xa0] sm:$0xff]
        %v1714 = vld [vmem:[#allocation7 + $0xa8] sm:$0xff]
        %v1715 = vld [vmem:[#allocation7 + $0xb0] sm:$0xff]
        %v1716 = vld [vmem:[#allocation7 + $0xb8] sm:$0xff]
        %v1717 = vld [vmem:[#allocation7 + $0xc0] sm:$0xff]
        %v1718 = vld [vmem:[#allocation7 + $0xc8] sm:$0xff]
        %v1719 = vld [vmem:[#allocation7 + $0xd0] sm:$0xff]
        %v1720 = vld [vmem:[#allocation7 + $0xd8] sm:$0xff]
        %v1721 = vld [vmem:[#allocation7 + $0xe0] sm:$0xff]
        %v1722 = vld [vmem:[#allocation7 + $0xe8] sm:$0xff]
        %v1723 = vld [vmem:[#allocation7 + $0xf0] sm:$0xff]
        %v1724 = vld [vmem:[#allocation7 + $0xf8] sm:$0xff]
        %v1725 = vld [vmem:[#allocation7 + $0x100] sm:$0xff]
        %v1726 = vld [vmem:[#allocation7 + $0x108] sm:$0xff]
        %v1727 = vld [vmem:[#allocation7 + $0x110] sm:$0xff]
        %v1728 = vld [vmem:[#allocation7 + $0x118] sm:$0xff]
        %v1729 = vld [vmem:[#allocation7 + $0x120] sm:$0xff]
        %v1730 = vld [vmem:[#allocation7 + $0x128] sm:$0xff]
        %v1731 = vld [vmem:[#allocation7 + $0x130] sm:$0xff]
        %v1732 = vld [vmem:[#allocation7 + $0x138] sm:$0xff]
        %v1733 = vld [vmem:[#allocation7 + $0x140] sm:$0xff]
        %v1734 = vld [vmem:[#allocation7 + $0x148] sm:$0xff]
        %v1735 = vld [vmem:[#allocation7 + $0x150] sm:$0xff]
        %v1736 = vld [vmem:[#allocation7 + $0x158] sm:$0xff]
        %v1737 = vld [vmem:[#allocation7 + $0x160] sm:$0xff]
        %v1738 = vld [vmem:[#allocation7 + $0x168] sm:$0xff]
        %v1739 = vld [vmem:[#allocation7 + $0x170] sm:$0xff]
        %v1740 = vld [vmem:[#allocation7 + $0x178] sm:$0xff]
        %v1741 = vld [vmem:[#allocation7 + $0x180] sm:$0xff]
        %v1742 = vld [vmem:[#allocation7 + $0x188] sm:$0xff]
        %v1743 = vld [vmem:[#allocation7 + $0x190] sm:$0xff]
        %v1744 = vld [vmem:[#allocation7 + $0x198] sm:$0xff]
        %v1745 = vld [vmem:[#allocation7 + $0x1a0] sm:$0xff]
        %v1746 = vld [vmem:[#allocation7 + $0x1a8] sm:$0xff]
        %v1747 = vld [vmem:[#allocation7 + $0x1b0] sm:$0xff]
        %v1748 = vld [vmem:[#allocation7 + $0x1b8] sm:$0xff]
        %v1749 = vld [vmem:[#allocation7 + $0x1c0] sm:$0xff]
        %v1750 = vld [vmem:[#allocation7 + $0x1c8] sm:$0xff]
        %v1751 = vld [vmem:[#allocation7 + $0x1d0] sm:$0xff]
        %v1752 = vld [vmem:[#allocation7 + $0x1d8] sm:$0xff]
        %v1753 = vld [vmem:[#allocation7 + $0x1e0] sm:$0xff]
        %v1754 = vld [vmem:[#allocation7 + $0x1e8] sm:$0xff]
        %v1755 = vld [vmem:[#allocation7 + $0x1f0] sm:$0xff]
        %v1756 = vld [vmem:[#allocation7 + $0x1f8] sm:$0xff]
        %s1757 = scalar_lea.vmem [#allocation7], 512
        %v1758 = vld [vmem:[%s1757] sm:$0xff]
        %v1759 = vld [vmem:[%s1757 + $0x8] sm:$0xff]
        %v1760 = vld [vmem:[%s1757 + $0x10] sm:$0xff]
        %v1761 = vld [vmem:[%s1757 + $0x18] sm:$0xff]
        %v1762 = vld [vmem:[%s1757 + $0x20] sm:$0xff]
        %v1763 = vld [vmem:[%s1757 + $0x28] sm:$0xff]
        %v1764 = vld [vmem:[%s1757 + $0x30] sm:$0xff]
        %v1765 = vld [vmem:[%s1757 + $0x38] sm:$0xff]
        %v1766 = vld [vmem:[%s1757 + $0x40] sm:$0xff]
        %v1767 = vld [vmem:[%s1757 + $0x48] sm:$0xff]
        %v1768 = vld [vmem:[%s1757 + $0x50] sm:$0xff]
        %v1769 = vld [vmem:[%s1757 + $0x58] sm:$0xff]
        %v1770 = vld [vmem:[%s1757 + $0x60] sm:$0xff]
        %v1771 = vld [vmem:[%s1757 + $0x68] sm:$0xff]
        %v1772 = vld [vmem:[%s1757 + $0x70] sm:$0xff]
        %v1773 = vld [vmem:[%s1757 + $0x78] sm:$0xff]
        %v1774 = vld [vmem:[%s1757 + $0x80] sm:$0xff]
        %v1775 = vld [vmem:[%s1757 + $0x88] sm:$0xff]
        %v1776 = vld [vmem:[%s1757 + $0x90] sm:$0xff]
        %v1777 = vld [vmem:[%s1757 + $0x98] sm:$0xff]
        %v1778 = vld [vmem:[%s1757 + $0xa0] sm:$0xff]
        %v1779 = vld [vmem:[%s1757 + $0xa8] sm:$0xff]
        %v1780 = vld [vmem:[%s1757 + $0xb0] sm:$0xff]
        %v1781 = vld [vmem:[%s1757 + $0xb8] sm:$0xff]
        %v1782 = vld [vmem:[%s1757 + $0xc0] sm:$0xff]
        %v1783 = vld [vmem:[%s1757 + $0xc8] sm:$0xff]
        %v1784 = vld [vmem:[%s1757 + $0xd0] sm:$0xff]
        %v1785 = vld [vmem:[%s1757 + $0xd8] sm:$0xff]
        %v1786 = vld [vmem:[%s1757 + $0xe0] sm:$0xff]
        %v1787 = vld [vmem:[%s1757 + $0xe8] sm:$0xff]
        %v1788 = vld [vmem:[%s1757 + $0xf0] sm:$0xff]
        %v1789 = vld [vmem:[%s1757 + $0xf8] sm:$0xff]
        %v1790 = vld [vmem:[%s1757 + $0x100] sm:$0xff]
        %v1791 = vld [vmem:[%s1757 + $0x108] sm:$0xff]
        %v1792 = vld [vmem:[%s1757 + $0x110] sm:$0xff]
        %v1793 = vld [vmem:[%s1757 + $0x118] sm:$0xff]
        %v1794 = vld [vmem:[%s1757 + $0x120] sm:$0xff]
        %v1795 = vld [vmem:[%s1757 + $0x128] sm:$0xff]
        %v1796 = vld [vmem:[%s1757 + $0x130] sm:$0xff]
        %v1797 = vld [vmem:[%s1757 + $0x138] sm:$0xff]
        %v1798 = vld [vmem:[%s1757 + $0x140] sm:$0xff]
        %v1799 = vld [vmem:[%s1757 + $0x148] sm:$0xff]
        %v1800 = vld [vmem:[%s1757 + $0x150] sm:$0xff]
        %v1801 = vld [vmem:[%s1757 + $0x158] sm:$0xff]
        %v1802 = vld [vmem:[%s1757 + $0x160] sm:$0xff]
        %v1803 = vld [vmem:[%s1757 + $0x168] sm:$0xff]
        %v1804 = vld [vmem:[%s1757 + $0x170] sm:$0xff]
        %v1805 = vld [vmem:[%s1757 + $0x178] sm:$0xff]
        %v1806 = vld [vmem:[%s1757 + $0x180] sm:$0xff]
        %v1807 = vld [vmem:[%s1757 + $0x188] sm:$0xff]
        %v1808 = vld [vmem:[%s1757 + $0x190] sm:$0xff]
        %v1809 = vld [vmem:[%s1757 + $0x198] sm:$0xff]
        %v1810 = vld [vmem:[%s1757 + $0x1a0] sm:$0xff]
        %v1811 = vld [vmem:[%s1757 + $0x1a8] sm:$0xff]
        %v1812 = vld [vmem:[%s1757 + $0x1b0] sm:$0xff]
        %v1813 = vld [vmem:[%s1757 + $0x1b8] sm:$0xff]
        %v1814 = vld [vmem:[%s1757 + $0x1c0] sm:$0xff]
        %v1815 = vld [vmem:[%s1757 + $0x1c8] sm:$0xff]
        %v1816 = vld [vmem:[%s1757 + $0x1d0] sm:$0xff]
        %v1817 = vld [vmem:[%s1757 + $0x1d8] sm:$0xff]
        %v1818 = vld [vmem:[%s1757 + $0x1e0] sm:$0xff]
        %v1819 = vld [vmem:[%s1757 + $0x1e8] sm:$0xff]
        %v1820 = vld [vmem:[%s1757 + $0x1f0] sm:$0xff]
        %v1821 = vld [vmem:[%s1757 + $0x1f8] sm:$0xff]
        %1822 = vmatprep.subr.mxu0 %v1789
        %1823 = vmatpush1.msra.mxu0 %v1788
        %1824 = vmatprep.subr.mxu0 %v1787
        %1825 = vmatpush1.msra.mxu0 %v1786
        %1826 = vmatprep.subr.mxu0 %v1785
        %1827 = vmatpush1.msra.mxu0 %v1784
        %1828 = vmatprep.subr.mxu0 %v1783
        %1829 = vmatpush1.msra.mxu0 %v1782
        %1830 = vmatprep.subr.mxu0 %v1781
        %1831 = vmatpush1.msra.mxu0 %v1780
        %1832 = vmatprep.subr.mxu0 %v1779
        %1833 = vmatpush1.msra.mxu0 %v1778
        %1834 = vmatprep.subr.mxu0 %v1777
        %1835 = vmatpush1.msra.mxu0 %v1776
        %1836 = vmatprep.subr.mxu0 %v1775
        %1837 = vmatpush1.msra.mxu0 %v1774
        %1838 = vmatprep.subr.mxu0 %v1773
        %1839 = vmatpush1.msra.mxu0 %v1772
        %1840 = vmatprep.subr.mxu0 %v1771
        %1841 = vmatpush1.msra.mxu0 %v1770
        %1842 = vmatprep.subr.mxu0 %v1769
        %1843 = vmatpush1.msra.mxu0 %v1768
        %1844 = vmatprep.subr.mxu0 %v1767
        %1845 = vmatpush1.msra.mxu0 %v1766
        %1846 = vmatprep.subr.mxu0 %v1765
        %1847 = vmatpush1.msra.mxu0 %v1764
        %1848 = vmatprep.subr.mxu0 %v1763
        %1849 = vmatpush1.msra.mxu0 %v1762
        %1850 = vmatprep.subr.mxu0 %v1761
        %1851 = vmatpush1.msra.mxu0 %v1760
        %1852 = vmatprep.subr.mxu0 %v1759
        %1853 = vmatpush1.msra.mxu0 %v1758
        %1854 = vmatprep.subr.mxu0 %v1821
        %1855 = vmatpush2.msra.mxu0 %v1820
        %1856 = vmatprep.subr.mxu0 %v1819
        %1857 = vmatpush2.msra.mxu0 %v1818
        %1858 = vmatprep.subr.mxu0 %v1817
        %1859 = vmatpush2.msra.mxu0 %v1816
        %1860 = vmatprep.subr.mxu0 %v1815
        %1861 = vmatpush2.msra.mxu0 %v1814
        %1862 = vmatprep.subr.mxu0 %v1813
        %1863 = vmatpush2.msra.mxu0 %v1812
        %1864 = vmatprep.subr.mxu0 %v1811
        %1865 = vmatpush2.msra.mxu0 %v1810
        %1866 = vmatprep.subr.mxu0 %v1809
        %1867 = vmatpush2.msra.mxu0 %v1808
        %1868 = vmatprep.subr.mxu0 %v1807
        %1869 = vmatpush2.msra.mxu0 %v1806
        %1870 = vmatprep.subr.mxu0 %v1805
        %1871 = vmatpush2.msra.mxu0 %v1804
        %1872 = vmatprep.subr.mxu0 %v1803
        %1873 = vmatpush2.msra.mxu0 %v1802
        %1874 = vmatprep.subr.mxu0 %v1801
        %1875 = vmatpush2.msra.mxu0 %v1800
        %1876 = vmatprep.subr.mxu0 %v1799
        %1877 = vmatpush2.msra.mxu0 %v1798
        %1878 = vmatprep.subr.mxu0 %v1797
        %1879 = vmatpush2.msra.mxu0 %v1796
        %1880 = vmatprep.subr.mxu0 %v1795
        %1881 = vmatpush2.msra.mxu0 %v1794
        %1882 = vmatprep.subr.mxu0 %v1793
        %1883 = vmatpush2.msra.mxu0 %v1792
        %1884 = vmatprep.subr.mxu0 %v1791
        %1885 = vmatpush2.msra.mxu0 %v1790
        %1886 = vmatprep.mubr.f32.mxu0 %v1582
        %1887 = vmatmul.mubr.f32.gmra.mxu0 %v1581
        %v1888 = vpop.f32.mrf.mxu0
        %v1889 = vadd.f32 0.0, %v1888
        %v1890 = vpop.f32.mrf.mxu0
        %v1891 = vadd.f32 0.0, %v1890
        %1892 = vmatprep.mubr.f32.mxu0 %v1584
        %1893 = vmatmul.mubr.f32.gmra.mxu0 %v1583
        %v1894 = vpop.f32.mrf.mxu0
        %v1895 = vadd.f32 0.0, %v1894
        %v1896 = vpop.f32.mrf.mxu0
        %v1897 = vadd.f32 0.0, %v1896
        %1898 = vmatprep.mubr.f32.mxu0 %v1586
        %1899 = vmatmul.mubr.f32.gmra.mxu0 %v1585
        %v1900 = vpop.f32.mrf.mxu0
        %v1901 = vadd.f32 0.0, %v1900
        %v1902 = vpop.f32.mrf.mxu0
        %v1903 = vadd.f32 0.0, %v1902
        %1904 = vmatprep.mubr.f32.mxu0 %v1588
        %1905 = vmatmul.mubr.f32.gmra.mxu0 %v1587
        %v1906 = vpop.f32.mrf.mxu0
        %v1907 = vadd.f32 0.0, %v1906
        %v1908 = vpop.f32.mrf.mxu0
        %v1909 = vadd.f32 0.0, %v1908
        %1910 = vmatprep.mubr.f32.mxu0 %v1590
        %1911 = vmatmul.mubr.f32.gmra.mxu0 %v1589
        %v1912 = vpop.f32.mrf.mxu0
        %v1913 = vadd.f32 0.0, %v1912
        %v1914 = vpop.f32.mrf.mxu0
        %v1915 = vadd.f32 0.0, %v1914
        %1916 = vmatprep.mubr.f32.mxu0 %v1592
        %1917 = vmatmul.mubr.f32.gmra.mxu0 %v1591
        %v1918 = vpop.f32.mrf.mxu0
        %v1919 = vadd.f32 0.0, %v1918
        %v1920 = vpop.f32.mrf.mxu0
        %v1921 = vadd.f32 0.0, %v1920
        %1922 = vmatprep.mubr.f32.mxu0 %v1594
        %1923 = vmatmul.mubr.f32.gmra.mxu0 %v1593
        %v1924 = vpop.f32.mrf.mxu0
        %v1925 = vadd.f32 0.0, %v1924
        %v1926 = vpop.f32.mrf.mxu0
        %v1927 = vadd.f32 0.0, %v1926
        %1928 = vmatprep.mubr.f32.mxu0 %v1596
        %1929 = vmatmul.mubr.f32.gmra.mxu0 %v1595
        %v1930 = vpop.f32.mrf.mxu0
        %v1931 = vadd.f32 0.0, %v1930
        %v1932 = vpop.f32.mrf.mxu0
        %v1933 = vadd.f32 0.0, %v1932
        %1934 = vdwg.mxu0
        %1935 = vmatprep.subr.mxu0 %v1724
        %1936 = vmatpush1.msra.mxu0 %v1723
        %1937 = vmatprep.subr.mxu0 %v1722
        %1938 = vmatpush1.msra.mxu0 %v1721
        %1939 = vmatprep.subr.mxu0 %v1720
        %1940 = vmatpush1.msra.mxu0 %v1719
        %1941 = vmatprep.subr.mxu0 %v1718
        %1942 = vmatpush1.msra.mxu0 %v1717
        %1943 = vmatprep.subr.mxu0 %v1716
        %1944 = vmatpush1.msra.mxu0 %v1715
        %1945 = vmatprep.subr.mxu0 %v1714
        %1946 = vmatpush1.msra.mxu0 %v1713
        %1947 = vmatprep.subr.mxu0 %v1712
        %1948 = vmatpush1.msra.mxu0 %v1711
        %1949 = vmatprep.subr.mxu0 %v1710
        %1950 = vmatpush1.msra.mxu0 %v1709
        %1951 = vmatprep.subr.mxu0 %v1708
        %1952 = vmatpush1.msra.mxu0 %v1707
        %1953 = vmatprep.subr.mxu0 %v1706
        %1954 = vmatpush1.msra.mxu0 %v1705
        %1955 = vmatprep.subr.mxu0 %v1704
        %1956 = vmatpush1.msra.mxu0 %v1703
        %1957 = vmatprep.subr.mxu0 %v1702
        %1958 = vmatpush1.msra.mxu0 %v1701
        %1959 = vmatprep.subr.mxu0 %v1700
        %1960 = vmatpush1.msra.mxu0 %v1699
        %1961 = vmatprep.subr.mxu0 %v1698
        %1962 = vmatpush1.msra.mxu0 %v1697
        %1963 = vmatprep.subr.mxu0 %v1696
        %1964 = vmatpush1.msra.mxu0 %v1695
        %1965 = vmatprep.subr.mxu0 %v1694
        %1966 = vmatpush1.msra.mxu0 %v1693
        %1967 = vmatprep.subr.mxu0 %v1756
        %1968 = vmatpush2.msra.mxu0 %v1755
        %1969 = vmatprep.subr.mxu0 %v1754
        %1970 = vmatpush2.msra.mxu0 %v1753
        %1971 = vmatprep.subr.mxu0 %v1752
        %1972 = vmatpush2.msra.mxu0 %v1751
        %1973 = vmatprep.subr.mxu0 %v1750
        %1974 = vmatpush2.msra.mxu0 %v1749
        %1975 = vmatprep.subr.mxu0 %v1748
        %1976 = vmatpush2.msra.mxu0 %v1747
        %1977 = vmatprep.subr.mxu0 %v1746
        %1978 = vmatpush2.msra.mxu0 %v1745
        %1979 = vmatprep.subr.mxu0 %v1744
        %1980 = vmatpush2.msra.mxu0 %v1743
        %1981 = vmatprep.subr.mxu0 %v1742
        %1982 = vmatpush2.msra.mxu0 %v1741
        %1983 = vmatprep.subr.mxu0 %v1740
        %1984 = vmatpush2.msra.mxu0 %v1739
        %1985 = vmatprep.subr.mxu0 %v1738
        %1986 = vmatpush2.msra.mxu0 %v1737
        %1987 = vmatprep.subr.mxu0 %v1736
        %1988 = vmatpush2.msra.mxu0 %v1735
        %1989 = vmatprep.subr.mxu0 %v1734
        %1990 = vmatpush2.msra.mxu0 %v1733
        %1991 = vmatprep.subr.mxu0 %v1732
        %1992 = vmatpush2.msra.mxu0 %v1731
        %1993 = vmatprep.subr.mxu0 %v1730
        %1994 = vmatpush2.msra.mxu0 %v1729
        %1995 = vmatprep.subr.mxu0 %v1728
        %1996 = vmatpush2.msra.mxu0 %v1727
        %1997 = vmatprep.subr.mxu0 %v1726
        %1998 = vmatpush2.msra.mxu0 %v1725
        %1999 = vmatprep.mubr.f32.mxu0 %v1630
        %2000 = vmatmul.mubr.f32.gmra.mxu0 %v1629
        %v2001 = vpop.f32.mrf.mxu0
        %v2002 = vadd.f32 %v1889, %v2001
        %v2003 = vpop.f32.mrf.mxu0
        %v2004 = vadd.f32 %v1891, %v2003
        %2005 = vmatprep.mubr.f32.mxu0 %v1632
        %2006 = vmatmul.mubr.f32.gmra.mxu0 %v1631
        %v2007 = vpop.f32.mrf.mxu0
        %v2008 = vadd.f32 %v1895, %v2007
        %v2009 = vpop.f32.mrf.mxu0
        %v2010 = vadd.f32 %v1897, %v2009
        %2011 = vmatprep.mubr.f32.mxu0 %v1634
        %2012 = vmatmul.mubr.f32.gmra.mxu0 %v1633
        %v2013 = vpop.f32.mrf.mxu0
        %v2014 = vadd.f32 %v1901, %v2013
        %v2015 = vpop.f32.mrf.mxu0
        %v2016 = vadd.f32 %v1903, %v2015
        %2017 = vmatprep.mubr.f32.mxu0 %v1636
        %2018 = vmatmul.mubr.f32.gmra.mxu0 %v1635
        %v2019 = vpop.f32.mrf.mxu0
        %v2020 = vadd.f32 %v1907, %v2019
        %v2021 = vpop.f32.mrf.mxu0
        %v2022 = vadd.f32 %v1909, %v2021
        %2023 = vmatprep.mubr.f32.mxu0 %v1638
        %2024 = vmatmul.mubr.f32.gmra.mxu0 %v1637
        %v2025 = vpop.f32.mrf.mxu0
        %v2026 = vadd.f32 %v1913, %v2025
        %v2027 = vpop.f32.mrf.mxu0
        %v2028 = vadd.f32 %v1915, %v2027
        %2029 = vmatprep.mubr.f32.mxu0 %v1640
        %2030 = vmatmul.mubr.f32.gmra.mxu0 %v1639
        %v2031 = vpop.f32.mrf.mxu0
        %v2032 = vadd.f32 %v1919, %v2031
        %v2033 = vpop.f32.mrf.mxu0
        %v2034 = vadd.f32 %v1921, %v2033
        %2035 = vmatprep.mubr.f32.mxu0 %v1642
        %2036 = vmatmul.mubr.f32.gmra.mxu0 %v1641
        %v2037 = vpop.f32.mrf.mxu0
        %v2038 = vadd.f32 %v1925, %v2037
        %v2039 = vpop.f32.mrf.mxu0
        %v2040 = vadd.f32 %v1927, %v2039
        %2041 = vmatprep.mubr.f32.mxu0 %v1644
        %2042 = vmatmul.mubr.f32.gmra.mxu0 %v1643
        %v2043 = vpop.f32.mrf.mxu0
        %v2044 = vadd.f32 %v1931, %v2043
        %v2045 = vpop.f32.mrf.mxu0
        %v2046 = vadd.f32 %v1933, %v2045
        %2047 = vdwg.mxu0
        %s2048 = scalar_lea.vmem [#allocation7], 1024
        %v2049 = vld [vmem:[%s2048] sm:$0xff]
        %v2050 = vld [vmem:[%s2048 + $0x8] sm:$0xff]
        %v2051 = vld [vmem:[%s2048 + $0x10] sm:$0xff]
        %v2052 = vld [vmem:[%s2048 + $0x18] sm:$0xff]
        %v2053 = vld [vmem:[%s2048 + $0x20] sm:$0xff]
        %v2054 = vld [vmem:[%s2048 + $0x28] sm:$0xff]
        %v2055 = vld [vmem:[%s2048 + $0x30] sm:$0xff]
        %v2056 = vld [vmem:[%s2048 + $0x38] sm:$0xff]
        %v2057 = vld [vmem:[%s2048 + $0x40] sm:$0xff]
        %v2058 = vld [vmem:[%s2048 + $0x48] sm:$0xff]
        %v2059 = vld [vmem:[%s2048 + $0x50] sm:$0xff]
        %v2060 = vld [vmem:[%s2048 + $0x58] sm:$0xff]
        %v2061 = vld [vmem:[%s2048 + $0x60] sm:$0xff]
        %v2062 = vld [vmem:[%s2048 + $0x68] sm:$0xff]
        %v2063 = vld [vmem:[%s2048 + $0x70] sm:$0xff]
        %v2064 = vld [vmem:[%s2048 + $0x78] sm:$0xff]
        %v2065 = vld [vmem:[%s2048 + $0x80] sm:$0xff]
        %v2066 = vld [vmem:[%s2048 + $0x88] sm:$0xff]
        %v2067 = vld [vmem:[%s2048 + $0x90] sm:$0xff]
        %v2068 = vld [vmem:[%s2048 + $0x98] sm:$0xff]
        %v2069 = vld [vmem:[%s2048 + $0xa0] sm:$0xff]
        %v2070 = vld [vmem:[%s2048 + $0xa8] sm:$0xff]
        %v2071 = vld [vmem:[%s2048 + $0xb0] sm:$0xff]
        %v2072 = vld [vmem:[%s2048 + $0xb8] sm:$0xff]
        %v2073 = vld [vmem:[%s2048 + $0xc0] sm:$0xff]
        %v2074 = vld [vmem:[%s2048 + $0xc8] sm:$0xff]
        %v2075 = vld [vmem:[%s2048 + $0xd0] sm:$0xff]
        %v2076 = vld [vmem:[%s2048 + $0xd8] sm:$0xff]
        %v2077 = vld [vmem:[%s2048 + $0xe0] sm:$0xff]
        %v2078 = vld [vmem:[%s2048 + $0xe8] sm:$0xff]
        %v2079 = vld [vmem:[%s2048 + $0xf0] sm:$0xff]
        %v2080 = vld [vmem:[%s2048 + $0xf8] sm:$0xff]
        %v2081 = vld [vmem:[%s2048 + $0x100] sm:$0xff]
        %v2082 = vld [vmem:[%s2048 + $0x108] sm:$0xff]
        %v2083 = vld [vmem:[%s2048 + $0x110] sm:$0xff]
        %v2084 = vld [vmem:[%s2048 + $0x118] sm:$0xff]
        %v2085 = vld [vmem:[%s2048 + $0x120] sm:$0xff]
        %v2086 = vld [vmem:[%s2048 + $0x128] sm:$0xff]
        %v2087 = vld [vmem:[%s2048 + $0x130] sm:$0xff]
        %v2088 = vld [vmem:[%s2048 + $0x138] sm:$0xff]
        %v2089 = vld [vmem:[%s2048 + $0x140] sm:$0xff]
        %v2090 = vld [vmem:[%s2048 + $0x148] sm:$0xff]
        %v2091 = vld [vmem:[%s2048 + $0x150] sm:$0xff]
        %v2092 = vld [vmem:[%s2048 + $0x158] sm:$0xff]
        %v2093 = vld [vmem:[%s2048 + $0x160] sm:$0xff]
        %v2094 = vld [vmem:[%s2048 + $0x168] sm:$0xff]
        %v2095 = vld [vmem:[%s2048 + $0x170] sm:$0xff]
        %v2096 = vld [vmem:[%s2048 + $0x178] sm:$0xff]
        %v2097 = vld [vmem:[%s2048 + $0x180] sm:$0xff]
        %v2098 = vld [vmem:[%s2048 + $0x188] sm:$0xff]
        %v2099 = vld [vmem:[%s2048 + $0x190] sm:$0xff]
        %v2100 = vld [vmem:[%s2048 + $0x198] sm:$0xff]
        %v2101 = vld [vmem:[%s2048 + $0x1a0] sm:$0xff]
        %v2102 = vld [vmem:[%s2048 + $0x1a8] sm:$0xff]
        %v2103 = vld [vmem:[%s2048 + $0x1b0] sm:$0xff]
        %v2104 = vld [vmem:[%s2048 + $0x1b8] sm:$0xff]
        %v2105 = vld [vmem:[%s2048 + $0x1c0] sm:$0xff]
        %v2106 = vld [vmem:[%s2048 + $0x1c8] sm:$0xff]
        %v2107 = vld [vmem:[%s2048 + $0x1d0] sm:$0xff]
        %v2108 = vld [vmem:[%s2048 + $0x1d8] sm:$0xff]
        %v2109 = vld [vmem:[%s2048 + $0x1e0] sm:$0xff]
        %v2110 = vld [vmem:[%s2048 + $0x1e8] sm:$0xff]
        %v2111 = vld [vmem:[%s2048 + $0x1f0] sm:$0xff]
        %v2112 = vld [vmem:[%s2048 + $0x1f8] sm:$0xff]
        %2113 = vmatprep.subr.mxu0 %v2080
        %2114 = vmatpush1.msra.mxu0 %v2079
        %2115 = vmatprep.subr.mxu0 %v2078
        %2116 = vmatpush1.msra.mxu0 %v2077
        %2117 = vmatprep.subr.mxu0 %v2076
        %2118 = vmatpush1.msra.mxu0 %v2075
        %2119 = vmatprep.subr.mxu0 %v2074
        %2120 = vmatpush1.msra.mxu0 %v2073
        %2121 = vmatprep.subr.mxu0 %v2072
        %2122 = vmatpush1.msra.mxu0 %v2071
        %2123 = vmatprep.subr.mxu0 %v2070
        %2124 = vmatpush1.msra.mxu0 %v2069
        %2125 = vmatprep.subr.mxu0 %v2068
        %2126 = vmatpush1.msra.mxu0 %v2067
        %2127 = vmatprep.subr.mxu0 %v2066
        %2128 = vmatpush1.msra.mxu0 %v2065
        %2129 = vmatprep.subr.mxu0 %v2064
        %2130 = vmatpush1.msra.mxu0 %v2063
        %2131 = vmatprep.subr.mxu0 %v2062
        %2132 = vmatpush1.msra.mxu0 %v2061
        %2133 = vmatprep.subr.mxu0 %v2060
        %2134 = vmatpush1.msra.mxu0 %v2059
        %2135 = vmatprep.subr.mxu0 %v2058
        %2136 = vmatpush1.msra.mxu0 %v2057
        %2137 = vmatprep.subr.mxu0 %v2056
        %2138 = vmatpush1.msra.mxu0 %v2055
        %2139 = vmatprep.subr.mxu0 %v2054
        %2140 = vmatpush1.msra.mxu0 %v2053
        %2141 = vmatprep.subr.mxu0 %v2052
        %2142 = vmatpush1.msra.mxu0 %v2051
        %2143 = vmatprep.subr.mxu0 %v2050
        %2144 = vmatpush1.msra.mxu0 %v2049
        %2145 = vmatprep.subr.mxu0 %v2112
        %2146 = vmatpush2.msra.mxu0 %v2111
        %2147 = vmatprep.subr.mxu0 %v2110
        %2148 = vmatpush2.msra.mxu0 %v2109
        %2149 = vmatprep.subr.mxu0 %v2108
        %2150 = vmatpush2.msra.mxu0 %v2107
        %2151 = vmatprep.subr.mxu0 %v2106
        %2152 = vmatpush2.msra.mxu0 %v2105
        %2153 = vmatprep.subr.mxu0 %v2104
        %2154 = vmatpush2.msra.mxu0 %v2103
        %2155 = vmatprep.subr.mxu0 %v2102
        %2156 = vmatpush2.msra.mxu0 %v2101
        %2157 = vmatprep.subr.mxu0 %v2100
        %2158 = vmatpush2.msra.mxu0 %v2099
        %2159 = vmatprep.subr.mxu0 %v2098
        %2160 = vmatpush2.msra.mxu0 %v2097
        %2161 = vmatprep.subr.mxu0 %v2096
        %2162 = vmatpush2.msra.mxu0 %v2095
        %2163 = vmatprep.subr.mxu0 %v2094
        %2164 = vmatpush2.msra.mxu0 %v2093
        %2165 = vmatprep.subr.mxu0 %v2092
        %2166 = vmatpush2.msra.mxu0 %v2091
        %2167 = vmatprep.subr.mxu0 %v2090
        %2168 = vmatpush2.msra.mxu0 %v2089
        %2169 = vmatprep.subr.mxu0 %v2088
        %2170 = vmatpush2.msra.mxu0 %v2087
        %2171 = vmatprep.subr.mxu0 %v2086
        %2172 = vmatpush2.msra.mxu0 %v2085
        %2173 = vmatprep.subr.mxu0 %v2084
        %2174 = vmatpush2.msra.mxu0 %v2083
        %2175 = vmatprep.subr.mxu0 %v2082
        %2176 = vmatpush2.msra.mxu0 %v2081
        %2177 = vmatprep.mubr.f32.mxu0 %v1678
        %2178 = vmatmul.mubr.f32.gmra.mxu0 %v1677
        %v2179 = vpop.f32.mrf.mxu0
        %v2180 = vadd.f32 0.0, %v2179
        %v2181 = vpop.f32.mrf.mxu0
        %v2182 = vadd.f32 0.0, %v2181
        %2183 = vmatprep.mubr.f32.mxu0 %v1680
        %2184 = vmatmul.mubr.f32.gmra.mxu0 %v1679
        %v2185 = vpop.f32.mrf.mxu0
        %v2186 = vadd.f32 0.0, %v2185
        %v2187 = vpop.f32.mrf.mxu0
        %v2188 = vadd.f32 0.0, %v2187
        %2189 = vmatprep.mubr.f32.mxu0 %v1682
        %2190 = vmatmul.mubr.f32.gmra.mxu0 %v1681
        %v2191 = vpop.f32.mrf.mxu0
        %v2192 = vadd.f32 0.0, %v2191
        %v2193 = vpop.f32.mrf.mxu0
        %v2194 = vadd.f32 0.0, %v2193
        %2195 = vmatprep.mubr.f32.mxu0 %v1684
        %2196 = vmatmul.mubr.f32.gmra.mxu0 %v1683
        %v2197 = vpop.f32.mrf.mxu0
        %v2198 = vadd.f32 0.0, %v2197
        %v2199 = vpop.f32.mrf.mxu0
        %v2200 = vadd.f32 0.0, %v2199
        %2201 = vmatprep.mubr.f32.mxu0 %v1686
        %2202 = vmatmul.mubr.f32.gmra.mxu0 %v1685
        %v2203 = vpop.f32.mrf.mxu0
        %v2204 = vadd.f32 0.0, %v2203
        %v2205 = vpop.f32.mrf.mxu0
        %v2206 = vadd.f32 0.0, %v2205
        %2207 = vmatprep.mubr.f32.mxu0 %v1688
        %2208 = vmatmul.mubr.f32.gmra.mxu0 %v1687
        %v2209 = vpop.f32.mrf.mxu0
        %v2210 = vadd.f32 0.0, %v2209
        %v2211 = vpop.f32.mrf.mxu0
        %v2212 = vadd.f32 0.0, %v2211
        %2213 = vmatprep.mubr.f32.mxu0 %v1690
        %2214 = vmatmul.mubr.f32.gmra.mxu0 %v1689
        %v2215 = vpop.f32.mrf.mxu0
        %v2216 = vadd.f32 0.0, %v2215
        %v2217 = vpop.f32.mrf.mxu0
        %v2218 = vadd.f32 0.0, %v2217
        %2219 = vmatprep.mubr.f32.mxu0 %v1692
        %2220 = vmatmul.mubr.f32.gmra.mxu0 %v1691
        %v2221 = vpop.f32.mrf.mxu0
        %v2222 = vadd.f32 0.0, %v2221
        %v2223 = vpop.f32.mrf.mxu0
        %v2224 = vadd.f32 0.0, %v2223
        %2225 = vdwg.mxu0
        %v2226 = vadd.f32 %v2002, %v2180
        %v2227 = vadd.f32 %v2004, %v2182
        %v2228 = vadd.f32 %v2008, %v2186
        %v2229 = vadd.f32 %v2010, %v2188
        %v2230 = vadd.f32 %v2014, %v2192
        %v2231 = vadd.f32 %v2016, %v2194
        %v2232 = vadd.f32 %v2020, %v2198
        %v2233 = vadd.f32 %v2022, %v2200
        %v2234 = vadd.f32 %v2026, %v2204
        %v2235 = vadd.f32 %v2028, %v2206
        %v2236 = vadd.f32 %v2032, %v2210
        %v2237 = vadd.f32 %v2034, %v2212
        %v2238 = vadd.f32 %v2038, %v2216
        %v2239 = vadd.f32 %v2040, %v2218
        %v2240 = vadd.f32 %v2044, %v2222
        %v2241 = vadd.f32 %v2046, %v2224
        %v2242 = vlaneseq
        %v2243 = vshrl.u32 %v2242, 7
        %v2244 = vsub.s32 3, %v2243
        %v2245 = vrot.slane %v277, %v2244
        %v2246 = vlaneseq
        %v2247 = vshrl.u32 %v2246, 7
        %v2248 = vsub.s32 3, %v2247
        %v2249 = vrot.slane %v278, %v2248
        %v2250 = vadd.f32 %v2226, %v2245
        %v2251 = vadd.f32 %v2227, %v2249
        %v2252 = vadd.f32 %v2228, %v2245
        %v2253 = vadd.f32 %v2229, %v2249
        %v2254 = vadd.f32 %v2230, %v2245
        %v2255 = vadd.f32 %v2231, %v2249
        %v2256 = vadd.f32 %v2232, %v2245
        %v2257 = vadd.f32 %v2233, %v2249
        %v2258 = vadd.f32 %v2234, %v2245
        %v2259 = vadd.f32 %v2235, %v2249
        %v2260 = vadd.f32 %v2236, %v2245
        %v2261 = vadd.f32 %v2237, %v2249
        %v2262 = vadd.f32 %v2238, %v2245
        %v2263 = vadd.f32 %v2239, %v2249
        %v2264 = vadd.f32 %v2240, %v2245
        %v2265 = vadd.f32 %v2241, %v2249
        %v2266 = vadd.f32 %v2250, %v2252
        %v2267 = vrot.slane %v2266, 4
        %v2268 = vadd.f32 %v2266, %v2267
        %v2269 = vrot.slane %v2268, 2
        %v2270 = vadd.f32 %v2268, %v2269
        %v2271 = vrot.slane %v2270, 1
        %v2272 = vadd.f32 %v2270, %v2271
        %v2273 = vadd.f32 %v2251, %v2253
        %v2274 = vrot.slane %v2273, 4
        %v2275 = vadd.f32 %v2273, %v2274
        %v2276 = vrot.slane %v2275, 2
        %v2277 = vadd.f32 %v2275, %v2276
        %v2278 = vrot.slane %v2277, 1
        %v2279 = vadd.f32 %v2277, %v2278
        %v2280 = vadd.f32 %v2254, %v2256
        %v2281 = vrot.slane %v2280, 4
        %v2282 = vadd.f32 %v2280, %v2281
        %v2283 = vrot.slane %v2282, 2
        %v2284 = vadd.f32 %v2282, %v2283
        %v2285 = vrot.slane %v2284, 1
        %v2286 = vadd.f32 %v2284, %v2285
        %v2287 = vadd.f32 %v2255, %v2257
        %v2288 = vrot.slane %v2287, 4
        %v2289 = vadd.f32 %v2287, %v2288
        %v2290 = vrot.slane %v2289, 2
        %v2291 = vadd.f32 %v2289, %v2290
        %v2292 = vrot.slane %v2291, 1
        %v2293 = vadd.f32 %v2291, %v2292
        %v2294 = vadd.f32 %v2258, %v2260
        %v2295 = vrot.slane %v2294, 4
        %v2296 = vadd.f32 %v2294, %v2295
        %v2297 = vrot.slane %v2296, 2
        %v2298 = vadd.f32 %v2296, %v2297
        %v2299 = vrot.slane %v2298, 1
        %v2300 = vadd.f32 %v2298, %v2299
        %v2301 = vadd.f32 %v2259, %v2261
        %v2302 = vrot.slane %v2301, 4
        %v2303 = vadd.f32 %v2301, %v2302
        %v2304 = vrot.slane %v2303, 2
        %v2305 = vadd.f32 %v2303, %v2304
        %v2306 = vrot.slane %v2305, 1
        %v2307 = vadd.f32 %v2305, %v2306
        %v2308 = vadd.f32 %v2262, %v2264
        %v2309 = vrot.slane %v2308, 4
        %v2310 = vadd.f32 %v2308, %v2309
        %v2311 = vrot.slane %v2310, 2
        %v2312 = vadd.f32 %v2310, %v2311
        %v2313 = vrot.slane %v2312, 1
        %v2314 = vadd.f32 %v2312, %v2313
        %v2315 = vadd.f32 %v2263, %v2265
        %v2316 = vrot.slane %v2315, 4
        %v2317 = vadd.f32 %v2315, %v2316
        %v2318 = vrot.slane %v2317, 2
        %v2319 = vadd.f32 %v2317, %v2318
        %v2320 = vrot.slane %v2319, 1
        %v2321 = vadd.f32 %v2319, %v2320
        %v2322 = vmul.f32 %v2250, %v2250
        %v2323 = vmul.f32 %v2251, %v2251
        %v2324 = vmul.f32 %v2252, %v2252
        %v2325 = vmul.f32 %v2253, %v2253
        %v2326 = vmul.f32 %v2254, %v2254
        %v2327 = vmul.f32 %v2255, %v2255
        %v2328 = vmul.f32 %v2256, %v2256
        %v2329 = vmul.f32 %v2257, %v2257
        %v2330 = vmul.f32 %v2258, %v2258
        %v2331 = vmul.f32 %v2259, %v2259
        %v2332 = vmul.f32 %v2260, %v2260
        %v2333 = vmul.f32 %v2261, %v2261
        %v2334 = vmul.f32 %v2262, %v2262
        %v2335 = vmul.f32 %v2263, %v2263
        %v2336 = vmul.f32 %v2264, %v2264
        %v2337 = vmul.f32 %v2265, %v2265
        %v2338 = vadd.f32 %v2322, %v2324
        %v2339 = vrot.slane %v2338, 4
        %v2340 = vadd.f32 %v2338, %v2339
        %v2341 = vrot.slane %v2340, 2
        %v2342 = vadd.f32 %v2340, %v2341
        %v2343 = vrot.slane %v2342, 1
        %v2344 = vadd.f32 %v2342, %v2343
        %v2345 = vadd.f32 %v2323, %v2325
        %v2346 = vrot.slane %v2345, 4
        %v2347 = vadd.f32 %v2345, %v2346
        %v2348 = vrot.slane %v2347, 2
        %v2349 = vadd.f32 %v2347, %v2348
        %v2350 = vrot.slane %v2349, 1
        %v2351 = vadd.f32 %v2349, %v2350
        %v2352 = vadd.f32 %v2326, %v2328
        %v2353 = vrot.slane %v2352, 4
        %v2354 = vadd.f32 %v2352, %v2353
        %v2355 = vrot.slane %v2354, 2
        %v2356 = vadd.f32 %v2354, %v2355
        %v2357 = vrot.slane %v2356, 1
        %v2358 = vadd.f32 %v2356, %v2357
        %v2359 = vadd.f32 %v2327, %v2329
        %v2360 = vrot.slane %v2359, 4
        %v2361 = vadd.f32 %v2359, %v2360
        %v2362 = vrot.slane %v2361, 2
        %v2363 = vadd.f32 %v2361, %v2362
        %v2364 = vrot.slane %v2363, 1
        %v2365 = vadd.f32 %v2363, %v2364
        %v2366 = vadd.f32 %v2330, %v2332
        %v2367 = vrot.slane %v2366, 4
        %v2368 = vadd.f32 %v2366, %v2367
        %v2369 = vrot.slane %v2368, 2
        %v2370 = vadd.f32 %v2368, %v2369
        %v2371 = vrot.slane %v2370, 1
        %v2372 = vadd.f32 %v2370, %v2371
        %v2373 = vadd.f32 %v2331, %v2333
        %v2374 = vrot.slane %v2373, 4
        %v2375 = vadd.f32 %v2373, %v2374
        %v2376 = vrot.slane %v2375, 2
        %v2377 = vadd.f32 %v2375, %v2376
        %v2378 = vrot.slane %v2377, 1
        %v2379 = vadd.f32 %v2377, %v2378
        %v2380 = vadd.f32 %v2334, %v2336
        %v2381 = vrot.slane %v2380, 4
        %v2382 = vadd.f32 %v2380, %v2381
        %v2383 = vrot.slane %v2382, 2
        %v2384 = vadd.f32 %v2382, %v2383
        %v2385 = vrot.slane %v2384, 1
        %v2386 = vadd.f32 %v2384, %v2385
        %v2387 = vadd.f32 %v2335, %v2337
        %v2388 = vrot.slane %v2387, 4
        %v2389 = vadd.f32 %v2387, %v2388
        %v2390 = vrot.slane %v2389, 2
        %v2391 = vadd.f32 %v2389, %v2390
        %v2392 = vrot.slane %v2391, 1
        %v2393 = vadd.f32 %v2391, %v2392
        %v2394 = vmul.f32 %v2272, %v277
        %v2395 = vmul.f32 %v2279, %v278
        %v2396 = vmul.f32 %v2286, %v277
        %v2397 = vmul.f32 %v2293, %v278
        %v2398 = vmul.f32 %v2300, %v277
        %v2399 = vmul.f32 %v2307, %v278
        %v2400 = vmul.f32 %v2314, %v277
        %v2401 = vmul.f32 %v2321, %v278
        %v2402 = vsel %vm1239, %v2394, 0.0
        %v2403 = vsel %vm1239, %v2395, 0.0
        %v2404 = vadd.f32 %v2402, %v2403
        %2405 = vadd.xlane.f32.xlu0 %v2404
        %v2406 = vpop.xlane.xlu0 %2405
        %v2407 = vsel %vm1239, %v2396, 0.0
        %v2408 = vsel %vm1239, %v2397, 0.0
        %v2409 = vadd.f32 %v2407, %v2408
        %2410 = vadd.xlane.f32.xlu0 %v2409
        %v2411 = vpop.xlane.xlu0 %2410
        %v2412 = vsel %vm1239, %v2398, 0.0
        %v2413 = vsel %vm1239, %v2399, 0.0
        %v2414 = vadd.f32 %v2412, %v2413
        %2415 = vadd.xlane.f32.xlu0 %v2414
        %v2416 = vpop.xlane.xlu0 %2415
        %v2417 = vsel %vm1239, %v2400, 0.0
        %v2418 = vsel %vm1239, %v2401, 0.0
        %v2419 = vadd.f32 %v2417, %v2418
        %2420 = vadd.xlane.f32.xlu0 %v2419
        %v2421 = vpop.xlane.xlu0 %2420
        %v2422 = vmul.f32 %v2344, %v277
        %v2423 = vmul.f32 %v2351, %v278
        %v2424 = vmul.f32 %v2358, %v277
        %v2425 = vmul.f32 %v2365, %v278
        %v2426 = vmul.f32 %v2372, %v277
        %v2427 = vmul.f32 %v2379, %v278
        %v2428 = vmul.f32 %v2386, %v277
        %v2429 = vmul.f32 %v2393, %v278
        %v2430 = vsel %vm1239, %v2422, 0.0
        %v2431 = vsel %vm1239, %v2423, 0.0
        %v2432 = vadd.f32 %v2430, %v2431
        %2433 = vadd.xlane.f32.xlu0 %v2432
        %v2434 = vpop.xlane.xlu0 %2433
        %v2435 = vsel %vm1239, %v2424, 0.0
        %v2436 = vsel %vm1239, %v2425, 0.0
        %v2437 = vadd.f32 %v2435, %v2436
        %2438 = vadd.xlane.f32.xlu0 %v2437
        %v2439 = vpop.xlane.xlu0 %2438
        %v2440 = vsel %vm1239, %v2426, 0.0
        %v2441 = vsel %vm1239, %v2427, 0.0
        %v2442 = vadd.f32 %v2440, %v2441
        %2443 = vadd.xlane.f32.xlu0 %v2442
        %v2444 = vpop.xlane.xlu0 %2443
        %v2445 = vsel %vm1239, %v2428, 0.0
        %v2446 = vsel %vm1239, %v2429, 0.0
        %v2447 = vadd.f32 %v2445, %v2446
        %2448 = vadd.xlane.f32.xlu0 %v2447
        %v2449 = vpop.xlane.xlu0 %2448
        %v2450 = vmul.f32 %v2406, 0.00048828125
        %v2451 = vmul.f32 %v2411, 0.00048828125
        %v2452 = vmul.f32 %v2416, 0.00048828125
        %v2453 = vmul.f32 %v2421, 0.00048828125
        %v2454 = vmul.f32 %v2434, 0.00048828125
        %v2455 = vmul.f32 %v2439, 0.00048828125
        %v2456 = vmul.f32 %v2444, 0.00048828125
        %v2457 = vmul.f32 %v2449, 0.00048828125
        %v2458 = vmul.f32 %v2450, %v2450
        %v2459 = vmul.f32 %v2451, %v2451
        %v2460 = vmul.f32 %v2452, %v2452
        %v2461 = vmul.f32 %v2453, %v2453
        %v2462 = vsub.f32 %v2454, %v2458
        %v2463 = vsub.f32 %v2455, %v2459
        %v2464 = vsub.f32 %v2456, %v2460
        %v2465 = vsub.f32 %v2457, %v2461
        %v2466 = vmax.f32 %v2462, 0.0
        %v2467 = vmax.f32 %v2463, 0.0
        %v2468 = vmax.f32 %v2464, 0.0
        %v2469 = vmax.f32 %v2465, 0.0
        %v2470 = vmul.f32 %v277, %v2450
        %v2471 = vmul.f32 %v278, %v2450
        %v2472 = vmul.f32 %v277, %v2451
        %v2473 = vmul.f32 %v278, %v2451
        %v2474 = vmul.f32 %v277, %v2452
        %v2475 = vmul.f32 %v278, %v2452
        %v2476 = vmul.f32 %v277, %v2453
        %v2477 = vmul.f32 %v278, %v2453
        %v2486 = vrot.slane %v2470, 6
        %v2487 = vrot.slane %v2471, 6
        %v2488 = vrot.slane %v2472, 6
        %v2489 = vrot.slane %v2473, 6
        %v2490 = vrot.slane %v2474, 6
        %v2491 = vrot.slane %v2475, 6
        %v2492 = vrot.slane %v2476, 6
        %v2493 = vrot.slane %v2477, 6
        %v2502 = vsel %vm1340, %v2486, 0.0
        %v2503 = vrot.slane %v2502, 4
        %v2504 = vadd.f32 %v2502, %v2503
        %v2505 = vrot.slane %v2504, 2
        %v2506 = vadd.f32 %v2504, %v2505
        %v2507 = vrot.slane %v2506, 1
        %v2508 = vadd.f32 %v2506, %v2507
        %v2509 = vsel %vm1340, %v2487, 0.0
        %v2510 = vrot.slane %v2509, 4
        %v2511 = vadd.f32 %v2509, %v2510
        %v2512 = vrot.slane %v2511, 2
        %v2513 = vadd.f32 %v2511, %v2512
        %v2514 = vrot.slane %v2513, 1
        %v2515 = vadd.f32 %v2513, %v2514
        %v2516 = vsel %vm1340, %v2488, 0.0
        %v2517 = vrot.slane %v2516, 4
        %v2518 = vadd.f32 %v2516, %v2517
        %v2519 = vrot.slane %v2518, 2
        %v2520 = vadd.f32 %v2518, %v2519
        %v2521 = vrot.slane %v2520, 1
        %v2522 = vadd.f32 %v2520, %v2521
        %v2523 = vsel %vm1340, %v2489, 0.0
        %v2524 = vrot.slane %v2523, 4
        %v2525 = vadd.f32 %v2523, %v2524
        %v2526 = vrot.slane %v2525, 2
        %v2527 = vadd.f32 %v2525, %v2526
        %v2528 = vrot.slane %v2527, 1
        %v2529 = vadd.f32 %v2527, %v2528
        %v2530 = vsel %vm1340, %v2490, 0.0
        %v2531 = vrot.slane %v2530, 4
        %v2532 = vadd.f32 %v2530, %v2531
        %v2533 = vrot.slane %v2532, 2
        %v2534 = vadd.f32 %v2532, %v2533
        %v2535 = vrot.slane %v2534, 1
        %v2536 = vadd.f32 %v2534, %v2535
        %v2537 = vsel %vm1340, %v2491, 0.0
        %v2538 = vrot.slane %v2537, 4
        %v2539 = vadd.f32 %v2537, %v2538
        %v2540 = vrot.slane %v2539, 2
        %v2541 = vadd.f32 %v2539, %v2540
        %v2542 = vrot.slane %v2541, 1
        %v2543 = vadd.f32 %v2541, %v2542
        %v2544 = vsel %vm1340, %v2492, 0.0
        %v2545 = vrot.slane %v2544, 4
        %v2546 = vadd.f32 %v2544, %v2545
        %v2547 = vrot.slane %v2546, 2
        %v2548 = vadd.f32 %v2546, %v2547
        %v2549 = vrot.slane %v2548, 1
        %v2550 = vadd.f32 %v2548, %v2549
        %v2551 = vsel %vm1340, %v2493, 0.0
        %v2552 = vrot.slane %v2551, 4
        %v2553 = vadd.f32 %v2551, %v2552
        %v2554 = vrot.slane %v2553, 2
        %v2555 = vadd.f32 %v2553, %v2554
        %v2556 = vrot.slane %v2555, 1
        %v2557 = vadd.f32 %v2555, %v2556
        %v2558 = vmul.f32 %v277, %v2466
        %v2559 = vmul.f32 %v278, %v2466
        %v2560 = vmul.f32 %v277, %v2467
        %v2561 = vmul.f32 %v278, %v2467
        %v2562 = vmul.f32 %v277, %v2468
        %v2563 = vmul.f32 %v278, %v2468
        %v2564 = vmul.f32 %v277, %v2469
        %v2565 = vmul.f32 %v278, %v2469
        %v2574 = vrot.slane %v2558, 6
        %v2575 = vrot.slane %v2559, 6
        %v2576 = vrot.slane %v2560, 6
        %v2577 = vrot.slane %v2561, 6
        %v2578 = vrot.slane %v2562, 6
        %v2579 = vrot.slane %v2563, 6
        %v2580 = vrot.slane %v2564, 6
        %v2581 = vrot.slane %v2565, 6
        %v2590 = vsel %vm1340, %v2574, 0.0
        %v2591 = vrot.slane %v2590, 4
        %v2592 = vadd.f32 %v2590, %v2591
        %v2593 = vrot.slane %v2592, 2
        %v2594 = vadd.f32 %v2592, %v2593
        %v2595 = vrot.slane %v2594, 1
        %v2596 = vadd.f32 %v2594, %v2595
        %v2597 = vsel %vm1340, %v2575, 0.0
        %v2598 = vrot.slane %v2597, 4
        %v2599 = vadd.f32 %v2597, %v2598
        %v2600 = vrot.slane %v2599, 2
        %v2601 = vadd.f32 %v2599, %v2600
        %v2602 = vrot.slane %v2601, 1
        %v2603 = vadd.f32 %v2601, %v2602
        %v2604 = vsel %vm1340, %v2576, 0.0
        %v2605 = vrot.slane %v2604, 4
        %v2606 = vadd.f32 %v2604, %v2605
        %v2607 = vrot.slane %v2606, 2
        %v2608 = vadd.f32 %v2606, %v2607
        %v2609 = vrot.slane %v2608, 1
        %v2610 = vadd.f32 %v2608, %v2609
        %v2611 = vsel %vm1340, %v2577, 0.0
        %v2612 = vrot.slane %v2611, 4
        %v2613 = vadd.f32 %v2611, %v2612
        %v2614 = vrot.slane %v2613, 2
        %v2615 = vadd.f32 %v2613, %v2614
        %v2616 = vrot.slane %v2615, 1
        %v2617 = vadd.f32 %v2615, %v2616
        %v2618 = vsel %vm1340, %v2578, 0.0
        %v2619 = vrot.slane %v2618, 4
        %v2620 = vadd.f32 %v2618, %v2619
        %v2621 = vrot.slane %v2620, 2
        %v2622 = vadd.f32 %v2620, %v2621
        %v2623 = vrot.slane %v2622, 1
        %v2624 = vadd.f32 %v2622, %v2623
        %v2625 = vsel %vm1340, %v2579, 0.0
        %v2626 = vrot.slane %v2625, 4
        %v2627 = vadd.f32 %v2625, %v2626
        %v2628 = vrot.slane %v2627, 2
        %v2629 = vadd.f32 %v2627, %v2628
        %v2630 = vrot.slane %v2629, 1
        %v2631 = vadd.f32 %v2629, %v2630
        %v2632 = vsel %vm1340, %v2580, 0.0
        %v2633 = vrot.slane %v2632, 4
        %v2634 = vadd.f32 %v2632, %v2633
        %v2635 = vrot.slane %v2634, 2
        %v2636 = vadd.f32 %v2634, %v2635
        %v2637 = vrot.slane %v2636, 1
        %v2638 = vadd.f32 %v2636, %v2637
        %v2639 = vsel %vm1340, %v2581, 0.0
        %v2640 = vrot.slane %v2639, 4
        %v2641 = vadd.f32 %v2639, %v2640
        %v2642 = vrot.slane %v2641, 2
        %v2643 = vadd.f32 %v2641, %v2642
        %v2644 = vrot.slane %v2643, 1
        %v2645 = vadd.f32 %v2643, %v2644
        %v2646 = vadd.f32 %v2596, 1e-05
        %v2647 = vadd.f32 %v2603, 1e-05
        %v2648 = vadd.f32 %v2610, 1e-05
        %v2649 = vadd.f32 %v2617, 1e-05
        %v2650 = vadd.f32 %v2624, 1e-05
        %v2651 = vadd.f32 %v2631, 1e-05
        %v2652 = vadd.f32 %v2638, 1e-05
        %v2653 = vadd.f32 %v2645, 1e-05
        %v2654 = vrsqrt.pop %v2646
        %v2655 = vrsqrt.pop %v2647
        %v2656 = vrsqrt.pop %v2648
        %v2657 = vrsqrt.pop %v2649
        %v2658 = vrsqrt.pop %v2650
        %v2659 = vrsqrt.pop %v2651
        %v2660 = vrsqrt.pop %v2652
        %v2661 = vrsqrt.pop %v2653
        %v2662 = vsub.f32 %v2250, %v2508
        %v2663 = vsub.f32 %v2251, %v2515
        %v2664 = vsub.f32 %v2252, %v2508
        %v2665 = vsub.f32 %v2253, %v2515
        %v2666 = vsub.f32 %v2254, %v2522
        %v2667 = vsub.f32 %v2255, %v2529
        %v2668 = vsub.f32 %v2256, %v2522
        %v2669 = vsub.f32 %v2257, %v2529
        %v2670 = vsub.f32 %v2258, %v2536
        %v2671 = vsub.f32 %v2259, %v2543
        %v2672 = vsub.f32 %v2260, %v2536
        %v2673 = vsub.f32 %v2261, %v2543
        %v2674 = vsub.f32 %v2262, %v2550
        %v2675 = vsub.f32 %v2263, %v2557
        %v2676 = vsub.f32 %v2264, %v2550
        %v2677 = vsub.f32 %v2265, %v2557
        %v2678 = vmul.f32 %v2662, %v2654
        %v2679 = vmul.f32 %v2663, %v2655
        %v2680 = vmul.f32 %v2664, %v2654
        %v2681 = vmul.f32 %v2665, %v2655
        %v2682 = vmul.f32 %v2666, %v2656
        %v2683 = vmul.f32 %v2667, %v2657
        %v2684 = vmul.f32 %v2668, %v2656
        %v2685 = vmul.f32 %v2669, %v2657
        %v2686 = vmul.f32 %v2670, %v2658
        %v2687 = vmul.f32 %v2671, %v2659
        %v2688 = vmul.f32 %v2672, %v2658
        %v2689 = vmul.f32 %v2673, %v2659
        %v2690 = vmul.f32 %v2674, %v2660
        %v2691 = vmul.f32 %v2675, %v2661
        %v2692 = vmul.f32 %v2676, %v2660
        %v2693 = vmul.f32 %v2677, %v2661
        %v2694 = vlaneseq
        %v2695 = vshrl.u32 %v2694, 7
        %v2696 = vsub.s32 4, %v2695
        %v2697 = vrot.slane %v277, %v2696
        %v2698 = vlaneseq
        %v2699 = vshrl.u32 %v2698, 7
        %v2700 = vsub.s32 4, %v2699
        %v2701 = vrot.slane %v278, %v2700
        %v2702 = vmul.f32 %v2678, %v2697
        %v2703 = vmul.f32 %v2679, %v2701
        %v2704 = vmul.f32 %v2680, %v2697
        %v2705 = vmul.f32 %v2681, %v2701
        %v2706 = vmul.f32 %v2682, %v2697
        %v2707 = vmul.f32 %v2683, %v2701
        %v2708 = vmul.f32 %v2684, %v2697
        %v2709 = vmul.f32 %v2685, %v2701
        %v2710 = vmul.f32 %v2686, %v2697
        %v2711 = vmul.f32 %v2687, %v2701
        %v2712 = vmul.f32 %v2688, %v2697
        %v2713 = vmul.f32 %v2689, %v2701
        %v2714 = vmul.f32 %v2690, %v2697
        %v2715 = vmul.f32 %v2691, %v2701
        %v2716 = vmul.f32 %v2692, %v2697
        %v2717 = vmul.f32 %v2693, %v2701
        %v2718 = vlaneseq
        %v2719 = vshrl.u32 %v2718, 7
        %v2720 = vsub.s32 5, %v2719
        %v2721 = vrot.slane %v277, %v2720
        %v2722 = vlaneseq
        %v2723 = vshrl.u32 %v2722, 7
        %v2724 = vsub.s32 5, %v2723
        %v2725 = vrot.slane %v278, %v2724
        %v2726 = vadd.f32 %v2702, %v2721
        %v2727 = vadd.f32 %v2703, %v2725
        %v2728 = vadd.f32 %v2704, %v2721
        %v2729 = vadd.f32 %v2705, %v2725
        %v2730 = vadd.f32 %v2706, %v2721
        %v2731 = vadd.f32 %v2707, %v2725
        %v2732 = vadd.f32 %v2708, %v2721
        %v2733 = vadd.f32 %v2709, %v2725
        %v2734 = vadd.f32 %v2710, %v2721
        %v2735 = vadd.f32 %v2711, %v2725
        %v2736 = vadd.f32 %v2712, %v2721
        %v2737 = vadd.f32 %v2713, %v2725
        %v2738 = vadd.f32 %v2714, %v2721
        %v2739 = vadd.f32 %v2715, %v2725
        %v2740 = vadd.f32 %v2716, %v2721
        %v2741 = vadd.f32 %v2717, %v2725
        %v2742 = vmax.f32 %v2726, 0.0
        %v2743 = vmax.f32 %v2727, 0.0
        %v2744 = vmax.f32 %v2728, 0.0
        %v2745 = vmax.f32 %v2729, 0.0
        %v2746 = vmax.f32 %v2730, 0.0
        %v2747 = vmax.f32 %v2731, 0.0
        %v2748 = vmax.f32 %v2732, 0.0
        %v2749 = vmax.f32 %v2733, 0.0
        %v2750 = vmax.f32 %v2734, 0.0
        %v2751 = vmax.f32 %v2735, 0.0
        %v2752 = vmax.f32 %v2736, 0.0
        %v2753 = vmax.f32 %v2737, 0.0
        %v2754 = vmax.f32 %v2738, 0.0
        %v2755 = vmax.f32 %v2739, 0.0
        %v2756 = vmax.f32 %v2740, 0.0
        %v2757 = vmax.f32 %v2741, 0.0
        %v2758 = vadd.f32 %v261, %v2742
        %v2759 = vadd.f32 %v262, %v2743
        %v2760 = vadd.f32 %v263, %v2744
        %v2761 = vadd.f32 %v264, %v2745
        %v2762 = vadd.f32 %v265, %v2746
        %v2763 = vadd.f32 %v266, %v2747
        %v2764 = vadd.f32 %v267, %v2748
        %v2765 = vadd.f32 %v268, %v2749
        %v2766 = vadd.f32 %v269, %v2750
        %v2767 = vadd.f32 %v270, %v2751
        %v2768 = vadd.f32 %v271, %v2752
        %v2769 = vadd.f32 %v272, %v2753
        %v2770 = vadd.f32 %v273, %v2754
        %v2771 = vadd.f32 %v274, %v2755
        %v2772 = vadd.f32 %v275, %v2756
        %v2773 = vadd.f32 %v276, %v2757
        %v2774 = vmax.f32 %v2758, 0.0
        %v2775 = vmax.f32 %v2759, 0.0
        %v2776 = vmax.f32 %v2760, 0.0
        %v2777 = vmax.f32 %v2761, 0.0
        %v2778 = vmax.f32 %v2762, 0.0
        %v2779 = vmax.f32 %v2763, 0.0
        %v2780 = vmax.f32 %v2764, 0.0
        %v2781 = vmax.f32 %v2765, 0.0
        %v2782 = vmax.f32 %v2766, 0.0
        %v2783 = vmax.f32 %v2767, 0.0
        %v2784 = vmax.f32 %v2768, 0.0
        %v2785 = vmax.f32 %v2769, 0.0
        %v2786 = vmax.f32 %v2770, 0.0
        %v2787 = vmax.f32 %v2771, 0.0
        %v2788 = vmax.f32 %v2772, 0.0
        %v2789 = vmax.f32 %v2773, 0.0
        %2790 = vst [vmem:[%s258] sm:$0xff] %v2774
        %2791 = vst [vmem:[%s258 + $0x8] sm:$0xff] %v2775
        %2792 = vst [vmem:[%s258 + $0x10] sm:$0xff] %v2776
        %2793 = vst [vmem:[%s258 + $0x18] sm:$0xff] %v2777
        %2794 = vst [vmem:[%s258 + $0x20] sm:$0xff] %v2778
        %2795 = vst [vmem:[%s258 + $0x28] sm:$0xff] %v2779
        %2796 = vst [vmem:[%s258 + $0x30] sm:$0xff] %v2780
        %2797 = vst [vmem:[%s258 + $0x38] sm:$0xff] %v2781
        %2798 = vst [vmem:[%s258 + $0x40] sm:$0xff] %v2782
        %2799 = vst [vmem:[%s258 + $0x48] sm:$0xff] %v2783
        %2800 = vst [vmem:[%s258 + $0x50] sm:$0xff] %v2784
        %2801 = vst [vmem:[%s258 + $0x58] sm:$0xff] %v2785
        %2802 = vst [vmem:[%s258 + $0x60] sm:$0xff] %v2786
        %2803 = vst [vmem:[%s258 + $0x68] sm:$0xff] %v2787
        %2804 = vst [vmem:[%s258 + $0x70] sm:$0xff] %v2788
        %2805 = vst [vmem:[%s258 + $0x78] sm:$0xff] %v2789
        %s2806 = sand.u32 %s120, 1
        %s2807 = scalar_lea.sflag [#allocation4], %s2806
        %s2808 = sand.u32 %s120, 1
        %s2809 = smul.addr %s2808, 128
        %s2810 = scalar_lea.vmem [#allocation10], %s2809
        // Predicated region
        $region53: #{tpu_custom_call.1} parent=35 // pred_check
          %p2811 = pneg %p130
        $region54: #{tpu_custom_call.1} parent=35 // pred_check_branch
          %2813 = sbr.rel (%p2811) target = $region56
        $region55: #{tpu_custom_call.1} parent=35 // pred_region
          %s2814 = smul.u32 4, %s23
          %s2816 = ssub.s32 2048, 2048
          %2817 = vsyncadd %s2807, %s2816
          %s2818 = smul.addr %s2814, 4
          %s2819 = smul.addr %s2818, 128
          %s2820 = scalar_lea.hbm %s4, %s2819
          %s2821 = sshll.u32 %s2810, 4
          %s2822 = int_to_ptr.vmem [resolvable:$true] %s2821
          %2827 = dma.vmem_to_hbm [thread:$0]  %s2822, 2048, %s2820, %s2807, 256, 256, 16
        $region56: #{tpu_custom_call.1} parent=35 // pred_fallthru
          _
      $region36: #{tpu_custom_call.1} parent=5 // pred_fallthru
        _
      %p2828 = scmp.le.s32.totalorder 2, %s18
      // Predicated region
      $region57: #{tpu_custom_call.1} parent=5 // pred_check
        %p2829 = pneg %p2828
      $region58: #{tpu_custom_call.1} parent=5 // pred_check_branch
        %2831 = sbr.rel (%p2829) target = $region60
      $region59: #{tpu_custom_call.1} parent=5 // pred_region
        %s2832 = ssub.s32 %s18, 2
        // Predicated region
        $region61: #{tpu_custom_call.1} parent=59 // pred_check
          %p2833 = pneg %p136
        $region62: #{tpu_custom_call.1} parent=59 // pred_check_branch
          %2835 = sbr.rel (%p2833) target = $region64
        $region63: #{tpu_custom_call.1} parent=59 // pred_region
          %s2836 = sand.u32 %s121, 1
          %s2837 = scalar_lea.sflag [#allocation4], %s2836
          %s2838 = sand.u32 %s121, 1
          %s2839 = smul.addr %s2838, 128
          %s2840 = scalar_lea.vmem [#allocation10], %s2839
          %2841 = dma.done %s2837, 2048
        $region64: #{tpu_custom_call.1} parent=59 // pred_fallthru
          _
      $region60: #{tpu_custom_call.1} parent=5 // pred_fallthru
        _
    $region6: #{tpu_custom_call.1} parent=1 // loop_footer
      %s22 = sadd.s32 1, %s18
    $region7: #{tpu_custom_call.1} parent=1 // loop_footer_branch
      %17 = sbr.rel target = $region3
    $region8: #{tpu_custom_call.1} parent=1 // loop_exit
      _
    %2842 = vsyncpa [#allocation3], 1
    %s2843 = scalar_lea.sflag [#allocation3], 1
    %2844 = vsyncpa %s2843, 1
    %2845 = vsyncpa [#allocation6], 1
    %2846 = vsyncpa [#allocation9], 1
    %2847 = vsyncpa [#allocation4], 1
    %s2848 = scalar_lea.sflag [#allocation4], 1
    %2849 = vsyncpa %s2848, 1

</llo_original>
